<compile_context>
chip_gen: v6e
topology: v6e:2x2x1
jax: 0.10.0
libtpu: 0.0.40
codegen_flags: <defaults>
</compile_context>

<pallas_src>
import math

import jax
import jax.numpy as jnp
import numpy as np
from jax import lax
from jax.experimental import pallas as pl
from jax.experimental.pallas import tpu as pltpu

K0, P0 = 7, 3            # conv0: 7x7 depthwise, padding 3
K1, D1, P1 = 9, 4, 16    # conv_spatial: 9x9 depthwise, dilation 4, padding 16
PCOL = 16                # column padding of the flat row layout (= P1)
HALO = P1 + P0           # 19 rows of x halo needed above/below a row block
PT = HALO + 1            # 20: top pad rows of x (1 slack row for column wrap)
MAX_UNROLL_STRIPS = 8    # strip loops longer than this use lax.fori_loop
VREG_BUDGET = 24         # target vregs for one strip accumulator (C, sr*Wp)


def _build_kernel(*, C, H, W, R, Wp, sr1, sr2, use_mxu):
    LXB = (R + 2 * PT) * Wp        # x slab / block: padded rows [r0, r0+R+40)
    LSC = (R + 2 * P1 + 1) * Wp    # conv0-out scratch: R+32 halo rows + 1 slack
    NROWS1 = R + 2 * P1            # conv0-out rows computed per block
    GX0 = PT * Wp + PCOL           # x-slab offset of output pixel (i=0, j=0)
    m_row = math.gcd(Wp, 128)

    def _lane_tables(rs):
        # Per-lane (local row, column-valid) tables for a strip of rs rows.
        ln = rs * Wp
        io = lax.broadcasted_iota(jnp.int32, (1, ln), 1).astype(jnp.float32)
        row = jnp.floor((io + 0.5) * (1.0 / Wp))        # exact for these ranges
        col = io - row * Wp
        colmask = (col > (PCOL - 0.5)) & (col < (W + PCOL - 0.5))
        return row, colmask

    def _hint(idx, m):
        if m > 1 and not isinstance(idx, (int, np.integer)):
            return pl.multiple_of(idx, m)
        return idx

    def _foreach_strip(total_rows, sr, body):
        # body(ts, rs): ts = first row of the strip (static or traced), rs static.
        nf, rem = divmod(total_rows, sr)
        if nf <= MAX_UNROLL_STRIPS:
            for s in range(nf):
                body(s * sr, sr)
        else:
            def loop_body(s, carry):
                body(s * sr, sr)
                return carry
            lax.fori_loop(0, nf, loop_body, 0)
        if rem:
            body(nf * sr, rem)

    def kernel(x_hbm, w0_ref, b0_ref, w1_ref, b1_ref, w2_ref, b2_ref,
               o_ref, xbuf, scr, sem):
        n = pl.program_id(0)
        rb = pl.program_id(1)
        r0 = rb * R                                   # output rows [r0, r0+R)

        # ---- fetch this block's halo'd x slab (rows r0-20 .. r0+R+19 of x) ----
        # TODO(synk): double-buffer this copy across grid steps to hide latency.
        cp = pltpu.make_async_copy(
            x_hbm.at[n, :, pl.ds(r0 * Wp, LXB)], xbuf, sem)
        cp.start()

        # x-independent work while the DMA is in flight (hoisted out of loops).
        w0v = w0_ref[...]; b0v = b0_ref[...]
        w1v = w1_ref[...]; b1v = b1_ref[...]
        w2v = w2_ref[...]; b2v = b2_ref[...]
        w2cols = None if use_mxu else [w2v[:, c:c + 1] for c in range(C)]
        scr[:, NROWS1 * Wp:LSC] = jnp.zeros((C, Wp), jnp.float32)  # slack row
        r0f = r0.astype(jnp.float32)

        tabs = {sr1: _lane_tables(sr1)}
        rem1 = NROWS1 % sr1
        if rem1:
            tabs[rem1] = _lane_tables(rem1)

        cp.wait()

        # ---- phase 1: depthwise 7x7 (+b0) for rows [r0-16, r0+R+16) ----------
        def p1_strip(ts, rs):
            ln = rs * Wp
            row_loc, colmask = tabs[rs]
            acc = jnp.zeros((C, ln), jnp.float32)
            for ki in range(K0):
                start = (ts + ki + 1) * Wp - P0            # one slab per tap row
                slab = xbuf[:, pl.ds(start, ln + (K0 - 1))]
                for kj in range(K0):
                    w = w0v[:, ki * K0 + kj:ki * K0 + kj + 1]
                    acc = acc + slab[:, kj:kj + ln] * w    # in-register shift
            # zero everything outside the real image (conv_spatial zero-padding)
            tsf = jnp.asarray(ts).astype(jnp.float32)
            t_abs = row_loc + tsf
            rowmask = (t_abs > (P1 - 0.5 - r0f)) & (t_abs < (H + P1 - 0.5 - r0f))
            scr[:, pl.ds(_hint(ts * Wp, m_row), ln)] = jnp.where(
                rowmask & colmask, acc + b0v, 0.0)

        _foreach_strip(NROWS1, sr1, p1_strip)

        # ---- phase 2: dilated 9x9 (+b1), 1x1 (+b2), gate by u = x -------------
        def p2_strip(ts, rs):
            ln = rs * Wp
            acc = jnp.zeros((C, ln), jnp.float32)
            for ki in range(K1):
                start = (ts + D1 * ki) * Wp
                slab = scr[:, pl.ds(_hint(start, m_row), ln + D1 * (K1 - 1))]
                for kj in range(K1):
                    w = w1v[:, ki * K1 + kj:ki * K1 + kj + 1]
                    acc = acc + slab[:, D1 * kj:D1 * kj + ln] * w
            a1 = acc + b1v
            if use_mxu:
                # TODO(synk): cast a1/w2 to bf16 for a single-pass MXU matmul on
                # v6e/v7x once the accuracy budget allows it.
                attn = jnp.dot(w2v, a1, preferred_element_type=jnp.float32)
            else:
                attn = w2cols[0] * a1[0:1, :]
                for c in range(1, C):
                    attn = attn + w2cols[c] * a1[c:c + 1, :]
            attn = attn + b2v
            xg = xbuf[:, pl.ds(_hint(GX0 + ts * Wp, math.gcd(m_row, PCOL)), ln)]
            o_ref[0, :, pl.ds(_hint(ts * Wp, m_row), ln)] = \
                (xg * attn).astype(o_ref.dtype)

        _foreach_strip(R, sr2, p2_strip)

    return kernel, LXB, LSC


def lka_pallas(x_nchw, params, *, block_rows=None):
    N, C, H, W = map(int, x_nchw.shape)
    Wp = W + 2 * PCOL
    # Row-block granularity that keeps the output blocks 128-lane aligned.
    align = 128 // math.gcd(Wp, 128)

    # ---- pick R (rows per halo'd spatial block) ------------------------------
    if block_rows is None:
        per_row = 2 * C * Wp * 4                       # x slab + conv0 scratch
        R = int((6 * 2 ** 20) // max(per_row, 1)) - 2 * PT
        R = max(align, min(max(R, align), 256))
    else:
        R = max(1, int(block_rows))
    R = -(-R // align) * align
    if R >= H:
        R, nblk = H, 1
    else:
        nblk = -(-H // R)
    H_grid = nblk * R

    # ---- C-aware strip size: acc (C, sr*Wp) stays within ~VREG_BUDGET vregs ---
    cp8 = -(-C // 8) * 8
    sr = max(1, (VREG_BUDGET * 8 * 128) // (Wp * cp8))
    sr1 = max(1, min(sr, R + 2 * P1))
    sr2 = max(1, min(sr, R))

    use_mxu = C >= 8
    kernel, LXB, LSC = _build_kernel(C=C, H=H, W=W, R=R, Wp=Wp,
                                     sr1=sr1, sr2=sr2, use_mxu=use_mxu)

    # ---- wrapper-side layout plumbing: pad + flatten rows (lane-dense) --------
    # TODO(synk): keep x (and the conv0 scratch) in bf16 on v6e/v7x to halve the
    # dominant VMEM/HBM consumers once the accuracy budget allows it.
    PB = H_grid - H + PT
    xf = x_nchw.astype(jnp.float32)
    x_pad = jnp.pad(xf, ((0, 0), (0, 0), (PT, PB), (PCOL, PCOL)))
    LX = (H_grid + 2 * PT) * Wp
    x_flat = x_pad.reshape(N, C, LX)

    w0 = params["w0"].reshape(C, K0 * K0).astype(jnp.float32)
    b0 = params["b0"].reshape(C, 1).astype(jnp.float32)
    w1 = params["w1"].reshape(C, K1 * K1).astype(jnp.float32)
    b1 = params["b1"].reshape(C, 1).astype(jnp.float32)
    w2 = params["w2"][:, :, 0, 0].astype(jnp.float32)           # (C_out, C_in)
    b2 = params["b2"].reshape(C, 1).astype(jnp.float32)

    # VMEM budget (x slab + scratch + double-buffered out block + weights).
    est = 4 * (C * LXB + C * LSC + 2 * C * R * Wp
               + 2 * C * (K0 * K0 + K1 * K1 + C + 3))
    vlim = int(min(96 * 2 ** 20, max(32 * 2 ** 20, 2 * est)))

    rep = lambda n, rb: (0, 0)
    out_flat = pl.pallas_call(
        kernel,
        out_shape=jax.ShapeDtypeStruct((N, C, H_grid * Wp), jnp.float32),
        grid_spec=pltpu.PrefetchScalarGridSpec(
            num_scalar_prefetch=0,
            grid=(N, nblk),
            in_specs=[
                pl.BlockSpec(memory_space=pl.ANY),   # x stays in HBM; DMA per block
                pl.BlockSpec((C, K0 * K0), rep),
                pl.BlockSpec((C, 1), rep),
                pl.BlockSpec((C, K1 * K1), rep),
                pl.BlockSpec((C, 1), rep),
                pl.BlockSpec((C, C), rep),
                pl.BlockSpec((C, 1), rep),
            ],
            out_specs=pl.BlockSpec((1, C, R * Wp), lambda n, rb: (n, 0, rb)),
            scratch_shapes=[
                pltpu.VMEM((C, LXB), jnp.float32),   # halo'd x slab
                pltpu.VMEM((C, LSC), jnp.float32),   # conv0 output (halo rows)
                pltpu.SemaphoreType.DMA(()),
            ],
        ),
        compiler_params=pltpu.CompilerParams(
            dimension_semantics=("parallel", "parallel"),
            vmem_limit_bytes=vlim),
    )(x_flat, w0, b0, w1, b1, w2, b2)

    # TODO(synk): skip this unpad slice (a full HBM round trip, costliest on
    # v5e) when the consumer can take the padded (N, C, H_grid, Wp) layout.
    return out_flat.reshape(N, C, H_grid, Wp)[:, :, :H, :W]


def lka_ref(x_nchw, params):
    """Pure-JAX reference (lax convs) matching the PyTorch module."""
    x = jnp.transpose(x_nchw, (0, 2, 3, 1)).astype(jnp.float32)
    C = x.shape[-1]
    dn = ("NHWC", "HWIO", "NHWC")
    w0 = jnp.transpose(params["w0"], (2, 3, 1, 0))                    # (7,7,1,C)
    a = jax.lax.conv_general_dilated(x, w0, (1, 1), [(P0, P0), (P0, P0)],
                                     dimension_numbers=dn,
                                     feature_group_count=C)
    a = a + params["b0"].reshape(1, 1, 1, C)
    w1 = jnp.transpose(params["w1"], (2, 3, 1, 0))                    # (9,9,1,C)
    a = jax.lax.conv_general_dilated(a, w1, (1, 1), [(P1, P1), (P1, P1)],
                                     rhs_dilation=(D1, D1),
                                     dimension_numbers=dn,
                                     feature_group_count=C)
    a = a + params["b1"].reshape(1, 1, 1, C)
    w2 = jnp.transpose(params["w2"], (2, 3, 1, 0))                    # (1,1,Cin,Cout)
    a = jax.lax.conv_general_dilated(a, w2, (1, 1), [(0, 0), (0, 0)],
                                     dimension_numbers=dn)
    a = a + params["b2"].reshape(1, 1, 1, C)
    return jnp.transpose(x * a, (0, 3, 1, 2))


if __name__ == "__main__":
    key = jax.random.PRNGKey(0)
    N, C, H, W = 2, 4, 16, 16
    ks = jax.random.split(key, 7)
    x = jax.random.normal(ks[0], (N, C, H, W), jnp.float32)
    params = {
        "w0": jax.random.normal(ks[1], (C, 1, K0, K0), jnp.float32) * 0.1,
        "b0": jax.random.normal(ks[2], (C,), jnp.float32) * 0.1,
        "w1": jax.random.normal(ks[3], (C, 1, K1, K1), jnp.float32) * 0.1,
        "b1": jax.random.normal(ks[4], (C,), jnp.float32) * 0.1,
        "w2": jax.random.normal(ks[5], (C, C, 1, 1), jnp.float32) * 0.1,
        "b2": jax.random.normal(ks[6], (C,), jnp.float32) * 0.1,
    }

    # block_rows=8 -> two halo'd row blocks per image, so the single run also
    # exercises the spatial grid split (halo DMA, row masking, block scratch).
    out = jax.block_until_ready(lka_pallas(x, params, block_rows=8))
    ref = jax.block_until_ready(lka_ref(x, params))
    assert out.shape == (N, C, H, W)
    np.testing.assert_allclose(np.asarray(out), np.asarray(ref),
                               rtol=1e-4, atol=1e-4)
    print("KERNEL_OK")
</pallas_src>

<mosaic_0001>
module attributes {stable_mosaic.version = 11 : i64} {
  func.func @kernel(%arg0: i32, %arg1: i32, %arg2: memref<2x4x2688xf32, #tpu.memory_space<any>>, %arg3: memref<4x49xf32, #tpu.memory_space<vmem>>, %arg4: memref<4x1xf32, #tpu.memory_space<vmem>>, %arg5: memref<4x81xf32, #tpu.memory_space<vmem>>, %arg6: memref<4x1xf32, #tpu.memory_space<vmem>>, %arg7: memref<4x4xf32, #tpu.memory_space<vmem>>, %arg8: memref<4x1xf32, #tpu.memory_space<vmem>>, %arg9: memref<1x4x384xf32, #tpu.memory_space<vmem>>, %arg10: memref<4x2304xf32, #tpu.memory_space<vmem>>, %arg11: memref<4x1968xf32, #tpu.memory_space<vmem>>, %arg12: memref<!tpu.dma_semaphore, #tpu.memory_space<semaphore_mem>>) attributes {dimension_semantics = [#tpu.dimension_semantics<parallel>, #tpu.dimension_semantics<parallel>], iteration_bounds = array<i64: 2, 2>, scalar_prefetch = 0 : i64, scratch_operands = 3 : i64, tpu.core_type = #tpu.core_type<tc>, window_params = [{}, {pipeline_mode = #tpu.pipeline_mode<synchronous>, transform_indices = @transform_1, window_bounds = array<i64: 4, 49>}, {pipeline_mode = #tpu.pipeline_mode<synchronous>, transform_indices = @transform_2, window_bounds = array<i64: 4, 1>}, {pipeline_mode = #tpu.pipeline_mode<synchronous>, transform_indices = @transform_3, window_bounds = array<i64: 4, 81>}, {pipeline_mode = #tpu.pipeline_mode<synchronous>, transform_indices = @transform_4, window_bounds = array<i64: 4, 1>}, {pipeline_mode = #tpu.pipeline_mode<synchronous>, transform_indices = @transform_5, window_bounds = array<i64: 4, 4>}, {pipeline_mode = #tpu.pipeline_mode<synchronous>, transform_indices = @transform_6, window_bounds = array<i64: 4, 1>}, {transform_indices = @transform_7, window_bounds = array<i64: 1, 4, 384>}]} {
    %c8_i32 = arith.constant 8 : i32
    %0 = arith.muli %arg1, %c8_i32 : i32
    %c48_i32 = arith.constant 48 : i32
    %1 = arith.muli %0, %c48_i32 : i32
    %c0_i32 = arith.constant 0 : i32
    %2 = tpu.memref_slice %arg2[%arg0, %c0_i32, %1] : memref<2x4x2688xf32, #tpu.memory_space<any>> -> memref<1x4x2304xf32, #tpu.memory_space<any>>
    %3 = tpu.memref_squeeze %2 : memref<1x4x2304xf32, #tpu.memory_space<any>> -> memref<4x2304xf32, #tpu.memory_space<any>>
    tpu.enqueue_dma source(%3 : memref<4x2304xf32, #tpu.memory_space<any>>) target(%arg10 : memref<4x2304xf32, #tpu.memory_space<vmem>>) target_semaphore(%arg12 : memref<!tpu.dma_semaphore, #tpu.memory_space<semaphore_mem>>)
    %c0 = arith.constant 0 : index
    %c0_0 = arith.constant 0 : index
    %4 = vector.load %arg3[%c0, %c0_0] : memref<4x49xf32, #tpu.memory_space<vmem>>, vector<4x49xf32>
    %c0_1 = arith.constant 0 : index
    %c0_2 = arith.constant 0 : index
    %5 = vector.load %arg4[%c0_1, %c0_2] : memref<4x1xf32, #tpu.memory_space<vmem>>, vector<4x1xf32>
    %c0_3 = arith.constant 0 : index
    %c0_4 = arith.constant 0 : index
    %6 = vector.load %arg5[%c0_3, %c0_4] : memref<4x81xf32, #tpu.memory_space<vmem>>, vector<4x81xf32>
    %c0_5 = arith.constant 0 : index
    %c0_6 = arith.constant 0 : index
    %7 = vector.load %arg6[%c0_5, %c0_6] : memref<4x1xf32, #tpu.memory_space<vmem>>, vector<4x1xf32>
    %c0_7 = arith.constant 0 : index
    %c0_8 = arith.constant 0 : index
    %8 = vector.load %arg7[%c0_7, %c0_8] : memref<4x4xf32, #tpu.memory_space<vmem>>, vector<4x4xf32>
    %c0_9 = arith.constant 0 : index
    %c0_10 = arith.constant 0 : index
    %9 = vector.load %arg8[%c0_9, %c0_10] : memref<4x1xf32, #tpu.memory_space<vmem>>, vector<4x1xf32>
    %10 = vector.extract_strided_slice %8 {offsets = [0, 0], sizes = [4, 1], strides = [1, 1]} : vector<4x4xf32> to vector<4x1xf32>
    %11 = vector.extract_strided_slice %8 {offsets = [0, 1], sizes = [4, 1], strides = [1, 1]} : vector<4x4xf32> to vector<4x1xf32>
    %12 = vector.extract_strided_slice %8 {offsets = [0, 2], sizes = [4, 1], strides = [1, 1]} : vector<4x4xf32> to vector<4x1xf32>
    %13 = vector.extract_strided_slice %8 {offsets = [0, 3], sizes = [4, 1], strides = [1, 1]} : vector<4x4xf32> to vector<4x1xf32>
    %cst = arith.constant 0.000000e+00 : f32
    %14 = vector.broadcast %cst : f32 to vector<4x48xf32>
    %c0_11 = arith.constant 0 : index
    %c1920 = arith.constant 1920 : index
    %15 = vector.load %arg11[%c0_11, %c1920] : memref<4x1968xf32, #tpu.memory_space<vmem>>, vector<4x48xf32>
    tpu.vector_store %arg11[%c0_11, %c1920], %14 {strides = array<i32>} : memref<4x1968xf32, #tpu.memory_space<vmem>>, vector<4x48xf32>,
    %16 = arith.sitofp %0 : i32 to f32
    %17 = tpu.iota {dimensions = array<i32: 1>} : vector<1x1920xi32>
    %18 = arith.sitofp %17 : vector<1x1920xi32> to vector<1x1920xf32>
    %cst_12 = arith.constant 5.000000e-01 : f32
    %19 = vector.broadcast %cst_12 : f32 to vector<1x1920xf32>
    %20 = arith.addf %18, %19 : vector<1x1920xf32>
    %cst_13 = arith.constant 0.020833334 : f32
    %21 = vector.broadcast %cst_13 : f32 to vector<1x1920xf32>
    %22 = arith.mulf %20, %21 : vector<1x1920xf32>
    %23 = math.floor %22 : vector<1x1920xf32>
    %cst_14 = arith.constant 4.800000e+01 : f32
    %24 = vector.broadcast %cst_14 : f32 to vector<1x1920xf32>
    %25 = arith.mulf %23, %24 : vector<1x1920xf32>
    %26 = arith.subf %18, %25 : vector<1x1920xf32>
    %cst_15 = arith.constant 1.550000e+01 : f32
    %27 = vector.broadcast %cst_15 : f32 to vector<1x1920xf32>
    %28 = arith.cmpf ogt, %26, %27 : vector<1x1920xf32>
    %cst_16 = arith.constant 3.150000e+01 : f32
    %29 = vector.broadcast %cst_16 : f32 to vector<1x1920xf32>
    %30 = arith.cmpf olt, %26, %29 : vector<1x1920xf32>
    %31 = arith.andi %28, %30 : vector<1x1920xi1>
    %c0_i32_17 = arith.constant 0 : i32
    %32 = tpu.memref_slice %arg2[%arg0, %c0_i32_17, %1] : memref<2x4x2688xf32, #tpu.memory_space<any>> -> memref<1x4x2304xf32, #tpu.memory_space<any>>
    %33 = tpu.memref_squeeze %32 : memref<1x4x2304xf32, #tpu.memory_space<any>> -> memref<4x2304xf32, #tpu.memory_space<any>>
    tpu.wait_dma2 semaphore(%arg12 : memref<!tpu.dma_semaphore, #tpu.memory_space<semaphore_mem>>) src(%33 : memref<4x2304xf32, #tpu.memory_space<any>>) dst(%arg10 : memref<4x2304xf32, #tpu.memory_space<vmem>>)
    %cst_18 = arith.constant 0.000000e+00 : f32
    %34 = vector.broadcast %cst_18 : f32 to vector<4x1920xf32>
    %c0_19 = arith.constant 0 : index
    %c45 = arith.constant 45 : index
    %35 = vector.load %arg10[%c0_19, %c45] : memref<4x2304xf32, #tpu.memory_space<vmem>>, vector<4x1926xf32>
    %36 = vector.extract_strided_slice %4 {offsets = [0, 0], sizes = [4, 1], strides = [1, 1]} : vector<4x49xf32> to vector<4x1xf32>
    %37 = vector.extract_strided_slice %35 {offsets = [0, 0], sizes = [4, 1920], strides = [1, 1]} : vector<4x1926xf32> to vector<4x1920xf32>
    %38 = vector.broadcast %36 : vector<4x1xf32> to vector<4x1920xf32>
    %39 = arith.mulf %37, %38 : vector<4x1920xf32>
    %40 = arith.addf %34, %39 : vector<4x1920xf32>
    %41 = vector.extract_strided_slice %4 {offsets = [0, 1], sizes = [4, 1], strides = [1, 1]} : vector<4x49xf32> to vector<4x1xf32>
    %42 = vector.extract_strided_slice %35 {offsets = [0, 1], sizes = [4, 1920], strides = [1, 1]} : vector<4x1926xf32> to vector<4x1920xf32>
    %43 = vector.broadcast %41 : vector<4x1xf32> to vector<4x1920xf32>
    %44 = arith.mulf %42, %43 : vector<4x1920xf32>
    %45 = arith.addf %40, %44 : vector<4x1920xf32>
    %46 = vector.extract_strided_slice %4 {offsets = [0, 2], sizes = [4, 1], strides = [1, 1]} : vector<4x49xf32> to vector<4x1xf32>
    %47 = vector.extract_strided_slice %35 {offsets = [0, 2], sizes = [4, 1920], strides = [1, 1]} : vector<4x1926xf32> to vector<4x1920xf32>
    %48 = vector.broadcast %46 : vector<4x1xf32> to vector<4x1920xf32>
    %49 = arith.mulf %47, %48 : vector<4x1920xf32>
    %50 = arith.addf %45, %49 : vector<4x1920xf32>
    %51 = vector.extract_strided_slice %4 {offsets = [0, 3], sizes = [4, 1], strides = [1, 1]} : vector<4x49xf32> to vector<4x1xf32>
    %52 = vector.extract_strided_slice %35 {offsets = [0, 3], sizes = [4, 1920], strides = [1, 1]} : vector<4x1926xf32> to vector<4x1920xf32>
    %53 = vector.broadcast %51 : vector<4x1xf32> to vector<4x1920xf32>
    %54 = arith.mulf %52, %53 : vector<4x1920xf32>
    %55 = arith.addf %50, %54 : vector<4x1920xf32>
    %56 = vector.extract_strided_slice %4 {offsets = [0, 4], sizes = [4, 1], strides = [1, 1]} : vector<4x49xf32> to vector<4x1xf32>
    %57 = vector.extract_strided_slice %35 {offsets = [0, 4], sizes = [4, 1920], strides = [1, 1]} : vector<4x1926xf32> to vector<4x1920xf32>
    %58 = vector.broadcast %56 : vector<4x1xf32> to vector<4x1920xf32>
    %59 = arith.mulf %57, %58 : vector<4x1920xf32>
    %60 = arith.addf %55, %59 : vector<4x1920xf32>
    %61 = vector.extract_strided_slice %4 {offsets = [0, 5], sizes = [4, 1], strides = [1, 1]} : vector<4x49xf32> to vector<4x1xf32>
    %62 = vector.extract_strided_slice %35 {offsets = [0, 5], sizes = [4, 1920], strides = [1, 1]} : vector<4x1926xf32> to vector<4x1920xf32>
    %63 = vector.broadcast %61 : vector<4x1xf32> to vector<4x1920xf32>
    %64 = arith.mulf %62, %63 : vector<4x1920xf32>
    %65 = arith.addf %60, %64 : vector<4x1920xf32>
    %66 = vector.extract_strided_slice %4 {offsets = [0, 6], sizes = [4, 1], strides = [1, 1]} : vector<4x49xf32> to vector<4x1xf32>
    %67 = vector.extract_strided_slice %35 {offsets = [0, 6], sizes = [4, 1920], strides = [1, 1]} : vector<4x1926xf32> to vector<4x1920xf32>
    %68 = vector.broadcast %66 : vector<4x1xf32> to vector<4x1920xf32>
    %69 = arith.mulf %67, %68 : vector<4x1920xf32>
    %70 = arith.addf %65, %69 : vector<4x1920xf32>
    %c0_20 = arith.constant 0 : index
    %c93 = arith.constant 93 : index
    %71 = vector.load %arg10[%c0_20, %c93] : memref<4x2304xf32, #tpu.memory_space<vmem>>, vector<4x1926xf32>
    %72 = vector.extract_strided_slice %4 {offsets = [0, 7], sizes = [4, 1], strides = [1, 1]} : vector<4x49xf32> to vector<4x1xf32>
    %73 = vector.extract_strided_slice %71 {offsets = [0, 0], sizes = [4, 1920], strides = [1, 1]} : vector<4x1926xf32> to vector<4x1920xf32>
    %74 = vector.broadcast %72 : vector<4x1xf32> to vector<4x1920xf32>
    %75 = arith.mulf %73, %74 : vector<4x1920xf32>
    %76 = arith.addf %70, %75 : vector<4x1920xf32>
    %77 = vector.extract_strided_slice %4 {offsets = [0, 8], sizes = [4, 1], strides = [1, 1]} : vector<4x49xf32> to vector<4x1xf32>
    %78 = vector.extract_strided_slice %71 {offsets = [0, 1], sizes = [4, 1920], strides = [1, 1]} : vector<4x1926xf32> to vector<4x1920xf32>
    %79 = vector.broadcast %77 : vector<4x1xf32> to vector<4x1920xf32>
    %80 = arith.mulf %78, %79 : vector<4x1920xf32>
    %81 = arith.addf %76, %80 : vector<4x1920xf32>
    %82 = vector.extract_strided_slice %4 {offsets = [0, 9], sizes = [4, 1], strides = [1, 1]} : vector<4x49xf32> to vector<4x1xf32>
    %83 = vector.extract_strided_slice %71 {offsets = [0, 2], sizes = [4, 1920], strides = [1, 1]} : vector<4x1926xf32> to vector<4x1920xf32>
    %84 = vector.broadcast %82 : vector<4x1xf32> to vector<4x1920xf32>
    %85 = arith.mulf %83, %84 : vector<4x1920xf32>
    %86 = arith.addf %81, %85 : vector<4x1920xf32>
    %87 = vector.extract_strided_slice %4 {offsets = [0, 10], sizes = [4, 1], strides = [1, 1]} : vector<4x49xf32> to vector<4x1xf32>
    %88 = vector.extract_strided_slice %71 {offsets = [0, 3], sizes = [4, 1920], strides = [1, 1]} : vector<4x1926xf32> to vector<4x1920xf32>
    %89 = vector.broadcast %87 : vector<4x1xf32> to vector<4x1920xf32>
    %90 = arith.mulf %88, %89 : vector<4x1920xf32>
    %91 = arith.addf %86, %90 : vector<4x1920xf32>
    %92 = vector.extract_strided_slice %4 {offsets = [0, 11], sizes = [4, 1], strides = [1, 1]} : vector<4x49xf32> to vector<4x1xf32>
    %93 = vector.extract_strided_slice %71 {offsets = [0, 4], sizes = [4, 1920], strides = [1, 1]} : vector<4x1926xf32> to vector<4x1920xf32>
    %94 = vector.broadcast %92 : vector<4x1xf32> to vector<4x1920xf32>
    %95 = arith.mulf %93, %94 : vector<4x1920xf32>
    %96 = arith.addf %91, %95 : vector<4x1920xf32>
    %97 = vector.extract_strided_slice %4 {offsets = [0, 12], sizes = [4, 1], strides = [1, 1]} : vector<4x49xf32> to vector<4x1xf32>
    %98 = vector.extract_strided_slice %71 {offsets = [0, 5], sizes = [4, 1920], strides = [1, 1]} : vector<4x1926xf32> to vector<4x1920xf32>
    %99 = vector.broadcast %97 : vector<4x1xf32> to vector<4x1920xf32>
    %100 = arith.mulf %98, %99 : vector<4x1920xf32>
    %101 = arith.addf %96, %100 : vector<4x1920xf32>
    %102 = vector.extract_strided_slice %4 {offsets = [0, 13], sizes = [4, 1], strides = [1, 1]} : vector<4x49xf32> to vector<4x1xf32>
    %103 = vector.extract_strided_slice %71 {offsets = [0, 6], sizes = [4, 1920], strides = [1, 1]} : vector<4x1926xf32> to vector<4x1920xf32>
    %104 = vector.broadcast %102 : vector<4x1xf32> to vector<4x1920xf32>
    %105 = arith.mulf %103, %104 : vector<4x1920xf32>
    %106 = arith.addf %101, %105 : vector<4x1920xf32>
    %c0_21 = arith.constant 0 : index
    %c141 = arith.constant 141 : index
    %107 = vector.load %arg10[%c0_21, %c141] : memref<4x2304xf32, #tpu.memory_space<vmem>>, vector<4x1926xf32>
    %108 = vector.extract_strided_slice %4 {offsets = [0, 14], sizes = [4, 1], strides = [1, 1]} : vector<4x49xf32> to vector<4x1xf32>
    %109 = vector.extract_strided_slice %107 {offsets = [0, 0], sizes = [4, 1920], strides = [1, 1]} : vector<4x1926xf32> to vector<4x1920xf32>
    %110 = vector.broadcast %108 : vector<4x1xf32> to vector<4x1920xf32>
    %111 = arith.mulf %109, %110 : vector<4x1920xf32>
    %112 = arith.addf %106, %111 : vector<4x1920xf32>
    %113 = vector.extract_strided_slice %4 {offsets = [0, 15], sizes = [4, 1], strides = [1, 1]} : vector<4x49xf32> to vector<4x1xf32>
    %114 = vector.extract_strided_slice %107 {offsets = [0, 1], sizes = [4, 1920], strides = [1, 1]} : vector<4x1926xf32> to vector<4x1920xf32>
    %115 = vector.broadcast %113 : vector<4x1xf32> to vector<4x1920xf32>
    %116 = arith.mulf %114, %115 : vector<4x1920xf32>
    %117 = arith.addf %112, %116 : vector<4x1920xf32>
    %118 = vector.extract_strided_slice %4 {offsets = [0, 16], sizes = [4, 1], strides = [1, 1]} : vector<4x49xf32> to vector<4x1xf32>
    %119 = vector.extract_strided_slice %107 {offsets = [0, 2], sizes = [4, 1920], strides = [1, 1]} : vector<4x1926xf32> to vector<4x1920xf32>
    %120 = vector.broadcast %118 : vector<4x1xf32> to vector<4x1920xf32>
    %121 = arith.mulf %119, %120 : vector<4x1920xf32>
    %122 = arith.addf %117, %121 : vector<4x1920xf32>
    %123 = vector.extract_strided_slice %4 {offsets = [0, 17], sizes = [4, 1], strides = [1, 1]} : vector<4x49xf32> to vector<4x1xf32>
    %124 = vector.extract_strided_slice %107 {offsets = [0, 3], sizes = [4, 1920], strides = [1, 1]} : vector<4x1926xf32> to vector<4x1920xf32>
    %125 = vector.broadcast %123 : vector<4x1xf32> to vector<4x1920xf32>
    %126 = arith.mulf %124, %125 : vector<4x1920xf32>
    %127 = arith.addf %122, %126 : vector<4x1920xf32>
    %128 = vector.extract_strided_slice %4 {offsets = [0, 18], sizes = [4, 1], strides = [1, 1]} : vector<4x49xf32> to vector<4x1xf32>
    %129 = vector.extract_strided_slice %107 {offsets = [0, 4], sizes = [4, 1920], strides = [1, 1]} : vector<4x1926xf32> to vector<4x1920xf32>
    %130 = vector.broadcast %128 : vector<4x1xf32> to vector<4x1920xf32>
    %131 = arith.mulf %129, %130 : vector<4x1920xf32>
    %132 = arith.addf %127, %131 : vector<4x1920xf32>
    %133 = vector.extract_strided_slice %4 {offsets = [0, 19], sizes = [4, 1], strides = [1, 1]} : vector<4x49xf32> to vector<4x1xf32>
    %134 = vector.extract_strided_slice %107 {offsets = [0, 5], sizes = [4, 1920], strides = [1, 1]} : vector<4x1926xf32> to vector<4x1920xf32>
    %135 = vector.broadcast %133 : vector<4x1xf32> to vector<4x1920xf32>
    %136 = arith.mulf %134, %135 : vector<4x1920xf32>
    %137 = arith.addf %132, %136 : vector<4x1920xf32>
    %138 = vector.extract_strided_slice %4 {offsets = [0, 20], sizes = [4, 1], strides = [1, 1]} : vector<4x49xf32> to vector<4x1xf32>
    %139 = vector.extract_strided_slice %107 {offsets = [0, 6], sizes = [4, 1920], strides = [1, 1]} : vector<4x1926xf32> to vector<4x1920xf32>
    %140 = vector.broadcast %138 : vector<4x1xf32> to vector<4x1920xf32>
    %141 = arith.mulf %139, %140 : vector<4x1920xf32>
    %142 = arith.addf %137, %141 : vector<4x1920xf32>
    %c0_22 = arith.constant 0 : index
    %c189 = arith.constant 189 : index
    %143 = vector.load %arg10[%c0_22, %c189] : memref<4x2304xf32, #tpu.memory_space<vmem>>, vector<4x1926xf32>
    %144 = vector.extract_strided_slice %4 {offsets = [0, 21], sizes = [4, 1], strides = [1, 1]} : vector<4x49xf32> to vector<4x1xf32>
    %145 = vector.extract_strided_slice %143 {offsets = [0, 0], sizes = [4, 1920], strides = [1, 1]} : vector<4x1926xf32> to vector<4x1920xf32>
    %146 = vector.broadcast %144 : vector<4x1xf32> to vector<4x1920xf32>
    %147 = arith.mulf %145, %146 : vector<4x1920xf32>
    %148 = arith.addf %142, %147 : vector<4x1920xf32>
    %149 = vector.extract_strided_slice %4 {offsets = [0, 22], sizes = [4, 1], strides = [1, 1]} : vector<4x49xf32> to vector<4x1xf32>
    %150 = vector.extract_strided_slice %143 {offsets = [0, 1], sizes = [4, 1920], strides = [1, 1]} : vector<4x1926xf32> to vector<4x1920xf32>
    %151 = vector.broadcast %149 : vector<4x1xf32> to vector<4x1920xf32>
    %152 = arith.mulf %150, %151 : vector<4x1920xf32>
    %153 = arith.addf %148, %152 : vector<4x1920xf32>
    %154 = vector.extract_strided_slice %4 {offsets = [0, 23], sizes = [4, 1], strides = [1, 1]} : vector<4x49xf32> to vector<4x1xf32>
    %155 = vector.extract_strided_slice %143 {offsets = [0, 2], sizes = [4, 1920], strides = [1, 1]} : vector<4x1926xf32> to vector<4x1920xf32>
    %156 = vector.broadcast %154 : vector<4x1xf32> to vector<4x1920xf32>
    %157 = arith.mulf %155, %156 : vector<4x1920xf32>
    %158 = arith.addf %153, %157 : vector<4x1920xf32>
    %159 = vector.extract_strided_slice %4 {offsets = [0, 24], sizes = [4, 1], strides = [1, 1]} : vector<4x49xf32> to vector<4x1xf32>
    %160 = vector.extract_strided_slice %143 {offsets = [0, 3], sizes = [4, 1920], strides = [1, 1]} : vector<4x1926xf32> to vector<4x1920xf32>
    %161 = vector.broadcast %159 : vector<4x1xf32> to vector<4x1920xf32>
    %162 = arith.mulf %160, %161 : vector<4x1920xf32>
    %163 = arith.addf %158, %162 : vector<4x1920xf32>
    %164 = vector.extract_strided_slice %4 {offsets = [0, 25], sizes = [4, 1], strides = [1, 1]} : vector<4x49xf32> to vector<4x1xf32>
    %165 = vector.extract_strided_slice %143 {offsets = [0, 4], sizes = [4, 1920], strides = [1, 1]} : vector<4x1926xf32> to vector<4x1920xf32>
    %166 = vector.broadcast %164 : vector<4x1xf32> to vector<4x1920xf32>
    %167 = arith.mulf %165, %166 : vector<4x1920xf32>
    %168 = arith.addf %163, %167 : vector<4x1920xf32>
    %169 = vector.extract_strided_slice %4 {offsets = [0, 26], sizes = [4, 1], strides = [1, 1]} : vector<4x49xf32> to vector<4x1xf32>
    %170 = vector.extract_strided_slice %143 {offsets = [0, 5], sizes = [4, 1920], strides = [1, 1]} : vector<4x1926xf32> to vector<4x1920xf32>
    %171 = vector.broadcast %169 : vector<4x1xf32> to vector<4x1920xf32>
    %172 = arith.mulf %170, %171 : vector<4x1920xf32>
    %173 = arith.addf %168, %172 : vector<4x1920xf32>
    %174 = vector.extract_strided_slice %4 {offsets = [0, 27], sizes = [4, 1], strides = [1, 1]} : vector<4x49xf32> to vector<4x1xf32>
    %175 = vector.extract_strided_slice %143 {offsets = [0, 6], sizes = [4, 1920], strides = [1, 1]} : vector<4x1926xf32> to vector<4x1920xf32>
    %176 = vector.broadcast %174 : vector<4x1xf32> to vector<4x1920xf32>
    %177 = arith.mulf %175, %176 : vector<4x1920xf32>
    %178 = arith.addf %173, %177 : vector<4x1920xf32>
    %c0_23 = arith.constant 0 : index
    %c237 = arith.constant 237 : index
    %179 = vector.load %arg10[%c0_23, %c237] : memref<4x2304xf32, #tpu.memory_space<vmem>>, vector<4x1926xf32>
    %180 = vector.extract_strided_slice %4 {offsets = [0, 28], sizes = [4, 1], strides = [1, 1]} : vector<4x49xf32> to vector<4x1xf32>
    %181 = vector.extract_strided_slice %179 {offsets = [0, 0], sizes = [4, 1920], strides = [1, 1]} : vector<4x1926xf32> to vector<4x1920xf32>
    %182 = vector.broadcast %180 : vector<4x1xf32> to vector<4x1920xf32>
    %183 = arith.mulf %181, %182 : vector<4x1920xf32>
    %184 = arith.addf %178, %183 : vector<4x1920xf32>
    %185 = vector.extract_strided_slice %4 {offsets = [0, 29], sizes = [4, 1], strides = [1, 1]} : vector<4x49xf32> to vector<4x1xf32>
    %186 = vector.extract_strided_slice %179 {offsets = [0, 1], sizes = [4, 1920], strides = [1, 1]} : vector<4x1926xf32> to vector<4x1920xf32>
    %187 = vector.broadcast %185 : vector<4x1xf32> to vector<4x1920xf32>
    %188 = arith.mulf %186, %187 : vector<4x1920xf32>
    %189 = arith.addf %184, %188 : vector<4x1920xf32>
    %190 = vector.extract_strided_slice %4 {offsets = [0, 30], sizes = [4, 1], strides = [1, 1]} : vector<4x49xf32> to vector<4x1xf32>
    %191 = vector.extract_strided_slice %179 {offsets = [0, 2], sizes = [4, 1920], strides = [1, 1]} : vector<4x1926xf32> to vector<4x1920xf32>
    %192 = vector.broadcast %190 : vector<4x1xf32> to vector<4x1920xf32>
    %193 = arith.mulf %191, %192 : vector<4x1920xf32>
    %194 = arith.addf %189, %193 : vector<4x1920xf32>
    %195 = vector.extract_strided_slice %4 {offsets = [0, 31], sizes = [4, 1], strides = [1, 1]} : vector<4x49xf32> to vector<4x1xf32>
    %196 = vector.extract_strided_slice %179 {offsets = [0, 3], sizes = [4, 1920], strides = [1, 1]} : vector<4x1926xf32> to vector<4x1920xf32>
    %197 = vector.broadcast %195 : vector<4x1xf32> to vector<4x1920xf32>
    %198 = arith.mulf %196, %197 : vector<4x1920xf32>
    %199 = arith.addf %194, %198 : vector<4x1920xf32>
    %200 = vector.extract_strided_slice %4 {offsets = [0, 32], sizes = [4, 1], strides = [1, 1]} : vector<4x49xf32> to vector<4x1xf32>
    %201 = vector.extract_strided_slice %179 {offsets = [0, 4], sizes = [4, 1920], strides = [1, 1]} : vector<4x1926xf32> to vector<4x1920xf32>
    %202 = vector.broadcast %200 : vector<4x1xf32> to vector<4x1920xf32>
    %203 = arith.mulf %201, %202 : vector<4x1920xf32>
    %204 = arith.addf %199, %203 : vector<4x1920xf32>
    %205 = vector.extract_strided_slice %4 {offsets = [0, 33], sizes = [4, 1], strides = [1, 1]} : vector<4x49xf32> to vector<4x1xf32>
    %206 = vector.extract_strided_slice %179 {offsets = [0, 5], sizes = [4, 1920], strides = [1, 1]} : vector<4x1926xf32> to vector<4x1920xf32>
    %207 = vector.broadcast %205 : vector<4x1xf32> to vector<4x1920xf32>
    %208 = arith.mulf %206, %207 : vector<4x1920xf32>
    %209 = arith.addf %204, %208 : vector<4x1920xf32>
    %210 = vector.extract_strided_slice %4 {offsets = [0, 34], sizes = [4, 1], strides = [1, 1]} : vector<4x49xf32> to vector<4x1xf32>
    %211 = vector.extract_strided_slice %179 {offsets = [0, 6], sizes = [4, 1920], strides = [1, 1]} : vector<4x1926xf32> to vector<4x1920xf32>
    %212 = vector.broadcast %210 : vector<4x1xf32> to vector<4x1920xf32>
    %213 = arith.mulf %211, %212 : vector<4x1920xf32>
    %214 = arith.addf %209, %213 : vector<4x1920xf32>
    %c0_24 = arith.constant 0 : index
    %c285 = arith.constant 285 : index
    %215 = vector.load %arg10[%c0_24, %c285] : memref<4x2304xf32, #tpu.memory_space<vmem>>, vector<4x1926xf32>
    %216 = vector.extract_strided_slice %4 {offsets = [0, 35], sizes = [4, 1], strides = [1, 1]} : vector<4x49xf32> to vector<4x1xf32>
    %217 = vector.extract_strided_slice %215 {offsets = [0, 0], sizes = [4, 1920], strides = [1, 1]} : vector<4x1926xf32> to vector<4x1920xf32>
    %218 = vector.broadcast %216 : vector<4x1xf32> to vector<4x1920xf32>
    %219 = arith.mulf %217, %218 : vector<4x1920xf32>
    %220 = arith.addf %214, %219 : vector<4x1920xf32>
    %221 = vector.extract_strided_slice %4 {offsets = [0, 36], sizes = [4, 1], strides = [1, 1]} : vector<4x49xf32> to vector<4x1xf32>
    %222 = vector.extract_strided_slice %215 {offsets = [0, 1], sizes = [4, 1920], strides = [1, 1]} : vector<4x1926xf32> to vector<4x1920xf32>
    %223 = vector.broadcast %221 : vector<4x1xf32> to vector<4x1920xf32>
    %224 = arith.mulf %222, %223 : vector<4x1920xf32>
    %225 = arith.addf %220, %224 : vector<4x1920xf32>
    %226 = vector.extract_strided_slice %4 {offsets = [0, 37], sizes = [4, 1], strides = [1, 1]} : vector<4x49xf32> to vector<4x1xf32>
    %227 = vector.extract_strided_slice %215 {offsets = [0, 2], sizes = [4, 1920], strides = [1, 1]} : vector<4x1926xf32> to vector<4x1920xf32>
    %228 = vector.broadcast %226 : vector<4x1xf32> to vector<4x1920xf32>
    %229 = arith.mulf %227, %228 : vector<4x1920xf32>
    %230 = arith.addf %225, %229 : vector<4x1920xf32>
    %231 = vector.extract_strided_slice %4 {offsets = [0, 38], sizes = [4, 1], strides = [1, 1]} : vector<4x49xf32> to vector<4x1xf32>
    %232 = vector.extract_strided_slice %215 {offsets = [0, 3], sizes = [4, 1920], strides = [1, 1]} : vector<4x1926xf32> to vector<4x1920xf32>
    %233 = vector.broadcast %231 : vector<4x1xf32> to vector<4x1920xf32>
    %234 = arith.mulf %232, %233 : vector<4x1920xf32>
    %235 = arith.addf %230, %234 : vector<4x1920xf32>
    %236 = vector.extract_strided_slice %4 {offsets = [0, 39], sizes = [4, 1], strides = [1, 1]} : vector<4x49xf32> to vector<4x1xf32>
    %237 = vector.extract_strided_slice %215 {offsets = [0, 4], sizes = [4, 1920], strides = [1, 1]} : vector<4x1926xf32> to vector<4x1920xf32>
    %238 = vector.broadcast %236 : vector<4x1xf32> to vector<4x1920xf32>
    %239 = arith.mulf %237, %238 : vector<4x1920xf32>
    %240 = arith.addf %235, %239 : vector<4x1920xf32>
    %241 = vector.extract_strided_slice %4 {offsets = [0, 40], sizes = [4, 1], strides = [1, 1]} : vector<4x49xf32> to vector<4x1xf32>
    %242 = vector.extract_strided_slice %215 {offsets = [0, 5], sizes = [4, 1920], strides = [1, 1]} : vector<4x1926xf32> to vector<4x1920xf32>
    %243 = vector.broadcast %241 : vector<4x1xf32> to vector<4x1920xf32>
    %244 = arith.mulf %242, %243 : vector<4x1920xf32>
    %245 = arith.addf %240, %244 : vector<4x1920xf32>
    %246 = vector.extract_strided_slice %4 {offsets = [0, 41], sizes = [4, 1], strides = [1, 1]} : vector<4x49xf32> to vector<4x1xf32>
    %247 = vector.extract_strided_slice %215 {offsets = [0, 6], sizes = [4, 1920], strides = [1, 1]} : vector<4x1926xf32> to vector<4x1920xf32>
    %248 = vector.broadcast %246 : vector<4x1xf32> to vector<4x1920xf32>
    %249 = arith.mulf %247, %248 : vector<4x1920xf32>
    %250 = arith.addf %245, %249 : vector<4x1920xf32>
    %c0_25 = arith.constant 0 : index
    %c333 = arith.constant 333 : index
    %251 = vector.load %arg10[%c0_25, %c333] : memref<4x2304xf32, #tpu.memory_space<vmem>>, vector<4x1926xf32>
    %252 = vector.extract_strided_slice %4 {offsets = [0, 42], sizes = [4, 1], strides = [1, 1]} : vector<4x49xf32> to vector<4x1xf32>
    %253 = vector.extract_strided_slice %251 {offsets = [0, 0], sizes = [4, 1920], strides = [1, 1]} : vector<4x1926xf32> to vector<4x1920xf32>
    %254 = vector.broadcast %252 : vector<4x1xf32> to vector<4x1920xf32>
    %255 = arith.mulf %253, %254 : vector<4x1920xf32>
    %256 = arith.addf %250, %255 : vector<4x1920xf32>
    %257 = vector.extract_strided_slice %4 {offsets = [0, 43], sizes = [4, 1], strides = [1, 1]} : vector<4x49xf32> to vector<4x1xf32>
    %258 = vector.extract_strided_slice %251 {offsets = [0, 1], sizes = [4, 1920], strides = [1, 1]} : vector<4x1926xf32> to vector<4x1920xf32>
    %259 = vector.broadcast %257 : vector<4x1xf32> to vector<4x1920xf32>
    %260 = arith.mulf %258, %259 : vector<4x1920xf32>
    %261 = arith.addf %256, %260 : vector<4x1920xf32>
    %262 = vector.extract_strided_slice %4 {offsets = [0, 44], sizes = [4, 1], strides = [1, 1]} : vector<4x49xf32> to vector<4x1xf32>
    %263 = vector.extract_strided_slice %251 {offsets = [0, 2], sizes = [4, 1920], strides = [1, 1]} : vector<4x1926xf32> to vector<4x1920xf32>
    %264 = vector.broadcast %262 : vector<4x1xf32> to vector<4x1920xf32>
    %265 = arith.mulf %263, %264 : vector<4x1920xf32>
    %266 = arith.addf %261, %265 : vector<4x1920xf32>
    %267 = vector.extract_strided_slice %4 {offsets = [0, 45], sizes = [4, 1], strides = [1, 1]} : vector<4x49xf32> to vector<4x1xf32>
    %268 = vector.extract_strided_slice %251 {offsets = [0, 3], sizes = [4, 1920], strides = [1, 1]} : vector<4x1926xf32> to vector<4x1920xf32>
    %269 = vector.broadcast %267 : vector<4x1xf32> to vector<4x1920xf32>
    %270 = arith.mulf %268, %269 : vector<4x1920xf32>
    %271 = arith.addf %266, %270 : vector<4x1920xf32>
    %272 = vector.extract_strided_slice %4 {offsets = [0, 46], sizes = [4, 1], strides = [1, 1]} : vector<4x49xf32> to vector<4x1xf32>
    %273 = vector.extract_strided_slice %251 {offsets = [0, 4], sizes = [4, 1920], strides = [1, 1]} : vector<4x1926xf32> to vector<4x1920xf32>
    %274 = vector.broadcast %272 : vector<4x1xf32> to vector<4x1920xf32>
    %275 = arith.mulf %273, %274 : vector<4x1920xf32>
    %276 = arith.addf %271, %275 : vector<4x1920xf32>
    %277 = vector.extract_strided_slice %4 {offsets = [0, 47], sizes = [4, 1], strides = [1, 1]} : vector<4x49xf32> to vector<4x1xf32>
    %278 = vector.extract_strided_slice %251 {offsets = [0, 5], sizes = [4, 1920], strides = [1, 1]} : vector<4x1926xf32> to vector<4x1920xf32>
    %279 = vector.broadcast %277 : vector<4x1xf32> to vector<4x1920xf32>
    %280 = arith.mulf %278, %279 : vector<4x1920xf32>
    %281 = arith.addf %276, %280 : vector<4x1920xf32>
    %282 = vector.extract_strided_slice %4 {offsets = [0, 48], sizes = [4, 1], strides = [1, 1]} : vector<4x49xf32> to vector<4x1xf32>
    %283 = vector.extract_strided_slice %251 {offsets = [0, 6], sizes = [4, 1920], strides = [1, 1]} : vector<4x1926xf32> to vector<4x1920xf32>
    %284 = vector.broadcast %282 : vector<4x1xf32> to vector<4x1920xf32>
    %285 = arith.mulf %283, %284 : vector<4x1920xf32>
    %286 = arith.addf %281, %285 : vector<4x1920xf32>
    %cst_26 = arith.constant 0.000000e+00 : f32
    %287 = vector.broadcast %cst_26 : f32 to vector<1x1920xf32>
    %288 = arith.addf %23, %287 : vector<1x1920xf32>
    %cst_27 = arith.constant 1.550000e+01 : f32
    %289 = arith.subf %cst_27, %16 : f32
    %290 = vector.broadcast %289 : f32 to vector<1x1920xf32>
    %291 = arith.cmpf ogt, %288, %290 : vector<1x1920xf32>
    %cst_28 = arith.constant 3.150000e+01 : f32
    %292 = arith.subf %cst_28, %16 : f32
    %293 = vector.broadcast %292 : f32 to vector<1x1920xf32>
    %294 = arith.cmpf olt, %288, %293 : vector<1x1920xf32>
    %295 = arith.andi %291, %294 : vector<1x1920xi1>
    %296 = arith.andi %295, %31 : vector<1x1920xi1>
    %297 = vector.broadcast %5 : vector<4x1xf32> to vector<4x1920xf32>
    %298 = arith.addf %286, %297 : vector<4x1920xf32>
    %cst_29 = arith.constant 0.000000e+00 : f32
    %299 = vector.shape_cast %296 : vector<1x1920xi1> to vector<1x1920xi1>
    %300 = vector.broadcast %299 : vector<1x1920xi1> to vector<4x1920xi1>
    %301 = vector.broadcast %cst_29 : f32 to vector<4x1920xf32>
    %302 = arith.select %300, %298, %301 : vector<4x1920xi1>, vector<4x1920xf32>
    %c0_30 = arith.constant 0 : index
    %c0_31 = arith.constant 0 : index
    %303 = vector.load %arg11[%c0_30, %c0_31] : memref<4x1968xf32, #tpu.memory_space<vmem>>, vector<4x1920xf32>
    tpu.vector_store %arg11[%c0_30, %c0_31], %302 {strides = array<i32>} : memref<4x1968xf32, #tpu.memory_space<vmem>>, vector<4x1920xf32>,
    %cst_32 = arith.constant 0.000000e+00 : f32
    %304 = vector.broadcast %cst_32 : f32 to vector<4x384xf32>
    %c0_33 = arith.constant 0 : index
    %c0_34 = arith.constant 0 : index
    %305 = vector.load %arg11[%c0_33, %c0_34] : memref<4x1968xf32, #tpu.memory_space<vmem>>, vector<4x416xf32>
    %306 = vector.extract_strided_slice %6 {offsets = [0, 0], sizes = [4, 1], strides = [1, 1]} : vector<4x81xf32> to vector<4x1xf32>
    %307 = vector.extract_strided_slice %305 {offsets = [0, 0], sizes = [4, 384], strides = [1, 1]} : vector<4x416xf32> to vector<4x384xf32>
    %308 = vector.broadcast %306 : vector<4x1xf32> to vector<4x384xf32>
    %309 = arith.mulf %307, %308 : vector<4x384xf32>
    %310 = arith.addf %304, %309 : vector<4x384xf32>
    %311 = vector.extract_strided_slice %6 {offsets = [0, 1], sizes = [4, 1], strides = [1, 1]} : vector<4x81xf32> to vector<4x1xf32>
    %312 = vector.extract_strided_slice %305 {offsets = [0, 4], sizes = [4, 384], strides = [1, 1]} : vector<4x416xf32> to vector<4x384xf32>
    %313 = vector.broadcast %311 : vector<4x1xf32> to vector<4x384xf32>
    %314 = arith.mulf %312, %313 : vector<4x384xf32>
    %315 = arith.addf %310, %314 : vector<4x384xf32>
    %316 = vector.extract_strided_slice %6 {offsets = [0, 2], sizes = [4, 1], strides = [1, 1]} : vector<4x81xf32> to vector<4x1xf32>
    %317 = vector.extract_strided_slice %305 {offsets = [0, 8], sizes = [4, 384], strides = [1, 1]} : vector<4x416xf32> to vector<4x384xf32>
    %318 = vector.broadcast %316 : vector<4x1xf32> to vector<4x384xf32>
    %319 = arith.mulf %317, %318 : vector<4x384xf32>
    %320 = arith.addf %315, %319 : vector<4x384xf32>
    %321 = vector.extract_strided_slice %6 {offsets = [0, 3], sizes = [4, 1], strides = [1, 1]} : vector<4x81xf32> to vector<4x1xf32>
    %322 = vector.extract_strided_slice %305 {offsets = [0, 12], sizes = [4, 384], strides = [1, 1]} : vector<4x416xf32> to vector<4x384xf32>
    %323 = vector.broadcast %321 : vector<4x1xf32> to vector<4x384xf32>
    %324 = arith.mulf %322, %323 : vector<4x384xf32>
    %325 = arith.addf %320, %324 : vector<4x384xf32>
    %326 = vector.extract_strided_slice %6 {offsets = [0, 4], sizes = [4, 1], strides = [1, 1]} : vector<4x81xf32> to vector<4x1xf32>
    %327 = vector.extract_strided_slice %305 {offsets = [0, 16], sizes = [4, 384], strides = [1, 1]} : vector<4x416xf32> to vector<4x384xf32>
    %328 = vector.broadcast %326 : vector<4x1xf32> to vector<4x384xf32>
    %329 = arith.mulf %327, %328 : vector<4x384xf32>
    %330 = arith.addf %325, %329 : vector<4x384xf32>
    %331 = vector.extract_strided_slice %6 {offsets = [0, 5], sizes = [4, 1], strides = [1, 1]} : vector<4x81xf32> to vector<4x1xf32>
    %332 = vector.extract_strided_slice %305 {offsets = [0, 20], sizes = [4, 384], strides = [1, 1]} : vector<4x416xf32> to vector<4x384xf32>
    %333 = vector.broadcast %331 : vector<4x1xf32> to vector<4x384xf32>
    %334 = arith.mulf %332, %333 : vector<4x384xf32>
    %335 = arith.addf %330, %334 : vector<4x384xf32>
    %336 = vector.extract_strided_slice %6 {offsets = [0, 6], sizes = [4, 1], strides = [1, 1]} : vector<4x81xf32> to vector<4x1xf32>
    %337 = vector.extract_strided_slice %305 {offsets = [0, 24], sizes = [4, 384], strides = [1, 1]} : vector<4x416xf32> to vector<4x384xf32>
    %338 = vector.broadcast %336 : vector<4x1xf32> to vector<4x384xf32>
    %339 = arith.mulf %337, %338 : vector<4x384xf32>
    %340 = arith.addf %335, %339 : vector<4x384xf32>
    %341 = vector.extract_strided_slice %6 {offsets = [0, 7], sizes = [4, 1], strides = [1, 1]} : vector<4x81xf32> to vector<4x1xf32>
    %342 = vector.extract_strided_slice %305 {offsets = [0, 28], sizes = [4, 384], strides = [1, 1]} : vector<4x416xf32> to vector<4x384xf32>
    %343 = vector.broadcast %341 : vector<4x1xf32> to vector<4x384xf32>
    %344 = arith.mulf %342, %343 : vector<4x384xf32>
    %345 = arith.addf %340, %344 : vector<4x384xf32>
    %346 = vector.extract_strided_slice %6 {offsets = [0, 8], sizes = [4, 1], strides = [1, 1]} : vector<4x81xf32> to vector<4x1xf32>
    %347 = vector.extract_strided_slice %305 {offsets = [0, 32], sizes = [4, 384], strides = [1, 1]} : vector<4x416xf32> to vector<4x384xf32>
    %348 = vector.broadcast %346 : vector<4x1xf32> to vector<4x384xf32>
    %349 = arith.mulf %347, %348 : vector<4x384xf32>
    %350 = arith.addf %345, %349 : vector<4x384xf32>
    %c0_35 = arith.constant 0 : index
    %c192 = arith.constant 192 : index
    %351 = vector.load %arg11[%c0_35, %c192] : memref<4x1968xf32, #tpu.memory_space<vmem>>, vector<4x416xf32>
    %352 = vector.extract_strided_slice %6 {offsets = [0, 9], sizes = [4, 1], strides = [1, 1]} : vector<4x81xf32> to vector<4x1xf32>
    %353 = vector.extract_strided_slice %351 {offsets = [0, 0], sizes = [4, 384], strides = [1, 1]} : vector<4x416xf32> to vector<4x384xf32>
    %354 = vector.broadcast %352 : vector<4x1xf32> to vector<4x384xf32>
    %355 = arith.mulf %353, %354 : vector<4x384xf32>
    %356 = arith.addf %350, %355 : vector<4x384xf32>
    %357 = vector.extract_strided_slice %6 {offsets = [0, 10], sizes = [4, 1], strides = [1, 1]} : vector<4x81xf32> to vector<4x1xf32>
    %358 = vector.extract_strided_slice %351 {offsets = [0, 4], sizes = [4, 384], strides = [1, 1]} : vector<4x416xf32> to vector<4x384xf32>
    %359 = vector.broadcast %357 : vector<4x1xf32> to vector<4x384xf32>
    %360 = arith.mulf %358, %359 : vector<4x384xf32>
    %361 = arith.addf %356, %360 : vector<4x384xf32>
    %362 = vector.extract_strided_slice %6 {offsets = [0, 11], sizes = [4, 1], strides = [1, 1]} : vector<4x81xf32> to vector<4x1xf32>
    %363 = vector.extract_strided_slice %351 {offsets = [0, 8], sizes = [4, 384], strides = [1, 1]} : vector<4x416xf32> to vector<4x384xf32>
    %364 = vector.broadcast %362 : vector<4x1xf32> to vector<4x384xf32>
    %365 = arith.mulf %363, %364 : vector<4x384xf32>
    %366 = arith.addf %361, %365 : vector<4x384xf32>
    %367 = vector.extract_strided_slice %6 {offsets = [0, 12], sizes = [4, 1], strides = [1, 1]} : vector<4x81xf32> to vector<4x1xf32>
    %368 = vector.extract_strided_slice %351 {offsets = [0, 12], sizes = [4, 384], strides = [1, 1]} : vector<4x416xf32> to vector<4x384xf32>
    %369 = vector.broadcast %367 : vector<4x1xf32> to vector<4x384xf32>
    %370 = arith.mulf %368, %369 : vector<4x384xf32>
    %371 = arith.addf %366, %370 : vector<4x384xf32>
    %372 = vector.extract_strided_slice %6 {offsets = [0, 13], sizes = [4, 1], strides = [1, 1]} : vector<4x81xf32> to vector<4x1xf32>
    %373 = vector.extract_strided_slice %351 {offsets = [0, 16], sizes = [4, 384], strides = [1, 1]} : vector<4x416xf32> to vector<4x384xf32>
    %374 = vector.broadcast %372 : vector<4x1xf32> to vector<4x384xf32>
    %375 = arith.mulf %373, %374 : vector<4x384xf32>
    %376 = arith.addf %371, %375 : vector<4x384xf32>
    %377 = vector.extract_strided_slice %6 {offsets = [0, 14], sizes = [4, 1], strides = [1, 1]} : vector<4x81xf32> to vector<4x1xf32>
    %378 = vector.extract_strided_slice %351 {offsets = [0, 20], sizes = [4, 384], strides = [1, 1]} : vector<4x416xf32> to vector<4x384xf32>
    %379 = vector.broadcast %377 : vector<4x1xf32> to vector<4x384xf32>
    %380 = arith.mulf %378, %379 : vector<4x384xf32>
    %381 = arith.addf %376, %380 : vector<4x384xf32>
    %382 = vector.extract_strided_slice %6 {offsets = [0, 15], sizes = [4, 1], strides = [1, 1]} : vector<4x81xf32> to vector<4x1xf32>
    %383 = vector.extract_strided_slice %351 {offsets = [0, 24], sizes = [4, 384], strides = [1, 1]} : vector<4x416xf32> to vector<4x384xf32>
    %384 = vector.broadcast %382 : vector<4x1xf32> to vector<4x384xf32>
    %385 = arith.mulf %383, %384 : vector<4x384xf32>
    %386 = arith.addf %381, %385 : vector<4x384xf32>
    %387 = vector.extract_strided_slice %6 {offsets = [0, 16], sizes = [4, 1], strides = [1, 1]} : vector<4x81xf32> to vector<4x1xf32>
    %388 = vector.extract_strided_slice %351 {offsets = [0, 28], sizes = [4, 384], strides = [1, 1]} : vector<4x416xf32> to vector<4x384xf32>
    %389 = vector.broadcast %387 : vector<4x1xf32> to vector<4x384xf32>
    %390 = arith.mulf %388, %389 : vector<4x384xf32>
    %391 = arith.addf %386, %390 : vector<4x384xf32>
    %392 = vector.extract_strided_slice %6 {offsets = [0, 17], sizes = [4, 1], strides = [1, 1]} : vector<4x81xf32> to vector<4x1xf32>
    %393 = vector.extract_strided_slice %351 {offsets = [0, 32], sizes = [4, 384], strides = [1, 1]} : vector<4x416xf32> to vector<4x384xf32>
    %394 = vector.broadcast %392 : vector<4x1xf32> to vector<4x384xf32>
    %395 = arith.mulf %393, %394 : vector<4x384xf32>
    %396 = arith.addf %391, %395 : vector<4x384xf32>
    %c0_36 = arith.constant 0 : index
    %c384 = arith.constant 384 : index
    %397 = vector.load %arg11[%c0_36, %c384] : memref<4x1968xf32, #tpu.memory_space<vmem>>, vector<4x416xf32>
    %398 = vector.extract_strided_slice %6 {offsets = [0, 18], sizes = [4, 1], strides = [1, 1]} : vector<4x81xf32> to vector<4x1xf32>
    %399 = vector.extract_strided_slice %397 {offsets = [0, 0], sizes = [4, 384], strides = [1, 1]} : vector<4x416xf32> to vector<4x384xf32>
    %400 = vector.broadcast %398 : vector<4x1xf32> to vector<4x384xf32>
    %401 = arith.mulf %399, %400 : vector<4x384xf32>
    %402 = arith.addf %396, %401 : vector<4x384xf32>
    %403 = vector.extract_strided_slice %6 {offsets = [0, 19], sizes = [4, 1], strides = [1, 1]} : vector<4x81xf32> to vector<4x1xf32>
    %404 = vector.extract_strided_slice %397 {offsets = [0, 4], sizes = [4, 384], strides = [1, 1]} : vector<4x416xf32> to vector<4x384xf32>
    %405 = vector.broadcast %403 : vector<4x1xf32> to vector<4x384xf32>
    %406 = arith.mulf %404, %405 : vector<4x384xf32>
    %407 = arith.addf %402, %406 : vector<4x384xf32>
    %408 = vector.extract_strided_slice %6 {offsets = [0, 20], sizes = [4, 1], strides = [1, 1]} : vector<4x81xf32> to vector<4x1xf32>
    %409 = vector.extract_strided_slice %397 {offsets = [0, 8], sizes = [4, 384], strides = [1, 1]} : vector<4x416xf32> to vector<4x384xf32>
    %410 = vector.broadcast %408 : vector<4x1xf32> to vector<4x384xf32>
    %411 = arith.mulf %409, %410 : vector<4x384xf32>
    %412 = arith.addf %407, %411 : vector<4x384xf32>
    %413 = vector.extract_strided_slice %6 {offsets = [0, 21], sizes = [4, 1], strides = [1, 1]} : vector<4x81xf32> to vector<4x1xf32>
    %414 = vector.extract_strided_slice %397 {offsets = [0, 12], sizes = [4, 384], strides = [1, 1]} : vector<4x416xf32> to vector<4x384xf32>
    %415 = vector.broadcast %413 : vector<4x1xf32> to vector<4x384xf32>
    %416 = arith.mulf %414, %415 : vector<4x384xf32>
    %417 = arith.addf %412, %416 : vector<4x384xf32>
    %418 = vector.extract_strided_slice %6 {offsets = [0, 22], sizes = [4, 1], strides = [1, 1]} : vector<4x81xf32> to vector<4x1xf32>
    %419 = vector.extract_strided_slice %397 {offsets = [0, 16], sizes = [4, 384], strides = [1, 1]} : vector<4x416xf32> to vector<4x384xf32>
    %420 = vector.broadcast %418 : vector<4x1xf32> to vector<4x384xf32>
    %421 = arith.mulf %419, %420 : vector<4x384xf32>
    %422 = arith.addf %417, %421 : vector<4x384xf32>
    %423 = vector.extract_strided_slice %6 {offsets = [0, 23], sizes = [4, 1], strides = [1, 1]} : vector<4x81xf32> to vector<4x1xf32>
    %424 = vector.extract_strided_slice %397 {offsets = [0, 20], sizes = [4, 384], strides = [1, 1]} : vector<4x416xf32> to vector<4x384xf32>
    %425 = vector.broadcast %423 : vector<4x1xf32> to vector<4x384xf32>
    %426 = arith.mulf %424, %425 : vector<4x384xf32>
    %427 = arith.addf %422, %426 : vector<4x384xf32>
    %428 = vector.extract_strided_slice %6 {offsets = [0, 24], sizes = [4, 1], strides = [1, 1]} : vector<4x81xf32> to vector<4x1xf32>
    %429 = vector.extract_strided_slice %397 {offsets = [0, 24], sizes = [4, 384], strides = [1, 1]} : vector<4x416xf32> to vector<4x384xf32>
    %430 = vector.broadcast %428 : vector<4x1xf32> to vector<4x384xf32>
    %431 = arith.mulf %429, %430 : vector<4x384xf32>
    %432 = arith.addf %427, %431 : vector<4x384xf32>
    %433 = vector.extract_strided_slice %6 {offsets = [0, 25], sizes = [4, 1], strides = [1, 1]} : vector<4x81xf32> to vector<4x1xf32>
    %434 = vector.extract_strided_slice %397 {offsets = [0, 28], sizes = [4, 384], strides = [1, 1]} : vector<4x416xf32> to vector<4x384xf32>
    %435 = vector.broadcast %433 : vector<4x1xf32> to vector<4x384xf32>
    %436 = arith.mulf %434, %435 : vector<4x384xf32>
    %437 = arith.addf %432, %436 : vector<4x384xf32>
    %438 = vector.extract_strided_slice %6 {offsets = [0, 26], sizes = [4, 1], strides = [1, 1]} : vector<4x81xf32> to vector<4x1xf32>
    %439 = vector.extract_strided_slice %397 {offsets = [0, 32], sizes = [4, 384], strides = [1, 1]} : vector<4x416xf32> to vector<4x384xf32>
    %440 = vector.broadcast %438 : vector<4x1xf32> to vector<4x384xf32>
    %441 = arith.mulf %439, %440 : vector<4x384xf32>
    %442 = arith.addf %437, %441 : vector<4x384xf32>
    %c0_37 = arith.constant 0 : index
    %c576 = arith.constant 576 : index
    %443 = vector.load %arg11[%c0_37, %c576] : memref<4x1968xf32, #tpu.memory_space<vmem>>, vector<4x416xf32>
    %444 = vector.extract_strided_slice %6 {offsets = [0, 27], sizes = [4, 1], strides = [1, 1]} : vector<4x81xf32> to vector<4x1xf32>
    %445 = vector.extract_strided_slice %443 {offsets = [0, 0], sizes = [4, 384], strides = [1, 1]} : vector<4x416xf32> to vector<4x384xf32>
    %446 = vector.broadcast %444 : vector<4x1xf32> to vector<4x384xf32>
    %447 = arith.mulf %445, %446 : vector<4x384xf32>
    %448 = arith.addf %442, %447 : vector<4x384xf32>
    %449 = vector.extract_strided_slice %6 {offsets = [0, 28], sizes = [4, 1], strides = [1, 1]} : vector<4x81xf32> to vector<4x1xf32>
    %450 = vector.extract_strided_slice %443 {offsets = [0, 4], sizes = [4, 384], strides = [1, 1]} : vector<4x416xf32> to vector<4x384xf32>
    %451 = vector.broadcast %449 : vector<4x1xf32> to vector<4x384xf32>
    %452 = arith.mulf %450, %451 : vector<4x384xf32>
    %453 = arith.addf %448, %452 : vector<4x384xf32>
    %454 = vector.extract_strided_slice %6 {offsets = [0, 29], sizes = [4, 1], strides = [1, 1]} : vector<4x81xf32> to vector<4x1xf32>
    %455 = vector.extract_strided_slice %443 {offsets = [0, 8], sizes = [4, 384], strides = [1, 1]} : vector<4x416xf32> to vector<4x384xf32>
    %456 = vector.broadcast %454 : vector<4x1xf32> to vector<4x384xf32>
    %457 = arith.mulf %455, %456 : vector<4x384xf32>
    %458 = arith.addf %453, %457 : vector<4x384xf32>
    %459 = vector.extract_strided_slice %6 {offsets = [0, 30], sizes = [4, 1], strides = [1, 1]} : vector<4x81xf32> to vector<4x1xf32>
    %460 = vector.extract_strided_slice %443 {offsets = [0, 12], sizes = [4, 384], strides = [1, 1]} : vector<4x416xf32> to vector<4x384xf32>
    %461 = vector.broadcast %459 : vector<4x1xf32> to vector<4x384xf32>
    %462 = arith.mulf %460, %461 : vector<4x384xf32>
    %463 = arith.addf %458, %462 : vector<4x384xf32>
    %464 = vector.extract_strided_slice %6 {offsets = [0, 31], sizes = [4, 1], strides = [1, 1]} : vector<4x81xf32> to vector<4x1xf32>
    %465 = vector.extract_strided_slice %443 {offsets = [0, 16], sizes = [4, 384], strides = [1, 1]} : vector<4x416xf32> to vector<4x384xf32>
    %466 = vector.broadcast %464 : vector<4x1xf32> to vector<4x384xf32>
    %467 = arith.mulf %465, %466 : vector<4x384xf32>
    %468 = arith.addf %463, %467 : vector<4x384xf32>
    %469 = vector.extract_strided_slice %6 {offsets = [0, 32], sizes = [4, 1], strides = [1, 1]} : vector<4x81xf32> to vector<4x1xf32>
    %470 = vector.extract_strided_slice %443 {offsets = [0, 20], sizes = [4, 384], strides = [1, 1]} : vector<4x416xf32> to vector<4x384xf32>
    %471 = vector.broadcast %469 : vector<4x1xf32> to vector<4x384xf32>
    %472 = arith.mulf %470, %471 : vector<4x384xf32>
    %473 = arith.addf %468, %472 : vector<4x384xf32>
    %474 = vector.extract_strided_slice %6 {offsets = [0, 33], sizes = [4, 1], strides = [1, 1]} : vector<4x81xf32> to vector<4x1xf32>
    %475 = vector.extract_strided_slice %443 {offsets = [0, 24], sizes = [4, 384], strides = [1, 1]} : vector<4x416xf32> to vector<4x384xf32>
    %476 = vector.broadcast %474 : vector<4x1xf32> to vector<4x384xf32>
    %477 = arith.mulf %475, %476 : vector<4x384xf32>
    %478 = arith.addf %473, %477 : vector<4x384xf32>
    %479 = vector.extract_strided_slice %6 {offsets = [0, 34], sizes = [4, 1], strides = [1, 1]} : vector<4x81xf32> to vector<4x1xf32>
    %480 = vector.extract_strided_slice %443 {offsets = [0, 28], sizes = [4, 384], strides = [1, 1]} : vector<4x416xf32> to vector<4x384xf32>
    %481 = vector.broadcast %479 : vector<4x1xf32> to vector<4x384xf32>
    %482 = arith.mulf %480, %481 : vector<4x384xf32>
    %483 = arith.addf %478, %482 : vector<4x384xf32>
    %484 = vector.extract_strided_slice %6 {offsets = [0, 35], sizes = [4, 1], strides = [1, 1]} : vector<4x81xf32> to vector<4x1xf32>
    %485 = vector.extract_strided_slice %443 {offsets = [0, 32], sizes = [4, 384], strides = [1, 1]} : vector<4x416xf32> to vector<4x384xf32>
    %486 = vector.broadcast %484 : vector<4x1xf32> to vector<4x384xf32>
    %487 = arith.mulf %485, %486 : vector<4x384xf32>
    %488 = arith.addf %483, %487 : vector<4x384xf32>
    %c0_38 = arith.constant 0 : index
    %c768 = arith.constant 768 : index
    %489 = vector.load %arg11[%c0_38, %c768] : memref<4x1968xf32, #tpu.memory_space<vmem>>, vector<4x416xf32>
    %490 = vector.extract_strided_slice %6 {offsets = [0, 36], sizes = [4, 1], strides = [1, 1]} : vector<4x81xf32> to vector<4x1xf32>
    %491 = vector.extract_strided_slice %489 {offsets = [0, 0], sizes = [4, 384], strides = [1, 1]} : vector<4x416xf32> to vector<4x384xf32>
    %492 = vector.broadcast %490 : vector<4x1xf32> to vector<4x384xf32>
    %493 = arith.mulf %491, %492 : vector<4x384xf32>
    %494 = arith.addf %488, %493 : vector<4x384xf32>
    %495 = vector.extract_strided_slice %6 {offsets = [0, 37], sizes = [4, 1], strides = [1, 1]} : vector<4x81xf32> to vector<4x1xf32>
    %496 = vector.extract_strided_slice %489 {offsets = [0, 4], sizes = [4, 384], strides = [1, 1]} : vector<4x416xf32> to vector<4x384xf32>
    %497 = vector.broadcast %495 : vector<4x1xf32> to vector<4x384xf32>
    %498 = arith.mulf %496, %497 : vector<4x384xf32>
    %499 = arith.addf %494, %498 : vector<4x384xf32>
    %500 = vector.extract_strided_slice %6 {offsets = [0, 38], sizes = [4, 1], strides = [1, 1]} : vector<4x81xf32> to vector<4x1xf32>
    %501 = vector.extract_strided_slice %489 {offsets = [0, 8], sizes = [4, 384], strides = [1, 1]} : vector<4x416xf32> to vector<4x384xf32>
    %502 = vector.broadcast %500 : vector<4x1xf32> to vector<4x384xf32>
    %503 = arith.mulf %501, %502 : vector<4x384xf32>
    %504 = arith.addf %499, %503 : vector<4x384xf32>
    %505 = vector.extract_strided_slice %6 {offsets = [0, 39], sizes = [4, 1], strides = [1, 1]} : vector<4x81xf32> to vector<4x1xf32>
    %506 = vector.extract_strided_slice %489 {offsets = [0, 12], sizes = [4, 384], strides = [1, 1]} : vector<4x416xf32> to vector<4x384xf32>
    %507 = vector.broadcast %505 : vector<4x1xf32> to vector<4x384xf32>
    %508 = arith.mulf %506, %507 : vector<4x384xf32>
    %509 = arith.addf %504, %508 : vector<4x384xf32>
    %510 = vector.extract_strided_slice %6 {offsets = [0, 40], sizes = [4, 1], strides = [1, 1]} : vector<4x81xf32> to vector<4x1xf32>
    %511 = vector.extract_strided_slice %489 {offsets = [0, 16], sizes = [4, 384], strides = [1, 1]} : vector<4x416xf32> to vector<4x384xf32>
    %512 = vector.broadcast %510 : vector<4x1xf32> to vector<4x384xf32>
    %513 = arith.mulf %511, %512 : vector<4x384xf32>
    %514 = arith.addf %509, %513 : vector<4x384xf32>
    %515 = vector.extract_strided_slice %6 {offsets = [0, 41], sizes = [4, 1], strides = [1, 1]} : vector<4x81xf32> to vector<4x1xf32>
    %516 = vector.extract_strided_slice %489 {offsets = [0, 20], sizes = [4, 384], strides = [1, 1]} : vector<4x416xf32> to vector<4x384xf32>
    %517 = vector.broadcast %515 : vector<4x1xf32> to vector<4x384xf32>
    %518 = arith.mulf %516, %517 : vector<4x384xf32>
    %519 = arith.addf %514, %518 : vector<4x384xf32>
    %520 = vector.extract_strided_slice %6 {offsets = [0, 42], sizes = [4, 1], strides = [1, 1]} : vector<4x81xf32> to vector<4x1xf32>
    %521 = vector.extract_strided_slice %489 {offsets = [0, 24], sizes = [4, 384], strides = [1, 1]} : vector<4x416xf32> to vector<4x384xf32>
    %522 = vector.broadcast %520 : vector<4x1xf32> to vector<4x384xf32>
    %523 = arith.mulf %521, %522 : vector<4x384xf32>
    %524 = arith.addf %519, %523 : vector<4x384xf32>
    %525 = vector.extract_strided_slice %6 {offsets = [0, 43], sizes = [4, 1], strides = [1, 1]} : vector<4x81xf32> to vector<4x1xf32>
    %526 = vector.extract_strided_slice %489 {offsets = [0, 28], sizes = [4, 384], strides = [1, 1]} : vector<4x416xf32> to vector<4x384xf32>
    %527 = vector.broadcast %525 : vector<4x1xf32> to vector<4x384xf32>
    %528 = arith.mulf %526, %527 : vector<4x384xf32>
    %529 = arith.addf %524, %528 : vector<4x384xf32>
    %530 = vector.extract_strided_slice %6 {offsets = [0, 44], sizes = [4, 1], strides = [1, 1]} : vector<4x81xf32> to vector<4x1xf32>
    %531 = vector.extract_strided_slice %489 {offsets = [0, 32], sizes = [4, 384], strides = [1, 1]} : vector<4x416xf32> to vector<4x384xf32>
    %532 = vector.broadcast %530 : vector<4x1xf32> to vector<4x384xf32>
    %533 = arith.mulf %531, %532 : vector<4x384xf32>
    %534 = arith.addf %529, %533 : vector<4x384xf32>
    %c0_39 = arith.constant 0 : index
    %c960 = arith.constant 960 : index
    %535 = vector.load %arg11[%c0_39, %c960] : memref<4x1968xf32, #tpu.memory_space<vmem>>, vector<4x416xf32>
    %536 = vector.extract_strided_slice %6 {offsets = [0, 45], sizes = [4, 1], strides = [1, 1]} : vector<4x81xf32> to vector<4x1xf32>
    %537 = vector.extract_strided_slice %535 {offsets = [0, 0], sizes = [4, 384], strides = [1, 1]} : vector<4x416xf32> to vector<4x384xf32>
    %538 = vector.broadcast %536 : vector<4x1xf32> to vector<4x384xf32>
    %539 = arith.mulf %537, %538 : vector<4x384xf32>
    %540 = arith.addf %534, %539 : vector<4x384xf32>
    %541 = vector.extract_strided_slice %6 {offsets = [0, 46], sizes = [4, 1], strides = [1, 1]} : vector<4x81xf32> to vector<4x1xf32>
    %542 = vector.extract_strided_slice %535 {offsets = [0, 4], sizes = [4, 384], strides = [1, 1]} : vector<4x416xf32> to vector<4x384xf32>
    %543 = vector.broadcast %541 : vector<4x1xf32> to vector<4x384xf32>
    %544 = arith.mulf %542, %543 : vector<4x384xf32>
    %545 = arith.addf %540, %544 : vector<4x384xf32>
    %546 = vector.extract_strided_slice %6 {offsets = [0, 47], sizes = [4, 1], strides = [1, 1]} : vector<4x81xf32> to vector<4x1xf32>
    %547 = vector.extract_strided_slice %535 {offsets = [0, 8], sizes = [4, 384], strides = [1, 1]} : vector<4x416xf32> to vector<4x384xf32>
    %548 = vector.broadcast %546 : vector<4x1xf32> to vector<4x384xf32>
    %549 = arith.mulf %547, %548 : vector<4x384xf32>
    %550 = arith.addf %545, %549 : vector<4x384xf32>
    %551 = vector.extract_strided_slice %6 {offsets = [0, 48], sizes = [4, 1], strides = [1, 1]} : vector<4x81xf32> to vector<4x1xf32>
    %552 = vector.extract_strided_slice %535 {offsets = [0, 12], sizes = [4, 384], strides = [1, 1]} : vector<4x416xf32> to vector<4x384xf32>
    %553 = vector.broadcast %551 : vector<4x1xf32> to vector<4x384xf32>
    %554 = arith.mulf %552, %553 : vector<4x384xf32>
    %555 = arith.addf %550, %554 : vector<4x384xf32>
    %556 = vector.extract_strided_slice %6 {offsets = [0, 49], sizes = [4, 1], strides = [1, 1]} : vector<4x81xf32> to vector<4x1xf32>
    %557 = vector.extract_strided_slice %535 {offsets = [0, 16], sizes = [4, 384], strides = [1, 1]} : vector<4x416xf32> to vector<4x384xf32>
    %558 = vector.broadcast %556 : vector<4x1xf32> to vector<4x384xf32>
    %559 = arith.mulf %557, %558 : vector<4x384xf32>
    %560 = arith.addf %555, %559 : vector<4x384xf32>
    %561 = vector.extract_strided_slice %6 {offsets = [0, 50], sizes = [4, 1], strides = [1, 1]} : vector<4x81xf32> to vector<4x1xf32>
    %562 = vector.extract_strided_slice %535 {offsets = [0, 20], sizes = [4, 384], strides = [1, 1]} : vector<4x416xf32> to vector<4x384xf32>
    %563 = vector.broadcast %561 : vector<4x1xf32> to vector<4x384xf32>
    %564 = arith.mulf %562, %563 : vector<4x384xf32>
    %565 = arith.addf %560, %564 : vector<4x384xf32>
    %566 = vector.extract_strided_slice %6 {offsets = [0, 51], sizes = [4, 1], strides = [1, 1]} : vector<4x81xf32> to vector<4x1xf32>
    %567 = vector.extract_strided_slice %535 {offsets = [0, 24], sizes = [4, 384], strides = [1, 1]} : vector<4x416xf32> to vector<4x384xf32>
    %568 = vector.broadcast %566 : vector<4x1xf32> to vector<4x384xf32>
    %569 = arith.mulf %567, %568 : vector<4x384xf32>
    %570 = arith.addf %565, %569 : vector<4x384xf32>
    %571 = vector.extract_strided_slice %6 {offsets = [0, 52], sizes = [4, 1], strides = [1, 1]} : vector<4x81xf32> to vector<4x1xf32>
    %572 = vector.extract_strided_slice %535 {offsets = [0, 28], sizes = [4, 384], strides = [1, 1]} : vector<4x416xf32> to vector<4x384xf32>
    %573 = vector.broadcast %571 : vector<4x1xf32> to vector<4x384xf32>
    %574 = arith.mulf %572, %573 : vector<4x384xf32>
    %575 = arith.addf %570, %574 : vector<4x384xf32>
    %576 = vector.extract_strided_slice %6 {offsets = [0, 53], sizes = [4, 1], strides = [1, 1]} : vector<4x81xf32> to vector<4x1xf32>
    %577 = vector.extract_strided_slice %535 {offsets = [0, 32], sizes = [4, 384], strides = [1, 1]} : vector<4x416xf32> to vector<4x384xf32>
    %578 = vector.broadcast %576 : vector<4x1xf32> to vector<4x384xf32>
    %579 = arith.mulf %577, %578 : vector<4x384xf32>
    %580 = arith.addf %575, %579 : vector<4x384xf32>
    %c0_40 = arith.constant 0 : index
    %c1152 = arith.constant 1152 : index
    %581 = vector.load %arg11[%c0_40, %c1152] : memref<4x1968xf32, #tpu.memory_space<vmem>>, vector<4x416xf32>
    %582 = vector.extract_strided_slice %6 {offsets = [0, 54], sizes = [4, 1], strides = [1, 1]} : vector<4x81xf32> to vector<4x1xf32>
    %583 = vector.extract_strided_slice %581 {offsets = [0, 0], sizes = [4, 384], strides = [1, 1]} : vector<4x416xf32> to vector<4x384xf32>
    %584 = vector.broadcast %582 : vector<4x1xf32> to vector<4x384xf32>
    %585 = arith.mulf %583, %584 : vector<4x384xf32>
    %586 = arith.addf %580, %585 : vector<4x384xf32>
    %587 = vector.extract_strided_slice %6 {offsets = [0, 55], sizes = [4, 1], strides = [1, 1]} : vector<4x81xf32> to vector<4x1xf32>
    %588 = vector.extract_strided_slice %581 {offsets = [0, 4], sizes = [4, 384], strides = [1, 1]} : vector<4x416xf32> to vector<4x384xf32>
    %589 = vector.broadcast %587 : vector<4x1xf32> to vector<4x384xf32>
    %590 = arith.mulf %588, %589 : vector<4x384xf32>
    %591 = arith.addf %586, %590 : vector<4x384xf32>
    %592 = vector.extract_strided_slice %6 {offsets = [0, 56], sizes = [4, 1], strides = [1, 1]} : vector<4x81xf32> to vector<4x1xf32>
    %593 = vector.extract_strided_slice %581 {offsets = [0, 8], sizes = [4, 384], strides = [1, 1]} : vector<4x416xf32> to vector<4x384xf32>
    %594 = vector.broadcast %592 : vector<4x1xf32> to vector<4x384xf32>
    %595 = arith.mulf %593, %594 : vector<4x384xf32>
    %596 = arith.addf %591, %595 : vector<4x384xf32>
    %597 = vector.extract_strided_slice %6 {offsets = [0, 57], sizes = [4, 1], strides = [1, 1]} : vector<4x81xf32> to vector<4x1xf32>
    %598 = vector.extract_strided_slice %581 {offsets = [0, 12], sizes = [4, 384], strides = [1, 1]} : vector<4x416xf32> to vector<4x384xf32>
    %599 = vector.broadcast %597 : vector<4x1xf32> to vector<4x384xf32>
    %600 = arith.mulf %598, %599 : vector<4x384xf32>
    %601 = arith.addf %596, %600 : vector<4x384xf32>
    %602 = vector.extract_strided_slice %6 {offsets = [0, 58], sizes = [4, 1], strides = [1, 1]} : vector<4x81xf32> to vector<4x1xf32>
    %603 = vector.extract_strided_slice %581 {offsets = [0, 16], sizes = [4, 384], strides = [1, 1]} : vector<4x416xf32> to vector<4x384xf32>
    %604 = vector.broadcast %602 : vector<4x1xf32> to vector<4x384xf32>
    %605 = arith.mulf %603, %604 : vector<4x384xf32>
    %606 = arith.addf %601, %605 : vector<4x384xf32>
    %607 = vector.extract_strided_slice %6 {offsets = [0, 59], sizes = [4, 1], strides = [1, 1]} : vector<4x81xf32> to vector<4x1xf32>
    %608 = vector.extract_strided_slice %581 {offsets = [0, 20], sizes = [4, 384], strides = [1, 1]} : vector<4x416xf32> to vector<4x384xf32>
    %609 = vector.broadcast %607 : vector<4x1xf32> to vector<4x384xf32>
    %610 = arith.mulf %608, %609 : vector<4x384xf32>
    %611 = arith.addf %606, %610 : vector<4x384xf32>
    %612 = vector.extract_strided_slice %6 {offsets = [0, 60], sizes = [4, 1], strides = [1, 1]} : vector<4x81xf32> to vector<4x1xf32>
    %613 = vector.extract_strided_slice %581 {offsets = [0, 24], sizes = [4, 384], strides = [1, 1]} : vector<4x416xf32> to vector<4x384xf32>
    %614 = vector.broadcast %612 : vector<4x1xf32> to vector<4x384xf32>
    %615 = arith.mulf %613, %614 : vector<4x384xf32>
    %616 = arith.addf %611, %615 : vector<4x384xf32>
    %617 = vector.extract_strided_slice %6 {offsets = [0, 61], sizes = [4, 1], strides = [1, 1]} : vector<4x81xf32> to vector<4x1xf32>
    %618 = vector.extract_strided_slice %581 {offsets = [0, 28], sizes = [4, 384], strides = [1, 1]} : vector<4x416xf32> to vector<4x384xf32>
    %619 = vector.broadcast %617 : vector<4x1xf32> to vector<4x384xf32>
    %620 = arith.mulf %618, %619 : vector<4x384xf32>
    %621 = arith.addf %616, %620 : vector<4x384xf32>
    %622 = vector.extract_strided_slice %6 {offsets = [0, 62], sizes = [4, 1], strides = [1, 1]} : vector<4x81xf32> to vector<4x1xf32>
    %623 = vector.extract_strided_slice %581 {offsets = [0, 32], sizes = [4, 384], strides = [1, 1]} : vector<4x416xf32> to vector<4x384xf32>
    %624 = vector.broadcast %622 : vector<4x1xf32> to vector<4x384xf32>
    %625 = arith.mulf %623, %624 : vector<4x384xf32>
    %626 = arith.addf %621, %625 : vector<4x384xf32>
    %c0_41 = arith.constant 0 : index
    %c1344 = arith.constant 1344 : index
    %627 = vector.load %arg11[%c0_41, %c1344] : memref<4x1968xf32, #tpu.memory_space<vmem>>, vector<4x416xf32>
    %628 = vector.extract_strided_slice %6 {offsets = [0, 63], sizes = [4, 1], strides = [1, 1]} : vector<4x81xf32> to vector<4x1xf32>
    %629 = vector.extract_strided_slice %627 {offsets = [0, 0], sizes = [4, 384], strides = [1, 1]} : vector<4x416xf32> to vector<4x384xf32>
    %630 = vector.broadcast %628 : vector<4x1xf32> to vector<4x384xf32>
    %631 = arith.mulf %629, %630 : vector<4x384xf32>
    %632 = arith.addf %626, %631 : vector<4x384xf32>
    %633 = vector.extract_strided_slice %6 {offsets = [0, 64], sizes = [4, 1], strides = [1, 1]} : vector<4x81xf32> to vector<4x1xf32>
    %634 = vector.extract_strided_slice %627 {offsets = [0, 4], sizes = [4, 384], strides = [1, 1]} : vector<4x416xf32> to vector<4x384xf32>
    %635 = vector.broadcast %633 : vector<4x1xf32> to vector<4x384xf32>
    %636 = arith.mulf %634, %635 : vector<4x384xf32>
    %637 = arith.addf %632, %636 : vector<4x384xf32>
    %638 = vector.extract_strided_slice %6 {offsets = [0, 65], sizes = [4, 1], strides = [1, 1]} : vector<4x81xf32> to vector<4x1xf32>
    %639 = vector.extract_strided_slice %627 {offsets = [0, 8], sizes = [4, 384], strides = [1, 1]} : vector<4x416xf32> to vector<4x384xf32>
    %640 = vector.broadcast %638 : vector<4x1xf32> to vector<4x384xf32>
    %641 = arith.mulf %639, %640 : vector<4x384xf32>
    %642 = arith.addf %637, %641 : vector<4x384xf32>
    %643 = vector.extract_strided_slice %6 {offsets = [0, 66], sizes = [4, 1], strides = [1, 1]} : vector<4x81xf32> to vector<4x1xf32>
    %644 = vector.extract_strided_slice %627 {offsets = [0, 12], sizes = [4, 384], strides = [1, 1]} : vector<4x416xf32> to vector<4x384xf32>
    %645 = vector.broadcast %643 : vector<4x1xf32> to vector<4x384xf32>
    %646 = arith.mulf %644, %645 : vector<4x384xf32>
    %647 = arith.addf %642, %646 : vector<4x384xf32>
    %648 = vector.extract_strided_slice %6 {offsets = [0, 67], sizes = [4, 1], strides = [1, 1]} : vector<4x81xf32> to vector<4x1xf32>
    %649 = vector.extract_strided_slice %627 {offsets = [0, 16], sizes = [4, 384], strides = [1, 1]} : vector<4x416xf32> to vector<4x384xf32>
    %650 = vector.broadcast %648 : vector<4x1xf32> to vector<4x384xf32>
    %651 = arith.mulf %649, %650 : vector<4x384xf32>
    %652 = arith.addf %647, %651 : vector<4x384xf32>
    %653 = vector.extract_strided_slice %6 {offsets = [0, 68], sizes = [4, 1], strides = [1, 1]} : vector<4x81xf32> to vector<4x1xf32>
    %654 = vector.extract_strided_slice %627 {offsets = [0, 20], sizes = [4, 384], strides = [1, 1]} : vector<4x416xf32> to vector<4x384xf32>
    %655 = vector.broadcast %653 : vector<4x1xf32> to vector<4x384xf32>
    %656 = arith.mulf %654, %655 : vector<4x384xf32>
    %657 = arith.addf %652, %656 : vector<4x384xf32>
    %658 = vector.extract_strided_slice %6 {offsets = [0, 69], sizes = [4, 1], strides = [1, 1]} : vector<4x81xf32> to vector<4x1xf32>
    %659 = vector.extract_strided_slice %627 {offsets = [0, 24], sizes = [4, 384], strides = [1, 1]} : vector<4x416xf32> to vector<4x384xf32>
    %660 = vector.broadcast %658 : vector<4x1xf32> to vector<4x384xf32>
    %661 = arith.mulf %659, %660 : vector<4x384xf32>
    %662 = arith.addf %657, %661 : vector<4x384xf32>
    %663 = vector.extract_strided_slice %6 {offsets = [0, 70], sizes = [4, 1], strides = [1, 1]} : vector<4x81xf32> to vector<4x1xf32>
    %664 = vector.extract_strided_slice %627 {offsets = [0, 28], sizes = [4, 384], strides = [1, 1]} : vector<4x416xf32> to vector<4x384xf32>
    %665 = vector.broadcast %663 : vector<4x1xf32> to vector<4x384xf32>
    %666 = arith.mulf %664, %665 : vector<4x384xf32>
    %667 = arith.addf %662, %666 : vector<4x384xf32>
    %668 = vector.extract_strided_slice %6 {offsets = [0, 71], sizes = [4, 1], strides = [1, 1]} : vector<4x81xf32> to vector<4x1xf32>
    %669 = vector.extract_strided_slice %627 {offsets = [0, 32], sizes = [4, 384], strides = [1, 1]} : vector<4x416xf32> to vector<4x384xf32>
    %670 = vector.broadcast %668 : vector<4x1xf32> to vector<4x384xf32>
    %671 = arith.mulf %669, %670 : vector<4x384xf32>
    %672 = arith.addf %667, %671 : vector<4x384xf32>
    %c0_42 = arith.constant 0 : index
    %c1536 = arith.constant 1536 : index
    %673 = vector.load %arg11[%c0_42, %c1536] : memref<4x1968xf32, #tpu.memory_space<vmem>>, vector<4x416xf32>
    %674 = vector.extract_strided_slice %6 {offsets = [0, 72], sizes = [4, 1], strides = [1, 1]} : vector<4x81xf32> to vector<4x1xf32>
    %675 = vector.extract_strided_slice %673 {offsets = [0, 0], sizes = [4, 384], strides = [1, 1]} : vector<4x416xf32> to vector<4x384xf32>
    %676 = vector.broadcast %674 : vector<4x1xf32> to vector<4x384xf32>
    %677 = arith.mulf %675, %676 : vector<4x384xf32>
    %678 = arith.addf %672, %677 : vector<4x384xf32>
    %679 = vector.extract_strided_slice %6 {offsets = [0, 73], sizes = [4, 1], strides = [1, 1]} : vector<4x81xf32> to vector<4x1xf32>
    %680 = vector.extract_strided_slice %673 {offsets = [0, 4], sizes = [4, 384], strides = [1, 1]} : vector<4x416xf32> to vector<4x384xf32>
    %681 = vector.broadcast %679 : vector<4x1xf32> to vector<4x384xf32>
    %682 = arith.mulf %680, %681 : vector<4x384xf32>
    %683 = arith.addf %678, %682 : vector<4x384xf32>
    %684 = vector.extract_strided_slice %6 {offsets = [0, 74], sizes = [4, 1], strides = [1, 1]} : vector<4x81xf32> to vector<4x1xf32>
    %685 = vector.extract_strided_slice %673 {offsets = [0, 8], sizes = [4, 384], strides = [1, 1]} : vector<4x416xf32> to vector<4x384xf32>
    %686 = vector.broadcast %684 : vector<4x1xf32> to vector<4x384xf32>
    %687 = arith.mulf %685, %686 : vector<4x384xf32>
    %688 = arith.addf %683, %687 : vector<4x384xf32>
    %689 = vector.extract_strided_slice %6 {offsets = [0, 75], sizes = [4, 1], strides = [1, 1]} : vector<4x81xf32> to vector<4x1xf32>
    %690 = vector.extract_strided_slice %673 {offsets = [0, 12], sizes = [4, 384], strides = [1, 1]} : vector<4x416xf32> to vector<4x384xf32>
    %691 = vector.broadcast %689 : vector<4x1xf32> to vector<4x384xf32>
    %692 = arith.mulf %690, %691 : vector<4x384xf32>
    %693 = arith.addf %688, %692 : vector<4x384xf32>
    %694 = vector.extract_strided_slice %6 {offsets = [0, 76], sizes = [4, 1], strides = [1, 1]} : vector<4x81xf32> to vector<4x1xf32>
    %695 = vector.extract_strided_slice %673 {offsets = [0, 16], sizes = [4, 384], strides = [1, 1]} : vector<4x416xf32> to vector<4x384xf32>
    %696 = vector.broadcast %694 : vector<4x1xf32> to vector<4x384xf32>
    %697 = arith.mulf %695, %696 : vector<4x384xf32>
    %698 = arith.addf %693, %697 : vector<4x384xf32>
    %699 = vector.extract_strided_slice %6 {offsets = [0, 77], sizes = [4, 1], strides = [1, 1]} : vector<4x81xf32> to vector<4x1xf32>
    %700 = vector.extract_strided_slice %673 {offsets = [0, 20], sizes = [4, 384], strides = [1, 1]} : vector<4x416xf32> to vector<4x384xf32>
    %701 = vector.broadcast %699 : vector<4x1xf32> to vector<4x384xf32>
    %702 = arith.mulf %700, %701 : vector<4x384xf32>
    %703 = arith.addf %698, %702 : vector<4x384xf32>
    %704 = vector.extract_strided_slice %6 {offsets = [0, 78], sizes = [4, 1], strides = [1, 1]} : vector<4x81xf32> to vector<4x1xf32>
    %705 = vector.extract_strided_slice %673 {offsets = [0, 24], sizes = [4, 384], strides = [1, 1]} : vector<4x416xf32> to vector<4x384xf32>
    %706 = vector.broadcast %704 : vector<4x1xf32> to vector<4x384xf32>
    %707 = arith.mulf %705, %706 : vector<4x384xf32>
    %708 = arith.addf %703, %707 : vector<4x384xf32>
    %709 = vector.extract_strided_slice %6 {offsets = [0, 79], sizes = [4, 1], strides = [1, 1]} : vector<4x81xf32> to vector<4x1xf32>
    %710 = vector.extract_strided_slice %673 {offsets = [0, 28], sizes = [4, 384], strides = [1, 1]} : vector<4x416xf32> to vector<4x384xf32>
    %711 = vector.broadcast %709 : vector<4x1xf32> to vector<4x384xf32>
    %712 = arith.mulf %710, %711 : vector<4x384xf32>
    %713 = arith.addf %708, %712 : vector<4x384xf32>
    %714 = vector.extract_strided_slice %6 {offsets = [0, 80], sizes = [4, 1], strides = [1, 1]} : vector<4x81xf32> to vector<4x1xf32>
    %715 = vector.extract_strided_slice %673 {offsets = [0, 32], sizes = [4, 384], strides = [1, 1]} : vector<4x416xf32> to vector<4x384xf32>
    %716 = vector.broadcast %714 : vector<4x1xf32> to vector<4x384xf32>
    %717 = arith.mulf %715, %716 : vector<4x384xf32>
    %718 = arith.addf %713, %717 : vector<4x384xf32>
    %719 = vector.broadcast %7 : vector<4x1xf32> to vector<4x384xf32>
    %720 = arith.addf %718, %719 : vector<4x384xf32>
    %721 = vector.extract_strided_slice %720 {offsets = [0, 0], sizes = [1, 384], strides = [1, 1]} : vector<4x384xf32> to vector<1x384xf32>
    %722 = vector.broadcast %10 : vector<4x1xf32> to vector<4x384xf32>
    %723 = vector.broadcast %721 : vector<1x384xf32> to vector<4x384xf32>
    %724 = arith.mulf %722, %723 : vector<4x384xf32>
    %725 = vector.extract_strided_slice %720 {offsets = [1, 0], sizes = [1, 384], strides = [1, 1]} : vector<4x384xf32> to vector<1x384xf32>
    %726 = vector.broadcast %11 : vector<4x1xf32> to vector<4x384xf32>
    %727 = vector.broadcast %725 : vector<1x384xf32> to vector<4x384xf32>
    %728 = arith.mulf %726, %727 : vector<4x384xf32>
    %729 = arith.addf %724, %728 : vector<4x384xf32>
    %730 = vector.extract_strided_slice %720 {offsets = [2, 0], sizes = [1, 384], strides = [1, 1]} : vector<4x384xf32> to vector<1x384xf32>
    %731 = vector.broadcast %12 : vector<4x1xf32> to vector<4x384xf32>
    %732 = vector.broadcast %730 : vector<1x384xf32> to vector<4x384xf32>
    %733 = arith.mulf %731, %732 : vector<4x384xf32>
    %734 = arith.addf %729, %733 : vector<4x384xf32>
    %735 = vector.extract_strided_slice %720 {offsets = [3, 0], sizes = [1, 384], strides = [1, 1]} : vector<4x384xf32> to vector<1x384xf32>
    %736 = vector.broadcast %13 : vector<4x1xf32> to vector<4x384xf32>
    %737 = vector.broadcast %735 : vector<1x384xf32> to vector<4x384xf32>
    %738 = arith.mulf %736, %737 : vector<4x384xf32>
    %739 = arith.addf %734, %738 : vector<4x384xf32>
    %740 = vector.broadcast %9 : vector<4x1xf32> to vector<4x384xf32>
    %741 = arith.addf %739, %740 : vector<4x384xf32>
    %c0_43 = arith.constant 0 : index
    %c976 = arith.constant 976 : index
    %742 = vector.load %arg10[%c0_43, %c976] : memref<4x2304xf32, #tpu.memory_space<vmem>>, vector<4x384xf32>
    %743 = arith.mulf %742, %741 : vector<4x384xf32>
    %c0_44 = arith.constant 0 : index
    %c0_45 = arith.constant 0 : index
    %c0_46 = arith.constant 0 : index
    %744 = vector.load %arg9[%c0_44, %c0_45, %c0_46] : memref<1x4x384xf32, #tpu.memory_space<vmem>>, vector<1x4x384xf32>
    %745 = vector.shape_cast %744 : vector<1x4x384xf32> to vector<4x384xf32>
    %746 = vector.shape_cast %743 : vector<4x384xf32> to vector<1x4x384xf32>
    tpu.vector_store %arg9[%c0_44, %c0_45, %c0_46], %746 {strides = array<i32>} : memref<1x4x384xf32, #tpu.memory_space<vmem>>, vector<1x4x384xf32>,
    return
  }
  func.func @transform_1(%arg0: i32, %arg1: i32) -> (i32, i32) {
    %c0_i32 = arith.constant 0 : i32
    %c0_i32_0 = arith.constant 0 : i32
    %c0_i32_1 = arith.constant 0 : i32
    return %c0_i32, %c0_i32_0 : i32, i32
  }
  func.func @transform_2(%arg0: i32, %arg1: i32) -> (i32, i32) {
    %c0_i32 = arith.constant 0 : i32
    %c0_i32_0 = arith.constant 0 : i32
    %c0_i32_1 = arith.constant 0 : i32
    return %c0_i32, %c0_i32_0 : i32, i32
  }
  func.func @transform_3(%arg0: i32, %arg1: i32) -> (i32, i32) {
    %c0_i32 = arith.constant 0 : i32
    %c0_i32_0 = arith.constant 0 : i32
    %c0_i32_1 = arith.constant 0 : i32
    return %c0_i32, %c0_i32_0 : i32, i32
  }
  func.func @transform_4(%arg0: i32, %arg1: i32) -> (i32, i32) {
    %c0_i32 = arith.constant 0 : i32
    %c0_i32_0 = arith.constant 0 : i32
    %c0_i32_1 = arith.constant 0 : i32
    return %c0_i32, %c0_i32_0 : i32, i32
  }
  func.func @transform_5(%arg0: i32, %arg1: i32) -> (i32, i32) {
    %c0_i32 = arith.constant 0 : i32
    %c0_i32_0 = arith.constant 0 : i32
    %c0_i32_1 = arith.constant 0 : i32
    return %c0_i32, %c0_i32_0 : i32, i32
  }
  func.func @transform_6(%arg0: i32, %arg1: i32) -> (i32, i32) {
    %c0_i32 = arith.constant 0 : i32
    %c0_i32_0 = arith.constant 0 : i32
    %c0_i32_1 = arith.constant 0 : i32
    return %c0_i32, %c0_i32_0 : i32, i32
  }
  func.func @transform_7(%arg0: i32, %arg1: i32) -> (i32, i32, i32) {
    %c0_i32 = arith.constant 0 : i32
    %c0_i32_0 = arith.constant 0 : i32
    return %arg0, %c0_i32, %arg1 : i32, i32, i32
  }
}

</mosaic_0001>

<llo_original>
// kernel: tpu_custom_call.1
$region0: #{tpu_custom_call.1}
  #allocation0 [shape = 'u32[]', space=smem, size = 0x4, offset = 0x4, fixed_abs, tag = 'smem constant byte address 0x4 - core index']
  #allocation1 [shape = 'u32[144,128]{1,0:T(1,128)}', space=vmem, size = 0x12000, scoped, tag = 'internal scratch']
  #allocation2 [shape = 'f32[4,2304]{1,0:T(4,128)}', space=vmem, size = 0x9000, scoped, tag = 'scratch operand']
  #allocation3 [shape = 'f32[4,1968]{1,0:T(4,128)}', space=vmem, size = 0x8000, scoped, tag = 'scratch operand']
  #allocation4 [shape = 's32[1]{0}', space=sflag, size = 0x4, scoped, tag = 'scratch operand']
  #allocation7 [shape = 's32[]', space=sflag, size = 0x4, offset = 0, fixed_abs, tag = 'sflag constant byte address 0x0 - dummy sync flag']
  #allocation8 [shape = 's32[]', space=sflag, size = 0x4, offset = 0, fixed_abs, tag = 'sflag constant byte address 0x0 - dummy sync flag']
  #allocation9 [shape = 'u32[]', space=smem, size = 0x4, offset = 0x44, fixed_abs, tag = 'smem constant byte address 0x44 - assertion arg 0']
  #allocation10 [shape = 'u32[]', space=smem, size = 0x4, offset = 0x48, fixed_abs, tag = 'smem constant byte address 0x48 - assertion arg 1']
  %s0 = inlined_call_operand.hbm [shape: f32[2,4,2688], index: 0, kind: input, shape index: {}]
  %s1 = inlined_call_operand.vmem [shape: f32[4,49], index: 1, kind: input, shape index: {}]
  %s2 = inlined_call_operand.vmem [shape: f32[4,1], index: 2, kind: input, shape index: {}]
  %s3 = inlined_call_operand.vmem [shape: f32[4,81], index: 3, kind: input, shape index: {}]
  %s4 = inlined_call_operand.vmem [shape: f32[4,1], index: 4, kind: input, shape index: {}]
  %s5 = inlined_call_operand.vmem [shape: f32[4,4], index: 5, kind: input, shape index: {}]
  %s6 = inlined_call_operand.vmem [shape: f32[4,1], index: 6, kind: input, shape index: {}]
  %s7 = inlined_call_operand.hbm [shape: f32[2,4,768], index: 7, kind: output, shape index: {}]
  %s8 = sld [smem:[#allocation0]]
  $region61: #{tpu_custom_call.1} parent=0
    _
  %s10 = ssub.s32 1, %s8
  %s11 = scalar_select 0, %s10, %s8
  $region1: #{tpu_custom_call.1} parent=0
    #allocation5 [shape = 'u8[12288]{0}', space=vmem, size = 0x3000, scoped, tag = 'output window, operand 0']
    #allocation6 [shape = 's32[2]{0}', space=sflag, size = 0x8, scoped, tag = 'scoped memory for tpu_custom_call.1']
    %12 = vsyncpa [#allocation6], 0
    %s13 = scalar_lea.sflag [#allocation6], 1
    %14 = vsyncpa %s13, 0
    loop: start=0, step=1, limit=6
    $region2: #{tpu_custom_call.1} parent=1 // loop_pre_header
      _
    $region3: #{tpu_custom_call.1} parent=1 // loop_header
      %s16 = sphi 0, %s20
      %p17 = scmp.ge.s32.totalorder %s16, 6
      %s23 = sphi 0, %s35
      %s24 = sphi 0, %s31
      %s25 = sphi 0, %s23
      %s26 = sphi 0, %s24
      %s27 = sphi 0, %s25
      %s28 = sphi 0, %s26
      %s36 = sphi 0, %s36
      %s38 = sphi 0, %s36
      %s39 = sphi 0, %s38
      %s53 = sphi 0, %s39
      %s57 = sphi 0, %s57
      %s59 = sphi 0, %s57
      %s60 = sphi 0, %s59
      %s74 = sphi 0, %s60
      %s78 = sphi 0, %s78
      %s80 = sphi 0, %s78
      %s81 = sphi 0, %s80
      %s95 = sphi 0, %s81
      %s99 = sphi 0, %s99
      %s101 = sphi 0, %s99
      %s102 = sphi 0, %s101
      %s116 = sphi 0, %s102
      %s120 = sphi 0, %s120
      %s122 = sphi 0, %s120
      %s123 = sphi 0, %s122
      %s137 = sphi 0, %s123
      %s141 = sphi 0, %s141
      %s143 = sphi 0, %s141
      %s144 = sphi 0, %s143
      %s158 = sphi 0, %s144
      %s166 = sphi 0, %s168
      %s169 = sphi 0, %s166
      %s170 = sphi 0, %s169
      %s186 = sphi 0, %s170
    $region4: #{tpu_custom_call.1} parent=1 // loop_header_branch
      %19 = sbr.rel (%p17) target = $region8
    $region5: #{tpu_custom_call.1} parent=1 // loop_body
      %s21 = ssub.s32 %s16, 1
      %s22 = ssub.s32 %s16, 2
      %s29 = sadd.s32 1, %s24
      %p30 = scmp.ge.s32.totalorder %s29, 2
      %s31 = scalar_select %p30, 0, %s29
      %s32 = sadd.s32 1, %s23
      %s33 = scalar_select %p30, %s32, %s23
      %p34 = scmp.ge.s32.totalorder %s33, 2
      %s35 = scalar_select %p34, 0, %s33
      %s37 = sadd.s32 %s36, 1
      %p40 = scmp.eq.s32.totalorder %s16, 3
      %p41 = scmp.ne.s32.totalorder %s36, %s38
      %p42 = scmp.eq.s32.totalorder %s16, 0
      %p43 = por %p41, %p42
      %p44 = scmp.ne.s32.totalorder %s36, %s38
      %p45 = scmp.eq.s32.totalorder %s21, 3
      %p46 = por %p44, %p45
      %p47 = scmp.ne.s32.totalorder %s38, %s39
      %p48 = scmp.eq.s32.totalorder %s21, 0
      %p49 = por %p47, %p48
      %p50 = scmp.ne.s32.totalorder %s38, %s39
      %p51 = scmp.eq.s32.totalorder %s22, 3
      %p52 = por %p50, %p51
      %p54 = scmp.ne.s32.totalorder %s39, %s53
      %p55 = scmp.eq.s32.totalorder %s22, 0
      %p56 = por %p54, %p55
      %s58 = sadd.s32 %s57, 1
      %p61 = scmp.eq.s32.totalorder %s16, 3
      %p62 = scmp.ne.s32.totalorder %s57, %s59
      %p63 = scmp.eq.s32.totalorder %s16, 0
      %p64 = por %p62, %p63
      %p65 = scmp.ne.s32.totalorder %s57, %s59
      %p66 = scmp.eq.s32.totalorder %s21, 3
      %p67 = por %p65, %p66
      %p68 = scmp.ne.s32.totalorder %s59, %s60
      %p69 = scmp.eq.s32.totalorder %s21, 0
      %p70 = por %p68, %p69
      %p71 = scmp.ne.s32.totalorder %s59, %s60
      %p72 = scmp.eq.s32.totalorder %s22, 3
      %p73 = por %p71, %p72
      %p75 = scmp.ne.s32.totalorder %s60, %s74
      %p76 = scmp.eq.s32.totalorder %s22, 0
      %p77 = por %p75, %p76
      %s79 = sadd.s32 %s78, 1
      %p82 = scmp.eq.s32.totalorder %s16, 3
      %p83 = scmp.ne.s32.totalorder %s78, %s80
      %p84 = scmp.eq.s32.totalorder %s16, 0
      %p85 = por %p83, %p84
      %p86 = scmp.ne.s32.totalorder %s78, %s80
      %p87 = scmp.eq.s32.totalorder %s21, 3
      %p88 = por %p86, %p87
      %p89 = scmp.ne.s32.totalorder %s80, %s81
      %p90 = scmp.eq.s32.totalorder %s21, 0
      %p91 = por %p89, %p90
      %p92 = scmp.ne.s32.totalorder %s80, %s81
      %p93 = scmp.eq.s32.totalorder %s22, 3
      %p94 = por %p92, %p93
      %p96 = scmp.ne.s32.totalorder %s81, %s95
      %p97 = scmp.eq.s32.totalorder %s22, 0
      %p98 = por %p96, %p97
      %s100 = sadd.s32 %s99, 1
      %p103 = scmp.eq.s32.totalorder %s16, 3
      %p104 = scmp.ne.s32.totalorder %s99, %s101
      %p105 = scmp.eq.s32.totalorder %s16, 0
      %p106 = por %p104, %p105
      %p107 = scmp.ne.s32.totalorder %s99, %s101
      %p108 = scmp.eq.s32.totalorder %s21, 3
      %p109 = por %p107, %p108
      %p110 = scmp.ne.s32.totalorder %s101, %s102
      %p111 = scmp.eq.s32.totalorder %s21, 0
      %p112 = por %p110, %p111
      %p113 = scmp.ne.s32.totalorder %s101, %s102
      %p114 = scmp.eq.s32.totalorder %s22, 3
      %p115 = por %p113, %p114
      %p117 = scmp.ne.s32.totalorder %s102, %s116
      %p118 = scmp.eq.s32.totalorder %s22, 0
      %p119 = por %p117, %p118
      %s121 = sadd.s32 %s120, 1
      %p124 = scmp.eq.s32.totalorder %s16, 3
      %p125 = scmp.ne.s32.totalorder %s120, %s122
      %p126 = scmp.eq.s32.totalorder %s16, 0
      %p127 = por %p125, %p126
      %p128 = scmp.ne.s32.totalorder %s120, %s122
      %p129 = scmp.eq.s32.totalorder %s21, 3
      %p130 = por %p128, %p129
      %p131 = scmp.ne.s32.totalorder %s122, %s123
      %p132 = scmp.eq.s32.totalorder %s21, 0
      %p133 = por %p131, %p132
      %p134 = scmp.ne.s32.totalorder %s122, %s123
      %p135 = scmp.eq.s32.totalorder %s22, 3
      %p136 = por %p134, %p135
      %p138 = scmp.ne.s32.totalorder %s123, %s137
      %p139 = scmp.eq.s32.totalorder %s22, 0
      %p140 = por %p138, %p139
      %s142 = sadd.s32 %s141, 1
      %p145 = scmp.eq.s32.totalorder %s16, 3
      %p146 = scmp.ne.s32.totalorder %s141, %s143
      %p147 = scmp.eq.s32.totalorder %s16, 0
      %p148 = por %p146, %p147
      %p149 = scmp.ne.s32.totalorder %s141, %s143
      %p150 = scmp.eq.s32.totalorder %s21, 3
      %p151 = por %p149, %p150
      %p152 = scmp.ne.s32.totalorder %s143, %s144
      %p153 = scmp.eq.s32.totalorder %s21, 0
      %p154 = por %p152, %p153
      %p155 = scmp.ne.s32.totalorder %s143, %s144
      %p156 = scmp.eq.s32.totalorder %s22, 3
      %p157 = por %p155, %p156
      %p159 = scmp.ne.s32.totalorder %s144, %s158
      %p160 = scmp.eq.s32.totalorder %s22, 0
      %p161 = por %p159, %p160
      %s162 = ssub.s32 %s23, %s35
      %s163 = ssub.s32 %s24, %s31
      %s164 = sor.u32 %s162, %s163
      %p165 = scmp.eq.s32.totalorder %s164, 0
      %s167 = sadd.s32 %s166, 1
      %s168 = scalar_select %p165, %s166, %s167
      %p171 = pneg %p165
      %p172 = scmp.eq.s32.totalorder %s16, 3
      %p173 = por %p171, %p172
      %p174 = scmp.ne.s32.totalorder %s166, %s169
      %p175 = scmp.eq.s32.totalorder %s16, 0
      %p176 = por %p174, %p175
      %p177 = scmp.ne.s32.totalorder %s166, %s169
      %p178 = scmp.eq.s32.totalorder %s21, 3
      %p179 = por %p177, %p178
      %p180 = scmp.ne.s32.totalorder %s169, %s170
      %p181 = scmp.eq.s32.totalorder %s21, 0
      %p182 = por %p180, %p181
      %p183 = scmp.ne.s32.totalorder %s169, %s170
      %p184 = scmp.eq.s32.totalorder %s22, 3
      %p185 = por %p183, %p184
      %p187 = scmp.ne.s32.totalorder %s170, %s186
      %p188 = scmp.eq.s32.totalorder %s22, 0
      %p189 = por %p187, %p188
      %p190 = scmp.le.s32.totalorder 1, %s16
      %p191 = scmp.lt.s32.totalorder %s16, 5
      %p192 = pnand %p190, %p191
      %p193 = pneg %p192
      // Predicated region
      $region9: #{tpu_custom_call.1} parent=5 // pred_check
        _
      $region10: #{tpu_custom_call.1} parent=5 // pred_check_branch
        %195 = sbr.rel (%p192) target = $region12
      $region11: #{tpu_custom_call.1} parent=5 // pred_region
        %s196 = ssub.s32 %s16, 1
        // Predicated region
        $region13: #{tpu_custom_call.1} parent=11 // pred_check
          %p197 = pneg %p49
        $region14: #{tpu_custom_call.1} parent=11 // pred_check_branch
          %199 = sbr.rel (%p197) target = $region16
        $region15: #{tpu_custom_call.1} parent=11 // pred_region
          _
        $region16: #{tpu_custom_call.1} parent=11 // pred_fallthru
          _
        // Predicated region
        $region17: #{tpu_custom_call.1} parent=11 // pred_check
          %p200 = pneg %p70
        $region18: #{tpu_custom_call.1} parent=11 // pred_check_branch
          %202 = sbr.rel (%p200) target = $region20
        $region19: #{tpu_custom_call.1} parent=11 // pred_region
          _
        $region20: #{tpu_custom_call.1} parent=11 // pred_fallthru
          _
        // Predicated region
        $region21: #{tpu_custom_call.1} parent=11 // pred_check
          %p203 = pneg %p91
        $region22: #{tpu_custom_call.1} parent=11 // pred_check_branch
          %205 = sbr.rel (%p203) target = $region24
        $region23: #{tpu_custom_call.1} parent=11 // pred_region
          _
        $region24: #{tpu_custom_call.1} parent=11 // pred_fallthru
          _
        // Predicated region
        $region25: #{tpu_custom_call.1} parent=11 // pred_check
          %p206 = pneg %p112
        $region26: #{tpu_custom_call.1} parent=11 // pred_check_branch
          %208 = sbr.rel (%p206) target = $region28
        $region27: #{tpu_custom_call.1} parent=11 // pred_region
          _
        $region28: #{tpu_custom_call.1} parent=11 // pred_fallthru
          _
        // Predicated region
        $region29: #{tpu_custom_call.1} parent=11 // pred_check
          %p209 = pneg %p133
        $region30: #{tpu_custom_call.1} parent=11 // pred_check_branch
          %211 = sbr.rel (%p209) target = $region32
        $region31: #{tpu_custom_call.1} parent=11 // pred_region
          _
        $region32: #{tpu_custom_call.1} parent=11 // pred_fallthru
          _
        // Predicated region
        $region33: #{tpu_custom_call.1} parent=11 // pred_check
          %p212 = pneg %p154
        $region34: #{tpu_custom_call.1} parent=11 // pred_check_branch
          %214 = sbr.rel (%p212) target = $region36
        $region35: #{tpu_custom_call.1} parent=11 // pred_region
          _
        $region36: #{tpu_custom_call.1} parent=11 // pred_fallthru
          _
      $region12: #{tpu_custom_call.1} parent=5 // pred_fallthru
        _
      %p215 = scmp.lt.s32.totalorder %s16, 4
      // Predicated region
      $region37: #{tpu_custom_call.1} parent=5 // pred_check
        %p216 = pneg %p215
      $region38: #{tpu_custom_call.1} parent=5 // pred_check_branch
        %218 = sbr.rel (%p216) target = $region40
      $region39: #{tpu_custom_call.1} parent=5 // pred_region
        _
      $region40: #{tpu_custom_call.1} parent=5 // pred_fallthru
        _
      %p219 = scmp.le.s32.totalorder 1, %s16
      %p220 = scmp.lt.s32.totalorder %s16, 5
      %p221 = pnand %p219, %p220
      %p222 = pneg %p221
      // Predicated region
      $region41: #{tpu_custom_call.1} parent=5 // pred_check
        _
      $region42: #{tpu_custom_call.1} parent=5 // pred_check_branch
        %224 = sbr.rel (%p221) target = $region44
      $region43: #{tpu_custom_call.1} parent=5 // pred_region
        %s225 = ssub.s32 %s16, 1
        %p226 = pneg %p49
        %p227 = pneg %p46
        %p228 = pneg %p70
        %p229 = pneg %p67
        %p230 = pneg %p91
        %p231 = pneg %p88
        %p232 = pneg %p112
        %p233 = pneg %p109
        %p234 = pneg %p133
        %p235 = pneg %p130
        %p236 = pneg %p154
        %p237 = pneg %p151
        %p238 = pneg %p182
        %p239 = pneg %p179
        %s240 = sand.u32 %s169, 1
        %s241 = scalar_lea.sflag [#allocation6], %s240
        %s242 = sand.u32 %s169, 1
        %s243 = smul.addr %s242, 12
        %s244 = scalar_lea.vmem [#allocation5], %s243
        %s245 = smul.u32 3, %s26
        %s246 = smul.u32 %s26, 8
        %s247 = smul.u32 %s26, 384
        %s248 = sshra.s32 %s247, 7
        %s249 = sand.u32 %s247, 127
        %s250 = smul.u32 %s25, 21
        %s251 = sadd.s32 %s248, %s250
        %s252 = smul.addr %s251, 64
        %s253 = scalar_lea.hbm %s0, %s252
        // Predicated region
        $region45: #{tpu_custom_call.1} parent=43 // pred_check
          _
        $region46: #{tpu_custom_call.1} parent=43 // pred_check_branch
          %255 = sbr.rel target = $region48
        $region47: #{tpu_custom_call.1} parent=43 // pred_region
          %256 = sst [smem:[#allocation9]] [#allocation8]
          %257 = sst [smem:[#allocation10]] [#allocation7]
        $region48: #{tpu_custom_call.1} parent=43 // pred_fallthru
          _
        %259 = shalt.err (0)
        %s261 = sshll.u32 [#allocation2], 4
        %s262 = int_to_ptr.vmem [resolvable:$true] %s261
        %264 = dma.hbm_to_vmem [thread:$0]  %s253, 1152, %s262, [#allocation4]
        %v265 = vld [vmem:[%s1] sm:$0xf]
        %v266 = vld [vmem:[%s2] sm:$0xf]
        %v267 = vld [vmem:[%s3] sm:$0xf]
        %v268 = vld [vmem:[%s4] sm:$0xf]
        %v269 = vld [vmem:[%s5] sm:$0xf]
        %v270 = vld [vmem:[%s6] sm:$0xf]
        %vm271 = vcmask 388096
        %272 = vst.msk [vmem:[#allocation3 + $0x3c] sm:$0xf] %vm271, 0.0
        %s273 = scvt.s32.f32 %s246
        %v274 = vlaneseq
        %v275 = vand.u32 %v274, 127
        %v276 = vadd.s32 %v275, 128
        %v277 = vadd.s32 %v275, 256
        %v278 = vadd.s32 %v275, 384
        %v279 = vadd.s32 %v275, 512
        %v280 = vadd.s32 %v275, 640
        %v281 = vadd.s32 %v275, 768
        %v282 = vadd.s32 %v275, 896
        %v283 = vadd.s32 %v275, 1024
        %v284 = vadd.s32 %v275, 1152
        %v285 = vadd.s32 %v275, 1280
        %v286 = vadd.s32 %v275, 1408
        %v287 = vadd.s32 %v275, 1536
        %v288 = vadd.s32 %v275, 1664
        %v289 = vadd.s32 %v275, 1792
        %v290 = vcvt.s32.f32 %v275
        %v291 = vcvt.s32.f32 %v276
        %v292 = vcvt.s32.f32 %v277
        %v293 = vcvt.s32.f32 %v278
        %v294 = vcvt.s32.f32 %v279
        %v295 = vcvt.s32.f32 %v280
        %v296 = vcvt.s32.f32 %v281
        %v297 = vcvt.s32.f32 %v282
        %v298 = vcvt.s32.f32 %v283
        %v299 = vcvt.s32.f32 %v284
        %v300 = vcvt.s32.f32 %v285
        %v301 = vcvt.s32.f32 %v286
        %v302 = vcvt.s32.f32 %v287
        %v303 = vcvt.s32.f32 %v288
        %v304 = vcvt.s32.f32 %v289
        %v305 = vadd.f32 %v290, 0.5
        %v306 = vadd.f32 %v291, 0.5
        %v307 = vadd.f32 %v292, 0.5
        %v308 = vadd.f32 %v293, 0.5
        %v309 = vadd.f32 %v294, 0.5
        %v310 = vadd.f32 %v295, 0.5
        %v311 = vadd.f32 %v296, 0.5
        %v312 = vadd.f32 %v297, 0.5
        %v313 = vadd.f32 %v298, 0.5
        %v314 = vadd.f32 %v299, 0.5
        %v315 = vadd.f32 %v300, 0.5
        %v316 = vadd.f32 %v301, 0.5
        %v317 = vadd.f32 %v302, 0.5
        %v318 = vadd.f32 %v303, 0.5
        %v319 = vadd.f32 %v304, 0.5
        %v320 = vmul.f32 %v305, 0.020833334
        %v321 = vmul.f32 %v306, 0.020833334
        %v322 = vmul.f32 %v307, 0.020833334
        %v323 = vmul.f32 %v308, 0.020833334
        %v324 = vmul.f32 %v309, 0.020833334
        %v325 = vmul.f32 %v310, 0.020833334
        %v326 = vmul.f32 %v311, 0.020833334
        %v327 = vmul.f32 %v312, 0.020833334
        %v328 = vmul.f32 %v313, 0.020833334
        %v329 = vmul.f32 %v314, 0.020833334
        %v330 = vmul.f32 %v315, 0.020833334
        %v331 = vmul.f32 %v316, 0.020833334
        %v332 = vmul.f32 %v317, 0.020833334
        %v333 = vmul.f32 %v318, 0.020833334
        %v334 = vmul.f32 %v319, 0.020833334
        %v335 = vfloor.f32 %v320
        %v336 = vfloor.f32 %v321
        %v337 = vfloor.f32 %v322
        %v338 = vfloor.f32 %v323
        %v339 = vfloor.f32 %v324
        %v340 = vfloor.f32 %v325
        %v341 = vfloor.f32 %v326
        %v342 = vfloor.f32 %v327
        %v343 = vfloor.f32 %v328
        %v344 = vfloor.f32 %v329
        %v345 = vfloor.f32 %v330
        %v346 = vfloor.f32 %v331
        %v347 = vfloor.f32 %v332
        %v348 = vfloor.f32 %v333
        %v349 = vfloor.f32 %v334
        %v350 = vmul.f32 %v335, 48.0
        %v351 = vmul.f32 %v336, 48.0
        %v352 = vmul.f32 %v337, 48.0
        %v353 = vmul.f32 %v338, 48.0
        %v354 = vmul.f32 %v339, 48.0
        %v355 = vmul.f32 %v340, 48.0
        %v356 = vmul.f32 %v341, 48.0
        %v357 = vmul.f32 %v342, 48.0
        %v358 = vmul.f32 %v343, 48.0
        %v359 = vmul.f32 %v344, 48.0
        %v360 = vmul.f32 %v345, 48.0
        %v361 = vmul.f32 %v346, 48.0
        %v362 = vmul.f32 %v347, 48.0
        %v363 = vmul.f32 %v348, 48.0
        %v364 = vmul.f32 %v349, 48.0
        %v365 = vsub.f32 %v290, %v350
        %v366 = vsub.f32 %v291, %v351
        %v367 = vsub.f32 %v292, %v352
        %v368 = vsub.f32 %v293, %v353
        %v369 = vsub.f32 %v294, %v354
        %v370 = vsub.f32 %v295, %v355
        %v371 = vsub.f32 %v296, %v356
        %v372 = vsub.f32 %v297, %v357
        %v373 = vsub.f32 %v298, %v358
        %v374 = vsub.f32 %v299, %v359
        %v375 = vsub.f32 %v300, %v360
        %v376 = vsub.f32 %v301, %v361
        %v377 = vsub.f32 %v302, %v362
        %v378 = vsub.f32 %v303, %v363
        %v379 = vsub.f32 %v304, %v364
        %vm380 = vcmp.gt.f32.partialorder %v365, 15.5
        %vm381 = vcmp.gt.f32.partialorder %v366, 15.5
        %vm382 = vcmp.gt.f32.partialorder %v367, 15.5
        %vm383 = vcmp.gt.f32.partialorder %v368, 15.5
        %vm384 = vcmp.gt.f32.partialorder %v369, 15.5
        %vm385 = vcmp.gt.f32.partialorder %v370, 15.5
        %vm386 = vcmp.gt.f32.partialorder %v371, 15.5
        %vm387 = vcmp.gt.f32.partialorder %v372, 15.5
        %vm388 = vcmp.gt.f32.partialorder %v373, 15.5
        %vm389 = vcmp.gt.f32.partialorder %v374, 15.5
        %vm390 = vcmp.gt.f32.partialorder %v375, 15.5
        %vm391 = vcmp.gt.f32.partialorder %v376, 15.5
        %vm392 = vcmp.gt.f32.partialorder %v377, 15.5
        %vm393 = vcmp.gt.f32.partialorder %v378, 15.5
        %vm394 = vcmp.gt.f32.partialorder %v379, 15.5
        %vm395 = vcmp.lt.f32.partialorder %v365, 31.5
        %vm396 = vcmp.lt.f32.partialorder %v366, 31.5
        %vm397 = vcmp.lt.f32.partialorder %v367, 31.5
        %vm398 = vcmp.lt.f32.partialorder %v368, 31.5
        %vm399 = vcmp.lt.f32.partialorder %v369, 31.5
        %vm400 = vcmp.lt.f32.partialorder %v370, 31.5
        %vm401 = vcmp.lt.f32.partialorder %v371, 31.5
        %vm402 = vcmp.lt.f32.partialorder %v372, 31.5
        %vm403 = vcmp.lt.f32.partialorder %v373, 31.5
        %vm404 = vcmp.lt.f32.partialorder %v374, 31.5
        %vm405 = vcmp.lt.f32.partialorder %v375, 31.5
        %vm406 = vcmp.lt.f32.partialorder %v376, 31.5
        %vm407 = vcmp.lt.f32.partialorder %v377, 31.5
        %vm408 = vcmp.lt.f32.partialorder %v378, 31.5
        %vm409 = vcmp.lt.f32.partialorder %v379, 31.5
        %vm410 = vmand %vm380, %vm395
        %vm411 = vmand %vm381, %vm396
        %vm412 = vmand %vm382, %vm397
        %vm413 = vmand %vm383, %vm398
        %vm414 = vmand %vm384, %vm399
        %vm415 = vmand %vm385, %vm400
        %vm416 = vmand %vm386, %vm401
        %vm417 = vmand %vm387, %vm402
        %vm418 = vmand %vm388, %vm403
        %vm419 = vmand %vm389, %vm404
        %vm420 = vmand %vm390, %vm405
        %vm421 = vmand %vm391, %vm406
        %vm422 = vmand %vm392, %vm407
        %vm423 = vmand %vm393, %vm408
        %vm424 = vmand %vm394, %vm409
        %s425 = smul.u32 4, 1
        %s426 = smul.u32 %s425, 18
        %s427 = sshll.u32 %s426, 4
        %428 = dma.done [#allocation4], %s427
        %v429 = vld [vmem:[#allocation2] sm:$0xff]
        %v430 = vld [vmem:[#allocation2 + $0x8] sm:$0xff]
        %v431 = vld [vmem:[#allocation2 + $0x10] sm:$0xff]
        %v432 = vld [vmem:[#allocation2 + $0x18] sm:$0xff]
        %v433 = vld [vmem:[#allocation2 + $0x20] sm:$0xff]
        %v434 = vld [vmem:[#allocation2 + $0x28] sm:$0xff]
        %v435 = vld [vmem:[#allocation2 + $0x30] sm:$0xff]
        %v436 = vld [vmem:[#allocation2 + $0x38] sm:$0xff]
        %438 = vset.pattern.permute.xlu0 0
        %439 = vperm.xlu0 %438, %v265
        %v440 = vpop.permute.xlu0 %439
        %v442 = vunpack.c.l.s4 839922192
        %v443 = vunpack.c.0.s8 %v442
        %v444 = vlaneseq
        %v445 = vshrl.u32 %v444, 7
        %v446 = vsub.s32 %v443, %v445
        %v447 = vrot.slane %v440, %v446
        %v449 = vmul.f32 %v429, %v447
        %v450 = vmul.f32 %v430, %v447
        %v451 = vmul.f32 %v431, %v447
        %v452 = vmul.f32 %v432, %v447
        %v453 = vmul.f32 %v433, %v447
        %v454 = vmul.f32 %v434, %v447
        %v455 = vmul.f32 %v435, %v447
        %v456 = vmul.f32 %v436, %v447
        %v457 = vadd.f32 %v449, 0.0
        %v458 = vadd.f32 %v450, 0.0
        %v459 = vadd.f32 %v451, 0.0
        %v460 = vadd.f32 %v452, 0.0
        %v461 = vadd.f32 %v453, 0.0
        %v462 = vadd.f32 %v454, 0.0
        %v463 = vadd.f32 %v455, 0.0
        %v464 = vadd.f32 %v456, 0.0
        %465 = vset.pattern.permute.xlu0 1
        %466 = vperm.xlu0 %465, %v265
        %v467 = vpop.permute.xlu0 %466
        %v469 = vunpack.c.l.s4 839922192
        %v470 = vunpack.c.0.s8 %v469
        %v471 = vlaneseq
        %v472 = vshrl.u32 %v471, 7
        %v473 = vsub.s32 %v470, %v472
        %v474 = vrot.slane %v467, %v473
        %v476 = vmul.f32 %v429, %v474
        %v477 = vmul.f32 %v430, %v474
        %v478 = vmul.f32 %v431, %v474
        %v479 = vmul.f32 %v432, %v474
        %v480 = vmul.f32 %v433, %v474
        %v481 = vmul.f32 %v434, %v474
        %v482 = vmul.f32 %v435, %v474
        %v483 = vmul.f32 %v436, %v474
        %492 = vrot.lane.b32.xlu0 %v476, 127
        %v493 = vpop.permute.xlu0 %492
        %494 = vrot.lane.b32.xlu0 %v477, 127
        %v495 = vpop.permute.xlu0 %494
        %496 = vrot.lane.b32.xlu0 %v478, 127
        %v497 = vpop.permute.xlu0 %496
        %498 = vrot.lane.b32.xlu0 %v479, 127
        %v499 = vpop.permute.xlu0 %498
        %500 = vrot.lane.b32.xlu0 %v480, 127
        %v501 = vpop.permute.xlu0 %500
        %502 = vrot.lane.b32.xlu0 %v481, 127
        %v503 = vpop.permute.xlu0 %502
        %504 = vrot.lane.b32.xlu0 %v482, 127
        %v505 = vpop.permute.xlu0 %504
        %506 = vrot.lane.b32.xlu0 %v483, 127
        %v507 = vpop.permute.xlu0 %506
        %v508 = vrot.slane %v493, 4
        %v509 = vrot.slane %v495, 4
        %v510 = vrot.slane %v497, 4
        %v511 = vrot.slane %v499, 4
        %v512 = vrot.slane %v501, 4
        %v513 = vrot.slane %v503, 4
        %v514 = vrot.slane %v505, 4
        %v515 = vrot.slane %v507, 4
        %vm516 = vcmask 1043456
        %v517 = vsel %vm516, %v508, %v509
        %vm518 = vcmask 1039360
        %v519 = vsel %vm518, %v493, %v517
        %v520 = vsel %vm516, %v509, %v510
        %v521 = vsel %vm518, %v495, %v520
        %v522 = vsel %vm516, %v510, %v511
        %v523 = vsel %vm518, %v497, %v522
        %v524 = vsel %vm516, %v511, %v512
        %v525 = vsel %vm518, %v499, %v524
        %v526 = vsel %vm516, %v512, %v513
        %v527 = vsel %vm518, %v501, %v526
        %v528 = vsel %vm516, %v513, %v514
        %v529 = vsel %vm518, %v503, %v528
        %v530 = vsel %vm516, %v514, %v515
        %v531 = vsel %vm518, %v505, %v530
        %v532 = vsel %vm518, %v507, %v515
        %v541 = vadd.f32 %v457, %v519
        %v542 = vadd.f32 %v458, %v521
        %v543 = vadd.f32 %v459, %v523
        %v544 = vadd.f32 %v460, %v525
        %v545 = vadd.f32 %v461, %v527
        %v546 = vadd.f32 %v462, %v529
        %v547 = vadd.f32 %v463, %v531
        %v548 = vadd.f32 %v464, %v532
        %549 = vset.pattern.permute.xlu0 2
        %550 = vperm.xlu0 %549, %v265
        %v551 = vpop.permute.xlu0 %550
        %v553 = vunpack.c.l.s4 839922192
        %v554 = vunpack.c.0.s8 %v553
        %v555 = vlaneseq
        %v556 = vshrl.u32 %v555, 7
        %v557 = vsub.s32 %v554, %v556
        %v558 = vrot.slane %v551, %v557
        %v560 = vmul.f32 %v429, %v558
        %v561 = vmul.f32 %v430, %v558
        %v562 = vmul.f32 %v431, %v558
        %v563 = vmul.f32 %v432, %v558
        %v564 = vmul.f32 %v433, %v558
        %v565 = vmul.f32 %v434, %v558
        %v566 = vmul.f32 %v435, %v558
        %v567 = vmul.f32 %v436, %v558
        %576 = vrot.lane.b32.xlu0 %v560, 126
        %v577 = vpop.permute.xlu0 %576
        %578 = vrot.lane.b32.xlu0 %v561, 126
        %v579 = vpop.permute.xlu0 %578
        %580 = vrot.lane.b32.xlu0 %v562, 126
        %v581 = vpop.permute.xlu0 %580
        %582 = vrot.lane.b32.xlu0 %v563, 126
        %v583 = vpop.permute.xlu0 %582
        %584 = vrot.lane.b32.xlu0 %v564, 126
        %v585 = vpop.permute.xlu0 %584
        %586 = vrot.lane.b32.xlu0 %v565, 126
        %v587 = vpop.permute.xlu0 %586
        %588 = vrot.lane.b32.xlu0 %v566, 126
        %v589 = vpop.permute.xlu0 %588
        %590 = vrot.lane.b32.xlu0 %v567, 126
        %v591 = vpop.permute.xlu0 %590
        %v592 = vrot.slane %v577, 4
        %v593 = vrot.slane %v579, 4
        %v594 = vrot.slane %v581, 4
        %v595 = vrot.slane %v583, 4
        %v596 = vrot.slane %v585, 4
        %v597 = vrot.slane %v587, 4
        %v598 = vrot.slane %v589, 4
        %v599 = vrot.slane %v591, 4
        %v600 = vsel %vm516, %v592, %v593
        %vm601 = vcmask 1031168
        %v602 = vsel %vm601, %v577, %v600
        %v603 = vsel %vm516, %v593, %v594
        %v604 = vsel %vm601, %v579, %v603
        %v605 = vsel %vm516, %v594, %v595
        %v606 = vsel %vm601, %v581, %v605
        %v607 = vsel %vm516, %v595, %v596
        %v608 = vsel %vm601, %v583, %v607
        %v609 = vsel %vm516, %v596, %v597
        %v610 = vsel %vm601, %v585, %v609
        %v611 = vsel %vm516, %v597, %v598
        %v612 = vsel %vm601, %v587, %v611
        %v613 = vsel %vm516, %v598, %v599
        %v614 = vsel %vm601, %v589, %v613
        %v615 = vsel %vm601, %v591, %v599
        %v624 = vadd.f32 %v541, %v602
        %v625 = vadd.f32 %v542, %v604
        %v626 = vadd.f32 %v543, %v606
        %v627 = vadd.f32 %v544, %v608
        %v628 = vadd.f32 %v545, %v610
        %v629 = vadd.f32 %v546, %v612
        %v630 = vadd.f32 %v547, %v614
        %v631 = vadd.f32 %v548, %v615
        %632 = vset.pattern.permute.xlu0 3
        %633 = vperm.xlu0 %632, %v265
        %v634 = vpop.permute.xlu0 %633
        %v636 = vunpack.c.l.s4 839922192
        %v637 = vunpack.c.0.s8 %v636
        %v638 = vlaneseq
        %v639 = vshrl.u32 %v638, 7
        %v640 = vsub.s32 %v637, %v639
        %v641 = vrot.slane %v634, %v640
        %v643 = vmul.f32 %v429, %v641
        %v644 = vmul.f32 %v430, %v641
        %v645 = vmul.f32 %v431, %v641
        %v646 = vmul.f32 %v432, %v641
        %v647 = vmul.f32 %v433, %v641
        %v648 = vmul.f32 %v434, %v641
        %v649 = vmul.f32 %v435, %v641
        %v650 = vmul.f32 %v436, %v641
        %659 = vrot.lane.b32.xlu0 %v643, 125
        %v660 = vpop.permute.xlu0 %659
        %661 = vrot.lane.b32.xlu0 %v644, 125
        %v662 = vpop.permute.xlu0 %661
        %663 = vrot.lane.b32.xlu0 %v645, 125
        %v664 = vpop.permute.xlu0 %663
        %665 = vrot.lane.b32.xlu0 %v646, 125
        %v666 = vpop.permute.xlu0 %665
        %667 = vrot.lane.b32.xlu0 %v647, 125
        %v668 = vpop.permute.xlu0 %667
        %669 = vrot.lane.b32.xlu0 %v648, 125
        %v670 = vpop.permute.xlu0 %669
        %671 = vrot.lane.b32.xlu0 %v649, 125
        %v672 = vpop.permute.xlu0 %671
        %673 = vrot.lane.b32.xlu0 %v650, 125
        %v674 = vpop.permute.xlu0 %673
        %v675 = vrot.slane %v660, 4
        %v676 = vrot.slane %v662, 4
        %v677 = vrot.slane %v664, 4
        %v678 = vrot.slane %v666, 4
        %v679 = vrot.slane %v668, 4
        %v680 = vrot.slane %v670, 4
        %v681 = vrot.slane %v672, 4
        %v682 = vrot.slane %v674, 4
        %v683 = vsel %vm516, %v675, %v676
        %vm684 = vcmask 1022976
        %v685 = vsel %vm684, %v660, %v683
        %v686 = vsel %vm516, %v676, %v677
        %v687 = vsel %vm684, %v662, %v686
        %v688 = vsel %vm516, %v677, %v678
        %v689 = vsel %vm684, %v664, %v688
        %v690 = vsel %vm516, %v678, %v679
        %v691 = vsel %vm684, %v666, %v690
        %v692 = vsel %vm516, %v679, %v680
        %v693 = vsel %vm684, %v668, %v692
        %v694 = vsel %vm516, %v680, %v681
        %v695 = vsel %vm684, %v670, %v694
        %v696 = vsel %vm516, %v681, %v682
        %v697 = vsel %vm684, %v672, %v696
        %v698 = vsel %vm684, %v674, %v682
        %v707 = vadd.f32 %v624, %v685
        %v708 = vadd.f32 %v625, %v687
        %v709 = vadd.f32 %v626, %v689
        %v710 = vadd.f32 %v627, %v691
        %v711 = vadd.f32 %v628, %v693
        %v712 = vadd.f32 %v629, %v695
        %v713 = vadd.f32 %v630, %v697
        %v714 = vadd.f32 %v631, %v698
        %715 = vset.pattern.permute.xlu0 4
        %716 = vperm.xlu0 %715, %v265
        %v717 = vpop.permute.xlu0 %716
        %v719 = vunpack.c.l.s4 839922192
        %v720 = vunpack.c.0.s8 %v719
        %v721 = vlaneseq
        %v722 = vshrl.u32 %v721, 7
        %v723 = vsub.s32 %v720, %v722
        %v724 = vrot.slane %v717, %v723
        %v726 = vmul.f32 %v429, %v724
        %v727 = vmul.f32 %v430, %v724
        %v728 = vmul.f32 %v431, %v724
        %v729 = vmul.f32 %v432, %v724
        %v730 = vmul.f32 %v433, %v724
        %v731 = vmul.f32 %v434, %v724
        %v732 = vmul.f32 %v435, %v724
        %v733 = vmul.f32 %v436, %v724
        %742 = vrot.lane.b32.xlu0 %v726, 124
        %v743 = vpop.permute.xlu0 %742
        %744 = vrot.lane.b32.xlu0 %v727, 124
        %v745 = vpop.permute.xlu0 %744
        %746 = vrot.lane.b32.xlu0 %v728, 124
        %v747 = vpop.permute.xlu0 %746
        %748 = vrot.lane.b32.xlu0 %v729, 124
        %v749 = vpop.permute.xlu0 %748
        %750 = vrot.lane.b32.xlu0 %v730, 124
        %v751 = vpop.permute.xlu0 %750
        %752 = vrot.lane.b32.xlu0 %v731, 124
        %v753 = vpop.permute.xlu0 %752
        %754 = vrot.lane.b32.xlu0 %v732, 124
        %v755 = vpop.permute.xlu0 %754
        %756 = vrot.lane.b32.xlu0 %v733, 124
        %v757 = vpop.permute.xlu0 %756
        %v758 = vrot.slane %v743, 4
        %v759 = vrot.slane %v745, 4
        %v760 = vrot.slane %v747, 4
        %v761 = vrot.slane %v749, 4
        %v762 = vrot.slane %v751, 4
        %v763 = vrot.slane %v753, 4
        %v764 = vrot.slane %v755, 4
        %v765 = vrot.slane %v757, 4
        %v766 = vsel %vm516, %v758, %v759
        %vm767 = vcmask 1014784
        %v768 = vsel %vm767, %v743, %v766
        %v769 = vsel %vm516, %v759, %v760
        %v770 = vsel %vm767, %v745, %v769
        %v771 = vsel %vm516, %v760, %v761
        %v772 = vsel %vm767, %v747, %v771
        %v773 = vsel %vm516, %v761, %v762
        %v774 = vsel %vm767, %v749, %v773
        %v775 = vsel %vm516, %v762, %v763
        %v776 = vsel %vm767, %v751, %v775
        %v777 = vsel %vm516, %v763, %v764
        %v778 = vsel %vm767, %v753, %v777
        %v779 = vsel %vm516, %v764, %v765
        %v780 = vsel %vm767, %v755, %v779
        %v781 = vsel %vm767, %v757, %v765
        %v790 = vadd.f32 %v707, %v768
        %v791 = vadd.f32 %v708, %v770
        %v792 = vadd.f32 %v709, %v772
        %v793 = vadd.f32 %v710, %v774
        %v794 = vadd.f32 %v711, %v776
        %v795 = vadd.f32 %v712, %v778
        %v796 = vadd.f32 %v713, %v780
        %v797 = vadd.f32 %v714, %v781
        %798 = vset.pattern.permute.xlu0 5
        %799 = vperm.xlu0 %798, %v265
        %v800 = vpop.permute.xlu0 %799
        %v802 = vunpack.c.l.s4 839922192
        %v803 = vunpack.c.0.s8 %v802
        %v804 = vlaneseq
        %v805 = vshrl.u32 %v804, 7
        %v806 = vsub.s32 %v803, %v805
        %v807 = vrot.slane %v800, %v806
        %v809 = vmul.f32 %v429, %v807
        %v810 = vmul.f32 %v430, %v807
        %v811 = vmul.f32 %v431, %v807
        %v812 = vmul.f32 %v432, %v807
        %v813 = vmul.f32 %v433, %v807
        %v814 = vmul.f32 %v434, %v807
        %v815 = vmul.f32 %v435, %v807
        %v816 = vmul.f32 %v436, %v807
        %825 = vrot.lane.b32.xlu0 %v809, 123
        %v826 = vpop.permute.xlu0 %825
        %827 = vrot.lane.b32.xlu0 %v810, 123
        %v828 = vpop.permute.xlu0 %827
        %829 = vrot.lane.b32.xlu0 %v811, 123
        %v830 = vpop.permute.xlu0 %829
        %831 = vrot.lane.b32.xlu0 %v812, 123
        %v832 = vpop.permute.xlu0 %831
        %833 = vrot.lane.b32.xlu0 %v813, 123
        %v834 = vpop.permute.xlu0 %833
        %835 = vrot.lane.b32.xlu0 %v814, 123
        %v836 = vpop.permute.xlu0 %835
        %837 = vrot.lane.b32.xlu0 %v815, 123
        %v838 = vpop.permute.xlu0 %837
        %839 = vrot.lane.b32.xlu0 %v816, 123
        %v840 = vpop.permute.xlu0 %839
        %v841 = vrot.slane %v826, 4
        %v842 = vrot.slane %v828, 4
        %v843 = vrot.slane %v830, 4
        %v844 = vrot.slane %v832, 4
        %v845 = vrot.slane %v834, 4
        %v846 = vrot.slane %v836, 4
        %v847 = vrot.slane %v838, 4
        %v848 = vrot.slane %v840, 4
        %v849 = vsel %vm516, %v841, %v842
        %vm850 = vcmask 1006592
        %v851 = vsel %vm850, %v826, %v849
        %v852 = vsel %vm516, %v842, %v843
        %v853 = vsel %vm850, %v828, %v852
        %v854 = vsel %vm516, %v843, %v844
        %v855 = vsel %vm850, %v830, %v854
        %v856 = vsel %vm516, %v844, %v845
        %v857 = vsel %vm850, %v832, %v856
        %v858 = vsel %vm516, %v845, %v846
        %v859 = vsel %vm850, %v834, %v858
        %v860 = vsel %vm516, %v846, %v847
        %v861 = vsel %vm850, %v836, %v860
        %v862 = vsel %vm516, %v847, %v848
        %v863 = vsel %vm850, %v838, %v862
        %v864 = vsel %vm850, %v840, %v848
        %v873 = vadd.f32 %v790, %v851
        %v874 = vadd.f32 %v791, %v853
        %v875 = vadd.f32 %v792, %v855
        %v876 = vadd.f32 %v793, %v857
        %v877 = vadd.f32 %v794, %v859
        %v878 = vadd.f32 %v795, %v861
        %v879 = vadd.f32 %v796, %v863
        %v880 = vadd.f32 %v797, %v864
        %881 = vset.pattern.permute.xlu0 6
        %882 = vperm.xlu0 %881, %v265
        %v883 = vpop.permute.xlu0 %882
        %v885 = vunpack.c.l.s4 839922192
        %v886 = vunpack.c.0.s8 %v885
        %v887 = vlaneseq
        %v888 = vshrl.u32 %v887, 7
        %v889 = vsub.s32 %v886, %v888
        %v890 = vrot.slane %v883, %v889
        %v892 = vmul.f32 %v429, %v890
        %v893 = vmul.f32 %v430, %v890
        %v894 = vmul.f32 %v431, %v890
        %v895 = vmul.f32 %v432, %v890
        %v896 = vmul.f32 %v433, %v890
        %v897 = vmul.f32 %v434, %v890
        %v898 = vmul.f32 %v435, %v890
        %v899 = vmul.f32 %v436, %v890
        %908 = vrot.lane.b32.xlu0 %v892, 122
        %v909 = vpop.permute.xlu0 %908
        %910 = vrot.lane.b32.xlu0 %v893, 122
        %v911 = vpop.permute.xlu0 %910
        %912 = vrot.lane.b32.xlu0 %v894, 122
        %v913 = vpop.permute.xlu0 %912
        %914 = vrot.lane.b32.xlu0 %v895, 122
        %v915 = vpop.permute.xlu0 %914
        %916 = vrot.lane.b32.xlu0 %v896, 122
        %v917 = vpop.permute.xlu0 %916
        %918 = vrot.lane.b32.xlu0 %v897, 122
        %v919 = vpop.permute.xlu0 %918
        %920 = vrot.lane.b32.xlu0 %v898, 122
        %v921 = vpop.permute.xlu0 %920
        %922 = vrot.lane.b32.xlu0 %v899, 122
        %v923 = vpop.permute.xlu0 %922
        %v924 = vrot.slane %v909, 4
        %v925 = vrot.slane %v911, 4
        %v926 = vrot.slane %v913, 4
        %v927 = vrot.slane %v915, 4
        %v928 = vrot.slane %v917, 4
        %v929 = vrot.slane %v919, 4
        %v930 = vrot.slane %v921, 4
        %v931 = vrot.slane %v923, 4
        %v932 = vsel %vm516, %v924, %v925
        %vm933 = vcmask 998400
        %v934 = vsel %vm933, %v909, %v932
        %v935 = vsel %vm516, %v925, %v926
        %v936 = vsel %vm933, %v911, %v935
        %v937 = vsel %vm516, %v926, %v927
        %v938 = vsel %vm933, %v913, %v937
        %v939 = vsel %vm516, %v927, %v928
        %v940 = vsel %vm933, %v915, %v939
        %v941 = vsel %vm516, %v928, %v929
        %v942 = vsel %vm933, %v917, %v941
        %v943 = vsel %vm516, %v929, %v930
        %v944 = vsel %vm933, %v919, %v943
        %v945 = vsel %vm516, %v930, %v931
        %v946 = vsel %vm933, %v921, %v945
        %v947 = vsel %vm933, %v923, %v931
        %v956 = vadd.f32 %v873, %v934
        %v957 = vadd.f32 %v874, %v936
        %v958 = vadd.f32 %v875, %v938
        %v959 = vadd.f32 %v876, %v940
        %v960 = vadd.f32 %v877, %v942
        %v961 = vadd.f32 %v878, %v944
        %v962 = vadd.f32 %v879, %v946
        %v963 = vadd.f32 %v880, %v947
        %964 = vset.pattern.permute.xlu0 7
        %965 = vperm.xlu0 %964, %v265
        %v966 = vpop.permute.xlu0 %965
        %v968 = vunpack.c.l.s4 839922192
        %v969 = vunpack.c.0.s8 %v968
        %v970 = vlaneseq
        %v971 = vshrl.u32 %v970, 7
        %v972 = vsub.s32 %v969, %v971
        %v973 = vrot.slane %v966, %v972
        %v975 = vmul.f32 %v429, %v973
        %v976 = vmul.f32 %v430, %v973
        %v977 = vmul.f32 %v431, %v973
        %v978 = vmul.f32 %v432, %v973
        %v979 = vmul.f32 %v433, %v973
        %v980 = vmul.f32 %v434, %v973
        %v981 = vmul.f32 %v435, %v973
        %v982 = vmul.f32 %v436, %v973
        %991 = vrot.lane.b32.xlu0 %v975, 80
        %v992 = vpop.permute.xlu0 %991
        %993 = vrot.lane.b32.xlu0 %v976, 80
        %v994 = vpop.permute.xlu0 %993
        %995 = vrot.lane.b32.xlu0 %v977, 80
        %v996 = vpop.permute.xlu0 %995
        %997 = vrot.lane.b32.xlu0 %v978, 80
        %v998 = vpop.permute.xlu0 %997
        %999 = vrot.lane.b32.xlu0 %v979, 80
        %v1000 = vpop.permute.xlu0 %999
        %1001 = vrot.lane.b32.xlu0 %v980, 80
        %v1002 = vpop.permute.xlu0 %1001
        %1003 = vrot.lane.b32.xlu0 %v981, 80
        %v1004 = vpop.permute.xlu0 %1003
        %1005 = vrot.lane.b32.xlu0 %v982, 80
        %v1006 = vpop.permute.xlu0 %1005
        %v1007 = vrot.slane %v992, 4
        %v1008 = vrot.slane %v994, 4
        %v1009 = vrot.slane %v996, 4
        %v1010 = vrot.slane %v998, 4
        %v1011 = vrot.slane %v1000, 4
        %v1012 = vrot.slane %v1002, 4
        %v1013 = vrot.slane %v1004, 4
        %v1014 = vrot.slane %v1006, 4
        %v1015 = vsel %vm516, %v1007, %v1008
        %vm1016 = vcmask 654336
        %v1017 = vsel %vm1016, %v992, %v1015
        %v1018 = vsel %vm516, %v1008, %v1009
        %v1019 = vsel %vm1016, %v994, %v1018
        %v1020 = vsel %vm516, %v1009, %v1010
        %v1021 = vsel %vm1016, %v996, %v1020
        %v1022 = vsel %vm516, %v1010, %v1011
        %v1023 = vsel %vm1016, %v998, %v1022
        %v1024 = vsel %vm516, %v1011, %v1012
        %v1025 = vsel %vm1016, %v1000, %v1024
        %v1026 = vsel %vm516, %v1012, %v1013
        %v1027 = vsel %vm1016, %v1002, %v1026
        %v1028 = vsel %vm516, %v1013, %v1014
        %v1029 = vsel %vm1016, %v1004, %v1028
        %v1030 = vsel %vm1016, %v1006, %v1014
        %v1039 = vadd.f32 %v956, %v1017
        %v1040 = vadd.f32 %v957, %v1019
        %v1041 = vadd.f32 %v958, %v1021
        %v1042 = vadd.f32 %v959, %v1023
        %v1043 = vadd.f32 %v960, %v1025
        %v1044 = vadd.f32 %v961, %v1027
        %v1045 = vadd.f32 %v962, %v1029
        %v1046 = vadd.f32 %v963, %v1030
        %1047 = vset.pattern.permute.xlu0 8
        %1048 = vperm.xlu0 %1047, %v265
        %v1049 = vpop.permute.xlu0 %1048
        %v1051 = vunpack.c.l.s4 839922192
        %v1052 = vunpack.c.0.s8 %v1051
        %v1053 = vlaneseq
        %v1054 = vshrl.u32 %v1053, 7
        %v1055 = vsub.s32 %v1052, %v1054
        %v1056 = vrot.slane %v1049, %v1055
        %v1058 = vmul.f32 %v429, %v1056
        %v1059 = vmul.f32 %v430, %v1056
        %v1060 = vmul.f32 %v431, %v1056
        %v1061 = vmul.f32 %v432, %v1056
        %v1062 = vmul.f32 %v433, %v1056
        %v1063 = vmul.f32 %v434, %v1056
        %v1064 = vmul.f32 %v435, %v1056
        %v1065 = vmul.f32 %v436, %v1056
        %1074 = vrot.lane.b32.xlu0 %v1058, 79
        %v1075 = vpop.permute.xlu0 %1074
        %1076 = vrot.lane.b32.xlu0 %v1059, 79
        %v1077 = vpop.permute.xlu0 %1076
        %1078 = vrot.lane.b32.xlu0 %v1060, 79
        %v1079 = vpop.permute.xlu0 %1078
        %1080 = vrot.lane.b32.xlu0 %v1061, 79
        %v1081 = vpop.permute.xlu0 %1080
        %1082 = vrot.lane.b32.xlu0 %v1062, 79
        %v1083 = vpop.permute.xlu0 %1082
        %1084 = vrot.lane.b32.xlu0 %v1063, 79
        %v1085 = vpop.permute.xlu0 %1084
        %1086 = vrot.lane.b32.xlu0 %v1064, 79
        %v1087 = vpop.permute.xlu0 %1086
        %1088 = vrot.lane.b32.xlu0 %v1065, 79
        %v1089 = vpop.permute.xlu0 %1088
        %v1090 = vrot.slane %v1075, 4
        %v1091 = vrot.slane %v1077, 4
        %v1092 = vrot.slane %v1079, 4
        %v1093 = vrot.slane %v1081, 4
        %v1094 = vrot.slane %v1083, 4
        %v1095 = vrot.slane %v1085, 4
        %v1096 = vrot.slane %v1087, 4
        %v1097 = vrot.slane %v1089, 4
        %v1098 = vsel %vm516, %v1090, %v1091
        %vm1099 = vcmask 646144
        %v1100 = vsel %vm1099, %v1075, %v1098
        %v1101 = vsel %vm516, %v1091, %v1092
        %v1102 = vsel %vm1099, %v1077, %v1101
        %v1103 = vsel %vm516, %v1092, %v1093
        %v1104 = vsel %vm1099, %v1079, %v1103
        %v1105 = vsel %vm516, %v1093, %v1094
        %v1106 = vsel %vm1099, %v1081, %v1105
        %v1107 = vsel %vm516, %v1094, %v1095
        %v1108 = vsel %vm1099, %v1083, %v1107
        %v1109 = vsel %vm516, %v1095, %v1096
        %v1110 = vsel %vm1099, %v1085, %v1109
        %v1111 = vsel %vm516, %v1096, %v1097
        %v1112 = vsel %vm1099, %v1087, %v1111
        %v1113 = vsel %vm1099, %v1089, %v1097
        %v1122 = vadd.f32 %v1039, %v1100
        %v1123 = vadd.f32 %v1040, %v1102
        %v1124 = vadd.f32 %v1041, %v1104
        %v1125 = vadd.f32 %v1042, %v1106
        %v1126 = vadd.f32 %v1043, %v1108
        %v1127 = vadd.f32 %v1044, %v1110
        %v1128 = vadd.f32 %v1045, %v1112
        %v1129 = vadd.f32 %v1046, %v1113
        %1130 = vset.pattern.permute.xlu0 9
        %1131 = vperm.xlu0 %1130, %v265
        %v1132 = vpop.permute.xlu0 %1131
        %v1134 = vunpack.c.l.s4 839922192
        %v1135 = vunpack.c.0.s8 %v1134
        %v1136 = vlaneseq
        %v1137 = vshrl.u32 %v1136, 7
        %v1138 = vsub.s32 %v1135, %v1137
        %v1139 = vrot.slane %v1132, %v1138
        %v1141 = vmul.f32 %v429, %v1139
        %v1142 = vmul.f32 %v430, %v1139
        %v1143 = vmul.f32 %v431, %v1139
        %v1144 = vmul.f32 %v432, %v1139
        %v1145 = vmul.f32 %v433, %v1139
        %v1146 = vmul.f32 %v434, %v1139
        %v1147 = vmul.f32 %v435, %v1139
        %v1148 = vmul.f32 %v436, %v1139
        %1157 = vrot.lane.b32.xlu0 %v1141, 78
        %v1158 = vpop.permute.xlu0 %1157
        %1159 = vrot.lane.b32.xlu0 %v1142, 78
        %v1160 = vpop.permute.xlu0 %1159
        %1161 = vrot.lane.b32.xlu0 %v1143, 78
        %v1162 = vpop.permute.xlu0 %1161
        %1163 = vrot.lane.b32.xlu0 %v1144, 78
        %v1164 = vpop.permute.xlu0 %1163
        %1165 = vrot.lane.b32.xlu0 %v1145, 78
        %v1166 = vpop.permute.xlu0 %1165
        %1167 = vrot.lane.b32.xlu0 %v1146, 78
        %v1168 = vpop.permute.xlu0 %1167
        %1169 = vrot.lane.b32.xlu0 %v1147, 78
        %v1170 = vpop.permute.xlu0 %1169
        %1171 = vrot.lane.b32.xlu0 %v1148, 78
        %v1172 = vpop.permute.xlu0 %1171
        %v1173 = vrot.slane %v1158, 4
        %v1174 = vrot.slane %v1160, 4
        %v1175 = vrot.slane %v1162, 4
        %v1176 = vrot.slane %v1164, 4
        %v1177 = vrot.slane %v1166, 4
        %v1178 = vrot.slane %v1168, 4
        %v1179 = vrot.slane %v1170, 4
        %v1180 = vrot.slane %v1172, 4
        %v1181 = vsel %vm516, %v1173, %v1174
        %vm1182 = vcmask 637952
        %v1183 = vsel %vm1182, %v1158, %v1181
        %v1184 = vsel %vm516, %v1174, %v1175
        %v1185 = vsel %vm1182, %v1160, %v1184
        %v1186 = vsel %vm516, %v1175, %v1176
        %v1187 = vsel %vm1182, %v1162, %v1186
        %v1188 = vsel %vm516, %v1176, %v1177
        %v1189 = vsel %vm1182, %v1164, %v1188
        %v1190 = vsel %vm516, %v1177, %v1178
        %v1191 = vsel %vm1182, %v1166, %v1190
        %v1192 = vsel %vm516, %v1178, %v1179
        %v1193 = vsel %vm1182, %v1168, %v1192
        %v1194 = vsel %vm516, %v1179, %v1180
        %v1195 = vsel %vm1182, %v1170, %v1194
        %v1196 = vsel %vm1182, %v1172, %v1180
        %v1205 = vadd.f32 %v1122, %v1183
        %v1206 = vadd.f32 %v1123, %v1185
        %v1207 = vadd.f32 %v1124, %v1187
        %v1208 = vadd.f32 %v1125, %v1189
        %v1209 = vadd.f32 %v1126, %v1191
        %v1210 = vadd.f32 %v1127, %v1193
        %v1211 = vadd.f32 %v1128, %v1195
        %v1212 = vadd.f32 %v1129, %v1196
        %1213 = vset.pattern.permute.xlu0 10
        %1214 = vperm.xlu0 %1213, %v265
        %v1215 = vpop.permute.xlu0 %1214
        %v1217 = vunpack.c.l.s4 839922192
        %v1218 = vunpack.c.0.s8 %v1217
        %v1219 = vlaneseq
        %v1220 = vshrl.u32 %v1219, 7
        %v1221 = vsub.s32 %v1218, %v1220
        %v1222 = vrot.slane %v1215, %v1221
        %v1224 = vmul.f32 %v429, %v1222
        %v1225 = vmul.f32 %v430, %v1222
        %v1226 = vmul.f32 %v431, %v1222
        %v1227 = vmul.f32 %v432, %v1222
        %v1228 = vmul.f32 %v433, %v1222
        %v1229 = vmul.f32 %v434, %v1222
        %v1230 = vmul.f32 %v435, %v1222
        %v1231 = vmul.f32 %v436, %v1222
        %1240 = vrot.lane.b32.xlu0 %v1224, 77
        %v1241 = vpop.permute.xlu0 %1240
        %1242 = vrot.lane.b32.xlu0 %v1225, 77
        %v1243 = vpop.permute.xlu0 %1242
        %1244 = vrot.lane.b32.xlu0 %v1226, 77
        %v1245 = vpop.permute.xlu0 %1244
        %1246 = vrot.lane.b32.xlu0 %v1227, 77
        %v1247 = vpop.permute.xlu0 %1246
        %1248 = vrot.lane.b32.xlu0 %v1228, 77
        %v1249 = vpop.permute.xlu0 %1248
        %1250 = vrot.lane.b32.xlu0 %v1229, 77
        %v1251 = vpop.permute.xlu0 %1250
        %1252 = vrot.lane.b32.xlu0 %v1230, 77
        %v1253 = vpop.permute.xlu0 %1252
        %1254 = vrot.lane.b32.xlu0 %v1231, 77
        %v1255 = vpop.permute.xlu0 %1254
        %v1256 = vrot.slane %v1241, 4
        %v1257 = vrot.slane %v1243, 4
        %v1258 = vrot.slane %v1245, 4
        %v1259 = vrot.slane %v1247, 4
        %v1260 = vrot.slane %v1249, 4
        %v1261 = vrot.slane %v1251, 4
        %v1262 = vrot.slane %v1253, 4
        %v1263 = vrot.slane %v1255, 4
        %v1264 = vsel %vm516, %v1256, %v1257
        %vm1265 = vcmask 629760
        %v1266 = vsel %vm1265, %v1241, %v1264
        %v1267 = vsel %vm516, %v1257, %v1258
        %v1268 = vsel %vm1265, %v1243, %v1267
        %v1269 = vsel %vm516, %v1258, %v1259
        %v1270 = vsel %vm1265, %v1245, %v1269
        %v1271 = vsel %vm516, %v1259, %v1260
        %v1272 = vsel %vm1265, %v1247, %v1271
        %v1273 = vsel %vm516, %v1260, %v1261
        %v1274 = vsel %vm1265, %v1249, %v1273
        %v1275 = vsel %vm516, %v1261, %v1262
        %v1276 = vsel %vm1265, %v1251, %v1275
        %v1277 = vsel %vm516, %v1262, %v1263
        %v1278 = vsel %vm1265, %v1253, %v1277
        %v1279 = vsel %vm1265, %v1255, %v1263
        %v1288 = vadd.f32 %v1205, %v1266
        %v1289 = vadd.f32 %v1206, %v1268
        %v1290 = vadd.f32 %v1207, %v1270
        %v1291 = vadd.f32 %v1208, %v1272
        %v1292 = vadd.f32 %v1209, %v1274
        %v1293 = vadd.f32 %v1210, %v1276
        %v1294 = vadd.f32 %v1211, %v1278
        %v1295 = vadd.f32 %v1212, %v1279
        %1296 = vset.pattern.permute.xlu0 11
        %1297 = vperm.xlu0 %1296, %v265
        %v1298 = vpop.permute.xlu0 %1297
        %v1300 = vunpack.c.l.s4 839922192
        %v1301 = vunpack.c.0.s8 %v1300
        %v1302 = vlaneseq
        %v1303 = vshrl.u32 %v1302, 7
        %v1304 = vsub.s32 %v1301, %v1303
        %v1305 = vrot.slane %v1298, %v1304
        %v1307 = vmul.f32 %v429, %v1305
        %v1308 = vmul.f32 %v430, %v1305
        %v1309 = vmul.f32 %v431, %v1305
        %v1310 = vmul.f32 %v432, %v1305
        %v1311 = vmul.f32 %v433, %v1305
        %v1312 = vmul.f32 %v434, %v1305
        %v1313 = vmul.f32 %v435, %v1305
        %v1314 = vmul.f32 %v436, %v1305
        %1323 = vrot.lane.b32.xlu0 %v1307, 76
        %v1324 = vpop.permute.xlu0 %1323
        %1325 = vrot.lane.b32.xlu0 %v1308, 76
        %v1326 = vpop.permute.xlu0 %1325
        %1327 = vrot.lane.b32.xlu0 %v1309, 76
        %v1328 = vpop.permute.xlu0 %1327
        %1329 = vrot.lane.b32.xlu0 %v1310, 76
        %v1330 = vpop.permute.xlu0 %1329
        %1331 = vrot.lane.b32.xlu0 %v1311, 76
        %v1332 = vpop.permute.xlu0 %1331
        %1333 = vrot.lane.b32.xlu0 %v1312, 76
        %v1334 = vpop.permute.xlu0 %1333
        %1335 = vrot.lane.b32.xlu0 %v1313, 76
        %v1336 = vpop.permute.xlu0 %1335
        %1337 = vrot.lane.b32.xlu0 %v1314, 76
        %v1338 = vpop.permute.xlu0 %1337
        %v1339 = vrot.slane %v1324, 4
        %v1340 = vrot.slane %v1326, 4
        %v1341 = vrot.slane %v1328, 4
        %v1342 = vrot.slane %v1330, 4
        %v1343 = vrot.slane %v1332, 4
        %v1344 = vrot.slane %v1334, 4
        %v1345 = vrot.slane %v1336, 4
        %v1346 = vrot.slane %v1338, 4
        %v1347 = vsel %vm516, %v1339, %v1340
        %vm1348 = vcmask 621568
        %v1349 = vsel %vm1348, %v1324, %v1347
        %v1350 = vsel %vm516, %v1340, %v1341
        %v1351 = vsel %vm1348, %v1326, %v1350
        %v1352 = vsel %vm516, %v1341, %v1342
        %v1353 = vsel %vm1348, %v1328, %v1352
        %v1354 = vsel %vm516, %v1342, %v1343
        %v1355 = vsel %vm1348, %v1330, %v1354
        %v1356 = vsel %vm516, %v1343, %v1344
        %v1357 = vsel %vm1348, %v1332, %v1356
        %v1358 = vsel %vm516, %v1344, %v1345
        %v1359 = vsel %vm1348, %v1334, %v1358
        %v1360 = vsel %vm516, %v1345, %v1346
        %v1361 = vsel %vm1348, %v1336, %v1360
        %v1362 = vsel %vm1348, %v1338, %v1346
        %v1371 = vadd.f32 %v1288, %v1349
        %v1372 = vadd.f32 %v1289, %v1351
        %v1373 = vadd.f32 %v1290, %v1353
        %v1374 = vadd.f32 %v1291, %v1355
        %v1375 = vadd.f32 %v1292, %v1357
        %v1376 = vadd.f32 %v1293, %v1359
        %v1377 = vadd.f32 %v1294, %v1361
        %v1378 = vadd.f32 %v1295, %v1362
        %1379 = vset.pattern.permute.xlu0 12
        %1380 = vperm.xlu0 %1379, %v265
        %v1381 = vpop.permute.xlu0 %1380
        %v1383 = vunpack.c.l.s4 839922192
        %v1384 = vunpack.c.0.s8 %v1383
        %v1385 = vlaneseq
        %v1386 = vshrl.u32 %v1385, 7
        %v1387 = vsub.s32 %v1384, %v1386
        %v1388 = vrot.slane %v1381, %v1387
        %v1390 = vmul.f32 %v429, %v1388
        %v1391 = vmul.f32 %v430, %v1388
        %v1392 = vmul.f32 %v431, %v1388
        %v1393 = vmul.f32 %v432, %v1388
        %v1394 = vmul.f32 %v433, %v1388
        %v1395 = vmul.f32 %v434, %v1388
        %v1396 = vmul.f32 %v435, %v1388
        %v1397 = vmul.f32 %v436, %v1388
        %1406 = vrot.lane.b32.xlu0 %v1390, 75
        %v1407 = vpop.permute.xlu0 %1406
        %1408 = vrot.lane.b32.xlu0 %v1391, 75
        %v1409 = vpop.permute.xlu0 %1408
        %1410 = vrot.lane.b32.xlu0 %v1392, 75
        %v1411 = vpop.permute.xlu0 %1410
        %1412 = vrot.lane.b32.xlu0 %v1393, 75
        %v1413 = vpop.permute.xlu0 %1412
        %1414 = vrot.lane.b32.xlu0 %v1394, 75
        %v1415 = vpop.permute.xlu0 %1414
        %1416 = vrot.lane.b32.xlu0 %v1395, 75
        %v1417 = vpop.permute.xlu0 %1416
        %1418 = vrot.lane.b32.xlu0 %v1396, 75
        %v1419 = vpop.permute.xlu0 %1418
        %1420 = vrot.lane.b32.xlu0 %v1397, 75
        %v1421 = vpop.permute.xlu0 %1420
        %v1422 = vrot.slane %v1407, 4
        %v1423 = vrot.slane %v1409, 4
        %v1424 = vrot.slane %v1411, 4
        %v1425 = vrot.slane %v1413, 4
        %v1426 = vrot.slane %v1415, 4
        %v1427 = vrot.slane %v1417, 4
        %v1428 = vrot.slane %v1419, 4
        %v1429 = vrot.slane %v1421, 4
        %v1430 = vsel %vm516, %v1422, %v1423
        %vm1431 = vcmask 613376
        %v1432 = vsel %vm1431, %v1407, %v1430
        %v1433 = vsel %vm516, %v1423, %v1424
        %v1434 = vsel %vm1431, %v1409, %v1433
        %v1435 = vsel %vm516, %v1424, %v1425
        %v1436 = vsel %vm1431, %v1411, %v1435
        %v1437 = vsel %vm516, %v1425, %v1426
        %v1438 = vsel %vm1431, %v1413, %v1437
        %v1439 = vsel %vm516, %v1426, %v1427
        %v1440 = vsel %vm1431, %v1415, %v1439
        %v1441 = vsel %vm516, %v1427, %v1428
        %v1442 = vsel %vm1431, %v1417, %v1441
        %v1443 = vsel %vm516, %v1428, %v1429
        %v1444 = vsel %vm1431, %v1419, %v1443
        %v1445 = vsel %vm1431, %v1421, %v1429
        %v1454 = vadd.f32 %v1371, %v1432
        %v1455 = vadd.f32 %v1372, %v1434
        %v1456 = vadd.f32 %v1373, %v1436
        %v1457 = vadd.f32 %v1374, %v1438
        %v1458 = vadd.f32 %v1375, %v1440
        %v1459 = vadd.f32 %v1376, %v1442
        %v1460 = vadd.f32 %v1377, %v1444
        %v1461 = vadd.f32 %v1378, %v1445
        %1462 = vset.pattern.permute.xlu0 13
        %1463 = vperm.xlu0 %1462, %v265
        %v1464 = vpop.permute.xlu0 %1463
        %v1466 = vunpack.c.l.s4 839922192
        %v1467 = vunpack.c.0.s8 %v1466
        %v1468 = vlaneseq
        %v1469 = vshrl.u32 %v1468, 7
        %v1470 = vsub.s32 %v1467, %v1469
        %v1471 = vrot.slane %v1464, %v1470
        %v1473 = vmul.f32 %v429, %v1471
        %v1474 = vmul.f32 %v430, %v1471
        %v1475 = vmul.f32 %v431, %v1471
        %v1476 = vmul.f32 %v432, %v1471
        %v1477 = vmul.f32 %v433, %v1471
        %v1478 = vmul.f32 %v434, %v1471
        %v1479 = vmul.f32 %v435, %v1471
        %v1480 = vmul.f32 %v436, %v1471
        %1489 = vrot.lane.b32.xlu0 %v1473, 74
        %v1490 = vpop.permute.xlu0 %1489
        %1491 = vrot.lane.b32.xlu0 %v1474, 74
        %v1492 = vpop.permute.xlu0 %1491
        %1493 = vrot.lane.b32.xlu0 %v1475, 74
        %v1494 = vpop.permute.xlu0 %1493
        %1495 = vrot.lane.b32.xlu0 %v1476, 74
        %v1496 = vpop.permute.xlu0 %1495
        %1497 = vrot.lane.b32.xlu0 %v1477, 74
        %v1498 = vpop.permute.xlu0 %1497
        %1499 = vrot.lane.b32.xlu0 %v1478, 74
        %v1500 = vpop.permute.xlu0 %1499
        %1501 = vrot.lane.b32.xlu0 %v1479, 74
        %v1502 = vpop.permute.xlu0 %1501
        %1503 = vrot.lane.b32.xlu0 %v1480, 74
        %v1504 = vpop.permute.xlu0 %1503
        %v1505 = vrot.slane %v1490, 4
        %v1506 = vrot.slane %v1492, 4
        %v1507 = vrot.slane %v1494, 4
        %v1508 = vrot.slane %v1496, 4
        %v1509 = vrot.slane %v1498, 4
        %v1510 = vrot.slane %v1500, 4
        %v1511 = vrot.slane %v1502, 4
        %v1512 = vrot.slane %v1504, 4
        %v1513 = vsel %vm516, %v1505, %v1506
        %vm1514 = vcmask 605184
        %v1515 = vsel %vm1514, %v1490, %v1513
        %v1516 = vsel %vm516, %v1506, %v1507
        %v1517 = vsel %vm1514, %v1492, %v1516
        %v1518 = vsel %vm516, %v1507, %v1508
        %v1519 = vsel %vm1514, %v1494, %v1518
        %v1520 = vsel %vm516, %v1508, %v1509
        %v1521 = vsel %vm1514, %v1496, %v1520
        %v1522 = vsel %vm516, %v1509, %v1510
        %v1523 = vsel %vm1514, %v1498, %v1522
        %v1524 = vsel %vm516, %v1510, %v1511
        %v1525 = vsel %vm1514, %v1500, %v1524
        %v1526 = vsel %vm516, %v1511, %v1512
        %v1527 = vsel %vm1514, %v1502, %v1526
        %v1528 = vsel %vm1514, %v1504, %v1512
        %v1537 = vadd.f32 %v1454, %v1515
        %v1538 = vadd.f32 %v1455, %v1517
        %v1539 = vadd.f32 %v1456, %v1519
        %v1540 = vadd.f32 %v1457, %v1521
        %v1541 = vadd.f32 %v1458, %v1523
        %v1542 = vadd.f32 %v1459, %v1525
        %v1543 = vadd.f32 %v1460, %v1527
        %v1544 = vadd.f32 %v1461, %v1528
        %v1545 = vld [vmem:[#allocation2 + $0x4] sm:$0xff]
        %v1546 = vld [vmem:[#allocation2 + $0xc] sm:$0xff]
        %v1547 = vld [vmem:[#allocation2 + $0x14] sm:$0xff]
        %v1548 = vld [vmem:[#allocation2 + $0x1c] sm:$0xff]
        %v1549 = vld [vmem:[#allocation2 + $0x24] sm:$0xff]
        %v1550 = vld [vmem:[#allocation2 + $0x2c] sm:$0xff]
        %v1551 = vld [vmem:[#allocation2 + $0x34] sm:$0xff]
        %v1552 = vld [vmem:[#allocation2 + $0x3c] sm:$0xff]
        %1553 = vset.pattern.permute.xlu0 14
        %1554 = vperm.xlu0 %1553, %v265
        %v1555 = vpop.permute.xlu0 %1554
        %v1557 = vunpack.c.l.s4 839922192
        %v1558 = vunpack.c.0.s8 %v1557
        %v1559 = vlaneseq
        %v1560 = vshrl.u32 %v1559, 7
        %v1561 = vsub.s32 %v1558, %v1560
        %v1562 = vrot.slane %v1555, %v1561
        %v1564 = vmul.f32 %v1545, %v1562
        %v1565 = vmul.f32 %v1546, %v1562
        %v1566 = vmul.f32 %v1547, %v1562
        %v1567 = vmul.f32 %v1548, %v1562
        %v1568 = vmul.f32 %v1549, %v1562
        %v1569 = vmul.f32 %v1550, %v1562
        %v1570 = vmul.f32 %v1551, %v1562
        %v1571 = vmul.f32 %v1552, %v1562
        %1580 = vrot.lane.b32.xlu0 %v1564, 32
        %v1581 = vpop.permute.xlu0 %1580
        %1582 = vrot.lane.b32.xlu0 %v1565, 32
        %v1583 = vpop.permute.xlu0 %1582
        %1584 = vrot.lane.b32.xlu0 %v1566, 32
        %v1585 = vpop.permute.xlu0 %1584
        %1586 = vrot.lane.b32.xlu0 %v1567, 32
        %v1587 = vpop.permute.xlu0 %1586
        %1588 = vrot.lane.b32.xlu0 %v1568, 32
        %v1589 = vpop.permute.xlu0 %1588
        %1590 = vrot.lane.b32.xlu0 %v1569, 32
        %v1591 = vpop.permute.xlu0 %1590
        %1592 = vrot.lane.b32.xlu0 %v1570, 32
        %v1593 = vpop.permute.xlu0 %1592
        %1594 = vrot.lane.b32.xlu0 %v1571, 32
        %v1595 = vpop.permute.xlu0 %1594
        %v1596 = vrot.slane %v1581, 4
        %v1597 = vrot.slane %v1583, 4
        %v1598 = vrot.slane %v1585, 4
        %v1599 = vrot.slane %v1587, 4
        %v1600 = vrot.slane %v1589, 4
        %v1601 = vrot.slane %v1591, 4
        %v1602 = vrot.slane %v1593, 4
        %v1603 = vrot.slane %v1595, 4
        %vm1604 = vcmask 261120
        %v1605 = vsel %vm1604, %v1596, %v1581
        %v1606 = vsel %vm516, %v1596, %v1597
        %v1607 = vsel %vm1604, %v1606, %v1583
        %v1608 = vsel %vm516, %v1597, %v1598
        %v1609 = vsel %vm1604, %v1608, %v1585
        %v1610 = vsel %vm516, %v1598, %v1599
        %v1611 = vsel %vm1604, %v1610, %v1587
        %v1612 = vsel %vm516, %v1599, %v1600
        %v1613 = vsel %vm1604, %v1612, %v1589
        %v1614 = vsel %vm516, %v1600, %v1601
        %v1615 = vsel %vm1604, %v1614, %v1591
        %v1616 = vsel %vm516, %v1601, %v1602
        %v1617 = vsel %vm1604, %v1616, %v1593
        %v1618 = vsel %vm516, %v1602, %v1603
        %v1619 = vsel %vm1604, %v1618, %v1595
        %v1628 = vadd.f32 %v1537, %v1605
        %v1629 = vadd.f32 %v1538, %v1607
        %v1630 = vadd.f32 %v1539, %v1609
        %v1631 = vadd.f32 %v1540, %v1611
        %v1632 = vadd.f32 %v1541, %v1613
        %v1633 = vadd.f32 %v1542, %v1615
        %v1634 = vadd.f32 %v1543, %v1617
        %v1635 = vadd.f32 %v1544, %v1619
        %1636 = vset.pattern.permute.xlu0 15
        %1637 = vperm.xlu0 %1636, %v265
        %v1638 = vpop.permute.xlu0 %1637
        %v1640 = vunpack.c.l.s4 839922192
        %v1641 = vunpack.c.0.s8 %v1640
        %v1642 = vlaneseq
        %v1643 = vshrl.u32 %v1642, 7
        %v1644 = vsub.s32 %v1641, %v1643
        %v1645 = vrot.slane %v1638, %v1644
        %v1647 = vmul.f32 %v1545, %v1645
        %v1648 = vmul.f32 %v1546, %v1645
        %v1649 = vmul.f32 %v1547, %v1645
        %v1650 = vmul.f32 %v1548, %v1645
        %v1651 = vmul.f32 %v1549, %v1645
        %v1652 = vmul.f32 %v1550, %v1645
        %v1653 = vmul.f32 %v1551, %v1645
        %v1654 = vmul.f32 %v1552, %v1645
        %1663 = vrot.lane.b32.xlu0 %v1647, 31
        %v1664 = vpop.permute.xlu0 %1663
        %1665 = vrot.lane.b32.xlu0 %v1648, 31
        %v1666 = vpop.permute.xlu0 %1665
        %1667 = vrot.lane.b32.xlu0 %v1649, 31
        %v1668 = vpop.permute.xlu0 %1667
        %1669 = vrot.lane.b32.xlu0 %v1650, 31
        %v1670 = vpop.permute.xlu0 %1669
        %1671 = vrot.lane.b32.xlu0 %v1651, 31
        %v1672 = vpop.permute.xlu0 %1671
        %1673 = vrot.lane.b32.xlu0 %v1652, 31
        %v1674 = vpop.permute.xlu0 %1673
        %1675 = vrot.lane.b32.xlu0 %v1653, 31
        %v1676 = vpop.permute.xlu0 %1675
        %1677 = vrot.lane.b32.xlu0 %v1654, 31
        %v1678 = vpop.permute.xlu0 %1677
        %v1679 = vrot.slane %v1664, 4
        %v1680 = vrot.slane %v1666, 4
        %v1681 = vrot.slane %v1668, 4
        %v1682 = vrot.slane %v1670, 4
        %v1683 = vrot.slane %v1672, 4
        %v1684 = vrot.slane %v1674, 4
        %v1685 = vrot.slane %v1676, 4
        %v1686 = vrot.slane %v1678, 4
        %vm1687 = vcmask 252928
        %v1688 = vsel %vm1687, %v1679, %v1664
        %v1689 = vsel %vm516, %v1679, %v1680
        %v1690 = vsel %vm1687, %v1689, %v1666
        %v1691 = vsel %vm516, %v1680, %v1681
        %v1692 = vsel %vm1687, %v1691, %v1668
        %v1693 = vsel %vm516, %v1681, %v1682
        %v1694 = vsel %vm1687, %v1693, %v1670
        %v1695 = vsel %vm516, %v1682, %v1683
        %v1696 = vsel %vm1687, %v1695, %v1672
        %v1697 = vsel %vm516, %v1683, %v1684
        %v1698 = vsel %vm1687, %v1697, %v1674
        %v1699 = vsel %vm516, %v1684, %v1685
        %v1700 = vsel %vm1687, %v1699, %v1676
        %v1701 = vsel %vm516, %v1685, %v1686
        %v1702 = vsel %vm1687, %v1701, %v1678
        %v1711 = vadd.f32 %v1628, %v1688
        %v1712 = vadd.f32 %v1629, %v1690
        %v1713 = vadd.f32 %v1630, %v1692
        %v1714 = vadd.f32 %v1631, %v1694
        %v1715 = vadd.f32 %v1632, %v1696
        %v1716 = vadd.f32 %v1633, %v1698
        %v1717 = vadd.f32 %v1634, %v1700
        %v1718 = vadd.f32 %v1635, %v1702
        %1719 = vset.pattern.permute.xlu0 16
        %1720 = vperm.xlu0 %1719, %v265
        %v1721 = vpop.permute.xlu0 %1720
        %v1723 = vunpack.c.l.s4 839922192
        %v1724 = vunpack.c.0.s8 %v1723
        %v1725 = vlaneseq
        %v1726 = vshrl.u32 %v1725, 7
        %v1727 = vsub.s32 %v1724, %v1726
        %v1728 = vrot.slane %v1721, %v1727
        %v1730 = vmul.f32 %v1545, %v1728
        %v1731 = vmul.f32 %v1546, %v1728
        %v1732 = vmul.f32 %v1547, %v1728
        %v1733 = vmul.f32 %v1548, %v1728
        %v1734 = vmul.f32 %v1549, %v1728
        %v1735 = vmul.f32 %v1550, %v1728
        %v1736 = vmul.f32 %v1551, %v1728
        %v1737 = vmul.f32 %v1552, %v1728
        %1746 = vrot.lane.b32.xlu0 %v1730, 30
        %v1747 = vpop.permute.xlu0 %1746
        %1748 = vrot.lane.b32.xlu0 %v1731, 30
        %v1749 = vpop.permute.xlu0 %1748
        %1750 = vrot.lane.b32.xlu0 %v1732, 30
        %v1751 = vpop.permute.xlu0 %1750
        %1752 = vrot.lane.b32.xlu0 %v1733, 30
        %v1753 = vpop.permute.xlu0 %1752
        %1754 = vrot.lane.b32.xlu0 %v1734, 30
        %v1755 = vpop.permute.xlu0 %1754
        %1756 = vrot.lane.b32.xlu0 %v1735, 30
        %v1757 = vpop.permute.xlu0 %1756
        %1758 = vrot.lane.b32.xlu0 %v1736, 30
        %v1759 = vpop.permute.xlu0 %1758
        %1760 = vrot.lane.b32.xlu0 %v1737, 30
        %v1761 = vpop.permute.xlu0 %1760
        %v1762 = vrot.slane %v1747, 4
        %v1763 = vrot.slane %v1749, 4
        %v1764 = vrot.slane %v1751, 4
        %v1765 = vrot.slane %v1753, 4
        %v1766 = vrot.slane %v1755, 4
        %v1767 = vrot.slane %v1757, 4
        %v1768 = vrot.slane %v1759, 4
        %v1769 = vrot.slane %v1761, 4
        %vm1770 = vcmask 244736
        %v1771 = vsel %vm1770, %v1762, %v1747
        %v1772 = vsel %vm516, %v1762, %v1763
        %v1773 = vsel %vm1770, %v1772, %v1749
        %v1774 = vsel %vm516, %v1763, %v1764
        %v1775 = vsel %vm1770, %v1774, %v1751
        %v1776 = vsel %vm516, %v1764, %v1765
        %v1777 = vsel %vm1770, %v1776, %v1753
        %v1778 = vsel %vm516, %v1765, %v1766
        %v1779 = vsel %vm1770, %v1778, %v1755
        %v1780 = vsel %vm516, %v1766, %v1767
        %v1781 = vsel %vm1770, %v1780, %v1757
        %v1782 = vsel %vm516, %v1767, %v1768
        %v1783 = vsel %vm1770, %v1782, %v1759
        %v1784 = vsel %vm516, %v1768, %v1769
        %v1785 = vsel %vm1770, %v1784, %v1761
        %v1794 = vadd.f32 %v1711, %v1771
        %v1795 = vadd.f32 %v1712, %v1773
        %v1796 = vadd.f32 %v1713, %v1775
        %v1797 = vadd.f32 %v1714, %v1777
        %v1798 = vadd.f32 %v1715, %v1779
        %v1799 = vadd.f32 %v1716, %v1781
        %v1800 = vadd.f32 %v1717, %v1783
        %v1801 = vadd.f32 %v1718, %v1785
        %1802 = vset.pattern.permute.xlu0 17
        %1803 = vperm.xlu0 %1802, %v265
        %v1804 = vpop.permute.xlu0 %1803
        %v1806 = vunpack.c.l.s4 839922192
        %v1807 = vunpack.c.0.s8 %v1806
        %v1808 = vlaneseq
        %v1809 = vshrl.u32 %v1808, 7
        %v1810 = vsub.s32 %v1807, %v1809
        %v1811 = vrot.slane %v1804, %v1810
        %v1813 = vmul.f32 %v1545, %v1811
        %v1814 = vmul.f32 %v1546, %v1811
        %v1815 = vmul.f32 %v1547, %v1811
        %v1816 = vmul.f32 %v1548, %v1811
        %v1817 = vmul.f32 %v1549, %v1811
        %v1818 = vmul.f32 %v1550, %v1811
        %v1819 = vmul.f32 %v1551, %v1811
        %v1820 = vmul.f32 %v1552, %v1811
        %1829 = vrot.lane.b32.xlu0 %v1813, 29
        %v1830 = vpop.permute.xlu0 %1829
        %1831 = vrot.lane.b32.xlu0 %v1814, 29
        %v1832 = vpop.permute.xlu0 %1831
        %1833 = vrot.lane.b32.xlu0 %v1815, 29
        %v1834 = vpop.permute.xlu0 %1833
        %1835 = vrot.lane.b32.xlu0 %v1816, 29
        %v1836 = vpop.permute.xlu0 %1835
        %1837 = vrot.lane.b32.xlu0 %v1817, 29
        %v1838 = vpop.permute.xlu0 %1837
        %1839 = vrot.lane.b32.xlu0 %v1818, 29
        %v1840 = vpop.permute.xlu0 %1839
        %1841 = vrot.lane.b32.xlu0 %v1819, 29
        %v1842 = vpop.permute.xlu0 %1841
        %1843 = vrot.lane.b32.xlu0 %v1820, 29
        %v1844 = vpop.permute.xlu0 %1843
        %v1845 = vrot.slane %v1830, 4
        %v1846 = vrot.slane %v1832, 4
        %v1847 = vrot.slane %v1834, 4
        %v1848 = vrot.slane %v1836, 4
        %v1849 = vrot.slane %v1838, 4
        %v1850 = vrot.slane %v1840, 4
        %v1851 = vrot.slane %v1842, 4
        %v1852 = vrot.slane %v1844, 4
        %vm1853 = vcmask 236544
        %v1854 = vsel %vm1853, %v1845, %v1830
        %v1855 = vsel %vm516, %v1845, %v1846
        %v1856 = vsel %vm1853, %v1855, %v1832
        %v1857 = vsel %vm516, %v1846, %v1847
        %v1858 = vsel %vm1853, %v1857, %v1834
        %v1859 = vsel %vm516, %v1847, %v1848
        %v1860 = vsel %vm1853, %v1859, %v1836
        %v1861 = vsel %vm516, %v1848, %v1849
        %v1862 = vsel %vm1853, %v1861, %v1838
        %v1863 = vsel %vm516, %v1849, %v1850
        %v1864 = vsel %vm1853, %v1863, %v1840
        %v1865 = vsel %vm516, %v1850, %v1851
        %v1866 = vsel %vm1853, %v1865, %v1842
        %v1867 = vsel %vm516, %v1851, %v1852
        %v1868 = vsel %vm1853, %v1867, %v1844
        %v1877 = vadd.f32 %v1794, %v1854
        %v1878 = vadd.f32 %v1795, %v1856
        %v1879 = vadd.f32 %v1796, %v1858
        %v1880 = vadd.f32 %v1797, %v1860
        %v1881 = vadd.f32 %v1798, %v1862
        %v1882 = vadd.f32 %v1799, %v1864
        %v1883 = vadd.f32 %v1800, %v1866
        %v1884 = vadd.f32 %v1801, %v1868
        %1885 = vset.pattern.permute.xlu0 18
        %1886 = vperm.xlu0 %1885, %v265
        %v1887 = vpop.permute.xlu0 %1886
        %v1889 = vunpack.c.l.s4 839922192
        %v1890 = vunpack.c.0.s8 %v1889
        %v1891 = vlaneseq
        %v1892 = vshrl.u32 %v1891, 7
        %v1893 = vsub.s32 %v1890, %v1892
        %v1894 = vrot.slane %v1887, %v1893
        %v1896 = vmul.f32 %v1545, %v1894
        %v1897 = vmul.f32 %v1546, %v1894
        %v1898 = vmul.f32 %v1547, %v1894
        %v1899 = vmul.f32 %v1548, %v1894
        %v1900 = vmul.f32 %v1549, %v1894
        %v1901 = vmul.f32 %v1550, %v1894
        %v1902 = vmul.f32 %v1551, %v1894
        %v1903 = vmul.f32 %v1552, %v1894
        %1912 = vrot.lane.b32.xlu0 %v1896, 28
        %v1913 = vpop.permute.xlu0 %1912
        %1914 = vrot.lane.b32.xlu0 %v1897, 28
        %v1915 = vpop.permute.xlu0 %1914
        %1916 = vrot.lane.b32.xlu0 %v1898, 28
        %v1917 = vpop.permute.xlu0 %1916
        %1918 = vrot.lane.b32.xlu0 %v1899, 28
        %v1919 = vpop.permute.xlu0 %1918
        %1920 = vrot.lane.b32.xlu0 %v1900, 28
        %v1921 = vpop.permute.xlu0 %1920
        %1922 = vrot.lane.b32.xlu0 %v1901, 28
        %v1923 = vpop.permute.xlu0 %1922
        %1924 = vrot.lane.b32.xlu0 %v1902, 28
        %v1925 = vpop.permute.xlu0 %1924
        %1926 = vrot.lane.b32.xlu0 %v1903, 28
        %v1927 = vpop.permute.xlu0 %1926
        %v1928 = vrot.slane %v1913, 4
        %v1929 = vrot.slane %v1915, 4
        %v1930 = vrot.slane %v1917, 4
        %v1931 = vrot.slane %v1919, 4
        %v1932 = vrot.slane %v1921, 4
        %v1933 = vrot.slane %v1923, 4
        %v1934 = vrot.slane %v1925, 4
        %v1935 = vrot.slane %v1927, 4
        %vm1936 = vcmask 228352
        %v1937 = vsel %vm1936, %v1928, %v1913
        %v1938 = vsel %vm516, %v1928, %v1929
        %v1939 = vsel %vm1936, %v1938, %v1915
        %v1940 = vsel %vm516, %v1929, %v1930
        %v1941 = vsel %vm1936, %v1940, %v1917
        %v1942 = vsel %vm516, %v1930, %v1931
        %v1943 = vsel %vm1936, %v1942, %v1919
        %v1944 = vsel %vm516, %v1931, %v1932
        %v1945 = vsel %vm1936, %v1944, %v1921
        %v1946 = vsel %vm516, %v1932, %v1933
        %v1947 = vsel %vm1936, %v1946, %v1923
        %v1948 = vsel %vm516, %v1933, %v1934
        %v1949 = vsel %vm1936, %v1948, %v1925
        %v1950 = vsel %vm516, %v1934, %v1935
        %v1951 = vsel %vm1936, %v1950, %v1927
        %v1960 = vadd.f32 %v1877, %v1937
        %v1961 = vadd.f32 %v1878, %v1939
        %v1962 = vadd.f32 %v1879, %v1941
        %v1963 = vadd.f32 %v1880, %v1943
        %v1964 = vadd.f32 %v1881, %v1945
        %v1965 = vadd.f32 %v1882, %v1947
        %v1966 = vadd.f32 %v1883, %v1949
        %v1967 = vadd.f32 %v1884, %v1951
        %1968 = vset.pattern.permute.xlu0 19
        %1969 = vperm.xlu0 %1968, %v265
        %v1970 = vpop.permute.xlu0 %1969
        %v1972 = vunpack.c.l.s4 839922192
        %v1973 = vunpack.c.0.s8 %v1972
        %v1974 = vlaneseq
        %v1975 = vshrl.u32 %v1974, 7
        %v1976 = vsub.s32 %v1973, %v1975
        %v1977 = vrot.slane %v1970, %v1976
        %v1979 = vmul.f32 %v1545, %v1977
        %v1980 = vmul.f32 %v1546, %v1977
        %v1981 = vmul.f32 %v1547, %v1977
        %v1982 = vmul.f32 %v1548, %v1977
        %v1983 = vmul.f32 %v1549, %v1977
        %v1984 = vmul.f32 %v1550, %v1977
        %v1985 = vmul.f32 %v1551, %v1977
        %v1986 = vmul.f32 %v1552, %v1977
        %1995 = vrot.lane.b32.xlu0 %v1979, 27
        %v1996 = vpop.permute.xlu0 %1995
        %1997 = vrot.lane.b32.xlu0 %v1980, 27
        %v1998 = vpop.permute.xlu0 %1997
        %1999 = vrot.lane.b32.xlu0 %v1981, 27
        %v2000 = vpop.permute.xlu0 %1999
        %2001 = vrot.lane.b32.xlu0 %v1982, 27
        %v2002 = vpop.permute.xlu0 %2001
        %2003 = vrot.lane.b32.xlu0 %v1983, 27
        %v2004 = vpop.permute.xlu0 %2003
        %2005 = vrot.lane.b32.xlu0 %v1984, 27
        %v2006 = vpop.permute.xlu0 %2005
        %2007 = vrot.lane.b32.xlu0 %v1985, 27
        %v2008 = vpop.permute.xlu0 %2007
        %2009 = vrot.lane.b32.xlu0 %v1986, 27
        %v2010 = vpop.permute.xlu0 %2009
        %v2011 = vrot.slane %v1996, 4
        %v2012 = vrot.slane %v1998, 4
        %v2013 = vrot.slane %v2000, 4
        %v2014 = vrot.slane %v2002, 4
        %v2015 = vrot.slane %v2004, 4
        %v2016 = vrot.slane %v2006, 4
        %v2017 = vrot.slane %v2008, 4
        %v2018 = vrot.slane %v2010, 4
        %vm2019 = vcmask 220160
        %v2020 = vsel %vm2019, %v2011, %v1996
        %v2021 = vsel %vm516, %v2011, %v2012
        %v2022 = vsel %vm2019, %v2021, %v1998
        %v2023 = vsel %vm516, %v2012, %v2013
        %v2024 = vsel %vm2019, %v2023, %v2000
        %v2025 = vsel %vm516, %v2013, %v2014
        %v2026 = vsel %vm2019, %v2025, %v2002
        %v2027 = vsel %vm516, %v2014, %v2015
        %v2028 = vsel %vm2019, %v2027, %v2004
        %v2029 = vsel %vm516, %v2015, %v2016
        %v2030 = vsel %vm2019, %v2029, %v2006
        %v2031 = vsel %vm516, %v2016, %v2017
        %v2032 = vsel %vm2019, %v2031, %v2008
        %v2033 = vsel %vm516, %v2017, %v2018
        %v2034 = vsel %vm2019, %v2033, %v2010
        %v2043 = vadd.f32 %v1960, %v2020
        %v2044 = vadd.f32 %v1961, %v2022
        %v2045 = vadd.f32 %v1962, %v2024
        %v2046 = vadd.f32 %v1963, %v2026
        %v2047 = vadd.f32 %v1964, %v2028
        %v2048 = vadd.f32 %v1965, %v2030
        %v2049 = vadd.f32 %v1966, %v2032
        %v2050 = vadd.f32 %v1967, %v2034
        %2051 = vset.pattern.permute.xlu0 20
        %2052 = vperm.xlu0 %2051, %v265
        %v2053 = vpop.permute.xlu0 %2052
        %v2055 = vunpack.c.l.s4 839922192
        %v2056 = vunpack.c.0.s8 %v2055
        %v2057 = vlaneseq
        %v2058 = vshrl.u32 %v2057, 7
        %v2059 = vsub.s32 %v2056, %v2058
        %v2060 = vrot.slane %v2053, %v2059
        %v2062 = vmul.f32 %v1545, %v2060
        %v2063 = vmul.f32 %v1546, %v2060
        %v2064 = vmul.f32 %v1547, %v2060
        %v2065 = vmul.f32 %v1548, %v2060
        %v2066 = vmul.f32 %v1549, %v2060
        %v2067 = vmul.f32 %v1550, %v2060
        %v2068 = vmul.f32 %v1551, %v2060
        %v2069 = vmul.f32 %v1552, %v2060
        %2078 = vrot.lane.b32.xlu0 %v2062, 26
        %v2079 = vpop.permute.xlu0 %2078
        %2080 = vrot.lane.b32.xlu0 %v2063, 26
        %v2081 = vpop.permute.xlu0 %2080
        %2082 = vrot.lane.b32.xlu0 %v2064, 26
        %v2083 = vpop.permute.xlu0 %2082
        %2084 = vrot.lane.b32.xlu0 %v2065, 26
        %v2085 = vpop.permute.xlu0 %2084
        %2086 = vrot.lane.b32.xlu0 %v2066, 26
        %v2087 = vpop.permute.xlu0 %2086
        %2088 = vrot.lane.b32.xlu0 %v2067, 26
        %v2089 = vpop.permute.xlu0 %2088
        %2090 = vrot.lane.b32.xlu0 %v2068, 26
        %v2091 = vpop.permute.xlu0 %2090
        %2092 = vrot.lane.b32.xlu0 %v2069, 26
        %v2093 = vpop.permute.xlu0 %2092
        %v2094 = vrot.slane %v2079, 4
        %v2095 = vrot.slane %v2081, 4
        %v2096 = vrot.slane %v2083, 4
        %v2097 = vrot.slane %v2085, 4
        %v2098 = vrot.slane %v2087, 4
        %v2099 = vrot.slane %v2089, 4
        %v2100 = vrot.slane %v2091, 4
        %v2101 = vrot.slane %v2093, 4
        %vm2102 = vcmask 211968
        %v2103 = vsel %vm2102, %v2094, %v2079
        %v2104 = vsel %vm516, %v2094, %v2095
        %v2105 = vsel %vm2102, %v2104, %v2081
        %v2106 = vsel %vm516, %v2095, %v2096
        %v2107 = vsel %vm2102, %v2106, %v2083
        %v2108 = vsel %vm516, %v2096, %v2097
        %v2109 = vsel %vm2102, %v2108, %v2085
        %v2110 = vsel %vm516, %v2097, %v2098
        %v2111 = vsel %vm2102, %v2110, %v2087
        %v2112 = vsel %vm516, %v2098, %v2099
        %v2113 = vsel %vm2102, %v2112, %v2089
        %v2114 = vsel %vm516, %v2099, %v2100
        %v2115 = vsel %vm2102, %v2114, %v2091
        %v2116 = vsel %vm516, %v2100, %v2101
        %v2117 = vsel %vm2102, %v2116, %v2093
        %v2126 = vadd.f32 %v2043, %v2103
        %v2127 = vadd.f32 %v2044, %v2105
        %v2128 = vadd.f32 %v2045, %v2107
        %v2129 = vadd.f32 %v2046, %v2109
        %v2130 = vadd.f32 %v2047, %v2111
        %v2131 = vadd.f32 %v2048, %v2113
        %v2132 = vadd.f32 %v2049, %v2115
        %v2133 = vadd.f32 %v2050, %v2117
        %2134 = vset.pattern.permute.xlu0 21
        %2135 = vperm.xlu0 %2134, %v265
        %v2136 = vpop.permute.xlu0 %2135
        %v2138 = vunpack.c.l.s4 839922192
        %v2139 = vunpack.c.0.s8 %v2138
        %v2140 = vlaneseq
        %v2141 = vshrl.u32 %v2140, 7
        %v2142 = vsub.s32 %v2139, %v2141
        %v2143 = vrot.slane %v2136, %v2142
        %v2145 = vmul.f32 %v1545, %v2143
        %v2146 = vmul.f32 %v1546, %v2143
        %v2147 = vmul.f32 %v1547, %v2143
        %v2148 = vmul.f32 %v1548, %v2143
        %v2149 = vmul.f32 %v1549, %v2143
        %v2150 = vmul.f32 %v1550, %v2143
        %v2151 = vmul.f32 %v1551, %v2143
        %v2152 = vmul.f32 %v1552, %v2143
        %2161 = vrot.lane.b32.xlu0 %v2145, 112
        %v2162 = vpop.permute.xlu0 %2161
        %2163 = vrot.lane.b32.xlu0 %v2146, 112
        %v2164 = vpop.permute.xlu0 %2163
        %2165 = vrot.lane.b32.xlu0 %v2147, 112
        %v2166 = vpop.permute.xlu0 %2165
        %2167 = vrot.lane.b32.xlu0 %v2148, 112
        %v2168 = vpop.permute.xlu0 %2167
        %2169 = vrot.lane.b32.xlu0 %v2149, 112
        %v2170 = vpop.permute.xlu0 %2169
        %2171 = vrot.lane.b32.xlu0 %v2150, 112
        %v2172 = vpop.permute.xlu0 %2171
        %2173 = vrot.lane.b32.xlu0 %v2151, 112
        %v2174 = vpop.permute.xlu0 %2173
        %2175 = vrot.lane.b32.xlu0 %v2152, 112
        %v2176 = vpop.permute.xlu0 %2175
        %v2177 = vrot.slane %v2162, 4
        %v2178 = vrot.slane %v2164, 4
        %v2179 = vrot.slane %v2166, 4
        %v2180 = vrot.slane %v2168, 4
        %v2181 = vrot.slane %v2170, 4
        %v2182 = vrot.slane %v2172, 4
        %v2183 = vrot.slane %v2174, 4
        %v2184 = vrot.slane %v2176, 4
        %v2185 = vsel %vm516, %v2177, %v2178
        %vm2186 = vcmask 916480
        %v2187 = vsel %vm2186, %v2162, %v2185
        %v2188 = vsel %vm516, %v2178, %v2179
        %v2189 = vsel %vm2186, %v2164, %v2188
        %v2190 = vsel %vm516, %v2179, %v2180
        %v2191 = vsel %vm2186, %v2166, %v2190
        %v2192 = vsel %vm516, %v2180, %v2181
        %v2193 = vsel %vm2186, %v2168, %v2192
        %v2194 = vsel %vm516, %v2181, %v2182
        %v2195 = vsel %vm2186, %v2170, %v2194
        %v2196 = vsel %vm516, %v2182, %v2183
        %v2197 = vsel %vm2186, %v2172, %v2196
        %v2198 = vsel %vm516, %v2183, %v2184
        %v2199 = vsel %vm2186, %v2174, %v2198
        %v2200 = vsel %vm2186, %v2176, %v2184
        %v2209 = vadd.f32 %v2126, %v2187
        %v2210 = vadd.f32 %v2127, %v2189
        %v2211 = vadd.f32 %v2128, %v2191
        %v2212 = vadd.f32 %v2129, %v2193
        %v2213 = vadd.f32 %v2130, %v2195
        %v2214 = vadd.f32 %v2131, %v2197
        %v2215 = vadd.f32 %v2132, %v2199
        %v2216 = vadd.f32 %v2133, %v2200
        %2217 = vset.pattern.permute.xlu0 22
        %2218 = vperm.xlu0 %2217, %v265
        %v2219 = vpop.permute.xlu0 %2218
        %v2221 = vunpack.c.l.s4 839922192
        %v2222 = vunpack.c.0.s8 %v2221
        %v2223 = vlaneseq
        %v2224 = vshrl.u32 %v2223, 7
        %v2225 = vsub.s32 %v2222, %v2224
        %v2226 = vrot.slane %v2219, %v2225
        %v2228 = vmul.f32 %v1545, %v2226
        %v2229 = vmul.f32 %v1546, %v2226
        %v2230 = vmul.f32 %v1547, %v2226
        %v2231 = vmul.f32 %v1548, %v2226
        %v2232 = vmul.f32 %v1549, %v2226
        %v2233 = vmul.f32 %v1550, %v2226
        %v2234 = vmul.f32 %v1551, %v2226
        %v2235 = vmul.f32 %v1552, %v2226
        %2244 = vrot.lane.b32.xlu0 %v2228, 111
        %v2245 = vpop.permute.xlu0 %2244
        %2246 = vrot.lane.b32.xlu0 %v2229, 111
        %v2247 = vpop.permute.xlu0 %2246
        %2248 = vrot.lane.b32.xlu0 %v2230, 111
        %v2249 = vpop.permute.xlu0 %2248
        %2250 = vrot.lane.b32.xlu0 %v2231, 111
        %v2251 = vpop.permute.xlu0 %2250
        %2252 = vrot.lane.b32.xlu0 %v2232, 111
        %v2253 = vpop.permute.xlu0 %2252
        %2254 = vrot.lane.b32.xlu0 %v2233, 111
        %v2255 = vpop.permute.xlu0 %2254
        %2256 = vrot.lane.b32.xlu0 %v2234, 111
        %v2257 = vpop.permute.xlu0 %2256
        %2258 = vrot.lane.b32.xlu0 %v2235, 111
        %v2259 = vpop.permute.xlu0 %2258
        %v2260 = vrot.slane %v2245, 4
        %v2261 = vrot.slane %v2247, 4
        %v2262 = vrot.slane %v2249, 4
        %v2263 = vrot.slane %v2251, 4
        %v2264 = vrot.slane %v2253, 4
        %v2265 = vrot.slane %v2255, 4
        %v2266 = vrot.slane %v2257, 4
        %v2267 = vrot.slane %v2259, 4
        %v2268 = vsel %vm516, %v2260, %v2261
        %vm2269 = vcmask 908288
        %v2270 = vsel %vm2269, %v2245, %v2268
        %v2271 = vsel %vm516, %v2261, %v2262
        %v2272 = vsel %vm2269, %v2247, %v2271
        %v2273 = vsel %vm516, %v2262, %v2263
        %v2274 = vsel %vm2269, %v2249, %v2273
        %v2275 = vsel %vm516, %v2263, %v2264
        %v2276 = vsel %vm2269, %v2251, %v2275
        %v2277 = vsel %vm516, %v2264, %v2265
        %v2278 = vsel %vm2269, %v2253, %v2277
        %v2279 = vsel %vm516, %v2265, %v2266
        %v2280 = vsel %vm2269, %v2255, %v2279
        %v2281 = vsel %vm516, %v2266, %v2267
        %v2282 = vsel %vm2269, %v2257, %v2281
        %v2283 = vsel %vm2269, %v2259, %v2267
        %v2292 = vadd.f32 %v2209, %v2270
        %v2293 = vadd.f32 %v2210, %v2272
        %v2294 = vadd.f32 %v2211, %v2274
        %v2295 = vadd.f32 %v2212, %v2276
        %v2296 = vadd.f32 %v2213, %v2278
        %v2297 = vadd.f32 %v2214, %v2280
        %v2298 = vadd.f32 %v2215, %v2282
        %v2299 = vadd.f32 %v2216, %v2283
        %2300 = vset.pattern.permute.xlu0 23
        %2301 = vperm.xlu0 %2300, %v265
        %v2302 = vpop.permute.xlu0 %2301
        %v2304 = vunpack.c.l.s4 839922192
        %v2305 = vunpack.c.0.s8 %v2304
        %v2306 = vlaneseq
        %v2307 = vshrl.u32 %v2306, 7
        %v2308 = vsub.s32 %v2305, %v2307
        %v2309 = vrot.slane %v2302, %v2308
        %v2311 = vmul.f32 %v1545, %v2309
        %v2312 = vmul.f32 %v1546, %v2309
        %v2313 = vmul.f32 %v1547, %v2309
        %v2314 = vmul.f32 %v1548, %v2309
        %v2315 = vmul.f32 %v1549, %v2309
        %v2316 = vmul.f32 %v1550, %v2309
        %v2317 = vmul.f32 %v1551, %v2309
        %v2318 = vmul.f32 %v1552, %v2309
        %2327 = vrot.lane.b32.xlu0 %v2311, 110
        %v2328 = vpop.permute.xlu0 %2327
        %2329 = vrot.lane.b32.xlu0 %v2312, 110
        %v2330 = vpop.permute.xlu0 %2329
        %2331 = vrot.lane.b32.xlu0 %v2313, 110
        %v2332 = vpop.permute.xlu0 %2331
        %2333 = vrot.lane.b32.xlu0 %v2314, 110
        %v2334 = vpop.permute.xlu0 %2333
        %2335 = vrot.lane.b32.xlu0 %v2315, 110
        %v2336 = vpop.permute.xlu0 %2335
        %2337 = vrot.lane.b32.xlu0 %v2316, 110
        %v2338 = vpop.permute.xlu0 %2337
        %2339 = vrot.lane.b32.xlu0 %v2317, 110
        %v2340 = vpop.permute.xlu0 %2339
        %2341 = vrot.lane.b32.xlu0 %v2318, 110
        %v2342 = vpop.permute.xlu0 %2341
        %v2343 = vrot.slane %v2328, 4
        %v2344 = vrot.slane %v2330, 4
        %v2345 = vrot.slane %v2332, 4
        %v2346 = vrot.slane %v2334, 4
        %v2347 = vrot.slane %v2336, 4
        %v2348 = vrot.slane %v2338, 4
        %v2349 = vrot.slane %v2340, 4
        %v2350 = vrot.slane %v2342, 4
        %v2351 = vsel %vm516, %v2343, %v2344
        %vm2352 = vcmask 900096
        %v2353 = vsel %vm2352, %v2328, %v2351
        %v2354 = vsel %vm516, %v2344, %v2345
        %v2355 = vsel %vm2352, %v2330, %v2354
        %v2356 = vsel %vm516, %v2345, %v2346
        %v2357 = vsel %vm2352, %v2332, %v2356
        %v2358 = vsel %vm516, %v2346, %v2347
        %v2359 = vsel %vm2352, %v2334, %v2358
        %v2360 = vsel %vm516, %v2347, %v2348
        %v2361 = vsel %vm2352, %v2336, %v2360
        %v2362 = vsel %vm516, %v2348, %v2349
        %v2363 = vsel %vm2352, %v2338, %v2362
        %v2364 = vsel %vm516, %v2349, %v2350
        %v2365 = vsel %vm2352, %v2340, %v2364
        %v2366 = vsel %vm2352, %v2342, %v2350
        %v2375 = vadd.f32 %v2292, %v2353
        %v2376 = vadd.f32 %v2293, %v2355
        %v2377 = vadd.f32 %v2294, %v2357
        %v2378 = vadd.f32 %v2295, %v2359
        %v2379 = vadd.f32 %v2296, %v2361
        %v2380 = vadd.f32 %v2297, %v2363
        %v2381 = vadd.f32 %v2298, %v2365
        %v2382 = vadd.f32 %v2299, %v2366
        %2383 = vset.pattern.permute.xlu0 24
        %2384 = vperm.xlu0 %2383, %v265
        %v2385 = vpop.permute.xlu0 %2384
        %v2387 = vunpack.c.l.s4 839922192
        %v2388 = vunpack.c.0.s8 %v2387
        %v2389 = vlaneseq
        %v2390 = vshrl.u32 %v2389, 7
        %v2391 = vsub.s32 %v2388, %v2390
        %v2392 = vrot.slane %v2385, %v2391
        %v2394 = vmul.f32 %v1545, %v2392
        %v2395 = vmul.f32 %v1546, %v2392
        %v2396 = vmul.f32 %v1547, %v2392
        %v2397 = vmul.f32 %v1548, %v2392
        %v2398 = vmul.f32 %v1549, %v2392
        %v2399 = vmul.f32 %v1550, %v2392
        %v2400 = vmul.f32 %v1551, %v2392
        %v2401 = vmul.f32 %v1552, %v2392
        %2410 = vrot.lane.b32.xlu0 %v2394, 109
        %v2411 = vpop.permute.xlu0 %2410
        %2412 = vrot.lane.b32.xlu0 %v2395, 109
        %v2413 = vpop.permute.xlu0 %2412
        %2414 = vrot.lane.b32.xlu0 %v2396, 109
        %v2415 = vpop.permute.xlu0 %2414
        %2416 = vrot.lane.b32.xlu0 %v2397, 109
        %v2417 = vpop.permute.xlu0 %2416
        %2418 = vrot.lane.b32.xlu0 %v2398, 109
        %v2419 = vpop.permute.xlu0 %2418
        %2420 = vrot.lane.b32.xlu0 %v2399, 109
        %v2421 = vpop.permute.xlu0 %2420
        %2422 = vrot.lane.b32.xlu0 %v2400, 109
        %v2423 = vpop.permute.xlu0 %2422
        %2424 = vrot.lane.b32.xlu0 %v2401, 109
        %v2425 = vpop.permute.xlu0 %2424
        %v2426 = vrot.slane %v2411, 4
        %v2427 = vrot.slane %v2413, 4
        %v2428 = vrot.slane %v2415, 4
        %v2429 = vrot.slane %v2417, 4
        %v2430 = vrot.slane %v2419, 4
        %v2431 = vrot.slane %v2421, 4
        %v2432 = vrot.slane %v2423, 4
        %v2433 = vrot.slane %v2425, 4
        %v2434 = vsel %vm516, %v2426, %v2427
        %vm2435 = vcmask 891904
        %v2436 = vsel %vm2435, %v2411, %v2434
        %v2437 = vsel %vm516, %v2427, %v2428
        %v2438 = vsel %vm2435, %v2413, %v2437
        %v2439 = vsel %vm516, %v2428, %v2429
        %v2440 = vsel %vm2435, %v2415, %v2439
        %v2441 = vsel %vm516, %v2429, %v2430
        %v2442 = vsel %vm2435, %v2417, %v2441
        %v2443 = vsel %vm516, %v2430, %v2431
        %v2444 = vsel %vm2435, %v2419, %v2443
        %v2445 = vsel %vm516, %v2431, %v2432
        %v2446 = vsel %vm2435, %v2421, %v2445
        %v2447 = vsel %vm516, %v2432, %v2433
        %v2448 = vsel %vm2435, %v2423, %v2447
        %v2449 = vsel %vm2435, %v2425, %v2433
        %v2458 = vadd.f32 %v2375, %v2436
        %v2459 = vadd.f32 %v2376, %v2438
        %v2460 = vadd.f32 %v2377, %v2440
        %v2461 = vadd.f32 %v2378, %v2442
        %v2462 = vadd.f32 %v2379, %v2444
        %v2463 = vadd.f32 %v2380, %v2446
        %v2464 = vadd.f32 %v2381, %v2448
        %v2465 = vadd.f32 %v2382, %v2449
        %2466 = vset.pattern.permute.xlu0 25
        %2467 = vperm.xlu0 %2466, %v265
        %v2468 = vpop.permute.xlu0 %2467
        %v2470 = vunpack.c.l.s4 839922192
        %v2471 = vunpack.c.0.s8 %v2470
        %v2472 = vlaneseq
        %v2473 = vshrl.u32 %v2472, 7
        %v2474 = vsub.s32 %v2471, %v2473
        %v2475 = vrot.slane %v2468, %v2474
        %v2477 = vmul.f32 %v1545, %v2475
        %v2478 = vmul.f32 %v1546, %v2475
        %v2479 = vmul.f32 %v1547, %v2475
        %v2480 = vmul.f32 %v1548, %v2475
        %v2481 = vmul.f32 %v1549, %v2475
        %v2482 = vmul.f32 %v1550, %v2475
        %v2483 = vmul.f32 %v1551, %v2475
        %v2484 = vmul.f32 %v1552, %v2475
        %2493 = vrot.lane.b32.xlu0 %v2477, 108
        %v2494 = vpop.permute.xlu0 %2493
        %2495 = vrot.lane.b32.xlu0 %v2478, 108
        %v2496 = vpop.permute.xlu0 %2495
        %2497 = vrot.lane.b32.xlu0 %v2479, 108
        %v2498 = vpop.permute.xlu0 %2497
        %2499 = vrot.lane.b32.xlu0 %v2480, 108
        %v2500 = vpop.permute.xlu0 %2499
        %2501 = vrot.lane.b32.xlu0 %v2481, 108
        %v2502 = vpop.permute.xlu0 %2501
        %2503 = vrot.lane.b32.xlu0 %v2482, 108
        %v2504 = vpop.permute.xlu0 %2503
        %2505 = vrot.lane.b32.xlu0 %v2483, 108
        %v2506 = vpop.permute.xlu0 %2505
        %2507 = vrot.lane.b32.xlu0 %v2484, 108
        %v2508 = vpop.permute.xlu0 %2507
        %v2509 = vrot.slane %v2494, 4
        %v2510 = vrot.slane %v2496, 4
        %v2511 = vrot.slane %v2498, 4
        %v2512 = vrot.slane %v2500, 4
        %v2513 = vrot.slane %v2502, 4
        %v2514 = vrot.slane %v2504, 4
        %v2515 = vrot.slane %v2506, 4
        %v2516 = vrot.slane %v2508, 4
        %v2517 = vsel %vm516, %v2509, %v2510
        %vm2518 = vcmask 883712
        %v2519 = vsel %vm2518, %v2494, %v2517
        %v2520 = vsel %vm516, %v2510, %v2511
        %v2521 = vsel %vm2518, %v2496, %v2520
        %v2522 = vsel %vm516, %v2511, %v2512
        %v2523 = vsel %vm2518, %v2498, %v2522
        %v2524 = vsel %vm516, %v2512, %v2513
        %v2525 = vsel %vm2518, %v2500, %v2524
        %v2526 = vsel %vm516, %v2513, %v2514
        %v2527 = vsel %vm2518, %v2502, %v2526
        %v2528 = vsel %vm516, %v2514, %v2515
        %v2529 = vsel %vm2518, %v2504, %v2528
        %v2530 = vsel %vm516, %v2515, %v2516
        %v2531 = vsel %vm2518, %v2506, %v2530
        %v2532 = vsel %vm2518, %v2508, %v2516
        %v2541 = vadd.f32 %v2458, %v2519
        %v2542 = vadd.f32 %v2459, %v2521
        %v2543 = vadd.f32 %v2460, %v2523
        %v2544 = vadd.f32 %v2461, %v2525
        %v2545 = vadd.f32 %v2462, %v2527
        %v2546 = vadd.f32 %v2463, %v2529
        %v2547 = vadd.f32 %v2464, %v2531
        %v2548 = vadd.f32 %v2465, %v2532
        %2549 = vset.pattern.permute.xlu0 26
        %2550 = vperm.xlu0 %2549, %v265
        %v2551 = vpop.permute.xlu0 %2550
        %v2553 = vunpack.c.l.s4 839922192
        %v2554 = vunpack.c.0.s8 %v2553
        %v2555 = vlaneseq
        %v2556 = vshrl.u32 %v2555, 7
        %v2557 = vsub.s32 %v2554, %v2556
        %v2558 = vrot.slane %v2551, %v2557
        %v2560 = vmul.f32 %v1545, %v2558
        %v2561 = vmul.f32 %v1546, %v2558
        %v2562 = vmul.f32 %v1547, %v2558
        %v2563 = vmul.f32 %v1548, %v2558
        %v2564 = vmul.f32 %v1549, %v2558
        %v2565 = vmul.f32 %v1550, %v2558
        %v2566 = vmul.f32 %v1551, %v2558
        %v2567 = vmul.f32 %v1552, %v2558
        %2576 = vrot.lane.b32.xlu0 %v2560, 107
        %v2577 = vpop.permute.xlu0 %2576
        %2578 = vrot.lane.b32.xlu0 %v2561, 107
        %v2579 = vpop.permute.xlu0 %2578
        %2580 = vrot.lane.b32.xlu0 %v2562, 107
        %v2581 = vpop.permute.xlu0 %2580
        %2582 = vrot.lane.b32.xlu0 %v2563, 107
        %v2583 = vpop.permute.xlu0 %2582
        %2584 = vrot.lane.b32.xlu0 %v2564, 107
        %v2585 = vpop.permute.xlu0 %2584
        %2586 = vrot.lane.b32.xlu0 %v2565, 107
        %v2587 = vpop.permute.xlu0 %2586
        %2588 = vrot.lane.b32.xlu0 %v2566, 107
        %v2589 = vpop.permute.xlu0 %2588
        %2590 = vrot.lane.b32.xlu0 %v2567, 107
        %v2591 = vpop.permute.xlu0 %2590
        %v2592 = vrot.slane %v2577, 4
        %v2593 = vrot.slane %v2579, 4
        %v2594 = vrot.slane %v2581, 4
        %v2595 = vrot.slane %v2583, 4
        %v2596 = vrot.slane %v2585, 4
        %v2597 = vrot.slane %v2587, 4
        %v2598 = vrot.slane %v2589, 4
        %v2599 = vrot.slane %v2591, 4
        %v2600 = vsel %vm516, %v2592, %v2593
        %vm2601 = vcmask 875520
        %v2602 = vsel %vm2601, %v2577, %v2600
        %v2603 = vsel %vm516, %v2593, %v2594
        %v2604 = vsel %vm2601, %v2579, %v2603
        %v2605 = vsel %vm516, %v2594, %v2595
        %v2606 = vsel %vm2601, %v2581, %v2605
        %v2607 = vsel %vm516, %v2595, %v2596
        %v2608 = vsel %vm2601, %v2583, %v2607
        %v2609 = vsel %vm516, %v2596, %v2597
        %v2610 = vsel %vm2601, %v2585, %v2609
        %v2611 = vsel %vm516, %v2597, %v2598
        %v2612 = vsel %vm2601, %v2587, %v2611
        %v2613 = vsel %vm516, %v2598, %v2599
        %v2614 = vsel %vm2601, %v2589, %v2613
        %v2615 = vsel %vm2601, %v2591, %v2599
        %v2624 = vadd.f32 %v2541, %v2602
        %v2625 = vadd.f32 %v2542, %v2604
        %v2626 = vadd.f32 %v2543, %v2606
        %v2627 = vadd.f32 %v2544, %v2608
        %v2628 = vadd.f32 %v2545, %v2610
        %v2629 = vadd.f32 %v2546, %v2612
        %v2630 = vadd.f32 %v2547, %v2614
        %v2631 = vadd.f32 %v2548, %v2615
        %2632 = vset.pattern.permute.xlu0 27
        %2633 = vperm.xlu0 %2632, %v265
        %v2634 = vpop.permute.xlu0 %2633
        %v2636 = vunpack.c.l.s4 839922192
        %v2637 = vunpack.c.0.s8 %v2636
        %v2638 = vlaneseq
        %v2639 = vshrl.u32 %v2638, 7
        %v2640 = vsub.s32 %v2637, %v2639
        %v2641 = vrot.slane %v2634, %v2640
        %v2643 = vmul.f32 %v1545, %v2641
        %v2644 = vmul.f32 %v1546, %v2641
        %v2645 = vmul.f32 %v1547, %v2641
        %v2646 = vmul.f32 %v1548, %v2641
        %v2647 = vmul.f32 %v1549, %v2641
        %v2648 = vmul.f32 %v1550, %v2641
        %v2649 = vmul.f32 %v1551, %v2641
        %v2650 = vmul.f32 %v1552, %v2641
        %2659 = vrot.lane.b32.xlu0 %v2643, 106
        %v2660 = vpop.permute.xlu0 %2659
        %2661 = vrot.lane.b32.xlu0 %v2644, 106
        %v2662 = vpop.permute.xlu0 %2661
        %2663 = vrot.lane.b32.xlu0 %v2645, 106
        %v2664 = vpop.permute.xlu0 %2663
        %2665 = vrot.lane.b32.xlu0 %v2646, 106
        %v2666 = vpop.permute.xlu0 %2665
        %2667 = vrot.lane.b32.xlu0 %v2647, 106
        %v2668 = vpop.permute.xlu0 %2667
        %2669 = vrot.lane.b32.xlu0 %v2648, 106
        %v2670 = vpop.permute.xlu0 %2669
        %2671 = vrot.lane.b32.xlu0 %v2649, 106
        %v2672 = vpop.permute.xlu0 %2671
        %2673 = vrot.lane.b32.xlu0 %v2650, 106
        %v2674 = vpop.permute.xlu0 %2673
        %v2675 = vrot.slane %v2660, 4
        %v2676 = vrot.slane %v2662, 4
        %v2677 = vrot.slane %v2664, 4
        %v2678 = vrot.slane %v2666, 4
        %v2679 = vrot.slane %v2668, 4
        %v2680 = vrot.slane %v2670, 4
        %v2681 = vrot.slane %v2672, 4
        %v2682 = vrot.slane %v2674, 4
        %v2683 = vsel %vm516, %v2675, %v2676
        %vm2684 = vcmask 867328
        %v2685 = vsel %vm2684, %v2660, %v2683
        %v2686 = vsel %vm516, %v2676, %v2677
        %v2687 = vsel %vm2684, %v2662, %v2686
        %v2688 = vsel %vm516, %v2677, %v2678
        %v2689 = vsel %vm2684, %v2664, %v2688
        %v2690 = vsel %vm516, %v2678, %v2679
        %v2691 = vsel %vm2684, %v2666, %v2690
        %v2692 = vsel %vm516, %v2679, %v2680
        %v2693 = vsel %vm2684, %v2668, %v2692
        %v2694 = vsel %vm516, %v2680, %v2681
        %v2695 = vsel %vm2684, %v2670, %v2694
        %v2696 = vsel %vm516, %v2681, %v2682
        %v2697 = vsel %vm2684, %v2672, %v2696
        %v2698 = vsel %vm2684, %v2674, %v2682
        %v2707 = vadd.f32 %v2624, %v2685
        %v2708 = vadd.f32 %v2625, %v2687
        %v2709 = vadd.f32 %v2626, %v2689
        %v2710 = vadd.f32 %v2627, %v2691
        %v2711 = vadd.f32 %v2628, %v2693
        %v2712 = vadd.f32 %v2629, %v2695
        %v2713 = vadd.f32 %v2630, %v2697
        %v2714 = vadd.f32 %v2631, %v2698
        %2715 = vset.pattern.permute.xlu0 28
        %2716 = vperm.xlu0 %2715, %v265
        %v2717 = vpop.permute.xlu0 %2716
        %v2719 = vunpack.c.l.s4 839922192
        %v2720 = vunpack.c.0.s8 %v2719
        %v2721 = vlaneseq
        %v2722 = vshrl.u32 %v2721, 7
        %v2723 = vsub.s32 %v2720, %v2722
        %v2724 = vrot.slane %v2717, %v2723
        %v2726 = vmul.f32 %v1545, %v2724
        %v2727 = vmul.f32 %v1546, %v2724
        %v2728 = vmul.f32 %v1547, %v2724
        %v2729 = vmul.f32 %v1548, %v2724
        %v2730 = vmul.f32 %v1549, %v2724
        %v2731 = vmul.f32 %v1550, %v2724
        %v2732 = vmul.f32 %v1551, %v2724
        %v2733 = vmul.f32 %v1552, %v2724
        %2742 = vrot.lane.b32.xlu0 %v2726, 64
        %v2743 = vpop.permute.xlu0 %2742
        %2744 = vrot.lane.b32.xlu0 %v2727, 64
        %v2745 = vpop.permute.xlu0 %2744
        %2746 = vrot.lane.b32.xlu0 %v2728, 64
        %v2747 = vpop.permute.xlu0 %2746
        %2748 = vrot.lane.b32.xlu0 %v2729, 64
        %v2749 = vpop.permute.xlu0 %2748
        %2750 = vrot.lane.b32.xlu0 %v2730, 64
        %v2751 = vpop.permute.xlu0 %2750
        %2752 = vrot.lane.b32.xlu0 %v2731, 64
        %v2753 = vpop.permute.xlu0 %2752
        %2754 = vrot.lane.b32.xlu0 %v2732, 64
        %v2755 = vpop.permute.xlu0 %2754
        %2756 = vrot.lane.b32.xlu0 %v2733, 64
        %v2757 = vpop.permute.xlu0 %2756
        %v2758 = vrot.slane %v2743, 4
        %v2759 = vrot.slane %v2745, 4
        %v2760 = vrot.slane %v2747, 4
        %v2761 = vrot.slane %v2749, 4
        %v2762 = vrot.slane %v2751, 4
        %v2763 = vrot.slane %v2753, 4
        %v2764 = vrot.slane %v2755, 4
        %v2765 = vrot.slane %v2757, 4
        %v2766 = vsel %vm516, %v2758, %v2759
        %vm2767 = vcmask 523264
        %v2768 = vsel %vm2767, %v2743, %v2766
        %v2769 = vsel %vm516, %v2759, %v2760
        %v2770 = vsel %vm2767, %v2745, %v2769
        %v2771 = vsel %vm516, %v2760, %v2761
        %v2772 = vsel %vm2767, %v2747, %v2771
        %v2773 = vsel %vm516, %v2761, %v2762
        %v2774 = vsel %vm2767, %v2749, %v2773
        %v2775 = vsel %vm516, %v2762, %v2763
        %v2776 = vsel %vm2767, %v2751, %v2775
        %v2777 = vsel %vm516, %v2763, %v2764
        %v2778 = vsel %vm2767, %v2753, %v2777
        %v2779 = vsel %vm516, %v2764, %v2765
        %v2780 = vsel %vm2767, %v2755, %v2779
        %v2781 = vsel %vm2767, %v2757, %v2765
        %v2790 = vadd.f32 %v2707, %v2768
        %v2791 = vadd.f32 %v2708, %v2770
        %v2792 = vadd.f32 %v2709, %v2772
        %v2793 = vadd.f32 %v2710, %v2774
        %v2794 = vadd.f32 %v2711, %v2776
        %v2795 = vadd.f32 %v2712, %v2778
        %v2796 = vadd.f32 %v2713, %v2780
        %v2797 = vadd.f32 %v2714, %v2781
        %2798 = vset.pattern.permute.xlu0 29
        %2799 = vperm.xlu0 %2798, %v265
        %v2800 = vpop.permute.xlu0 %2799
        %v2802 = vunpack.c.l.s4 839922192
        %v2803 = vunpack.c.0.s8 %v2802
        %v2804 = vlaneseq
        %v2805 = vshrl.u32 %v2804, 7
        %v2806 = vsub.s32 %v2803, %v2805
        %v2807 = vrot.slane %v2800, %v2806
        %v2809 = vmul.f32 %v1545, %v2807
        %v2810 = vmul.f32 %v1546, %v2807
        %v2811 = vmul.f32 %v1547, %v2807
        %v2812 = vmul.f32 %v1548, %v2807
        %v2813 = vmul.f32 %v1549, %v2807
        %v2814 = vmul.f32 %v1550, %v2807
        %v2815 = vmul.f32 %v1551, %v2807
        %v2816 = vmul.f32 %v1552, %v2807
        %2825 = vrot.lane.b32.xlu0 %v2809, 63
        %v2826 = vpop.permute.xlu0 %2825
        %2827 = vrot.lane.b32.xlu0 %v2810, 63
        %v2828 = vpop.permute.xlu0 %2827
        %2829 = vrot.lane.b32.xlu0 %v2811, 63
        %v2830 = vpop.permute.xlu0 %2829
        %2831 = vrot.lane.b32.xlu0 %v2812, 63
        %v2832 = vpop.permute.xlu0 %2831
        %2833 = vrot.lane.b32.xlu0 %v2813, 63
        %v2834 = vpop.permute.xlu0 %2833
        %2835 = vrot.lane.b32.xlu0 %v2814, 63
        %v2836 = vpop.permute.xlu0 %2835
        %2837 = vrot.lane.b32.xlu0 %v2815, 63
        %v2838 = vpop.permute.xlu0 %2837
        %2839 = vrot.lane.b32.xlu0 %v2816, 63
        %v2840 = vpop.permute.xlu0 %2839
        %v2841 = vrot.slane %v2826, 4
        %v2842 = vrot.slane %v2828, 4
        %v2843 = vrot.slane %v2830, 4
        %v2844 = vrot.slane %v2832, 4
        %v2845 = vrot.slane %v2834, 4
        %v2846 = vrot.slane %v2836, 4
        %v2847 = vrot.slane %v2838, 4
        %v2848 = vrot.slane %v2840, 4
        %v2849 = vsel %vm516, %v2841, %v2842
        %vm2850 = vcmask 515072
        %v2851 = vsel %vm2850, %v2826, %v2849
        %v2852 = vsel %vm516, %v2842, %v2843
        %v2853 = vsel %vm2850, %v2828, %v2852
        %v2854 = vsel %vm516, %v2843, %v2844
        %v2855 = vsel %vm2850, %v2830, %v2854
        %v2856 = vsel %vm516, %v2844, %v2845
        %v2857 = vsel %vm2850, %v2832, %v2856
        %v2858 = vsel %vm516, %v2845, %v2846
        %v2859 = vsel %vm2850, %v2834, %v2858
        %v2860 = vsel %vm516, %v2846, %v2847
        %v2861 = vsel %vm2850, %v2836, %v2860
        %v2862 = vsel %vm516, %v2847, %v2848
        %v2863 = vsel %vm2850, %v2838, %v2862
        %v2864 = vsel %vm2850, %v2840, %v2848
        %v2873 = vadd.f32 %v2790, %v2851
        %v2874 = vadd.f32 %v2791, %v2853
        %v2875 = vadd.f32 %v2792, %v2855
        %v2876 = vadd.f32 %v2793, %v2857
        %v2877 = vadd.f32 %v2794, %v2859
        %v2878 = vadd.f32 %v2795, %v2861
        %v2879 = vadd.f32 %v2796, %v2863
        %v2880 = vadd.f32 %v2797, %v2864
        %2881 = vset.pattern.permute.xlu0 30
        %2882 = vperm.xlu0 %2881, %v265
        %v2883 = vpop.permute.xlu0 %2882
        %v2885 = vunpack.c.l.s4 839922192
        %v2886 = vunpack.c.0.s8 %v2885
        %v2887 = vlaneseq
        %v2888 = vshrl.u32 %v2887, 7
        %v2889 = vsub.s32 %v2886, %v2888
        %v2890 = vrot.slane %v2883, %v2889
        %v2892 = vmul.f32 %v1545, %v2890
        %v2893 = vmul.f32 %v1546, %v2890
        %v2894 = vmul.f32 %v1547, %v2890
        %v2895 = vmul.f32 %v1548, %v2890
        %v2896 = vmul.f32 %v1549, %v2890
        %v2897 = vmul.f32 %v1550, %v2890
        %v2898 = vmul.f32 %v1551, %v2890
        %v2899 = vmul.f32 %v1552, %v2890
        %2908 = vrot.lane.b32.xlu0 %v2892, 62
        %v2909 = vpop.permute.xlu0 %2908
        %2910 = vrot.lane.b32.xlu0 %v2893, 62
        %v2911 = vpop.permute.xlu0 %2910
        %2912 = vrot.lane.b32.xlu0 %v2894, 62
        %v2913 = vpop.permute.xlu0 %2912
        %2914 = vrot.lane.b32.xlu0 %v2895, 62
        %v2915 = vpop.permute.xlu0 %2914
        %2916 = vrot.lane.b32.xlu0 %v2896, 62
        %v2917 = vpop.permute.xlu0 %2916
        %2918 = vrot.lane.b32.xlu0 %v2897, 62
        %v2919 = vpop.permute.xlu0 %2918
        %2920 = vrot.lane.b32.xlu0 %v2898, 62
        %v2921 = vpop.permute.xlu0 %2920
        %2922 = vrot.lane.b32.xlu0 %v2899, 62
        %v2923 = vpop.permute.xlu0 %2922
        %v2924 = vrot.slane %v2909, 4
        %v2925 = vrot.slane %v2911, 4
        %v2926 = vrot.slane %v2913, 4
        %v2927 = vrot.slane %v2915, 4
        %v2928 = vrot.slane %v2917, 4
        %v2929 = vrot.slane %v2919, 4
        %v2930 = vrot.slane %v2921, 4
        %v2931 = vrot.slane %v2923, 4
        %v2932 = vsel %vm516, %v2924, %v2925
        %vm2933 = vcmask 506880
        %v2934 = vsel %vm2933, %v2909, %v2932
        %v2935 = vsel %vm516, %v2925, %v2926
        %v2936 = vsel %vm2933, %v2911, %v2935
        %v2937 = vsel %vm516, %v2926, %v2927
        %v2938 = vsel %vm2933, %v2913, %v2937
        %v2939 = vsel %vm516, %v2927, %v2928
        %v2940 = vsel %vm2933, %v2915, %v2939
        %v2941 = vsel %vm516, %v2928, %v2929
        %v2942 = vsel %vm2933, %v2917, %v2941
        %v2943 = vsel %vm516, %v2929, %v2930
        %v2944 = vsel %vm2933, %v2919, %v2943
        %v2945 = vsel %vm516, %v2930, %v2931
        %v2946 = vsel %vm2933, %v2921, %v2945
        %v2947 = vsel %vm2933, %v2923, %v2931
        %v2956 = vadd.f32 %v2873, %v2934
        %v2957 = vadd.f32 %v2874, %v2936
        %v2958 = vadd.f32 %v2875, %v2938
        %v2959 = vadd.f32 %v2876, %v2940
        %v2960 = vadd.f32 %v2877, %v2942
        %v2961 = vadd.f32 %v2878, %v2944
        %v2962 = vadd.f32 %v2879, %v2946
        %v2963 = vadd.f32 %v2880, %v2947
        %2964 = vset.pattern.permute.xlu0 31
        %2965 = vperm.xlu0 %2964, %v265
        %v2966 = vpop.permute.xlu0 %2965
        %v2968 = vunpack.c.l.s4 839922192
        %v2969 = vunpack.c.0.s8 %v2968
        %v2970 = vlaneseq
        %v2971 = vshrl.u32 %v2970, 7
        %v2972 = vsub.s32 %v2969, %v2971
        %v2973 = vrot.slane %v2966, %v2972
        %v2975 = vmul.f32 %v1545, %v2973
        %v2976 = vmul.f32 %v1546, %v2973
        %v2977 = vmul.f32 %v1547, %v2973
        %v2978 = vmul.f32 %v1548, %v2973
        %v2979 = vmul.f32 %v1549, %v2973
        %v2980 = vmul.f32 %v1550, %v2973
        %v2981 = vmul.f32 %v1551, %v2973
        %v2982 = vmul.f32 %v1552, %v2973
        %2991 = vrot.lane.b32.xlu0 %v2975, 61
        %v2992 = vpop.permute.xlu0 %2991
        %2993 = vrot.lane.b32.xlu0 %v2976, 61
        %v2994 = vpop.permute.xlu0 %2993
        %2995 = vrot.lane.b32.xlu0 %v2977, 61
        %v2996 = vpop.permute.xlu0 %2995
        %2997 = vrot.lane.b32.xlu0 %v2978, 61
        %v2998 = vpop.permute.xlu0 %2997
        %2999 = vrot.lane.b32.xlu0 %v2979, 61
        %v3000 = vpop.permute.xlu0 %2999
        %3001 = vrot.lane.b32.xlu0 %v2980, 61
        %v3002 = vpop.permute.xlu0 %3001
        %3003 = vrot.lane.b32.xlu0 %v2981, 61
        %v3004 = vpop.permute.xlu0 %3003
        %3005 = vrot.lane.b32.xlu0 %v2982, 61
        %v3006 = vpop.permute.xlu0 %3005
        %v3007 = vrot.slane %v2992, 4
        %v3008 = vrot.slane %v2994, 4
        %v3009 = vrot.slane %v2996, 4
        %v3010 = vrot.slane %v2998, 4
        %v3011 = vrot.slane %v3000, 4
        %v3012 = vrot.slane %v3002, 4
        %v3013 = vrot.slane %v3004, 4
        %v3014 = vrot.slane %v3006, 4
        %v3015 = vsel %vm516, %v3007, %v3008
        %vm3016 = vcmask 498688
        %v3017 = vsel %vm3016, %v2992, %v3015
        %v3018 = vsel %vm516, %v3008, %v3009
        %v3019 = vsel %vm3016, %v2994, %v3018
        %v3020 = vsel %vm516, %v3009, %v3010
        %v3021 = vsel %vm3016, %v2996, %v3020
        %v3022 = vsel %vm516, %v3010, %v3011
        %v3023 = vsel %vm3016, %v2998, %v3022
        %v3024 = vsel %vm516, %v3011, %v3012
        %v3025 = vsel %vm3016, %v3000, %v3024
        %v3026 = vsel %vm516, %v3012, %v3013
        %v3027 = vsel %vm3016, %v3002, %v3026
        %v3028 = vsel %vm516, %v3013, %v3014
        %v3029 = vsel %vm3016, %v3004, %v3028
        %v3030 = vsel %vm3016, %v3006, %v3014
        %v3039 = vadd.f32 %v2956, %v3017
        %v3040 = vadd.f32 %v2957, %v3019
        %v3041 = vadd.f32 %v2958, %v3021
        %v3042 = vadd.f32 %v2959, %v3023
        %v3043 = vadd.f32 %v2960, %v3025
        %v3044 = vadd.f32 %v2961, %v3027
        %v3045 = vadd.f32 %v2962, %v3029
        %v3046 = vadd.f32 %v2963, %v3030
        %3047 = vset.pattern.permute.xlu0 32
        %3048 = vperm.xlu0 %3047, %v265
        %v3049 = vpop.permute.xlu0 %3048
        %v3051 = vunpack.c.l.s4 839922192
        %v3052 = vunpack.c.0.s8 %v3051
        %v3053 = vlaneseq
        %v3054 = vshrl.u32 %v3053, 7
        %v3055 = vsub.s32 %v3052, %v3054
        %v3056 = vrot.slane %v3049, %v3055
        %v3058 = vmul.f32 %v1545, %v3056
        %v3059 = vmul.f32 %v1546, %v3056
        %v3060 = vmul.f32 %v1547, %v3056
        %v3061 = vmul.f32 %v1548, %v3056
        %v3062 = vmul.f32 %v1549, %v3056
        %v3063 = vmul.f32 %v1550, %v3056
        %v3064 = vmul.f32 %v1551, %v3056
        %v3065 = vmul.f32 %v1552, %v3056
        %3074 = vrot.lane.b32.xlu0 %v3058, 60
        %v3075 = vpop.permute.xlu0 %3074
        %3076 = vrot.lane.b32.xlu0 %v3059, 60
        %v3077 = vpop.permute.xlu0 %3076
        %3078 = vrot.lane.b32.xlu0 %v3060, 60
        %v3079 = vpop.permute.xlu0 %3078
        %3080 = vrot.lane.b32.xlu0 %v3061, 60
        %v3081 = vpop.permute.xlu0 %3080
        %3082 = vrot.lane.b32.xlu0 %v3062, 60
        %v3083 = vpop.permute.xlu0 %3082
        %3084 = vrot.lane.b32.xlu0 %v3063, 60
        %v3085 = vpop.permute.xlu0 %3084
        %3086 = vrot.lane.b32.xlu0 %v3064, 60
        %v3087 = vpop.permute.xlu0 %3086
        %3088 = vrot.lane.b32.xlu0 %v3065, 60
        %v3089 = vpop.permute.xlu0 %3088
        %v3090 = vrot.slane %v3075, 4
        %v3091 = vrot.slane %v3077, 4
        %v3092 = vrot.slane %v3079, 4
        %v3093 = vrot.slane %v3081, 4
        %v3094 = vrot.slane %v3083, 4
        %v3095 = vrot.slane %v3085, 4
        %v3096 = vrot.slane %v3087, 4
        %v3097 = vrot.slane %v3089, 4
        %v3098 = vsel %vm516, %v3090, %v3091
        %vm3099 = vcmask 490496
        %v3100 = vsel %vm3099, %v3075, %v3098
        %v3101 = vsel %vm516, %v3091, %v3092
        %v3102 = vsel %vm3099, %v3077, %v3101
        %v3103 = vsel %vm516, %v3092, %v3093
        %v3104 = vsel %vm3099, %v3079, %v3103
        %v3105 = vsel %vm516, %v3093, %v3094
        %v3106 = vsel %vm3099, %v3081, %v3105
        %v3107 = vsel %vm516, %v3094, %v3095
        %v3108 = vsel %vm3099, %v3083, %v3107
        %v3109 = vsel %vm516, %v3095, %v3096
        %v3110 = vsel %vm3099, %v3085, %v3109
        %v3111 = vsel %vm516, %v3096, %v3097
        %v3112 = vsel %vm3099, %v3087, %v3111
        %v3113 = vsel %vm3099, %v3089, %v3097
        %v3122 = vadd.f32 %v3039, %v3100
        %v3123 = vadd.f32 %v3040, %v3102
        %v3124 = vadd.f32 %v3041, %v3104
        %v3125 = vadd.f32 %v3042, %v3106
        %v3126 = vadd.f32 %v3043, %v3108
        %v3127 = vadd.f32 %v3044, %v3110
        %v3128 = vadd.f32 %v3045, %v3112
        %v3129 = vadd.f32 %v3046, %v3113
        %3130 = vset.pattern.permute.xlu0 33
        %3131 = vperm.xlu0 %3130, %v265
        %v3132 = vpop.permute.xlu0 %3131
        %v3134 = vunpack.c.l.s4 839922192
        %v3135 = vunpack.c.0.s8 %v3134
        %v3136 = vlaneseq
        %v3137 = vshrl.u32 %v3136, 7
        %v3138 = vsub.s32 %v3135, %v3137
        %v3139 = vrot.slane %v3132, %v3138
        %v3141 = vmul.f32 %v1545, %v3139
        %v3142 = vmul.f32 %v1546, %v3139
        %v3143 = vmul.f32 %v1547, %v3139
        %v3144 = vmul.f32 %v1548, %v3139
        %v3145 = vmul.f32 %v1549, %v3139
        %v3146 = vmul.f32 %v1550, %v3139
        %v3147 = vmul.f32 %v1551, %v3139
        %v3148 = vmul.f32 %v1552, %v3139
        %3157 = vrot.lane.b32.xlu0 %v3141, 59
        %v3158 = vpop.permute.xlu0 %3157
        %3159 = vrot.lane.b32.xlu0 %v3142, 59
        %v3160 = vpop.permute.xlu0 %3159
        %3161 = vrot.lane.b32.xlu0 %v3143, 59
        %v3162 = vpop.permute.xlu0 %3161
        %3163 = vrot.lane.b32.xlu0 %v3144, 59
        %v3164 = vpop.permute.xlu0 %3163
        %3165 = vrot.lane.b32.xlu0 %v3145, 59
        %v3166 = vpop.permute.xlu0 %3165
        %3167 = vrot.lane.b32.xlu0 %v3146, 59
        %v3168 = vpop.permute.xlu0 %3167
        %3169 = vrot.lane.b32.xlu0 %v3147, 59
        %v3170 = vpop.permute.xlu0 %3169
        %3171 = vrot.lane.b32.xlu0 %v3148, 59
        %v3172 = vpop.permute.xlu0 %3171
        %v3173 = vrot.slane %v3158, 4
        %v3174 = vrot.slane %v3160, 4
        %v3175 = vrot.slane %v3162, 4
        %v3176 = vrot.slane %v3164, 4
        %v3177 = vrot.slane %v3166, 4
        %v3178 = vrot.slane %v3168, 4
        %v3179 = vrot.slane %v3170, 4
        %v3180 = vrot.slane %v3172, 4
        %v3181 = vsel %vm516, %v3173, %v3174
        %vm3182 = vcmask 482304
        %v3183 = vsel %vm3182, %v3158, %v3181
        %v3184 = vsel %vm516, %v3174, %v3175
        %v3185 = vsel %vm3182, %v3160, %v3184
        %v3186 = vsel %vm516, %v3175, %v3176
        %v3187 = vsel %vm3182, %v3162, %v3186
        %v3188 = vsel %vm516, %v3176, %v3177
        %v3189 = vsel %vm3182, %v3164, %v3188
        %v3190 = vsel %vm516, %v3177, %v3178
        %v3191 = vsel %vm3182, %v3166, %v3190
        %v3192 = vsel %vm516, %v3178, %v3179
        %v3193 = vsel %vm3182, %v3168, %v3192
        %v3194 = vsel %vm516, %v3179, %v3180
        %v3195 = vsel %vm3182, %v3170, %v3194
        %v3196 = vsel %vm3182, %v3172, %v3180
        %v3205 = vadd.f32 %v3122, %v3183
        %v3206 = vadd.f32 %v3123, %v3185
        %v3207 = vadd.f32 %v3124, %v3187
        %v3208 = vadd.f32 %v3125, %v3189
        %v3209 = vadd.f32 %v3126, %v3191
        %v3210 = vadd.f32 %v3127, %v3193
        %v3211 = vadd.f32 %v3128, %v3195
        %v3212 = vadd.f32 %v3129, %v3196
        %3213 = vset.pattern.permute.xlu0 34
        %3214 = vperm.xlu0 %3213, %v265
        %v3215 = vpop.permute.xlu0 %3214
        %v3217 = vunpack.c.l.s4 839922192
        %v3218 = vunpack.c.0.s8 %v3217
        %v3219 = vlaneseq
        %v3220 = vshrl.u32 %v3219, 7
        %v3221 = vsub.s32 %v3218, %v3220
        %v3222 = vrot.slane %v3215, %v3221
        %v3224 = vmul.f32 %v1545, %v3222
        %v3225 = vmul.f32 %v1546, %v3222
        %v3226 = vmul.f32 %v1547, %v3222
        %v3227 = vmul.f32 %v1548, %v3222
        %v3228 = vmul.f32 %v1549, %v3222
        %v3229 = vmul.f32 %v1550, %v3222
        %v3230 = vmul.f32 %v1551, %v3222
        %v3231 = vmul.f32 %v1552, %v3222
        %3240 = vrot.lane.b32.xlu0 %v3224, 58
        %v3241 = vpop.permute.xlu0 %3240
        %3242 = vrot.lane.b32.xlu0 %v3225, 58
        %v3243 = vpop.permute.xlu0 %3242
        %3244 = vrot.lane.b32.xlu0 %v3226, 58
        %v3245 = vpop.permute.xlu0 %3244
        %3246 = vrot.lane.b32.xlu0 %v3227, 58
        %v3247 = vpop.permute.xlu0 %3246
        %3248 = vrot.lane.b32.xlu0 %v3228, 58
        %v3249 = vpop.permute.xlu0 %3248
        %3250 = vrot.lane.b32.xlu0 %v3229, 58
        %v3251 = vpop.permute.xlu0 %3250
        %3252 = vrot.lane.b32.xlu0 %v3230, 58
        %v3253 = vpop.permute.xlu0 %3252
        %3254 = vrot.lane.b32.xlu0 %v3231, 58
        %v3255 = vpop.permute.xlu0 %3254
        %v3256 = vrot.slane %v3241, 4
        %v3257 = vrot.slane %v3243, 4
        %v3258 = vrot.slane %v3245, 4
        %v3259 = vrot.slane %v3247, 4
        %v3260 = vrot.slane %v3249, 4
        %v3261 = vrot.slane %v3251, 4
        %v3262 = vrot.slane %v3253, 4
        %v3263 = vrot.slane %v3255, 4
        %v3264 = vsel %vm516, %v3256, %v3257
        %vm3265 = vcmask 474112
        %v3266 = vsel %vm3265, %v3241, %v3264
        %v3267 = vsel %vm516, %v3257, %v3258
        %v3268 = vsel %vm3265, %v3243, %v3267
        %v3269 = vsel %vm516, %v3258, %v3259
        %v3270 = vsel %vm3265, %v3245, %v3269
        %v3271 = vsel %vm516, %v3259, %v3260
        %v3272 = vsel %vm3265, %v3247, %v3271
        %v3273 = vsel %vm516, %v3260, %v3261
        %v3274 = vsel %vm3265, %v3249, %v3273
        %v3275 = vsel %vm516, %v3261, %v3262
        %v3276 = vsel %vm3265, %v3251, %v3275
        %v3277 = vsel %vm516, %v3262, %v3263
        %v3278 = vsel %vm3265, %v3253, %v3277
        %v3279 = vsel %vm3265, %v3255, %v3263
        %v3288 = vadd.f32 %v3205, %v3266
        %v3289 = vadd.f32 %v3206, %v3268
        %v3290 = vadd.f32 %v3207, %v3270
        %v3291 = vadd.f32 %v3208, %v3272
        %v3292 = vadd.f32 %v3209, %v3274
        %v3293 = vadd.f32 %v3210, %v3276
        %v3294 = vadd.f32 %v3211, %v3278
        %v3295 = vadd.f32 %v3212, %v3279
        %v3296 = vld [vmem:[#allocation2 + $0x8] sm:$0xff]
        %v3297 = vld [vmem:[#allocation2 + $0x10] sm:$0xff]
        %v3298 = vld [vmem:[#allocation2 + $0x18] sm:$0xff]
        %v3299 = vld [vmem:[#allocation2 + $0x20] sm:$0xff]
        %v3300 = vld [vmem:[#allocation2 + $0x28] sm:$0xff]
        %v3301 = vld [vmem:[#allocation2 + $0x30] sm:$0xff]
        %v3302 = vld [vmem:[#allocation2 + $0x38] sm:$0xff]
        %v3303 = vld [vmem:[#allocation2 + $0x40] sm:$0xff]
        %3304 = vset.pattern.permute.xlu0 35
        %3305 = vperm.xlu0 %3304, %v265
        %v3306 = vpop.permute.xlu0 %3305
        %v3308 = vunpack.c.l.s4 839922192
        %v3309 = vunpack.c.0.s8 %v3308
        %v3310 = vlaneseq
        %v3311 = vshrl.u32 %v3310, 7
        %v3312 = vsub.s32 %v3309, %v3311
        %v3313 = vrot.slane %v3306, %v3312
        %v3315 = vmul.f32 %v3296, %v3313
        %v3316 = vmul.f32 %v3297, %v3313
        %v3317 = vmul.f32 %v3298, %v3313
        %v3318 = vmul.f32 %v3299, %v3313
        %v3319 = vmul.f32 %v3300, %v3313
        %v3320 = vmul.f32 %v3301, %v3313
        %v3321 = vmul.f32 %v3302, %v3313
        %v3322 = vmul.f32 %v3303, %v3313
        %3331 = vrot.lane.b32.xlu0 %v3315, 16
        %v3332 = vpop.permute.xlu0 %3331
        %3333 = vrot.lane.b32.xlu0 %v3316, 16
        %v3334 = vpop.permute.xlu0 %3333
        %3335 = vrot.lane.b32.xlu0 %v3317, 16
        %v3336 = vpop.permute.xlu0 %3335
        %3337 = vrot.lane.b32.xlu0 %v3318, 16
        %v3338 = vpop.permute.xlu0 %3337
        %3339 = vrot.lane.b32.xlu0 %v3319, 16
        %v3340 = vpop.permute.xlu0 %3339
        %3341 = vrot.lane.b32.xlu0 %v3320, 16
        %v3342 = vpop.permute.xlu0 %3341
        %3343 = vrot.lane.b32.xlu0 %v3321, 16
        %v3344 = vpop.permute.xlu0 %3343
        %3345 = vrot.lane.b32.xlu0 %v3322, 16
        %v3346 = vpop.permute.xlu0 %3345
        %v3347 = vrot.slane %v3332, 4
        %v3348 = vrot.slane %v3334, 4
        %v3349 = vrot.slane %v3336, 4
        %v3350 = vrot.slane %v3338, 4
        %v3351 = vrot.slane %v3340, 4
        %v3352 = vrot.slane %v3342, 4
        %v3353 = vrot.slane %v3344, 4
        %v3354 = vrot.slane %v3346, 4
        %vm3355 = vcmask 130048
        %v3356 = vsel %vm3355, %v3347, %v3332
        %v3357 = vsel %vm516, %v3347, %v3348
        %v3358 = vsel %vm3355, %v3357, %v3334
        %v3359 = vsel %vm516, %v3348, %v3349
        %v3360 = vsel %vm3355, %v3359, %v3336
        %v3361 = vsel %vm516, %v3349, %v3350
        %v3362 = vsel %vm3355, %v3361, %v3338
        %v3363 = vsel %vm516, %v3350, %v3351
        %v3364 = vsel %vm3355, %v3363, %v3340
        %v3365 = vsel %vm516, %v3351, %v3352
        %v3366 = vsel %vm3355, %v3365, %v3342
        %v3367 = vsel %vm516, %v3352, %v3353
        %v3368 = vsel %vm3355, %v3367, %v3344
        %v3369 = vsel %vm516, %v3353, %v3354
        %v3370 = vsel %vm3355, %v3369, %v3346
        %v3379 = vadd.f32 %v3288, %v3356
        %v3380 = vadd.f32 %v3289, %v3358
        %v3381 = vadd.f32 %v3290, %v3360
        %v3382 = vadd.f32 %v3291, %v3362
        %v3383 = vadd.f32 %v3292, %v3364
        %v3384 = vadd.f32 %v3293, %v3366
        %v3385 = vadd.f32 %v3294, %v3368
        %v3386 = vadd.f32 %v3295, %v3370
        %3387 = vset.pattern.permute.xlu0 36
        %3388 = vperm.xlu0 %3387, %v265
        %v3389 = vpop.permute.xlu0 %3388
        %v3391 = vunpack.c.l.s4 839922192
        %v3392 = vunpack.c.0.s8 %v3391
        %v3393 = vlaneseq
        %v3394 = vshrl.u32 %v3393, 7
        %v3395 = vsub.s32 %v3392, %v3394
        %v3396 = vrot.slane %v3389, %v3395
        %v3398 = vmul.f32 %v3296, %v3396
        %v3399 = vmul.f32 %v3297, %v3396
        %v3400 = vmul.f32 %v3298, %v3396
        %v3401 = vmul.f32 %v3299, %v3396
        %v3402 = vmul.f32 %v3300, %v3396
        %v3403 = vmul.f32 %v3301, %v3396
        %v3404 = vmul.f32 %v3302, %v3396
        %v3405 = vmul.f32 %v3303, %v3396
        %3414 = vrot.lane.b32.xlu0 %v3398, 15
        %v3415 = vpop.permute.xlu0 %3414
        %3416 = vrot.lane.b32.xlu0 %v3399, 15
        %v3417 = vpop.permute.xlu0 %3416
        %3418 = vrot.lane.b32.xlu0 %v3400, 15
        %v3419 = vpop.permute.xlu0 %3418
        %3420 = vrot.lane.b32.xlu0 %v3401, 15
        %v3421 = vpop.permute.xlu0 %3420
        %3422 = vrot.lane.b32.xlu0 %v3402, 15
        %v3423 = vpop.permute.xlu0 %3422
        %3424 = vrot.lane.b32.xlu0 %v3403, 15
        %v3425 = vpop.permute.xlu0 %3424
        %3426 = vrot.lane.b32.xlu0 %v3404, 15
        %v3427 = vpop.permute.xlu0 %3426
        %3428 = vrot.lane.b32.xlu0 %v3405, 15
        %v3429 = vpop.permute.xlu0 %3428
        %v3430 = vrot.slane %v3415, 4
        %v3431 = vrot.slane %v3417, 4
        %v3432 = vrot.slane %v3419, 4
        %v3433 = vrot.slane %v3421, 4
        %v3434 = vrot.slane %v3423, 4
        %v3435 = vrot.slane %v3425, 4
        %v3436 = vrot.slane %v3427, 4
        %v3437 = vrot.slane %v3429, 4
        %vm3438 = vcmask 121856
        %v3439 = vsel %vm3438, %v3430, %v3415
        %v3440 = vsel %vm516, %v3430, %v3431
        %v3441 = vsel %vm3438, %v3440, %v3417
        %v3442 = vsel %vm516, %v3431, %v3432
        %v3443 = vsel %vm3438, %v3442, %v3419
        %v3444 = vsel %vm516, %v3432, %v3433
        %v3445 = vsel %vm3438, %v3444, %v3421
        %v3446 = vsel %vm516, %v3433, %v3434
        %v3447 = vsel %vm3438, %v3446, %v3423
        %v3448 = vsel %vm516, %v3434, %v3435
        %v3449 = vsel %vm3438, %v3448, %v3425
        %v3450 = vsel %vm516, %v3435, %v3436
        %v3451 = vsel %vm3438, %v3450, %v3427
        %v3452 = vsel %vm516, %v3436, %v3437
        %v3453 = vsel %vm3438, %v3452, %v3429
        %v3462 = vadd.f32 %v3379, %v3439
        %v3463 = vadd.f32 %v3380, %v3441
        %v3464 = vadd.f32 %v3381, %v3443
        %v3465 = vadd.f32 %v3382, %v3445
        %v3466 = vadd.f32 %v3383, %v3447
        %v3467 = vadd.f32 %v3384, %v3449
        %v3468 = vadd.f32 %v3385, %v3451
        %v3469 = vadd.f32 %v3386, %v3453
        %3470 = vset.pattern.permute.xlu0 37
        %3471 = vperm.xlu0 %3470, %v265
        %v3472 = vpop.permute.xlu0 %3471
        %v3474 = vunpack.c.l.s4 839922192
        %v3475 = vunpack.c.0.s8 %v3474
        %v3476 = vlaneseq
        %v3477 = vshrl.u32 %v3476, 7
        %v3478 = vsub.s32 %v3475, %v3477
        %v3479 = vrot.slane %v3472, %v3478
        %v3481 = vmul.f32 %v3296, %v3479
        %v3482 = vmul.f32 %v3297, %v3479
        %v3483 = vmul.f32 %v3298, %v3479
        %v3484 = vmul.f32 %v3299, %v3479
        %v3485 = vmul.f32 %v3300, %v3479
        %v3486 = vmul.f32 %v3301, %v3479
        %v3487 = vmul.f32 %v3302, %v3479
        %v3488 = vmul.f32 %v3303, %v3479
        %3497 = vrot.lane.b32.xlu0 %v3481, 14
        %v3498 = vpop.permute.xlu0 %3497
        %3499 = vrot.lane.b32.xlu0 %v3482, 14
        %v3500 = vpop.permute.xlu0 %3499
        %3501 = vrot.lane.b32.xlu0 %v3483, 14
        %v3502 = vpop.permute.xlu0 %3501
        %3503 = vrot.lane.b32.xlu0 %v3484, 14
        %v3504 = vpop.permute.xlu0 %3503
        %3505 = vrot.lane.b32.xlu0 %v3485, 14
        %v3506 = vpop.permute.xlu0 %3505
        %3507 = vrot.lane.b32.xlu0 %v3486, 14
        %v3508 = vpop.permute.xlu0 %3507
        %3509 = vrot.lane.b32.xlu0 %v3487, 14
        %v3510 = vpop.permute.xlu0 %3509
        %3511 = vrot.lane.b32.xlu0 %v3488, 14
        %v3512 = vpop.permute.xlu0 %3511
        %v3513 = vrot.slane %v3498, 4
        %v3514 = vrot.slane %v3500, 4
        %v3515 = vrot.slane %v3502, 4
        %v3516 = vrot.slane %v3504, 4
        %v3517 = vrot.slane %v3506, 4
        %v3518 = vrot.slane %v3508, 4
        %v3519 = vrot.slane %v3510, 4
        %v3520 = vrot.slane %v3512, 4
        %vm3521 = vcmask 113664
        %v3522 = vsel %vm3521, %v3513, %v3498
        %v3523 = vsel %vm516, %v3513, %v3514
        %v3524 = vsel %vm3521, %v3523, %v3500
        %v3525 = vsel %vm516, %v3514, %v3515
        %v3526 = vsel %vm3521, %v3525, %v3502
        %v3527 = vsel %vm516, %v3515, %v3516
        %v3528 = vsel %vm3521, %v3527, %v3504
        %v3529 = vsel %vm516, %v3516, %v3517
        %v3530 = vsel %vm3521, %v3529, %v3506
        %v3531 = vsel %vm516, %v3517, %v3518
        %v3532 = vsel %vm3521, %v3531, %v3508
        %v3533 = vsel %vm516, %v3518, %v3519
        %v3534 = vsel %vm3521, %v3533, %v3510
        %v3535 = vsel %vm516, %v3519, %v3520
        %v3536 = vsel %vm3521, %v3535, %v3512
        %v3545 = vadd.f32 %v3462, %v3522
        %v3546 = vadd.f32 %v3463, %v3524
        %v3547 = vadd.f32 %v3464, %v3526
        %v3548 = vadd.f32 %v3465, %v3528
        %v3549 = vadd.f32 %v3466, %v3530
        %v3550 = vadd.f32 %v3467, %v3532
        %v3551 = vadd.f32 %v3468, %v3534
        %v3552 = vadd.f32 %v3469, %v3536
        %3553 = vset.pattern.permute.xlu0 38
        %3554 = vperm.xlu0 %3553, %v265
        %v3555 = vpop.permute.xlu0 %3554
        %v3557 = vunpack.c.l.s4 839922192
        %v3558 = vunpack.c.0.s8 %v3557
        %v3559 = vlaneseq
        %v3560 = vshrl.u32 %v3559, 7
        %v3561 = vsub.s32 %v3558, %v3560
        %v3562 = vrot.slane %v3555, %v3561
        %v3564 = vmul.f32 %v3296, %v3562
        %v3565 = vmul.f32 %v3297, %v3562
        %v3566 = vmul.f32 %v3298, %v3562
        %v3567 = vmul.f32 %v3299, %v3562
        %v3568 = vmul.f32 %v3300, %v3562
        %v3569 = vmul.f32 %v3301, %v3562
        %v3570 = vmul.f32 %v3302, %v3562
        %v3571 = vmul.f32 %v3303, %v3562
        %3580 = vrot.lane.b32.xlu0 %v3564, 13
        %v3581 = vpop.permute.xlu0 %3580
        %3582 = vrot.lane.b32.xlu0 %v3565, 13
        %v3583 = vpop.permute.xlu0 %3582
        %3584 = vrot.lane.b32.xlu0 %v3566, 13
        %v3585 = vpop.permute.xlu0 %3584
        %3586 = vrot.lane.b32.xlu0 %v3567, 13
        %v3587 = vpop.permute.xlu0 %3586
        %3588 = vrot.lane.b32.xlu0 %v3568, 13
        %v3589 = vpop.permute.xlu0 %3588
        %3590 = vrot.lane.b32.xlu0 %v3569, 13
        %v3591 = vpop.permute.xlu0 %3590
        %3592 = vrot.lane.b32.xlu0 %v3570, 13
        %v3593 = vpop.permute.xlu0 %3592
        %3594 = vrot.lane.b32.xlu0 %v3571, 13
        %v3595 = vpop.permute.xlu0 %3594
        %v3596 = vrot.slane %v3581, 4
        %v3597 = vrot.slane %v3583, 4
        %v3598 = vrot.slane %v3585, 4
        %v3599 = vrot.slane %v3587, 4
        %v3600 = vrot.slane %v3589, 4
        %v3601 = vrot.slane %v3591, 4
        %v3602 = vrot.slane %v3593, 4
        %v3603 = vrot.slane %v3595, 4
        %vm3604 = vcmask 105472
        %v3605 = vsel %vm3604, %v3596, %v3581
        %v3606 = vsel %vm516, %v3596, %v3597
        %v3607 = vsel %vm3604, %v3606, %v3583
        %v3608 = vsel %vm516, %v3597, %v3598
        %v3609 = vsel %vm3604, %v3608, %v3585
        %v3610 = vsel %vm516, %v3598, %v3599
        %v3611 = vsel %vm3604, %v3610, %v3587
        %v3612 = vsel %vm516, %v3599, %v3600
        %v3613 = vsel %vm3604, %v3612, %v3589
        %v3614 = vsel %vm516, %v3600, %v3601
        %v3615 = vsel %vm3604, %v3614, %v3591
        %v3616 = vsel %vm516, %v3601, %v3602
        %v3617 = vsel %vm3604, %v3616, %v3593
        %v3618 = vsel %vm516, %v3602, %v3603
        %v3619 = vsel %vm3604, %v3618, %v3595
        %v3628 = vadd.f32 %v3545, %v3605
        %v3629 = vadd.f32 %v3546, %v3607
        %v3630 = vadd.f32 %v3547, %v3609
        %v3631 = vadd.f32 %v3548, %v3611
        %v3632 = vadd.f32 %v3549, %v3613
        %v3633 = vadd.f32 %v3550, %v3615
        %v3634 = vadd.f32 %v3551, %v3617
        %v3635 = vadd.f32 %v3552, %v3619
        %3636 = vset.pattern.permute.xlu0 39
        %3637 = vperm.xlu0 %3636, %v265
        %v3638 = vpop.permute.xlu0 %3637
        %v3640 = vunpack.c.l.s4 839922192
        %v3641 = vunpack.c.0.s8 %v3640
        %v3642 = vlaneseq
        %v3643 = vshrl.u32 %v3642, 7
        %v3644 = vsub.s32 %v3641, %v3643
        %v3645 = vrot.slane %v3638, %v3644
        %v3647 = vmul.f32 %v3296, %v3645
        %v3648 = vmul.f32 %v3297, %v3645
        %v3649 = vmul.f32 %v3298, %v3645
        %v3650 = vmul.f32 %v3299, %v3645
        %v3651 = vmul.f32 %v3300, %v3645
        %v3652 = vmul.f32 %v3301, %v3645
        %v3653 = vmul.f32 %v3302, %v3645
        %v3654 = vmul.f32 %v3303, %v3645
        %3663 = vrot.lane.b32.xlu0 %v3647, 12
        %v3664 = vpop.permute.xlu0 %3663
        %3665 = vrot.lane.b32.xlu0 %v3648, 12
        %v3666 = vpop.permute.xlu0 %3665
        %3667 = vrot.lane.b32.xlu0 %v3649, 12
        %v3668 = vpop.permute.xlu0 %3667
        %3669 = vrot.lane.b32.xlu0 %v3650, 12
        %v3670 = vpop.permute.xlu0 %3669
        %3671 = vrot.lane.b32.xlu0 %v3651, 12
        %v3672 = vpop.permute.xlu0 %3671
        %3673 = vrot.lane.b32.xlu0 %v3652, 12
        %v3674 = vpop.permute.xlu0 %3673
        %3675 = vrot.lane.b32.xlu0 %v3653, 12
        %v3676 = vpop.permute.xlu0 %3675
        %3677 = vrot.lane.b32.xlu0 %v3654, 12
        %v3678 = vpop.permute.xlu0 %3677
        %v3679 = vrot.slane %v3664, 4
        %v3680 = vrot.slane %v3666, 4
        %v3681 = vrot.slane %v3668, 4
        %v3682 = vrot.slane %v3670, 4
        %v3683 = vrot.slane %v3672, 4
        %v3684 = vrot.slane %v3674, 4
        %v3685 = vrot.slane %v3676, 4
        %v3686 = vrot.slane %v3678, 4
        %vm3687 = vcmask 97280
        %v3688 = vsel %vm3687, %v3679, %v3664
        %v3689 = vsel %vm516, %v3679, %v3680
        %v3690 = vsel %vm3687, %v3689, %v3666
        %v3691 = vsel %vm516, %v3680, %v3681
        %v3692 = vsel %vm3687, %v3691, %v3668
        %v3693 = vsel %vm516, %v3681, %v3682
        %v3694 = vsel %vm3687, %v3693, %v3670
        %v3695 = vsel %vm516, %v3682, %v3683
        %v3696 = vsel %vm3687, %v3695, %v3672
        %v3697 = vsel %vm516, %v3683, %v3684
        %v3698 = vsel %vm3687, %v3697, %v3674
        %v3699 = vsel %vm516, %v3684, %v3685
        %v3700 = vsel %vm3687, %v3699, %v3676
        %v3701 = vsel %vm516, %v3685, %v3686
        %v3702 = vsel %vm3687, %v3701, %v3678
        %v3711 = vadd.f32 %v3628, %v3688
        %v3712 = vadd.f32 %v3629, %v3690
        %v3713 = vadd.f32 %v3630, %v3692
        %v3714 = vadd.f32 %v3631, %v3694
        %v3715 = vadd.f32 %v3632, %v3696
        %v3716 = vadd.f32 %v3633, %v3698
        %v3717 = vadd.f32 %v3634, %v3700
        %v3718 = vadd.f32 %v3635, %v3702
        %3719 = vset.pattern.permute.xlu0 40
        %3720 = vperm.xlu0 %3719, %v265
        %v3721 = vpop.permute.xlu0 %3720
        %v3723 = vunpack.c.l.s4 839922192
        %v3724 = vunpack.c.0.s8 %v3723
        %v3725 = vlaneseq
        %v3726 = vshrl.u32 %v3725, 7
        %v3727 = vsub.s32 %v3724, %v3726
        %v3728 = vrot.slane %v3721, %v3727
        %v3730 = vmul.f32 %v3296, %v3728
        %v3731 = vmul.f32 %v3297, %v3728
        %v3732 = vmul.f32 %v3298, %v3728
        %v3733 = vmul.f32 %v3299, %v3728
        %v3734 = vmul.f32 %v3300, %v3728
        %v3735 = vmul.f32 %v3301, %v3728
        %v3736 = vmul.f32 %v3302, %v3728
        %v3737 = vmul.f32 %v3303, %v3728
        %3746 = vrot.lane.b32.xlu0 %v3730, 11
        %v3747 = vpop.permute.xlu0 %3746
        %3748 = vrot.lane.b32.xlu0 %v3731, 11
        %v3749 = vpop.permute.xlu0 %3748
        %3750 = vrot.lane.b32.xlu0 %v3732, 11
        %v3751 = vpop.permute.xlu0 %3750
        %3752 = vrot.lane.b32.xlu0 %v3733, 11
        %v3753 = vpop.permute.xlu0 %3752
        %3754 = vrot.lane.b32.xlu0 %v3734, 11
        %v3755 = vpop.permute.xlu0 %3754
        %3756 = vrot.lane.b32.xlu0 %v3735, 11
        %v3757 = vpop.permute.xlu0 %3756
        %3758 = vrot.lane.b32.xlu0 %v3736, 11
        %v3759 = vpop.permute.xlu0 %3758
        %3760 = vrot.lane.b32.xlu0 %v3737, 11
        %v3761 = vpop.permute.xlu0 %3760
        %v3762 = vrot.slane %v3747, 4
        %v3763 = vrot.slane %v3749, 4
        %v3764 = vrot.slane %v3751, 4
        %v3765 = vrot.slane %v3753, 4
        %v3766 = vrot.slane %v3755, 4
        %v3767 = vrot.slane %v3757, 4
        %v3768 = vrot.slane %v3759, 4
        %v3769 = vrot.slane %v3761, 4
        %vm3770 = vcmask 89088
        %v3771 = vsel %vm3770, %v3762, %v3747
        %v3772 = vsel %vm516, %v3762, %v3763
        %v3773 = vsel %vm3770, %v3772, %v3749
        %v3774 = vsel %vm516, %v3763, %v3764
        %v3775 = vsel %vm3770, %v3774, %v3751
        %v3776 = vsel %vm516, %v3764, %v3765
        %v3777 = vsel %vm3770, %v3776, %v3753
        %v3778 = vsel %vm516, %v3765, %v3766
        %v3779 = vsel %vm3770, %v3778, %v3755
        %v3780 = vsel %vm516, %v3766, %v3767
        %v3781 = vsel %vm3770, %v3780, %v3757
        %v3782 = vsel %vm516, %v3767, %v3768
        %v3783 = vsel %vm3770, %v3782, %v3759
        %v3784 = vsel %vm516, %v3768, %v3769
        %v3785 = vsel %vm3770, %v3784, %v3761
        %v3794 = vadd.f32 %v3711, %v3771
        %v3795 = vadd.f32 %v3712, %v3773
        %v3796 = vadd.f32 %v3713, %v3775
        %v3797 = vadd.f32 %v3714, %v3777
        %v3798 = vadd.f32 %v3715, %v3779
        %v3799 = vadd.f32 %v3716, %v3781
        %v3800 = vadd.f32 %v3717, %v3783
        %v3801 = vadd.f32 %v3718, %v3785
        %3802 = vset.pattern.permute.xlu0 41
        %3803 = vperm.xlu0 %3802, %v265
        %v3804 = vpop.permute.xlu0 %3803
        %v3806 = vunpack.c.l.s4 839922192
        %v3807 = vunpack.c.0.s8 %v3806
        %v3808 = vlaneseq
        %v3809 = vshrl.u32 %v3808, 7
        %v3810 = vsub.s32 %v3807, %v3809
        %v3811 = vrot.slane %v3804, %v3810
        %v3813 = vmul.f32 %v3296, %v3811
        %v3814 = vmul.f32 %v3297, %v3811
        %v3815 = vmul.f32 %v3298, %v3811
        %v3816 = vmul.f32 %v3299, %v3811
        %v3817 = vmul.f32 %v3300, %v3811
        %v3818 = vmul.f32 %v3301, %v3811
        %v3819 = vmul.f32 %v3302, %v3811
        %v3820 = vmul.f32 %v3303, %v3811
        %3829 = vrot.lane.b32.xlu0 %v3813, 10
        %v3830 = vpop.permute.xlu0 %3829
        %3831 = vrot.lane.b32.xlu0 %v3814, 10
        %v3832 = vpop.permute.xlu0 %3831
        %3833 = vrot.lane.b32.xlu0 %v3815, 10
        %v3834 = vpop.permute.xlu0 %3833
        %3835 = vrot.lane.b32.xlu0 %v3816, 10
        %v3836 = vpop.permute.xlu0 %3835
        %3837 = vrot.lane.b32.xlu0 %v3817, 10
        %v3838 = vpop.permute.xlu0 %3837
        %3839 = vrot.lane.b32.xlu0 %v3818, 10
        %v3840 = vpop.permute.xlu0 %3839
        %3841 = vrot.lane.b32.xlu0 %v3819, 10
        %v3842 = vpop.permute.xlu0 %3841
        %3843 = vrot.lane.b32.xlu0 %v3820, 10
        %v3844 = vpop.permute.xlu0 %3843
        %v3845 = vrot.slane %v3830, 4
        %v3846 = vrot.slane %v3832, 4
        %v3847 = vrot.slane %v3834, 4
        %v3848 = vrot.slane %v3836, 4
        %v3849 = vrot.slane %v3838, 4
        %v3850 = vrot.slane %v3840, 4
        %v3851 = vrot.slane %v3842, 4
        %v3852 = vrot.slane %v3844, 4
        %vm3853 = vcmask 80896
        %v3854 = vsel %vm3853, %v3845, %v3830
        %v3855 = vsel %vm516, %v3845, %v3846
        %v3856 = vsel %vm3853, %v3855, %v3832
        %v3857 = vsel %vm516, %v3846, %v3847
        %v3858 = vsel %vm3853, %v3857, %v3834
        %v3859 = vsel %vm516, %v3847, %v3848
        %v3860 = vsel %vm3853, %v3859, %v3836
        %v3861 = vsel %vm516, %v3848, %v3849
        %v3862 = vsel %vm3853, %v3861, %v3838
        %v3863 = vsel %vm516, %v3849, %v3850
        %v3864 = vsel %vm3853, %v3863, %v3840
        %v3865 = vsel %vm516, %v3850, %v3851
        %v3866 = vsel %vm3853, %v3865, %v3842
        %v3867 = vsel %vm516, %v3851, %v3852
        %v3868 = vsel %vm3853, %v3867, %v3844
        %v3877 = vadd.f32 %v3794, %v3854
        %v3878 = vadd.f32 %v3795, %v3856
        %v3879 = vadd.f32 %v3796, %v3858
        %v3880 = vadd.f32 %v3797, %v3860
        %v3881 = vadd.f32 %v3798, %v3862
        %v3882 = vadd.f32 %v3799, %v3864
        %v3883 = vadd.f32 %v3800, %v3866
        %v3884 = vadd.f32 %v3801, %v3868
        %3885 = vset.pattern.permute.xlu0 42
        %3886 = vperm.xlu0 %3885, %v265
        %v3887 = vpop.permute.xlu0 %3886
        %v3889 = vunpack.c.l.s4 839922192
        %v3890 = vunpack.c.0.s8 %v3889
        %v3891 = vlaneseq
        %v3892 = vshrl.u32 %v3891, 7
        %v3893 = vsub.s32 %v3890, %v3892
        %v3894 = vrot.slane %v3887, %v3893
        %v3896 = vmul.f32 %v3296, %v3894
        %v3897 = vmul.f32 %v3297, %v3894
        %v3898 = vmul.f32 %v3298, %v3894
        %v3899 = vmul.f32 %v3299, %v3894
        %v3900 = vmul.f32 %v3300, %v3894
        %v3901 = vmul.f32 %v3301, %v3894
        %v3902 = vmul.f32 %v3302, %v3894
        %v3903 = vmul.f32 %v3303, %v3894
        %3912 = vrot.lane.b32.xlu0 %v3896, 96
        %v3913 = vpop.permute.xlu0 %3912
        %3914 = vrot.lane.b32.xlu0 %v3897, 96
        %v3915 = vpop.permute.xlu0 %3914
        %3916 = vrot.lane.b32.xlu0 %v3898, 96
        %v3917 = vpop.permute.xlu0 %3916
        %3918 = vrot.lane.b32.xlu0 %v3899, 96
        %v3919 = vpop.permute.xlu0 %3918
        %3920 = vrot.lane.b32.xlu0 %v3900, 96
        %v3921 = vpop.permute.xlu0 %3920
        %3922 = vrot.lane.b32.xlu0 %v3901, 96
        %v3923 = vpop.permute.xlu0 %3922
        %3924 = vrot.lane.b32.xlu0 %v3902, 96
        %v3925 = vpop.permute.xlu0 %3924
        %3926 = vrot.lane.b32.xlu0 %v3903, 96
        %v3927 = vpop.permute.xlu0 %3926
        %v3928 = vrot.slane %v3913, 4
        %v3929 = vrot.slane %v3915, 4
        %v3930 = vrot.slane %v3917, 4
        %v3931 = vrot.slane %v3919, 4
        %v3932 = vrot.slane %v3921, 4
        %v3933 = vrot.slane %v3923, 4
        %v3934 = vrot.slane %v3925, 4
        %v3935 = vrot.slane %v3927, 4
        %v3936 = vsel %vm516, %v3928, %v3929
        %vm3937 = vcmask 785408
        %v3938 = vsel %vm3937, %v3913, %v3936
        %v3939 = vsel %vm516, %v3929, %v3930
        %v3940 = vsel %vm3937, %v3915, %v3939
        %v3941 = vsel %vm516, %v3930, %v3931
        %v3942 = vsel %vm3937, %v3917, %v3941
        %v3943 = vsel %vm516, %v3931, %v3932
        %v3944 = vsel %vm3937, %v3919, %v3943
        %v3945 = vsel %vm516, %v3932, %v3933
        %v3946 = vsel %vm3937, %v3921, %v3945
        %v3947 = vsel %vm516, %v3933, %v3934
        %v3948 = vsel %vm3937, %v3923, %v3947
        %v3949 = vsel %vm516, %v3934, %v3935
        %v3950 = vsel %vm3937, %v3925, %v3949
        %v3951 = vsel %vm3937, %v3927, %v3935
        %v3960 = vadd.f32 %v3877, %v3938
        %v3961 = vadd.f32 %v3878, %v3940
        %v3962 = vadd.f32 %v3879, %v3942
        %v3963 = vadd.f32 %v3880, %v3944
        %v3964 = vadd.f32 %v3881, %v3946
        %v3965 = vadd.f32 %v3882, %v3948
        %v3966 = vadd.f32 %v3883, %v3950
        %v3967 = vadd.f32 %v3884, %v3951
        %3968 = vset.pattern.permute.xlu0 43
        %3969 = vperm.xlu0 %3968, %v265
        %v3970 = vpop.permute.xlu0 %3969
        %v3972 = vunpack.c.l.s4 839922192
        %v3973 = vunpack.c.0.s8 %v3972
        %v3974 = vlaneseq
        %v3975 = vshrl.u32 %v3974, 7
        %v3976 = vsub.s32 %v3973, %v3975
        %v3977 = vrot.slane %v3970, %v3976
        %v3979 = vmul.f32 %v3296, %v3977
        %v3980 = vmul.f32 %v3297, %v3977
        %v3981 = vmul.f32 %v3298, %v3977
        %v3982 = vmul.f32 %v3299, %v3977
        %v3983 = vmul.f32 %v3300, %v3977
        %v3984 = vmul.f32 %v3301, %v3977
        %v3985 = vmul.f32 %v3302, %v3977
        %v3986 = vmul.f32 %v3303, %v3977
        %3995 = vrot.lane.b32.xlu0 %v3979, 95
        %v3996 = vpop.permute.xlu0 %3995
        %3997 = vrot.lane.b32.xlu0 %v3980, 95
        %v3998 = vpop.permute.xlu0 %3997
        %3999 = vrot.lane.b32.xlu0 %v3981, 95
        %v4000 = vpop.permute.xlu0 %3999
        %4001 = vrot.lane.b32.xlu0 %v3982, 95
        %v4002 = vpop.permute.xlu0 %4001
        %4003 = vrot.lane.b32.xlu0 %v3983, 95
        %v4004 = vpop.permute.xlu0 %4003
        %4005 = vrot.lane.b32.xlu0 %v3984, 95
        %v4006 = vpop.permute.xlu0 %4005
        %4007 = vrot.lane.b32.xlu0 %v3985, 95
        %v4008 = vpop.permute.xlu0 %4007
        %4009 = vrot.lane.b32.xlu0 %v3986, 95
        %v4010 = vpop.permute.xlu0 %4009
        %v4011 = vrot.slane %v3996, 4
        %v4012 = vrot.slane %v3998, 4
        %v4013 = vrot.slane %v4000, 4
        %v4014 = vrot.slane %v4002, 4
        %v4015 = vrot.slane %v4004, 4
        %v4016 = vrot.slane %v4006, 4
        %v4017 = vrot.slane %v4008, 4
        %v4018 = vrot.slane %v4010, 4
        %v4019 = vsel %vm516, %v4011, %v4012
        %vm4020 = vcmask 777216
        %v4021 = vsel %vm4020, %v3996, %v4019
        %v4022 = vsel %vm516, %v4012, %v4013
        %v4023 = vsel %vm4020, %v3998, %v4022
        %v4024 = vsel %vm516, %v4013, %v4014
        %v4025 = vsel %vm4020, %v4000, %v4024
        %v4026 = vsel %vm516, %v4014, %v4015
        %v4027 = vsel %vm4020, %v4002, %v4026
        %v4028 = vsel %vm516, %v4015, %v4016
        %v4029 = vsel %vm4020, %v4004, %v4028
        %v4030 = vsel %vm516, %v4016, %v4017
        %v4031 = vsel %vm4020, %v4006, %v4030
        %v4032 = vsel %vm516, %v4017, %v4018
        %v4033 = vsel %vm4020, %v4008, %v4032
        %v4034 = vsel %vm4020, %v4010, %v4018
        %v4043 = vadd.f32 %v3960, %v4021
        %v4044 = vadd.f32 %v3961, %v4023
        %v4045 = vadd.f32 %v3962, %v4025
        %v4046 = vadd.f32 %v3963, %v4027
        %v4047 = vadd.f32 %v3964, %v4029
        %v4048 = vadd.f32 %v3965, %v4031
        %v4049 = vadd.f32 %v3966, %v4033
        %v4050 = vadd.f32 %v3967, %v4034
        %4051 = vset.pattern.permute.xlu0 44
        %4052 = vperm.xlu0 %4051, %v265
        %v4053 = vpop.permute.xlu0 %4052
        %v4055 = vunpack.c.l.s4 839922192
        %v4056 = vunpack.c.0.s8 %v4055
        %v4057 = vlaneseq
        %v4058 = vshrl.u32 %v4057, 7
        %v4059 = vsub.s32 %v4056, %v4058
        %v4060 = vrot.slane %v4053, %v4059
        %v4062 = vmul.f32 %v3296, %v4060
        %v4063 = vmul.f32 %v3297, %v4060
        %v4064 = vmul.f32 %v3298, %v4060
        %v4065 = vmul.f32 %v3299, %v4060
        %v4066 = vmul.f32 %v3300, %v4060
        %v4067 = vmul.f32 %v3301, %v4060
        %v4068 = vmul.f32 %v3302, %v4060
        %v4069 = vmul.f32 %v3303, %v4060
        %4078 = vrot.lane.b32.xlu0 %v4062, 94
        %v4079 = vpop.permute.xlu0 %4078
        %4080 = vrot.lane.b32.xlu0 %v4063, 94
        %v4081 = vpop.permute.xlu0 %4080
        %4082 = vrot.lane.b32.xlu0 %v4064, 94
        %v4083 = vpop.permute.xlu0 %4082
        %4084 = vrot.lane.b32.xlu0 %v4065, 94
        %v4085 = vpop.permute.xlu0 %4084
        %4086 = vrot.lane.b32.xlu0 %v4066, 94
        %v4087 = vpop.permute.xlu0 %4086
        %4088 = vrot.lane.b32.xlu0 %v4067, 94
        %v4089 = vpop.permute.xlu0 %4088
        %4090 = vrot.lane.b32.xlu0 %v4068, 94
        %v4091 = vpop.permute.xlu0 %4090
        %4092 = vrot.lane.b32.xlu0 %v4069, 94
        %v4093 = vpop.permute.xlu0 %4092
        %v4094 = vrot.slane %v4079, 4
        %v4095 = vrot.slane %v4081, 4
        %v4096 = vrot.slane %v4083, 4
        %v4097 = vrot.slane %v4085, 4
        %v4098 = vrot.slane %v4087, 4
        %v4099 = vrot.slane %v4089, 4
        %v4100 = vrot.slane %v4091, 4
        %v4101 = vrot.slane %v4093, 4
        %v4102 = vsel %vm516, %v4094, %v4095
        %vm4103 = vcmask 769024
        %v4104 = vsel %vm4103, %v4079, %v4102
        %v4105 = vsel %vm516, %v4095, %v4096
        %v4106 = vsel %vm4103, %v4081, %v4105
        %v4107 = vsel %vm516, %v4096, %v4097
        %v4108 = vsel %vm4103, %v4083, %v4107
        %v4109 = vsel %vm516, %v4097, %v4098
        %v4110 = vsel %vm4103, %v4085, %v4109
        %v4111 = vsel %vm516, %v4098, %v4099
        %v4112 = vsel %vm4103, %v4087, %v4111
        %v4113 = vsel %vm516, %v4099, %v4100
        %v4114 = vsel %vm4103, %v4089, %v4113
        %v4115 = vsel %vm516, %v4100, %v4101
        %v4116 = vsel %vm4103, %v4091, %v4115
        %v4117 = vsel %vm4103, %v4093, %v4101
        %v4126 = vadd.f32 %v4043, %v4104
        %v4127 = vadd.f32 %v4044, %v4106
        %v4128 = vadd.f32 %v4045, %v4108
        %v4129 = vadd.f32 %v4046, %v4110
        %v4130 = vadd.f32 %v4047, %v4112
        %v4131 = vadd.f32 %v4048, %v4114
        %v4132 = vadd.f32 %v4049, %v4116
        %v4133 = vadd.f32 %v4050, %v4117
        %4134 = vset.pattern.permute.xlu0 45
        %4135 = vperm.xlu0 %4134, %v265
        %v4136 = vpop.permute.xlu0 %4135
        %v4138 = vunpack.c.l.s4 839922192
        %v4139 = vunpack.c.0.s8 %v4138
        %v4140 = vlaneseq
        %v4141 = vshrl.u32 %v4140, 7
        %v4142 = vsub.s32 %v4139, %v4141
        %v4143 = vrot.slane %v4136, %v4142
        %v4145 = vmul.f32 %v3296, %v4143
        %v4146 = vmul.f32 %v3297, %v4143
        %v4147 = vmul.f32 %v3298, %v4143
        %v4148 = vmul.f32 %v3299, %v4143
        %v4149 = vmul.f32 %v3300, %v4143
        %v4150 = vmul.f32 %v3301, %v4143
        %v4151 = vmul.f32 %v3302, %v4143
        %v4152 = vmul.f32 %v3303, %v4143
        %4161 = vrot.lane.b32.xlu0 %v4145, 93
        %v4162 = vpop.permute.xlu0 %4161
        %4163 = vrot.lane.b32.xlu0 %v4146, 93
        %v4164 = vpop.permute.xlu0 %4163
        %4165 = vrot.lane.b32.xlu0 %v4147, 93
        %v4166 = vpop.permute.xlu0 %4165
        %4167 = vrot.lane.b32.xlu0 %v4148, 93
        %v4168 = vpop.permute.xlu0 %4167
        %4169 = vrot.lane.b32.xlu0 %v4149, 93
        %v4170 = vpop.permute.xlu0 %4169
        %4171 = vrot.lane.b32.xlu0 %v4150, 93
        %v4172 = vpop.permute.xlu0 %4171
        %4173 = vrot.lane.b32.xlu0 %v4151, 93
        %v4174 = vpop.permute.xlu0 %4173
        %4175 = vrot.lane.b32.xlu0 %v4152, 93
        %v4176 = vpop.permute.xlu0 %4175
        %v4177 = vrot.slane %v4162, 4
        %v4178 = vrot.slane %v4164, 4
        %v4179 = vrot.slane %v4166, 4
        %v4180 = vrot.slane %v4168, 4
        %v4181 = vrot.slane %v4170, 4
        %v4182 = vrot.slane %v4172, 4
        %v4183 = vrot.slane %v4174, 4
        %v4184 = vrot.slane %v4176, 4
        %v4185 = vsel %vm516, %v4177, %v4178
        %vm4186 = vcmask 760832
        %v4187 = vsel %vm4186, %v4162, %v4185
        %v4188 = vsel %vm516, %v4178, %v4179
        %v4189 = vsel %vm4186, %v4164, %v4188
        %v4190 = vsel %vm516, %v4179, %v4180
        %v4191 = vsel %vm4186, %v4166, %v4190
        %v4192 = vsel %vm516, %v4180, %v4181
        %v4193 = vsel %vm4186, %v4168, %v4192
        %v4194 = vsel %vm516, %v4181, %v4182
        %v4195 = vsel %vm4186, %v4170, %v4194
        %v4196 = vsel %vm516, %v4182, %v4183
        %v4197 = vsel %vm4186, %v4172, %v4196
        %v4198 = vsel %vm516, %v4183, %v4184
        %v4199 = vsel %vm4186, %v4174, %v4198
        %v4200 = vsel %vm4186, %v4176, %v4184
        %v4209 = vadd.f32 %v4126, %v4187
        %v4210 = vadd.f32 %v4127, %v4189
        %v4211 = vadd.f32 %v4128, %v4191
        %v4212 = vadd.f32 %v4129, %v4193
        %v4213 = vadd.f32 %v4130, %v4195
        %v4214 = vadd.f32 %v4131, %v4197
        %v4215 = vadd.f32 %v4132, %v4199
        %v4216 = vadd.f32 %v4133, %v4200
        %4217 = vset.pattern.permute.xlu0 46
        %4218 = vperm.xlu0 %4217, %v265
        %v4219 = vpop.permute.xlu0 %4218
        %v4221 = vunpack.c.l.s4 839922192
        %v4222 = vunpack.c.0.s8 %v4221
        %v4223 = vlaneseq
        %v4224 = vshrl.u32 %v4223, 7
        %v4225 = vsub.s32 %v4222, %v4224
        %v4226 = vrot.slane %v4219, %v4225
        %v4228 = vmul.f32 %v3296, %v4226
        %v4229 = vmul.f32 %v3297, %v4226
        %v4230 = vmul.f32 %v3298, %v4226
        %v4231 = vmul.f32 %v3299, %v4226
        %v4232 = vmul.f32 %v3300, %v4226
        %v4233 = vmul.f32 %v3301, %v4226
        %v4234 = vmul.f32 %v3302, %v4226
        %v4235 = vmul.f32 %v3303, %v4226
        %4244 = vrot.lane.b32.xlu0 %v4228, 92
        %v4245 = vpop.permute.xlu0 %4244
        %4246 = vrot.lane.b32.xlu0 %v4229, 92
        %v4247 = vpop.permute.xlu0 %4246
        %4248 = vrot.lane.b32.xlu0 %v4230, 92
        %v4249 = vpop.permute.xlu0 %4248
        %4250 = vrot.lane.b32.xlu0 %v4231, 92
        %v4251 = vpop.permute.xlu0 %4250
        %4252 = vrot.lane.b32.xlu0 %v4232, 92
        %v4253 = vpop.permute.xlu0 %4252
        %4254 = vrot.lane.b32.xlu0 %v4233, 92
        %v4255 = vpop.permute.xlu0 %4254
        %4256 = vrot.lane.b32.xlu0 %v4234, 92
        %v4257 = vpop.permute.xlu0 %4256
        %4258 = vrot.lane.b32.xlu0 %v4235, 92
        %v4259 = vpop.permute.xlu0 %4258
        %v4260 = vrot.slane %v4245, 4
        %v4261 = vrot.slane %v4247, 4
        %v4262 = vrot.slane %v4249, 4
        %v4263 = vrot.slane %v4251, 4
        %v4264 = vrot.slane %v4253, 4
        %v4265 = vrot.slane %v4255, 4
        %v4266 = vrot.slane %v4257, 4
        %v4267 = vrot.slane %v4259, 4
        %v4268 = vsel %vm516, %v4260, %v4261
        %vm4269 = vcmask 752640
        %v4270 = vsel %vm4269, %v4245, %v4268
        %v4271 = vsel %vm516, %v4261, %v4262
        %v4272 = vsel %vm4269, %v4247, %v4271
        %v4273 = vsel %vm516, %v4262, %v4263
        %v4274 = vsel %vm4269, %v4249, %v4273
        %v4275 = vsel %vm516, %v4263, %v4264
        %v4276 = vsel %vm4269, %v4251, %v4275
        %v4277 = vsel %vm516, %v4264, %v4265
        %v4278 = vsel %vm4269, %v4253, %v4277
        %v4279 = vsel %vm516, %v4265, %v4266
        %v4280 = vsel %vm4269, %v4255, %v4279
        %v4281 = vsel %vm516, %v4266, %v4267
        %v4282 = vsel %vm4269, %v4257, %v4281
        %v4283 = vsel %vm4269, %v4259, %v4267
        %v4292 = vadd.f32 %v4209, %v4270
        %v4293 = vadd.f32 %v4210, %v4272
        %v4294 = vadd.f32 %v4211, %v4274
        %v4295 = vadd.f32 %v4212, %v4276
        %v4296 = vadd.f32 %v4213, %v4278
        %v4297 = vadd.f32 %v4214, %v4280
        %v4298 = vadd.f32 %v4215, %v4282
        %v4299 = vadd.f32 %v4216, %v4283
        %4300 = vset.pattern.permute.xlu0 47
        %4301 = vperm.xlu0 %4300, %v265
        %v4302 = vpop.permute.xlu0 %4301
        %v4304 = vunpack.c.l.s4 839922192
        %v4305 = vunpack.c.0.s8 %v4304
        %v4306 = vlaneseq
        %v4307 = vshrl.u32 %v4306, 7
        %v4308 = vsub.s32 %v4305, %v4307
        %v4309 = vrot.slane %v4302, %v4308
        %v4311 = vmul.f32 %v3296, %v4309
        %v4312 = vmul.f32 %v3297, %v4309
        %v4313 = vmul.f32 %v3298, %v4309
        %v4314 = vmul.f32 %v3299, %v4309
        %v4315 = vmul.f32 %v3300, %v4309
        %v4316 = vmul.f32 %v3301, %v4309
        %v4317 = vmul.f32 %v3302, %v4309
        %v4318 = vmul.f32 %v3303, %v4309
        %4327 = vrot.lane.b32.xlu0 %v4311, 91
        %v4328 = vpop.permute.xlu0 %4327
        %4329 = vrot.lane.b32.xlu0 %v4312, 91
        %v4330 = vpop.permute.xlu0 %4329
        %4331 = vrot.lane.b32.xlu0 %v4313, 91
        %v4332 = vpop.permute.xlu0 %4331
        %4333 = vrot.lane.b32.xlu0 %v4314, 91
        %v4334 = vpop.permute.xlu0 %4333
        %4335 = vrot.lane.b32.xlu0 %v4315, 91
        %v4336 = vpop.permute.xlu0 %4335
        %4337 = vrot.lane.b32.xlu0 %v4316, 91
        %v4338 = vpop.permute.xlu0 %4337
        %4339 = vrot.lane.b32.xlu0 %v4317, 91
        %v4340 = vpop.permute.xlu0 %4339
        %4341 = vrot.lane.b32.xlu0 %v4318, 91
        %v4342 = vpop.permute.xlu0 %4341
        %v4343 = vrot.slane %v4328, 4
        %v4344 = vrot.slane %v4330, 4
        %v4345 = vrot.slane %v4332, 4
        %v4346 = vrot.slane %v4334, 4
        %v4347 = vrot.slane %v4336, 4
        %v4348 = vrot.slane %v4338, 4
        %v4349 = vrot.slane %v4340, 4
        %v4350 = vrot.slane %v4342, 4
        %v4351 = vsel %vm516, %v4343, %v4344
        %vm4352 = vcmask 744448
        %v4353 = vsel %vm4352, %v4328, %v4351
        %v4354 = vsel %vm516, %v4344, %v4345
        %v4355 = vsel %vm4352, %v4330, %v4354
        %v4356 = vsel %vm516, %v4345, %v4346
        %v4357 = vsel %vm4352, %v4332, %v4356
        %v4358 = vsel %vm516, %v4346, %v4347
        %v4359 = vsel %vm4352, %v4334, %v4358
        %v4360 = vsel %vm516, %v4347, %v4348
        %v4361 = vsel %vm4352, %v4336, %v4360
        %v4362 = vsel %vm516, %v4348, %v4349
        %v4363 = vsel %vm4352, %v4338, %v4362
        %v4364 = vsel %vm516, %v4349, %v4350
        %v4365 = vsel %vm4352, %v4340, %v4364
        %v4366 = vsel %vm4352, %v4342, %v4350
        %v4375 = vadd.f32 %v4292, %v4353
        %v4376 = vadd.f32 %v4293, %v4355
        %v4377 = vadd.f32 %v4294, %v4357
        %v4378 = vadd.f32 %v4295, %v4359
        %v4379 = vadd.f32 %v4296, %v4361
        %v4380 = vadd.f32 %v4297, %v4363
        %v4381 = vadd.f32 %v4298, %v4365
        %v4382 = vadd.f32 %v4299, %v4366
        %4383 = vset.pattern.permute.xlu0 48
        %4384 = vperm.xlu0 %4383, %v265
        %v4385 = vpop.permute.xlu0 %4384
        %v4387 = vunpack.c.l.s4 839922192
        %v4388 = vunpack.c.0.s8 %v4387
        %v4389 = vlaneseq
        %v4390 = vshrl.u32 %v4389, 7
        %v4391 = vsub.s32 %v4388, %v4390
        %v4392 = vrot.slane %v4385, %v4391
        %v4394 = vmul.f32 %v3296, %v4392
        %v4395 = vmul.f32 %v3297, %v4392
        %v4396 = vmul.f32 %v3298, %v4392
        %v4397 = vmul.f32 %v3299, %v4392
        %v4398 = vmul.f32 %v3300, %v4392
        %v4399 = vmul.f32 %v3301, %v4392
        %v4400 = vmul.f32 %v3302, %v4392
        %v4401 = vmul.f32 %v3303, %v4392
        %4410 = vrot.lane.b32.xlu0 %v4394, 90
        %v4411 = vpop.permute.xlu0 %4410
        %4412 = vrot.lane.b32.xlu0 %v4395, 90
        %v4413 = vpop.permute.xlu0 %4412
        %4414 = vrot.lane.b32.xlu0 %v4396, 90
        %v4415 = vpop.permute.xlu0 %4414
        %4416 = vrot.lane.b32.xlu0 %v4397, 90
        %v4417 = vpop.permute.xlu0 %4416
        %4418 = vrot.lane.b32.xlu0 %v4398, 90
        %v4419 = vpop.permute.xlu0 %4418
        %4420 = vrot.lane.b32.xlu0 %v4399, 90
        %v4421 = vpop.permute.xlu0 %4420
        %4422 = vrot.lane.b32.xlu0 %v4400, 90
        %v4423 = vpop.permute.xlu0 %4422
        %4424 = vrot.lane.b32.xlu0 %v4401, 90
        %v4425 = vpop.permute.xlu0 %4424
        %v4426 = vrot.slane %v4411, 4
        %v4427 = vrot.slane %v4413, 4
        %v4428 = vrot.slane %v4415, 4
        %v4429 = vrot.slane %v4417, 4
        %v4430 = vrot.slane %v4419, 4
        %v4431 = vrot.slane %v4421, 4
        %v4432 = vrot.slane %v4423, 4
        %v4433 = vrot.slane %v4425, 4
        %v4434 = vsel %vm516, %v4426, %v4427
        %vm4435 = vcmask 736256
        %v4436 = vsel %vm4435, %v4411, %v4434
        %v4437 = vsel %vm516, %v4427, %v4428
        %v4438 = vsel %vm4435, %v4413, %v4437
        %v4439 = vsel %vm516, %v4428, %v4429
        %v4440 = vsel %vm4435, %v4415, %v4439
        %v4441 = vsel %vm516, %v4429, %v4430
        %v4442 = vsel %vm4435, %v4417, %v4441
        %v4443 = vsel %vm516, %v4430, %v4431
        %v4444 = vsel %vm4435, %v4419, %v4443
        %v4445 = vsel %vm516, %v4431, %v4432
        %v4446 = vsel %vm4435, %v4421, %v4445
        %v4447 = vsel %vm516, %v4432, %v4433
        %v4448 = vsel %vm4435, %v4423, %v4447
        %v4449 = vsel %vm4435, %v4425, %v4433
        %v4458 = vadd.f32 %v4375, %v4436
        %v4459 = vadd.f32 %v4376, %v4438
        %v4460 = vadd.f32 %v4377, %v4440
        %v4461 = vadd.f32 %v4378, %v4442
        %v4462 = vadd.f32 %v4379, %v4444
        %v4463 = vadd.f32 %v4380, %v4446
        %v4464 = vadd.f32 %v4381, %v4448
        %v4465 = vadd.f32 %v4382, %v4449
        %v4466 = vadd.f32 %v335, 0.0
        %v4467 = vadd.f32 %v336, 0.0
        %v4468 = vadd.f32 %v337, 0.0
        %v4469 = vadd.f32 %v338, 0.0
        %v4470 = vadd.f32 %v339, 0.0
        %v4471 = vadd.f32 %v340, 0.0
        %v4472 = vadd.f32 %v341, 0.0
        %v4473 = vadd.f32 %v342, 0.0
        %v4474 = vadd.f32 %v343, 0.0
        %v4475 = vadd.f32 %v344, 0.0
        %v4476 = vadd.f32 %v345, 0.0
        %v4477 = vadd.f32 %v346, 0.0
        %v4478 = vadd.f32 %v347, 0.0
        %v4479 = vadd.f32 %v348, 0.0
        %v4480 = vadd.f32 %v349, 0.0
        %s4481 = ssub.f32 15.5, %s273
        %v4482 = vstv %s4481
        %vm4483 = vcmp.gt.f32.partialorder %v4466, %v4482
        %vm4484 = vcmp.gt.f32.partialorder %v4467, %v4482
        %vm4485 = vcmp.gt.f32.partialorder %v4468, %v4482
        %vm4486 = vcmp.gt.f32.partialorder %v4469, %v4482
        %vm4487 = vcmp.gt.f32.partialorder %v4470, %v4482
        %vm4488 = vcmp.gt.f32.partialorder %v4471, %v4482
        %vm4489 = vcmp.gt.f32.partialorder %v4472, %v4482
        %vm4490 = vcmp.gt.f32.partialorder %v4473, %v4482
        %vm4491 = vcmp.gt.f32.partialorder %v4474, %v4482
        %vm4492 = vcmp.gt.f32.partialorder %v4475, %v4482
        %vm4493 = vcmp.gt.f32.partialorder %v4476, %v4482
        %vm4494 = vcmp.gt.f32.partialorder %v4477, %v4482
        %vm4495 = vcmp.gt.f32.partialorder %v4478, %v4482
        %vm4496 = vcmp.gt.f32.partialorder %v4479, %v4482
        %vm4497 = vcmp.gt.f32.partialorder %v4480, %v4482
        %s4498 = ssub.f32 31.5, %s273
        %v4499 = vstv %s4498
        %vm4500 = vcmp.lt.f32.partialorder %v4466, %v4499
        %vm4501 = vcmp.lt.f32.partialorder %v4467, %v4499
        %vm4502 = vcmp.lt.f32.partialorder %v4468, %v4499
        %vm4503 = vcmp.lt.f32.partialorder %v4469, %v4499
        %vm4504 = vcmp.lt.f32.partialorder %v4470, %v4499
        %vm4505 = vcmp.lt.f32.partialorder %v4471, %v4499
        %vm4506 = vcmp.lt.f32.partialorder %v4472, %v4499
        %vm4507 = vcmp.lt.f32.partialorder %v4473, %v4499
        %vm4508 = vcmp.lt.f32.partialorder %v4474, %v4499
        %vm4509 = vcmp.lt.f32.partialorder %v4475, %v4499
        %vm4510 = vcmp.lt.f32.partialorder %v4476, %v4499
        %vm4511 = vcmp.lt.f32.partialorder %v4477, %v4499
        %vm4512 = vcmp.lt.f32.partialorder %v4478, %v4499
        %vm4513 = vcmp.lt.f32.partialorder %v4479, %v4499
        %vm4514 = vcmp.lt.f32.partialorder %v4480, %v4499
        %vm4515 = vmand %vm4483, %vm4500
        %vm4516 = vmand %vm4484, %vm4501
        %vm4517 = vmand %vm4485, %vm4502
        %vm4518 = vmand %vm4486, %vm4503
        %vm4519 = vmand %vm4487, %vm4504
        %vm4520 = vmand %vm4488, %vm4505
        %vm4521 = vmand %vm4489, %vm4506
        %vm4522 = vmand %vm4490, %vm4507
        %vm4523 = vmand %vm4491, %vm4508
        %vm4524 = vmand %vm4492, %vm4509
        %vm4525 = vmand %vm4493, %vm4510
        %vm4526 = vmand %vm4494, %vm4511
        %vm4527 = vmand %vm4495, %vm4512
        %vm4528 = vmand %vm4496, %vm4513
        %vm4529 = vmand %vm4497, %vm4514
        %vm4530 = vmand %vm4515, %vm410
        %vm4531 = vmand %vm4516, %vm411
        %vm4532 = vmand %vm4517, %vm412
        %vm4533 = vmand %vm4518, %vm413
        %vm4534 = vmand %vm4519, %vm414
        %vm4535 = vmand %vm4520, %vm415
        %vm4536 = vmand %vm4521, %vm416
        %vm4537 = vmand %vm4522, %vm417
        %vm4538 = vmand %vm4523, %vm418
        %vm4539 = vmand %vm4524, %vm419
        %vm4540 = vmand %vm4525, %vm420
        %vm4541 = vmand %vm4526, %vm421
        %vm4542 = vmand %vm4527, %vm422
        %vm4543 = vmand %vm4528, %vm423
        %vm4544 = vmand %vm4529, %vm424
        %4546 = vset.pattern.permute.xlu0 0
        %4547 = vperm.xlu0 %4546, %v266
        %v4548 = vpop.permute.xlu0 %4547
        %v4550 = vunpack.c.l.s4 839922192
        %v4551 = vunpack.c.0.s8 %v4550
        %v4552 = vlaneseq
        %v4553 = vshrl.u32 %v4552, 7
        %v4554 = vsub.s32 %v4551, %v4553
        %v4555 = vrot.slane %v4548, %v4554
        %v4557 = vadd.f32 %v4458, %v4555
        %v4558 = vadd.f32 %v4459, %v4555
        %v4559 = vadd.f32 %v4460, %v4555
        %v4560 = vadd.f32 %v4461, %v4555
        %v4561 = vadd.f32 %v4462, %v4555
        %v4562 = vadd.f32 %v4463, %v4555
        %v4563 = vadd.f32 %v4464, %v4555
        %v4564 = vadd.f32 %v4465, %v4555
        %v4565 = vsel %vm4530, 1, 0
        %v4566 = vsel %vm4531, 1, 0
        %v4567 = vsel %vm4532, 1, 0
        %v4568 = vsel %vm4533, 1, 0
        %v4569 = vsel %vm4534, 1, 0
        %v4570 = vsel %vm4535, 1, 0
        %v4571 = vsel %vm4536, 1, 0
        %v4572 = vsel %vm4537, 1, 0
        %v4573 = vsel %vm4538, 1, 0
        %v4574 = vsel %vm4539, 1, 0
        %v4575 = vsel %vm4540, 1, 0
        %v4576 = vsel %vm4541, 1, 0
        %v4577 = vsel %vm4542, 1, 0
        %v4578 = vsel %vm4543, 1, 0
        %v4579 = vsel %vm4544, 1, 0
        %vm4580 = vcmp.eq.s32.totalorder %v4565, 1
        %vm4581 = vcmp.eq.s32.totalorder %v4566, 1
        %vm4582 = vcmp.eq.s32.totalorder %v4567, 1
        %vm4583 = vcmp.eq.s32.totalorder %v4568, 1
        %vm4584 = vcmp.eq.s32.totalorder %v4569, 1
        %vm4585 = vcmp.eq.s32.totalorder %v4570, 1
        %vm4586 = vcmp.eq.s32.totalorder %v4571, 1
        %vm4587 = vcmp.eq.s32.totalorder %v4572, 1
        %vm4588 = vcmp.eq.s32.totalorder %v4573, 1
        %vm4589 = vcmp.eq.s32.totalorder %v4574, 1
        %vm4590 = vcmp.eq.s32.totalorder %v4575, 1
        %vm4591 = vcmp.eq.s32.totalorder %v4576, 1
        %vm4592 = vcmp.eq.s32.totalorder %v4577, 1
        %vm4593 = vcmp.eq.s32.totalorder %v4578, 1
        %vm4594 = vcmp.eq.s32.totalorder %v4579, 1
        %v4603 = vcombine.high %v4557, %v4557
        %v4604 = vcombine.high %v4558, %v4558
        %v4605 = vcombine.high %v4559, %v4559
        %v4606 = vcombine.high %v4560, %v4560
        %v4607 = vcombine.high %v4561, %v4561
        %v4608 = vcombine.high %v4562, %v4562
        %v4609 = vcombine.high %v4563, %v4563
        %v4610 = vcombine.high %v4564, %v4564
        %4611 = vrot.lane.b32.xlu0 %v4557, 83
        %v4612 = vpop.permute.xlu0 %4611
        %4613 = vrot.lane.b32.xlu0 %v4603, 83
        %v4614 = vpop.permute.xlu0 %4613
        %4615 = vrot.lane.b32.xlu0 %v4558, 83
        %v4616 = vpop.permute.xlu0 %4615
        %4617 = vrot.lane.b32.xlu0 %v4604, 83
        %v4618 = vpop.permute.xlu0 %4617
        %4619 = vrot.lane.b32.xlu0 %v4559, 83
        %v4620 = vpop.permute.xlu0 %4619
        %4621 = vrot.lane.b32.xlu0 %v4605, 83
        %v4622 = vpop.permute.xlu0 %4621
        %4623 = vrot.lane.b32.xlu0 %v4560, 83
        %v4624 = vpop.permute.xlu0 %4623
        %4625 = vrot.lane.b32.xlu0 %v4606, 83
        %v4626 = vpop.permute.xlu0 %4625
        %4627 = vrot.lane.b32.xlu0 %v4561, 83
        %v4628 = vpop.permute.xlu0 %4627
        %4629 = vrot.lane.b32.xlu0 %v4607, 83
        %v4630 = vpop.permute.xlu0 %4629
        %4631 = vrot.lane.b32.xlu0 %v4562, 83
        %v4632 = vpop.permute.xlu0 %4631
        %4633 = vrot.lane.b32.xlu0 %v4608, 83
        %v4634 = vpop.permute.xlu0 %4633
        %4635 = vrot.lane.b32.xlu0 %v4563, 83
        %v4636 = vpop.permute.xlu0 %4635
        %4637 = vrot.lane.b32.xlu0 %v4609, 83
        %v4638 = vpop.permute.xlu0 %4637
        %4639 = vrot.lane.b32.xlu0 %v4564, 83
        %v4640 = vpop.permute.xlu0 %4639
        %4641 = vrot.lane.b32.xlu0 %v4610, 83
        %v4642 = vpop.permute.xlu0 %4641
        %vm4643 = vcmask 678912
        %v4644 = vsel %vm4643, %v4612, %v4614
        %v4645 = vsel %vm4643, %v4614, %v4616
        %v4646 = vsel %vm4643, %v4616, %v4618
        %v4647 = vsel %vm4643, %v4618, %v4620
        %v4648 = vsel %vm4643, %v4620, %v4622
        %v4649 = vsel %vm4643, %v4622, %v4624
        %v4650 = vsel %vm4643, %v4624, %v4626
        %v4651 = vsel %vm4643, %v4626, %v4628
        %v4652 = vsel %vm4643, %v4628, %v4630
        %v4653 = vsel %vm4643, %v4630, %v4632
        %v4654 = vsel %vm4643, %v4632, %v4634
        %v4655 = vsel %vm4643, %v4634, %v4636
        %v4656 = vsel %vm4643, %v4636, %v4638
        %v4657 = vsel %vm4643, %v4638, %v4640
        %v4658 = vsel %vm4643, %v4640, %v4642
        %v4674 = vsel %vm4580, %v4644, 0.0
        %v4675 = vsel %vm4581, %v4645, 0.0
        %v4676 = vsel %vm4582, %v4646, 0.0
        %v4677 = vsel %vm4583, %v4647, 0.0
        %v4678 = vsel %vm4584, %v4648, 0.0
        %v4679 = vsel %vm4585, %v4649, 0.0
        %v4680 = vsel %vm4586, %v4650, 0.0
        %v4681 = vsel %vm4587, %v4651, 0.0
        %v4682 = vsel %vm4588, %v4652, 0.0
        %v4683 = vsel %vm4589, %v4653, 0.0
        %v4684 = vsel %vm4590, %v4654, 0.0
        %v4685 = vsel %vm4591, %v4655, 0.0
        %v4686 = vsel %vm4592, %v4656, 0.0
        %v4687 = vsel %vm4593, %v4657, 0.0
        %v4688 = vsel %vm4594, %v4658, 0.0
        %v4703 = vcombine.low %v4674, %v4675
        %v4704 = vcombine.low %v4676, %v4677
        %v4705 = vcombine.low %v4678, %v4679
        %v4706 = vcombine.low %v4680, %v4681
        %v4707 = vcombine.low %v4682, %v4683
        %v4708 = vcombine.low %v4684, %v4685
        %v4709 = vcombine.low %v4686, %v4687
        %4717 = vst [vmem:[#allocation3] sm:$0xff] %v4703
        %4718 = vst [vmem:[#allocation3 + $0x8] sm:$0xff] %v4704
        %4719 = vst [vmem:[#allocation3 + $0x10] sm:$0xff] %v4705
        %4720 = vst [vmem:[#allocation3 + $0x18] sm:$0xff] %v4706
        %4721 = vst [vmem:[#allocation3 + $0x20] sm:$0xff] %v4707
        %4722 = vst [vmem:[#allocation3 + $0x28] sm:$0xff] %v4708
        %4723 = vst [vmem:[#allocation3 + $0x30] sm:$0xff] %v4709
        %4724 = vst [vmem:[#allocation3 + $0x38] sm:$0xf] %v4688
        %v4725 = vld [vmem:[#allocation3] sm:$0xff]
        %v4726 = vld [vmem:[#allocation3 + $0x8] sm:$0xff]
        %4728 = vset.pattern.permute.xlu0 0
        %4729 = vperm.xlu0 %4728, %v267
        %v4730 = vpop.permute.xlu0 %4729
        %v4732 = vunpack.c.l.s4 839922192
        %v4733 = vunpack.c.0.s8 %v4732
        %v4734 = vlaneseq
        %v4735 = vshrl.u32 %v4734, 7
        %v4736 = vsub.s32 %v4733, %v4735
        %v4737 = vrot.slane %v4730, %v4736
        %v4739 = vmul.f32 %v4725, %v4737
        %v4740 = vmul.f32 %v4726, %v4737
        %v4741 = vadd.f32 %v4739, 0.0
        %v4742 = vadd.f32 %v4740, 0.0
        %4743 = vset.pattern.permute.xlu0 1
        %4744 = vperm.xlu0 %4743, %v267
        %v4745 = vpop.permute.xlu0 %4744
        %v4747 = vunpack.c.l.s4 839922192
        %v4748 = vunpack.c.0.s8 %v4747
        %v4749 = vlaneseq
        %v4750 = vshrl.u32 %v4749, 7
        %v4751 = vsub.s32 %v4748, %v4750
        %v4752 = vrot.slane %v4745, %v4751
        %v4754 = vmul.f32 %v4725, %v4752
        %v4755 = vmul.f32 %v4726, %v4752
        %4758 = vrot.lane.b32.xlu0 %v4754, 124
        %v4759 = vpop.permute.xlu0 %4758
        %4760 = vrot.lane.b32.xlu0 %v4755, 124
        %v4761 = vpop.permute.xlu0 %4760
        %v4762 = vrot.slane %v4759, 4
        %v4763 = vrot.slane %v4761, 4
        %v4764 = vsel %vm516, %v4762, %v4763
        %v4765 = vsel %vm767, %v4759, %v4764
        %v4766 = vsel %vm767, %v4761, %v4763
        %v4769 = vadd.f32 %v4741, %v4765
        %v4770 = vadd.f32 %v4742, %v4766
        %4771 = vset.pattern.permute.xlu0 2
        %4772 = vperm.xlu0 %4771, %v267
        %v4773 = vpop.permute.xlu0 %4772
        %v4775 = vunpack.c.l.s4 839922192
        %v4776 = vunpack.c.0.s8 %v4775
        %v4777 = vlaneseq
        %v4778 = vshrl.u32 %v4777, 7
        %v4779 = vsub.s32 %v4776, %v4778
        %v4780 = vrot.slane %v4773, %v4779
        %v4782 = vmul.f32 %v4725, %v4780
        %v4783 = vmul.f32 %v4726, %v4780
        %4786 = vrot.lane.b32.xlu0 %v4782, 120
        %v4787 = vpop.permute.xlu0 %4786
        %4788 = vrot.lane.b32.xlu0 %v4783, 120
        %v4789 = vpop.permute.xlu0 %4788
        %v4790 = vrot.slane %v4787, 4
        %v4791 = vrot.slane %v4789, 4
        %v4792 = vsel %vm516, %v4790, %v4791
        %vm4793 = vcmask 982016
        %v4794 = vsel %vm4793, %v4787, %v4792
        %v4795 = vsel %vm4793, %v4789, %v4791
        %v4798 = vadd.f32 %v4769, %v4794
        %v4799 = vadd.f32 %v4770, %v4795
        %4800 = vset.pattern.permute.xlu0 3
        %4801 = vperm.xlu0 %4800, %v267
        %v4802 = vpop.permute.xlu0 %4801
        %v4804 = vunpack.c.l.s4 839922192
        %v4805 = vunpack.c.0.s8 %v4804
        %v4806 = vlaneseq
        %v4807 = vshrl.u32 %v4806, 7
        %v4808 = vsub.s32 %v4805, %v4807
        %v4809 = vrot.slane %v4802, %v4808
        %v4811 = vmul.f32 %v4725, %v4809
        %v4812 = vmul.f32 %v4726, %v4809
        %4815 = vrot.lane.b32.xlu0 %v4811, 116
        %v4816 = vpop.permute.xlu0 %4815
        %4817 = vrot.lane.b32.xlu0 %v4812, 116
        %v4818 = vpop.permute.xlu0 %4817
        %v4819 = vrot.slane %v4816, 4
        %v4820 = vrot.slane %v4818, 4
        %v4821 = vsel %vm516, %v4819, %v4820
        %vm4822 = vcmask 949248
        %v4823 = vsel %vm4822, %v4816, %v4821
        %v4824 = vsel %vm4822, %v4818, %v4820
        %v4827 = vadd.f32 %v4798, %v4823
        %v4828 = vadd.f32 %v4799, %v4824
        %4829 = vset.pattern.permute.xlu0 4
        %4830 = vperm.xlu0 %4829, %v267
        %v4831 = vpop.permute.xlu0 %4830
        %v4833 = vunpack.c.l.s4 839922192
        %v4834 = vunpack.c.0.s8 %v4833
        %v4835 = vlaneseq
        %v4836 = vshrl.u32 %v4835, 7
        %v4837 = vsub.s32 %v4834, %v4836
        %v4838 = vrot.slane %v4831, %v4837
        %v4840 = vmul.f32 %v4725, %v4838
        %v4841 = vmul.f32 %v4726, %v4838
        %4844 = vrot.lane.b32.xlu0 %v4840, 112
        %v4845 = vpop.permute.xlu0 %4844
        %4846 = vrot.lane.b32.xlu0 %v4841, 112
        %v4847 = vpop.permute.xlu0 %4846
        %v4848 = vrot.slane %v4845, 4
        %v4849 = vrot.slane %v4847, 4
        %v4850 = vsel %vm516, %v4848, %v4849
        %v4851 = vsel %vm2186, %v4845, %v4850
        %v4852 = vsel %vm2186, %v4847, %v4849
        %v4855 = vadd.f32 %v4827, %v4851
        %v4856 = vadd.f32 %v4828, %v4852
        %4857 = vset.pattern.permute.xlu0 5
        %4858 = vperm.xlu0 %4857, %v267
        %v4859 = vpop.permute.xlu0 %4858
        %v4861 = vunpack.c.l.s4 839922192
        %v4862 = vunpack.c.0.s8 %v4861
        %v4863 = vlaneseq
        %v4864 = vshrl.u32 %v4863, 7
        %v4865 = vsub.s32 %v4862, %v4864
        %v4866 = vrot.slane %v4859, %v4865
        %v4868 = vmul.f32 %v4725, %v4866
        %v4869 = vmul.f32 %v4726, %v4866
        %4872 = vrot.lane.b32.xlu0 %v4868, 108
        %v4873 = vpop.permute.xlu0 %4872
        %4874 = vrot.lane.b32.xlu0 %v4869, 108
        %v4875 = vpop.permute.xlu0 %4874
        %v4876 = vrot.slane %v4873, 4
        %v4877 = vrot.slane %v4875, 4
        %v4878 = vsel %vm516, %v4876, %v4877
        %v4879 = vsel %vm2518, %v4873, %v4878
        %v4880 = vsel %vm2518, %v4875, %v4877
        %v4883 = vadd.f32 %v4855, %v4879
        %v4884 = vadd.f32 %v4856, %v4880
        %4885 = vset.pattern.permute.xlu0 6
        %4886 = vperm.xlu0 %4885, %v267
        %v4887 = vpop.permute.xlu0 %4886
        %v4889 = vunpack.c.l.s4 839922192
        %v4890 = vunpack.c.0.s8 %v4889
        %v4891 = vlaneseq
        %v4892 = vshrl.u32 %v4891, 7
        %v4893 = vsub.s32 %v4890, %v4892
        %v4894 = vrot.slane %v4887, %v4893
        %v4896 = vmul.f32 %v4725, %v4894
        %v4897 = vmul.f32 %v4726, %v4894
        %4900 = vrot.lane.b32.xlu0 %v4896, 104
        %v4901 = vpop.permute.xlu0 %4900
        %4902 = vrot.lane.b32.xlu0 %v4897, 104
        %v4903 = vpop.permute.xlu0 %4902
        %v4904 = vrot.slane %v4901, 4
        %v4905 = vrot.slane %v4903, 4
        %v4906 = vsel %vm516, %v4904, %v4905
        %vm4907 = vcmask 850944
        %v4908 = vsel %vm4907, %v4901, %v4906
        %v4909 = vsel %vm4907, %v4903, %v4905
        %v4912 = vadd.f32 %v4883, %v4908
        %v4913 = vadd.f32 %v4884, %v4909
        %4914 = vset.pattern.permute.xlu0 7
        %4915 = vperm.xlu0 %4914, %v267
        %v4916 = vpop.permute.xlu0 %4915
        %v4918 = vunpack.c.l.s4 839922192
        %v4919 = vunpack.c.0.s8 %v4918
        %v4920 = vlaneseq
        %v4921 = vshrl.u32 %v4920, 7
        %v4922 = vsub.s32 %v4919, %v4921
        %v4923 = vrot.slane %v4916, %v4922
        %v4925 = vmul.f32 %v4725, %v4923
        %v4926 = vmul.f32 %v4726, %v4923
        %4929 = vrot.lane.b32.xlu0 %v4925, 100
        %v4930 = vpop.permute.xlu0 %4929
        %4931 = vrot.lane.b32.xlu0 %v4926, 100
        %v4932 = vpop.permute.xlu0 %4931
        %v4933 = vrot.slane %v4930, 4
        %v4934 = vrot.slane %v4932, 4
        %v4935 = vsel %vm516, %v4933, %v4934
        %vm4936 = vcmask 818176
        %v4937 = vsel %vm4936, %v4930, %v4935
        %v4938 = vsel %vm4936, %v4932, %v4934
        %v4941 = vadd.f32 %v4912, %v4937
        %v4942 = vadd.f32 %v4913, %v4938
        %4943 = vset.pattern.permute.xlu0 8
        %4944 = vperm.xlu0 %4943, %v267
        %v4945 = vpop.permute.xlu0 %4944
        %v4947 = vunpack.c.l.s4 839922192
        %v4948 = vunpack.c.0.s8 %v4947
        %v4949 = vlaneseq
        %v4950 = vshrl.u32 %v4949, 7
        %v4951 = vsub.s32 %v4948, %v4950
        %v4952 = vrot.slane %v4945, %v4951
        %v4954 = vmul.f32 %v4725, %v4952
        %v4955 = vmul.f32 %v4726, %v4952
        %4958 = vrot.lane.b32.xlu0 %v4954, 96
        %v4959 = vpop.permute.xlu0 %4958
        %4960 = vrot.lane.b32.xlu0 %v4955, 96
        %v4961 = vpop.permute.xlu0 %4960
        %v4962 = vrot.slane %v4959, 4
        %v4963 = vrot.slane %v4961, 4
        %v4964 = vsel %vm516, %v4962, %v4963
        %v4965 = vsel %vm3937, %v4959, %v4964
        %v4966 = vsel %vm3937, %v4961, %v4963
        %v4969 = vadd.f32 %v4941, %v4965
        %v4970 = vadd.f32 %v4942, %v4966
        %v4971 = vld [vmem:[#allocation3 + $0x4] sm:$0xff]
        %v4972 = vld [vmem:[#allocation3 + $0xc] sm:$0xff]
        %4973 = vset.pattern.permute.xlu0 9
        %4974 = vperm.xlu0 %4973, %v267
        %v4975 = vpop.permute.xlu0 %4974
        %v4977 = vunpack.c.l.s4 839922192
        %v4978 = vunpack.c.0.s8 %v4977
        %v4979 = vlaneseq
        %v4980 = vshrl.u32 %v4979, 7
        %v4981 = vsub.s32 %v4978, %v4980
        %v4982 = vrot.slane %v4975, %v4981
        %v4984 = vmul.f32 %v4971, %v4982
        %v4985 = vmul.f32 %v4972, %v4982
        %4988 = vrot.lane.b32.xlu0 %v4984, 64
        %v4989 = vpop.permute.xlu0 %4988
        %4990 = vrot.lane.b32.xlu0 %v4985, 64
        %v4991 = vpop.permute.xlu0 %4990
        %v4992 = vrot.slane %v4989, 4
        %v4993 = vrot.slane %v4991, 4
        %v4994 = vsel %vm516, %v4992, %v4993
        %v4995 = vsel %vm2767, %v4989, %v4994
        %v4996 = vsel %vm2767, %v4991, %v4993
        %v4999 = vadd.f32 %v4969, %v4995
        %v5000 = vadd.f32 %v4970, %v4996
        %5001 = vset.pattern.permute.xlu0 10
        %5002 = vperm.xlu0 %5001, %v267
        %v5003 = vpop.permute.xlu0 %5002
        %v5005 = vunpack.c.l.s4 839922192
        %v5006 = vunpack.c.0.s8 %v5005
        %v5007 = vlaneseq
        %v5008 = vshrl.u32 %v5007, 7
        %v5009 = vsub.s32 %v5006, %v5008
        %v5010 = vrot.slane %v5003, %v5009
        %v5012 = vmul.f32 %v4971, %v5010
        %v5013 = vmul.f32 %v4972, %v5010
        %5016 = vrot.lane.b32.xlu0 %v5012, 60
        %v5017 = vpop.permute.xlu0 %5016
        %5018 = vrot.lane.b32.xlu0 %v5013, 60
        %v5019 = vpop.permute.xlu0 %5018
        %v5020 = vrot.slane %v5017, 4
        %v5021 = vrot.slane %v5019, 4
        %v5022 = vsel %vm516, %v5020, %v5021
        %v5023 = vsel %vm3099, %v5017, %v5022
        %v5024 = vsel %vm3099, %v5019, %v5021
        %v5027 = vadd.f32 %v4999, %v5023
        %v5028 = vadd.f32 %v5000, %v5024
        %5029 = vset.pattern.permute.xlu0 11
        %5030 = vperm.xlu0 %5029, %v267
        %v5031 = vpop.permute.xlu0 %5030
        %v5033 = vunpack.c.l.s4 839922192
        %v5034 = vunpack.c.0.s8 %v5033
        %v5035 = vlaneseq
        %v5036 = vshrl.u32 %v5035, 7
        %v5037 = vsub.s32 %v5034, %v5036
        %v5038 = vrot.slane %v5031, %v5037
        %v5040 = vmul.f32 %v4971, %v5038
        %v5041 = vmul.f32 %v4972, %v5038
        %5044 = vrot.lane.b32.xlu0 %v5040, 56
        %v5045 = vpop.permute.xlu0 %5044
        %5046 = vrot.lane.b32.xlu0 %v5041, 56
        %v5047 = vpop.permute.xlu0 %5046
        %v5048 = vrot.slane %v5045, 4
        %v5049 = vrot.slane %v5047, 4
        %v5050 = vsel %vm516, %v5048, %v5049
        %vm5051 = vcmask 457728
        %v5052 = vsel %vm5051, %v5045, %v5050
        %v5053 = vsel %vm5051, %v5047, %v5049
        %v5056 = vadd.f32 %v5027, %v5052
        %v5057 = vadd.f32 %v5028, %v5053
        %5058 = vset.pattern.permute.xlu0 12
        %5059 = vperm.xlu0 %5058, %v267
        %v5060 = vpop.permute.xlu0 %5059
        %v5062 = vunpack.c.l.s4 839922192
        %v5063 = vunpack.c.0.s8 %v5062
        %v5064 = vlaneseq
        %v5065 = vshrl.u32 %v5064, 7
        %v5066 = vsub.s32 %v5063, %v5065
        %v5067 = vrot.slane %v5060, %v5066
        %v5069 = vmul.f32 %v4971, %v5067
        %v5070 = vmul.f32 %v4972, %v5067
        %5073 = vrot.lane.b32.xlu0 %v5069, 52
        %v5074 = vpop.permute.xlu0 %5073
        %5075 = vrot.lane.b32.xlu0 %v5070, 52
        %v5076 = vpop.permute.xlu0 %5075
        %v5077 = vrot.slane %v5074, 4
        %v5078 = vrot.slane %v5076, 4
        %v5079 = vsel %vm516, %v5077, %v5078
        %vm5080 = vcmask 424960
        %v5081 = vsel %vm5080, %v5074, %v5079
        %v5082 = vsel %vm5080, %v5076, %v5078
        %v5085 = vadd.f32 %v5056, %v5081
        %v5086 = vadd.f32 %v5057, %v5082
        %5087 = vset.pattern.permute.xlu0 13
        %5088 = vperm.xlu0 %5087, %v267
        %v5089 = vpop.permute.xlu0 %5088
        %v5091 = vunpack.c.l.s4 839922192
        %v5092 = vunpack.c.0.s8 %v5091
        %v5093 = vlaneseq
        %v5094 = vshrl.u32 %v5093, 7
        %v5095 = vsub.s32 %v5092, %v5094
        %v5096 = vrot.slane %v5089, %v5095
        %v5098 = vmul.f32 %v4971, %v5096
        %v5099 = vmul.f32 %v4972, %v5096
        %5102 = vrot.lane.b32.xlu0 %v5098, 48
        %v5103 = vpop.permute.xlu0 %5102
        %5104 = vrot.lane.b32.xlu0 %v5099, 48
        %v5105 = vpop.permute.xlu0 %5104
        %v5106 = vrot.slane %v5103, 4
        %v5107 = vrot.slane %v5105, 4
        %v5108 = vsel %vm516, %v5106, %v5107
        %vm5109 = vcmask 392192
        %v5110 = vsel %vm5109, %v5103, %v5108
        %v5111 = vsel %vm5109, %v5105, %v5107
        %v5114 = vadd.f32 %v5085, %v5110
        %v5115 = vadd.f32 %v5086, %v5111
        %5116 = vset.pattern.permute.xlu0 14
        %5117 = vperm.xlu0 %5116, %v267
        %v5118 = vpop.permute.xlu0 %5117
        %v5120 = vunpack.c.l.s4 839922192
        %v5121 = vunpack.c.0.s8 %v5120
        %v5122 = vlaneseq
        %v5123 = vshrl.u32 %v5122, 7
        %v5124 = vsub.s32 %v5121, %v5123
        %v5125 = vrot.slane %v5118, %v5124
        %v5127 = vmul.f32 %v4971, %v5125
        %v5128 = vmul.f32 %v4972, %v5125
        %5131 = vrot.lane.b32.xlu0 %v5127, 44
        %v5132 = vpop.permute.xlu0 %5131
        %5133 = vrot.lane.b32.xlu0 %v5128, 44
        %v5134 = vpop.permute.xlu0 %5133
        %v5135 = vrot.slane %v5132, 4
        %v5136 = vrot.slane %v5134, 4
        %v5137 = vsel %vm516, %v5135, %v5136
        %vm5138 = vcmask 359424
        %v5139 = vsel %vm5138, %v5132, %v5137
        %v5140 = vsel %vm5138, %v5134, %v5136
        %v5143 = vadd.f32 %v5114, %v5139
        %v5144 = vadd.f32 %v5115, %v5140
        %5145 = vset.pattern.permute.xlu0 15
        %5146 = vperm.xlu0 %5145, %v267
        %v5147 = vpop.permute.xlu0 %5146
        %v5149 = vunpack.c.l.s4 839922192
        %v5150 = vunpack.c.0.s8 %v5149
        %v5151 = vlaneseq
        %v5152 = vshrl.u32 %v5151, 7
        %v5153 = vsub.s32 %v5150, %v5152
        %v5154 = vrot.slane %v5147, %v5153
        %v5156 = vmul.f32 %v4971, %v5154
        %v5157 = vmul.f32 %v4972, %v5154
        %5160 = vrot.lane.b32.xlu0 %v5156, 40
        %v5161 = vpop.permute.xlu0 %5160
        %5162 = vrot.lane.b32.xlu0 %v5157, 40
        %v5163 = vpop.permute.xlu0 %5162
        %v5164 = vrot.slane %v5161, 4
        %v5165 = vrot.slane %v5163, 4
        %v5166 = vsel %vm516, %v5164, %v5165
        %vm5167 = vcmask 326656
        %v5168 = vsel %vm5167, %v5161, %v5166
        %v5169 = vsel %vm5167, %v5163, %v5165
        %v5172 = vadd.f32 %v5143, %v5168
        %v5173 = vadd.f32 %v5144, %v5169
        %5174 = vset.pattern.permute.xlu0 16
        %5175 = vperm.xlu0 %5174, %v267
        %v5176 = vpop.permute.xlu0 %5175
        %v5178 = vunpack.c.l.s4 839922192
        %v5179 = vunpack.c.0.s8 %v5178
        %v5180 = vlaneseq
        %v5181 = vshrl.u32 %v5180, 7
        %v5182 = vsub.s32 %v5179, %v5181
        %v5183 = vrot.slane %v5176, %v5182
        %v5185 = vmul.f32 %v4971, %v5183
        %v5186 = vmul.f32 %v4972, %v5183
        %5189 = vrot.lane.b32.xlu0 %v5185, 36
        %v5190 = vpop.permute.xlu0 %5189
        %5191 = vrot.lane.b32.xlu0 %v5186, 36
        %v5192 = vpop.permute.xlu0 %5191
        %v5193 = vrot.slane %v5190, 4
        %v5194 = vrot.slane %v5192, 4
        %v5195 = vsel %vm516, %v5193, %v5194
        %vm5196 = vcmask 293888
        %v5197 = vsel %vm5196, %v5190, %v5195
        %v5198 = vsel %vm5196, %v5192, %v5194
        %v5201 = vadd.f32 %v5172, %v5197
        %v5202 = vadd.f32 %v5173, %v5198
        %5203 = vset.pattern.permute.xlu0 17
        %5204 = vperm.xlu0 %5203, %v267
        %v5205 = vpop.permute.xlu0 %5204
        %v5207 = vunpack.c.l.s4 839922192
        %v5208 = vunpack.c.0.s8 %v5207
        %v5209 = vlaneseq
        %v5210 = vshrl.u32 %v5209, 7
        %v5211 = vsub.s32 %v5208, %v5210
        %v5212 = vrot.slane %v5205, %v5211
        %v5214 = vmul.f32 %v4971, %v5212
        %v5215 = vmul.f32 %v4972, %v5212
        %5218 = vrot.lane.b32.xlu0 %v5214, 32
        %v5219 = vpop.permute.xlu0 %5218
        %5220 = vrot.lane.b32.xlu0 %v5215, 32
        %v5221 = vpop.permute.xlu0 %5220
        %v5222 = vrot.slane %v5219, 4
        %v5223 = vrot.slane %v5221, 4
        %v5224 = vsel %vm516, %v5222, %v5223
        %v5225 = vsel %vm1604, %v5219, %v5224
        %v5226 = vsel %vm1604, %v5221, %v5223
        %v5229 = vadd.f32 %v5201, %v5225
        %v5230 = vadd.f32 %v5202, %v5226
        %v5231 = vld [vmem:[#allocation3 + $0xc] sm:$0xff]
        %v5232 = vld [vmem:[#allocation3 + $0x14] sm:$0xff]
        %5233 = vset.pattern.permute.xlu0 18
        %5234 = vperm.xlu0 %5233, %v267
        %v5235 = vpop.permute.xlu0 %5234
        %v5237 = vunpack.c.l.s4 839922192
        %v5238 = vunpack.c.0.s8 %v5237
        %v5239 = vlaneseq
        %v5240 = vshrl.u32 %v5239, 7
        %v5241 = vsub.s32 %v5238, %v5240
        %v5242 = vrot.slane %v5235, %v5241
        %v5244 = vmul.f32 %v5231, %v5242
        %v5245 = vmul.f32 %v5232, %v5242
        %v5246 = vadd.f32 %v5229, %v5244
        %v5247 = vadd.f32 %v5230, %v5245
        %5248 = vset.pattern.permute.xlu0 19
        %5249 = vperm.xlu0 %5248, %v267
        %v5250 = vpop.permute.xlu0 %5249
        %v5252 = vunpack.c.l.s4 839922192
        %v5253 = vunpack.c.0.s8 %v5252
        %v5254 = vlaneseq
        %v5255 = vshrl.u32 %v5254, 7
        %v5256 = vsub.s32 %v5253, %v5255
        %v5257 = vrot.slane %v5250, %v5256
        %v5259 = vmul.f32 %v5231, %v5257
        %v5260 = vmul.f32 %v5232, %v5257
        %5263 = vrot.lane.b32.xlu0 %v5259, 124
        %v5264 = vpop.permute.xlu0 %5263
        %5265 = vrot.lane.b32.xlu0 %v5260, 124
        %v5266 = vpop.permute.xlu0 %5265
        %v5267 = vrot.slane %v5264, 4
        %v5268 = vrot.slane %v5266, 4
        %v5269 = vsel %vm516, %v5267, %v5268
        %v5270 = vsel %vm767, %v5264, %v5269
        %v5271 = vsel %vm767, %v5266, %v5268
        %v5274 = vadd.f32 %v5246, %v5270
        %v5275 = vadd.f32 %v5247, %v5271
        %5276 = vset.pattern.permute.xlu0 20
        %5277 = vperm.xlu0 %5276, %v267
        %v5278 = vpop.permute.xlu0 %5277
        %v5280 = vunpack.c.l.s4 839922192
        %v5281 = vunpack.c.0.s8 %v5280
        %v5282 = vlaneseq
        %v5283 = vshrl.u32 %v5282, 7
        %v5284 = vsub.s32 %v5281, %v5283
        %v5285 = vrot.slane %v5278, %v5284
        %v5287 = vmul.f32 %v5231, %v5285
        %v5288 = vmul.f32 %v5232, %v5285
        %5291 = vrot.lane.b32.xlu0 %v5287, 120
        %v5292 = vpop.permute.xlu0 %5291
        %5293 = vrot.lane.b32.xlu0 %v5288, 120
        %v5294 = vpop.permute.xlu0 %5293
        %v5295 = vrot.slane %v5292, 4
        %v5296 = vrot.slane %v5294, 4
        %v5297 = vsel %vm516, %v5295, %v5296
        %v5298 = vsel %vm4793, %v5292, %v5297
        %v5299 = vsel %vm4793, %v5294, %v5296
        %v5302 = vadd.f32 %v5274, %v5298
        %v5303 = vadd.f32 %v5275, %v5299
        %5304 = vset.pattern.permute.xlu0 21
        %5305 = vperm.xlu0 %5304, %v267
        %v5306 = vpop.permute.xlu0 %5305
        %v5308 = vunpack.c.l.s4 839922192
        %v5309 = vunpack.c.0.s8 %v5308
        %v5310 = vlaneseq
        %v5311 = vshrl.u32 %v5310, 7
        %v5312 = vsub.s32 %v5309, %v5311
        %v5313 = vrot.slane %v5306, %v5312
        %v5315 = vmul.f32 %v5231, %v5313
        %v5316 = vmul.f32 %v5232, %v5313
        %5319 = vrot.lane.b32.xlu0 %v5315, 116
        %v5320 = vpop.permute.xlu0 %5319
        %5321 = vrot.lane.b32.xlu0 %v5316, 116
        %v5322 = vpop.permute.xlu0 %5321
        %v5323 = vrot.slane %v5320, 4
        %v5324 = vrot.slane %v5322, 4
        %v5325 = vsel %vm516, %v5323, %v5324
        %v5326 = vsel %vm4822, %v5320, %v5325
        %v5327 = vsel %vm4822, %v5322, %v5324
        %v5330 = vadd.f32 %v5302, %v5326
        %v5331 = vadd.f32 %v5303, %v5327
        %5332 = vset.pattern.permute.xlu0 22
        %5333 = vperm.xlu0 %5332, %v267
        %v5334 = vpop.permute.xlu0 %5333
        %v5336 = vunpack.c.l.s4 839922192
        %v5337 = vunpack.c.0.s8 %v5336
        %v5338 = vlaneseq
        %v5339 = vshrl.u32 %v5338, 7
        %v5340 = vsub.s32 %v5337, %v5339
        %v5341 = vrot.slane %v5334, %v5340
        %v5343 = vmul.f32 %v5231, %v5341
        %v5344 = vmul.f32 %v5232, %v5341
        %5347 = vrot.lane.b32.xlu0 %v5343, 112
        %v5348 = vpop.permute.xlu0 %5347
        %5349 = vrot.lane.b32.xlu0 %v5344, 112
        %v5350 = vpop.permute.xlu0 %5349
        %v5351 = vrot.slane %v5348, 4
        %v5352 = vrot.slane %v5350, 4
        %v5353 = vsel %vm516, %v5351, %v5352
        %v5354 = vsel %vm2186, %v5348, %v5353
        %v5355 = vsel %vm2186, %v5350, %v5352
        %v5358 = vadd.f32 %v5330, %v5354
        %v5359 = vadd.f32 %v5331, %v5355
        %5360 = vset.pattern.permute.xlu0 23
        %5361 = vperm.xlu0 %5360, %v267
        %v5362 = vpop.permute.xlu0 %5361
        %v5364 = vunpack.c.l.s4 839922192
        %v5365 = vunpack.c.0.s8 %v5364
        %v5366 = vlaneseq
        %v5367 = vshrl.u32 %v5366, 7
        %v5368 = vsub.s32 %v5365, %v5367
        %v5369 = vrot.slane %v5362, %v5368
        %v5371 = vmul.f32 %v5231, %v5369
        %v5372 = vmul.f32 %v5232, %v5369
        %5375 = vrot.lane.b32.xlu0 %v5371, 108
        %v5376 = vpop.permute.xlu0 %5375
        %5377 = vrot.lane.b32.xlu0 %v5372, 108
        %v5378 = vpop.permute.xlu0 %5377
        %v5379 = vrot.slane %v5376, 4
        %v5380 = vrot.slane %v5378, 4
        %v5381 = vsel %vm516, %v5379, %v5380
        %v5382 = vsel %vm2518, %v5376, %v5381
        %v5383 = vsel %vm2518, %v5378, %v5380
        %v5386 = vadd.f32 %v5358, %v5382
        %v5387 = vadd.f32 %v5359, %v5383
        %5388 = vset.pattern.permute.xlu0 24
        %5389 = vperm.xlu0 %5388, %v267
        %v5390 = vpop.permute.xlu0 %5389
        %v5392 = vunpack.c.l.s4 839922192
        %v5393 = vunpack.c.0.s8 %v5392
        %v5394 = vlaneseq
        %v5395 = vshrl.u32 %v5394, 7
        %v5396 = vsub.s32 %v5393, %v5395
        %v5397 = vrot.slane %v5390, %v5396
        %v5399 = vmul.f32 %v5231, %v5397
        %v5400 = vmul.f32 %v5232, %v5397
        %5403 = vrot.lane.b32.xlu0 %v5399, 104
        %v5404 = vpop.permute.xlu0 %5403
        %5405 = vrot.lane.b32.xlu0 %v5400, 104
        %v5406 = vpop.permute.xlu0 %5405
        %v5407 = vrot.slane %v5404, 4
        %v5408 = vrot.slane %v5406, 4
        %v5409 = vsel %vm516, %v5407, %v5408
        %v5410 = vsel %vm4907, %v5404, %v5409
        %v5411 = vsel %vm4907, %v5406, %v5408
        %v5414 = vadd.f32 %v5386, %v5410
        %v5415 = vadd.f32 %v5387, %v5411
        %5416 = vset.pattern.permute.xlu0 25
        %5417 = vperm.xlu0 %5416, %v267
        %v5418 = vpop.permute.xlu0 %5417
        %v5420 = vunpack.c.l.s4 839922192
        %v5421 = vunpack.c.0.s8 %v5420
        %v5422 = vlaneseq
        %v5423 = vshrl.u32 %v5422, 7
        %v5424 = vsub.s32 %v5421, %v5423
        %v5425 = vrot.slane %v5418, %v5424
        %v5427 = vmul.f32 %v5231, %v5425
        %v5428 = vmul.f32 %v5232, %v5425
        %5431 = vrot.lane.b32.xlu0 %v5427, 100
        %v5432 = vpop.permute.xlu0 %5431
        %5433 = vrot.lane.b32.xlu0 %v5428, 100
        %v5434 = vpop.permute.xlu0 %5433
        %v5435 = vrot.slane %v5432, 4
        %v5436 = vrot.slane %v5434, 4
        %v5437 = vsel %vm516, %v5435, %v5436
        %v5438 = vsel %vm4936, %v5432, %v5437
        %v5439 = vsel %vm4936, %v5434, %v5436
        %v5442 = vadd.f32 %v5414, %v5438
        %v5443 = vadd.f32 %v5415, %v5439
        %5444 = vset.pattern.permute.xlu0 26
        %5445 = vperm.xlu0 %5444, %v267
        %v5446 = vpop.permute.xlu0 %5445
        %v5448 = vunpack.c.l.s4 839922192
        %v5449 = vunpack.c.0.s8 %v5448
        %v5450 = vlaneseq
        %v5451 = vshrl.u32 %v5450, 7
        %v5452 = vsub.s32 %v5449, %v5451
        %v5453 = vrot.slane %v5446, %v5452
        %v5455 = vmul.f32 %v5231, %v5453
        %v5456 = vmul.f32 %v5232, %v5453
        %5459 = vrot.lane.b32.xlu0 %v5455, 96
        %v5460 = vpop.permute.xlu0 %5459
        %5461 = vrot.lane.b32.xlu0 %v5456, 96
        %v5462 = vpop.permute.xlu0 %5461
        %v5463 = vrot.slane %v5460, 4
        %v5464 = vrot.slane %v5462, 4
        %v5465 = vsel %vm516, %v5463, %v5464
        %v5466 = vsel %vm3937, %v5460, %v5465
        %v5467 = vsel %vm3937, %v5462, %v5464
        %v5470 = vadd.f32 %v5442, %v5466
        %v5471 = vadd.f32 %v5443, %v5467
        %v5472 = vld [vmem:[#allocation3 + $0x10] sm:$0xff]
        %v5473 = vld [vmem:[#allocation3 + $0x18] sm:$0xff]
        %5474 = vset.pattern.permute.xlu0 27
        %5475 = vperm.xlu0 %5474, %v267
        %v5476 = vpop.permute.xlu0 %5475
        %v5478 = vunpack.c.l.s4 839922192
        %v5479 = vunpack.c.0.s8 %v5478
        %v5480 = vlaneseq
        %v5481 = vshrl.u32 %v5480, 7
        %v5482 = vsub.s32 %v5479, %v5481
        %v5483 = vrot.slane %v5476, %v5482
        %v5485 = vmul.f32 %v5472, %v5483
        %v5486 = vmul.f32 %v5473, %v5483
        %5489 = vrot.lane.b32.xlu0 %v5485, 64
        %v5490 = vpop.permute.xlu0 %5489
        %5491 = vrot.lane.b32.xlu0 %v5486, 64
        %v5492 = vpop.permute.xlu0 %5491
        %v5493 = vrot.slane %v5490, 4
        %v5494 = vrot.slane %v5492, 4
        %v5495 = vsel %vm516, %v5493, %v5494
        %v5496 = vsel %vm2767, %v5490, %v5495
        %v5497 = vsel %vm2767, %v5492, %v5494
        %v5500 = vadd.f32 %v5470, %v5496
        %v5501 = vadd.f32 %v5471, %v5497
        %5502 = vset.pattern.permute.xlu0 28
        %5503 = vperm.xlu0 %5502, %v267
        %v5504 = vpop.permute.xlu0 %5503
        %v5506 = vunpack.c.l.s4 839922192
        %v5507 = vunpack.c.0.s8 %v5506
        %v5508 = vlaneseq
        %v5509 = vshrl.u32 %v5508, 7
        %v5510 = vsub.s32 %v5507, %v5509
        %v5511 = vrot.slane %v5504, %v5510
        %v5513 = vmul.f32 %v5472, %v5511
        %v5514 = vmul.f32 %v5473, %v5511
        %5517 = vrot.lane.b32.xlu0 %v5513, 60
        %v5518 = vpop.permute.xlu0 %5517
        %5519 = vrot.lane.b32.xlu0 %v5514, 60
        %v5520 = vpop.permute.xlu0 %5519
        %v5521 = vrot.slane %v5518, 4
        %v5522 = vrot.slane %v5520, 4
        %v5523 = vsel %vm516, %v5521, %v5522
        %v5524 = vsel %vm3099, %v5518, %v5523
        %v5525 = vsel %vm3099, %v5520, %v5522
        %v5528 = vadd.f32 %v5500, %v5524
        %v5529 = vadd.f32 %v5501, %v5525
        %5530 = vset.pattern.permute.xlu0 29
        %5531 = vperm.xlu0 %5530, %v267
        %v5532 = vpop.permute.xlu0 %5531
        %v5534 = vunpack.c.l.s4 839922192
        %v5535 = vunpack.c.0.s8 %v5534
        %v5536 = vlaneseq
        %v5537 = vshrl.u32 %v5536, 7
        %v5538 = vsub.s32 %v5535, %v5537
        %v5539 = vrot.slane %v5532, %v5538
        %v5541 = vmul.f32 %v5472, %v5539
        %v5542 = vmul.f32 %v5473, %v5539
        %5545 = vrot.lane.b32.xlu0 %v5541, 56
        %v5546 = vpop.permute.xlu0 %5545
        %5547 = vrot.lane.b32.xlu0 %v5542, 56
        %v5548 = vpop.permute.xlu0 %5547
        %v5549 = vrot.slane %v5546, 4
        %v5550 = vrot.slane %v5548, 4
        %v5551 = vsel %vm516, %v5549, %v5550
        %v5552 = vsel %vm5051, %v5546, %v5551
        %v5553 = vsel %vm5051, %v5548, %v5550
        %v5556 = vadd.f32 %v5528, %v5552
        %v5557 = vadd.f32 %v5529, %v5553
        %5558 = vset.pattern.permute.xlu0 30
        %5559 = vperm.xlu0 %5558, %v267
        %v5560 = vpop.permute.xlu0 %5559
        %v5562 = vunpack.c.l.s4 839922192
        %v5563 = vunpack.c.0.s8 %v5562
        %v5564 = vlaneseq
        %v5565 = vshrl.u32 %v5564, 7
        %v5566 = vsub.s32 %v5563, %v5565
        %v5567 = vrot.slane %v5560, %v5566
        %v5569 = vmul.f32 %v5472, %v5567
        %v5570 = vmul.f32 %v5473, %v5567
        %5573 = vrot.lane.b32.xlu0 %v5569, 52
        %v5574 = vpop.permute.xlu0 %5573
        %5575 = vrot.lane.b32.xlu0 %v5570, 52
        %v5576 = vpop.permute.xlu0 %5575
        %v5577 = vrot.slane %v5574, 4
        %v5578 = vrot.slane %v5576, 4
        %v5579 = vsel %vm516, %v5577, %v5578
        %v5580 = vsel %vm5080, %v5574, %v5579
        %v5581 = vsel %vm5080, %v5576, %v5578
        %v5584 = vadd.f32 %v5556, %v5580
        %v5585 = vadd.f32 %v5557, %v5581
        %5586 = vset.pattern.permute.xlu0 31
        %5587 = vperm.xlu0 %5586, %v267
        %v5588 = vpop.permute.xlu0 %5587
        %v5590 = vunpack.c.l.s4 839922192
        %v5591 = vunpack.c.0.s8 %v5590
        %v5592 = vlaneseq
        %v5593 = vshrl.u32 %v5592, 7
        %v5594 = vsub.s32 %v5591, %v5593
        %v5595 = vrot.slane %v5588, %v5594
        %v5597 = vmul.f32 %v5472, %v5595
        %v5598 = vmul.f32 %v5473, %v5595
        %5601 = vrot.lane.b32.xlu0 %v5597, 48
        %v5602 = vpop.permute.xlu0 %5601
        %5603 = vrot.lane.b32.xlu0 %v5598, 48
        %v5604 = vpop.permute.xlu0 %5603
        %v5605 = vrot.slane %v5602, 4
        %v5606 = vrot.slane %v5604, 4
        %v5607 = vsel %vm516, %v5605, %v5606
        %v5608 = vsel %vm5109, %v5602, %v5607
        %v5609 = vsel %vm5109, %v5604, %v5606
        %v5612 = vadd.f32 %v5584, %v5608
        %v5613 = vadd.f32 %v5585, %v5609
        %5614 = vset.pattern.permute.xlu0 32
        %5615 = vperm.xlu0 %5614, %v267
        %v5616 = vpop.permute.xlu0 %5615
        %v5618 = vunpack.c.l.s4 839922192
        %v5619 = vunpack.c.0.s8 %v5618
        %v5620 = vlaneseq
        %v5621 = vshrl.u32 %v5620, 7
        %v5622 = vsub.s32 %v5619, %v5621
        %v5623 = vrot.slane %v5616, %v5622
        %v5625 = vmul.f32 %v5472, %v5623
        %v5626 = vmul.f32 %v5473, %v5623
        %5629 = vrot.lane.b32.xlu0 %v5625, 44
        %v5630 = vpop.permute.xlu0 %5629
        %5631 = vrot.lane.b32.xlu0 %v5626, 44
        %v5632 = vpop.permute.xlu0 %5631
        %v5633 = vrot.slane %v5630, 4
        %v5634 = vrot.slane %v5632, 4
        %v5635 = vsel %vm516, %v5633, %v5634
        %v5636 = vsel %vm5138, %v5630, %v5635
        %v5637 = vsel %vm5138, %v5632, %v5634
        %v5640 = vadd.f32 %v5612, %v5636
        %v5641 = vadd.f32 %v5613, %v5637
        %5642 = vset.pattern.permute.xlu0 33
        %5643 = vperm.xlu0 %5642, %v267
        %v5644 = vpop.permute.xlu0 %5643
        %v5646 = vunpack.c.l.s4 839922192
        %v5647 = vunpack.c.0.s8 %v5646
        %v5648 = vlaneseq
        %v5649 = vshrl.u32 %v5648, 7
        %v5650 = vsub.s32 %v5647, %v5649
        %v5651 = vrot.slane %v5644, %v5650
        %v5653 = vmul.f32 %v5472, %v5651
        %v5654 = vmul.f32 %v5473, %v5651
        %5657 = vrot.lane.b32.xlu0 %v5653, 40
        %v5658 = vpop.permute.xlu0 %5657
        %5659 = vrot.lane.b32.xlu0 %v5654, 40
        %v5660 = vpop.permute.xlu0 %5659
        %v5661 = vrot.slane %v5658, 4
        %v5662 = vrot.slane %v5660, 4
        %v5663 = vsel %vm516, %v5661, %v5662
        %v5664 = vsel %vm5167, %v5658, %v5663
        %v5665 = vsel %vm5167, %v5660, %v5662
        %v5668 = vadd.f32 %v5640, %v5664
        %v5669 = vadd.f32 %v5641, %v5665
        %5670 = vset.pattern.permute.xlu0 34
        %5671 = vperm.xlu0 %5670, %v267
        %v5672 = vpop.permute.xlu0 %5671
        %v5674 = vunpack.c.l.s4 839922192
        %v5675 = vunpack.c.0.s8 %v5674
        %v5676 = vlaneseq
        %v5677 = vshrl.u32 %v5676, 7
        %v5678 = vsub.s32 %v5675, %v5677
        %v5679 = vrot.slane %v5672, %v5678
        %v5681 = vmul.f32 %v5472, %v5679
        %v5682 = vmul.f32 %v5473, %v5679
        %5685 = vrot.lane.b32.xlu0 %v5681, 36
        %v5686 = vpop.permute.xlu0 %5685
        %5687 = vrot.lane.b32.xlu0 %v5682, 36
        %v5688 = vpop.permute.xlu0 %5687
        %v5689 = vrot.slane %v5686, 4
        %v5690 = vrot.slane %v5688, 4
        %v5691 = vsel %vm516, %v5689, %v5690
        %v5692 = vsel %vm5196, %v5686, %v5691
        %v5693 = vsel %vm5196, %v5688, %v5690
        %v5696 = vadd.f32 %v5668, %v5692
        %v5697 = vadd.f32 %v5669, %v5693
        %5698 = vset.pattern.permute.xlu0 35
        %5699 = vperm.xlu0 %5698, %v267
        %v5700 = vpop.permute.xlu0 %5699
        %v5702 = vunpack.c.l.s4 839922192
        %v5703 = vunpack.c.0.s8 %v5702
        %v5704 = vlaneseq
        %v5705 = vshrl.u32 %v5704, 7
        %v5706 = vsub.s32 %v5703, %v5705
        %v5707 = vrot.slane %v5700, %v5706
        %v5709 = vmul.f32 %v5472, %v5707
        %v5710 = vmul.f32 %v5473, %v5707
        %5713 = vrot.lane.b32.xlu0 %v5709, 32
        %v5714 = vpop.permute.xlu0 %5713
        %5715 = vrot.lane.b32.xlu0 %v5710, 32
        %v5716 = vpop.permute.xlu0 %5715
        %v5717 = vrot.slane %v5714, 4
        %v5718 = vrot.slane %v5716, 4
        %v5719 = vsel %vm516, %v5717, %v5718
        %v5720 = vsel %vm1604, %v5714, %v5719
        %v5721 = vsel %vm1604, %v5716, %v5718
        %v5724 = vadd.f32 %v5696, %v5720
        %v5725 = vadd.f32 %v5697, %v5721
        %v5726 = vld [vmem:[#allocation3 + $0x18] sm:$0xff]
        %v5727 = vld [vmem:[#allocation3 + $0x20] sm:$0xff]
        %5728 = vset.pattern.permute.xlu0 36
        %5729 = vperm.xlu0 %5728, %v267
        %v5730 = vpop.permute.xlu0 %5729
        %v5732 = vunpack.c.l.s4 839922192
        %v5733 = vunpack.c.0.s8 %v5732
        %v5734 = vlaneseq
        %v5735 = vshrl.u32 %v5734, 7
        %v5736 = vsub.s32 %v5733, %v5735
        %v5737 = vrot.slane %v5730, %v5736
        %v5739 = vmul.f32 %v5726, %v5737
        %v5740 = vmul.f32 %v5727, %v5737
        %v5741 = vadd.f32 %v5724, %v5739
        %v5742 = vadd.f32 %v5725, %v5740
        %5743 = vset.pattern.permute.xlu0 37
        %5744 = vperm.xlu0 %5743, %v267
        %v5745 = vpop.permute.xlu0 %5744
        %v5747 = vunpack.c.l.s4 839922192
        %v5748 = vunpack.c.0.s8 %v5747
        %v5749 = vlaneseq
        %v5750 = vshrl.u32 %v5749, 7
        %v5751 = vsub.s32 %v5748, %v5750
        %v5752 = vrot.slane %v5745, %v5751
        %v5754 = vmul.f32 %v5726, %v5752
        %v5755 = vmul.f32 %v5727, %v5752
        %5758 = vrot.lane.b32.xlu0 %v5754, 124
        %v5759 = vpop.permute.xlu0 %5758
        %5760 = vrot.lane.b32.xlu0 %v5755, 124
        %v5761 = vpop.permute.xlu0 %5760
        %v5762 = vrot.slane %v5759, 4
        %v5763 = vrot.slane %v5761, 4
        %v5764 = vsel %vm516, %v5762, %v5763
        %v5765 = vsel %vm767, %v5759, %v5764
        %v5766 = vsel %vm767, %v5761, %v5763
        %v5769 = vadd.f32 %v5741, %v5765
        %v5770 = vadd.f32 %v5742, %v5766
        %5771 = vset.pattern.permute.xlu0 38
        %5772 = vperm.xlu0 %5771, %v267
        %v5773 = vpop.permute.xlu0 %5772
        %v5775 = vunpack.c.l.s4 839922192
        %v5776 = vunpack.c.0.s8 %v5775
        %v5777 = vlaneseq
        %v5778 = vshrl.u32 %v5777, 7
        %v5779 = vsub.s32 %v5776, %v5778
        %v5780 = vrot.slane %v5773, %v5779
        %v5782 = vmul.f32 %v5726, %v5780
        %v5783 = vmul.f32 %v5727, %v5780
        %5786 = vrot.lane.b32.xlu0 %v5782, 120
        %v5787 = vpop.permute.xlu0 %5786
        %5788 = vrot.lane.b32.xlu0 %v5783, 120
        %v5789 = vpop.permute.xlu0 %5788
        %v5790 = vrot.slane %v5787, 4
        %v5791 = vrot.slane %v5789, 4
        %v5792 = vsel %vm516, %v5790, %v5791
        %v5793 = vsel %vm4793, %v5787, %v5792
        %v5794 = vsel %vm4793, %v5789, %v5791
        %v5797 = vadd.f32 %v5769, %v5793
        %v5798 = vadd.f32 %v5770, %v5794
        %5799 = vset.pattern.permute.xlu0 39
        %5800 = vperm.xlu0 %5799, %v267
        %v5801 = vpop.permute.xlu0 %5800
        %v5803 = vunpack.c.l.s4 839922192
        %v5804 = vunpack.c.0.s8 %v5803
        %v5805 = vlaneseq
        %v5806 = vshrl.u32 %v5805, 7
        %v5807 = vsub.s32 %v5804, %v5806
        %v5808 = vrot.slane %v5801, %v5807
        %v5810 = vmul.f32 %v5726, %v5808
        %v5811 = vmul.f32 %v5727, %v5808
        %5814 = vrot.lane.b32.xlu0 %v5810, 116
        %v5815 = vpop.permute.xlu0 %5814
        %5816 = vrot.lane.b32.xlu0 %v5811, 116
        %v5817 = vpop.permute.xlu0 %5816
        %v5818 = vrot.slane %v5815, 4
        %v5819 = vrot.slane %v5817, 4
        %v5820 = vsel %vm516, %v5818, %v5819
        %v5821 = vsel %vm4822, %v5815, %v5820
        %v5822 = vsel %vm4822, %v5817, %v5819
        %v5825 = vadd.f32 %v5797, %v5821
        %v5826 = vadd.f32 %v5798, %v5822
        %5827 = vset.pattern.permute.xlu0 40
        %5828 = vperm.xlu0 %5827, %v267
        %v5829 = vpop.permute.xlu0 %5828
        %v5831 = vunpack.c.l.s4 839922192
        %v5832 = vunpack.c.0.s8 %v5831
        %v5833 = vlaneseq
        %v5834 = vshrl.u32 %v5833, 7
        %v5835 = vsub.s32 %v5832, %v5834
        %v5836 = vrot.slane %v5829, %v5835
        %v5838 = vmul.f32 %v5726, %v5836
        %v5839 = vmul.f32 %v5727, %v5836
        %5842 = vrot.lane.b32.xlu0 %v5838, 112
        %v5843 = vpop.permute.xlu0 %5842
        %5844 = vrot.lane.b32.xlu0 %v5839, 112
        %v5845 = vpop.permute.xlu0 %5844
        %v5846 = vrot.slane %v5843, 4
        %v5847 = vrot.slane %v5845, 4
        %v5848 = vsel %vm516, %v5846, %v5847
        %v5849 = vsel %vm2186, %v5843, %v5848
        %v5850 = vsel %vm2186, %v5845, %v5847
        %v5853 = vadd.f32 %v5825, %v5849
        %v5854 = vadd.f32 %v5826, %v5850
        %5855 = vset.pattern.permute.xlu0 41
        %5856 = vperm.xlu0 %5855, %v267
        %v5857 = vpop.permute.xlu0 %5856
        %v5859 = vunpack.c.l.s4 839922192
        %v5860 = vunpack.c.0.s8 %v5859
        %v5861 = vlaneseq
        %v5862 = vshrl.u32 %v5861, 7
        %v5863 = vsub.s32 %v5860, %v5862
        %v5864 = vrot.slane %v5857, %v5863
        %v5866 = vmul.f32 %v5726, %v5864
        %v5867 = vmul.f32 %v5727, %v5864
        %5870 = vrot.lane.b32.xlu0 %v5866, 108
        %v5871 = vpop.permute.xlu0 %5870
        %5872 = vrot.lane.b32.xlu0 %v5867, 108
        %v5873 = vpop.permute.xlu0 %5872
        %v5874 = vrot.slane %v5871, 4
        %v5875 = vrot.slane %v5873, 4
        %v5876 = vsel %vm516, %v5874, %v5875
        %v5877 = vsel %vm2518, %v5871, %v5876
        %v5878 = vsel %vm2518, %v5873, %v5875
        %v5881 = vadd.f32 %v5853, %v5877
        %v5882 = vadd.f32 %v5854, %v5878
        %5883 = vset.pattern.permute.xlu0 42
        %5884 = vperm.xlu0 %5883, %v267
        %v5885 = vpop.permute.xlu0 %5884
        %v5887 = vunpack.c.l.s4 839922192
        %v5888 = vunpack.c.0.s8 %v5887
        %v5889 = vlaneseq
        %v5890 = vshrl.u32 %v5889, 7
        %v5891 = vsub.s32 %v5888, %v5890
        %v5892 = vrot.slane %v5885, %v5891
        %v5894 = vmul.f32 %v5726, %v5892
        %v5895 = vmul.f32 %v5727, %v5892
        %5898 = vrot.lane.b32.xlu0 %v5894, 104
        %v5899 = vpop.permute.xlu0 %5898
        %5900 = vrot.lane.b32.xlu0 %v5895, 104
        %v5901 = vpop.permute.xlu0 %5900
        %v5902 = vrot.slane %v5899, 4
        %v5903 = vrot.slane %v5901, 4
        %v5904 = vsel %vm516, %v5902, %v5903
        %v5905 = vsel %vm4907, %v5899, %v5904
        %v5906 = vsel %vm4907, %v5901, %v5903
        %v5909 = vadd.f32 %v5881, %v5905
        %v5910 = vadd.f32 %v5882, %v5906
        %5911 = vset.pattern.permute.xlu0 43
        %5912 = vperm.xlu0 %5911, %v267
        %v5913 = vpop.permute.xlu0 %5912
        %v5915 = vunpack.c.l.s4 839922192
        %v5916 = vunpack.c.0.s8 %v5915
        %v5917 = vlaneseq
        %v5918 = vshrl.u32 %v5917, 7
        %v5919 = vsub.s32 %v5916, %v5918
        %v5920 = vrot.slane %v5913, %v5919
        %v5922 = vmul.f32 %v5726, %v5920
        %v5923 = vmul.f32 %v5727, %v5920
        %5926 = vrot.lane.b32.xlu0 %v5922, 100
        %v5927 = vpop.permute.xlu0 %5926
        %5928 = vrot.lane.b32.xlu0 %v5923, 100
        %v5929 = vpop.permute.xlu0 %5928
        %v5930 = vrot.slane %v5927, 4
        %v5931 = vrot.slane %v5929, 4
        %v5932 = vsel %vm516, %v5930, %v5931
        %v5933 = vsel %vm4936, %v5927, %v5932
        %v5934 = vsel %vm4936, %v5929, %v5931
        %v5937 = vadd.f32 %v5909, %v5933
        %v5938 = vadd.f32 %v5910, %v5934
        %5939 = vset.pattern.permute.xlu0 44
        %5940 = vperm.xlu0 %5939, %v267
        %v5941 = vpop.permute.xlu0 %5940
        %v5943 = vunpack.c.l.s4 839922192
        %v5944 = vunpack.c.0.s8 %v5943
        %v5945 = vlaneseq
        %v5946 = vshrl.u32 %v5945, 7
        %v5947 = vsub.s32 %v5944, %v5946
        %v5948 = vrot.slane %v5941, %v5947
        %v5950 = vmul.f32 %v5726, %v5948
        %v5951 = vmul.f32 %v5727, %v5948
        %5954 = vrot.lane.b32.xlu0 %v5950, 96
        %v5955 = vpop.permute.xlu0 %5954
        %5956 = vrot.lane.b32.xlu0 %v5951, 96
        %v5957 = vpop.permute.xlu0 %5956
        %v5958 = vrot.slane %v5955, 4
        %v5959 = vrot.slane %v5957, 4
        %v5960 = vsel %vm516, %v5958, %v5959
        %v5961 = vsel %vm3937, %v5955, %v5960
        %v5962 = vsel %vm3937, %v5957, %v5959
        %v5965 = vadd.f32 %v5937, %v5961
        %v5966 = vadd.f32 %v5938, %v5962
        %v5967 = vld [vmem:[#allocation3 + $0x1c] sm:$0xff]
        %v5968 = vld [vmem:[#allocation3 + $0x24] sm:$0xff]
        %5969 = vset.pattern.permute.xlu0 45
        %5970 = vperm.xlu0 %5969, %v267
        %v5971 = vpop.permute.xlu0 %5970
        %v5973 = vunpack.c.l.s4 839922192
        %v5974 = vunpack.c.0.s8 %v5973
        %v5975 = vlaneseq
        %v5976 = vshrl.u32 %v5975, 7
        %v5977 = vsub.s32 %v5974, %v5976
        %v5978 = vrot.slane %v5971, %v5977
        %v5980 = vmul.f32 %v5967, %v5978
        %v5981 = vmul.f32 %v5968, %v5978
        %5984 = vrot.lane.b32.xlu0 %v5980, 64
        %v5985 = vpop.permute.xlu0 %5984
        %5986 = vrot.lane.b32.xlu0 %v5981, 64
        %v5987 = vpop.permute.xlu0 %5986
        %v5988 = vrot.slane %v5985, 4
        %v5989 = vrot.slane %v5987, 4
        %v5990 = vsel %vm516, %v5988, %v5989
        %v5991 = vsel %vm2767, %v5985, %v5990
        %v5992 = vsel %vm2767, %v5987, %v5989
        %v5995 = vadd.f32 %v5965, %v5991
        %v5996 = vadd.f32 %v5966, %v5992
        %5997 = vset.pattern.permute.xlu0 46
        %5998 = vperm.xlu0 %5997, %v267
        %v5999 = vpop.permute.xlu0 %5998
        %v6001 = vunpack.c.l.s4 839922192
        %v6002 = vunpack.c.0.s8 %v6001
        %v6003 = vlaneseq
        %v6004 = vshrl.u32 %v6003, 7
        %v6005 = vsub.s32 %v6002, %v6004
        %v6006 = vrot.slane %v5999, %v6005
        %v6008 = vmul.f32 %v5967, %v6006
        %v6009 = vmul.f32 %v5968, %v6006
        %6012 = vrot.lane.b32.xlu0 %v6008, 60
        %v6013 = vpop.permute.xlu0 %6012
        %6014 = vrot.lane.b32.xlu0 %v6009, 60
        %v6015 = vpop.permute.xlu0 %6014
        %v6016 = vrot.slane %v6013, 4
        %v6017 = vrot.slane %v6015, 4
        %v6018 = vsel %vm516, %v6016, %v6017
        %v6019 = vsel %vm3099, %v6013, %v6018
        %v6020 = vsel %vm3099, %v6015, %v6017
        %v6023 = vadd.f32 %v5995, %v6019
        %v6024 = vadd.f32 %v5996, %v6020
        %6025 = vset.pattern.permute.xlu0 47
        %6026 = vperm.xlu0 %6025, %v267
        %v6027 = vpop.permute.xlu0 %6026
        %v6029 = vunpack.c.l.s4 839922192
        %v6030 = vunpack.c.0.s8 %v6029
        %v6031 = vlaneseq
        %v6032 = vshrl.u32 %v6031, 7
        %v6033 = vsub.s32 %v6030, %v6032
        %v6034 = vrot.slane %v6027, %v6033
        %v6036 = vmul.f32 %v5967, %v6034
        %v6037 = vmul.f32 %v5968, %v6034
        %6040 = vrot.lane.b32.xlu0 %v6036, 56
        %v6041 = vpop.permute.xlu0 %6040
        %6042 = vrot.lane.b32.xlu0 %v6037, 56
        %v6043 = vpop.permute.xlu0 %6042
        %v6044 = vrot.slane %v6041, 4
        %v6045 = vrot.slane %v6043, 4
        %v6046 = vsel %vm516, %v6044, %v6045
        %v6047 = vsel %vm5051, %v6041, %v6046
        %v6048 = vsel %vm5051, %v6043, %v6045
        %v6051 = vadd.f32 %v6023, %v6047
        %v6052 = vadd.f32 %v6024, %v6048
        %6053 = vset.pattern.permute.xlu0 48
        %6054 = vperm.xlu0 %6053, %v267
        %v6055 = vpop.permute.xlu0 %6054
        %v6057 = vunpack.c.l.s4 839922192
        %v6058 = vunpack.c.0.s8 %v6057
        %v6059 = vlaneseq
        %v6060 = vshrl.u32 %v6059, 7
        %v6061 = vsub.s32 %v6058, %v6060
        %v6062 = vrot.slane %v6055, %v6061
        %v6064 = vmul.f32 %v5967, %v6062
        %v6065 = vmul.f32 %v5968, %v6062
        %6068 = vrot.lane.b32.xlu0 %v6064, 52
        %v6069 = vpop.permute.xlu0 %6068
        %6070 = vrot.lane.b32.xlu0 %v6065, 52
        %v6071 = vpop.permute.xlu0 %6070
        %v6072 = vrot.slane %v6069, 4
        %v6073 = vrot.slane %v6071, 4
        %v6074 = vsel %vm516, %v6072, %v6073
        %v6075 = vsel %vm5080, %v6069, %v6074
        %v6076 = vsel %vm5080, %v6071, %v6073
        %v6079 = vadd.f32 %v6051, %v6075
        %v6080 = vadd.f32 %v6052, %v6076
        %6081 = vset.pattern.permute.xlu0 49
        %6082 = vperm.xlu0 %6081, %v267
        %v6083 = vpop.permute.xlu0 %6082
        %v6085 = vunpack.c.l.s4 839922192
        %v6086 = vunpack.c.0.s8 %v6085
        %v6087 = vlaneseq
        %v6088 = vshrl.u32 %v6087, 7
        %v6089 = vsub.s32 %v6086, %v6088
        %v6090 = vrot.slane %v6083, %v6089
        %v6092 = vmul.f32 %v5967, %v6090
        %v6093 = vmul.f32 %v5968, %v6090
        %6096 = vrot.lane.b32.xlu0 %v6092, 48
        %v6097 = vpop.permute.xlu0 %6096
        %6098 = vrot.lane.b32.xlu0 %v6093, 48
        %v6099 = vpop.permute.xlu0 %6098
        %v6100 = vrot.slane %v6097, 4
        %v6101 = vrot.slane %v6099, 4
        %v6102 = vsel %vm516, %v6100, %v6101
        %v6103 = vsel %vm5109, %v6097, %v6102
        %v6104 = vsel %vm5109, %v6099, %v6101
        %v6107 = vadd.f32 %v6079, %v6103
        %v6108 = vadd.f32 %v6080, %v6104
        %6109 = vset.pattern.permute.xlu0 50
        %6110 = vperm.xlu0 %6109, %v267
        %v6111 = vpop.permute.xlu0 %6110
        %v6113 = vunpack.c.l.s4 839922192
        %v6114 = vunpack.c.0.s8 %v6113
        %v6115 = vlaneseq
        %v6116 = vshrl.u32 %v6115, 7
        %v6117 = vsub.s32 %v6114, %v6116
        %v6118 = vrot.slane %v6111, %v6117
        %v6120 = vmul.f32 %v5967, %v6118
        %v6121 = vmul.f32 %v5968, %v6118
        %6124 = vrot.lane.b32.xlu0 %v6120, 44
        %v6125 = vpop.permute.xlu0 %6124
        %6126 = vrot.lane.b32.xlu0 %v6121, 44
        %v6127 = vpop.permute.xlu0 %6126
        %v6128 = vrot.slane %v6125, 4
        %v6129 = vrot.slane %v6127, 4
        %v6130 = vsel %vm516, %v6128, %v6129
        %v6131 = vsel %vm5138, %v6125, %v6130
        %v6132 = vsel %vm5138, %v6127, %v6129
        %v6135 = vadd.f32 %v6107, %v6131
        %v6136 = vadd.f32 %v6108, %v6132
        %6137 = vset.pattern.permute.xlu0 51
        %6138 = vperm.xlu0 %6137, %v267
        %v6139 = vpop.permute.xlu0 %6138
        %v6141 = vunpack.c.l.s4 839922192
        %v6142 = vunpack.c.0.s8 %v6141
        %v6143 = vlaneseq
        %v6144 = vshrl.u32 %v6143, 7
        %v6145 = vsub.s32 %v6142, %v6144
        %v6146 = vrot.slane %v6139, %v6145
        %v6148 = vmul.f32 %v5967, %v6146
        %v6149 = vmul.f32 %v5968, %v6146
        %6152 = vrot.lane.b32.xlu0 %v6148, 40
        %v6153 = vpop.permute.xlu0 %6152
        %6154 = vrot.lane.b32.xlu0 %v6149, 40
        %v6155 = vpop.permute.xlu0 %6154
        %v6156 = vrot.slane %v6153, 4
        %v6157 = vrot.slane %v6155, 4
        %v6158 = vsel %vm516, %v6156, %v6157
        %v6159 = vsel %vm5167, %v6153, %v6158
        %v6160 = vsel %vm5167, %v6155, %v6157
        %v6163 = vadd.f32 %v6135, %v6159
        %v6164 = vadd.f32 %v6136, %v6160
        %6165 = vset.pattern.permute.xlu0 52
        %6166 = vperm.xlu0 %6165, %v267
        %v6167 = vpop.permute.xlu0 %6166
        %v6169 = vunpack.c.l.s4 839922192
        %v6170 = vunpack.c.0.s8 %v6169
        %v6171 = vlaneseq
        %v6172 = vshrl.u32 %v6171, 7
        %v6173 = vsub.s32 %v6170, %v6172
        %v6174 = vrot.slane %v6167, %v6173
        %v6176 = vmul.f32 %v5967, %v6174
        %v6177 = vmul.f32 %v5968, %v6174
        %6180 = vrot.lane.b32.xlu0 %v6176, 36
        %v6181 = vpop.permute.xlu0 %6180
        %6182 = vrot.lane.b32.xlu0 %v6177, 36
        %v6183 = vpop.permute.xlu0 %6182
        %v6184 = vrot.slane %v6181, 4
        %v6185 = vrot.slane %v6183, 4
        %v6186 = vsel %vm516, %v6184, %v6185
        %v6187 = vsel %vm5196, %v6181, %v6186
        %v6188 = vsel %vm5196, %v6183, %v6185
        %v6191 = vadd.f32 %v6163, %v6187
        %v6192 = vadd.f32 %v6164, %v6188
        %6193 = vset.pattern.permute.xlu0 53
        %6194 = vperm.xlu0 %6193, %v267
        %v6195 = vpop.permute.xlu0 %6194
        %v6197 = vunpack.c.l.s4 839922192
        %v6198 = vunpack.c.0.s8 %v6197
        %v6199 = vlaneseq
        %v6200 = vshrl.u32 %v6199, 7
        %v6201 = vsub.s32 %v6198, %v6200
        %v6202 = vrot.slane %v6195, %v6201
        %v6204 = vmul.f32 %v5967, %v6202
        %v6205 = vmul.f32 %v5968, %v6202
        %6208 = vrot.lane.b32.xlu0 %v6204, 32
        %v6209 = vpop.permute.xlu0 %6208
        %6210 = vrot.lane.b32.xlu0 %v6205, 32
        %v6211 = vpop.permute.xlu0 %6210
        %v6212 = vrot.slane %v6209, 4
        %v6213 = vrot.slane %v6211, 4
        %v6214 = vsel %vm516, %v6212, %v6213
        %v6215 = vsel %vm1604, %v6209, %v6214
        %v6216 = vsel %vm1604, %v6211, %v6213
        %v6219 = vadd.f32 %v6191, %v6215
        %v6220 = vadd.f32 %v6192, %v6216
        %v6221 = vld [vmem:[#allocation3 + $0x24] sm:$0xff]
        %v6222 = vld [vmem:[#allocation3 + $0x2c] sm:$0xff]
        %6223 = vset.pattern.permute.xlu0 54
        %6224 = vperm.xlu0 %6223, %v267
        %v6225 = vpop.permute.xlu0 %6224
        %v6227 = vunpack.c.l.s4 839922192
        %v6228 = vunpack.c.0.s8 %v6227
        %v6229 = vlaneseq
        %v6230 = vshrl.u32 %v6229, 7
        %v6231 = vsub.s32 %v6228, %v6230
        %v6232 = vrot.slane %v6225, %v6231
        %v6234 = vmul.f32 %v6221, %v6232
        %v6235 = vmul.f32 %v6222, %v6232
        %v6236 = vadd.f32 %v6219, %v6234
        %v6237 = vadd.f32 %v6220, %v6235
        %6238 = vset.pattern.permute.xlu0 55
        %6239 = vperm.xlu0 %6238, %v267
        %v6240 = vpop.permute.xlu0 %6239
        %v6242 = vunpack.c.l.s4 839922192
        %v6243 = vunpack.c.0.s8 %v6242
        %v6244 = vlaneseq
        %v6245 = vshrl.u32 %v6244, 7
        %v6246 = vsub.s32 %v6243, %v6245
        %v6247 = vrot.slane %v6240, %v6246
        %v6249 = vmul.f32 %v6221, %v6247
        %v6250 = vmul.f32 %v6222, %v6247
        %6253 = vrot.lane.b32.xlu0 %v6249, 124
        %v6254 = vpop.permute.xlu0 %6253
        %6255 = vrot.lane.b32.xlu0 %v6250, 124
        %v6256 = vpop.permute.xlu0 %6255
        %v6257 = vrot.slane %v6254, 4
        %v6258 = vrot.slane %v6256, 4
        %v6259 = vsel %vm516, %v6257, %v6258
        %v6260 = vsel %vm767, %v6254, %v6259
        %v6261 = vsel %vm767, %v6256, %v6258
        %v6264 = vadd.f32 %v6236, %v6260
        %v6265 = vadd.f32 %v6237, %v6261
        %6266 = vset.pattern.permute.xlu0 56
        %6267 = vperm.xlu0 %6266, %v267
        %v6268 = vpop.permute.xlu0 %6267
        %v6270 = vunpack.c.l.s4 839922192
        %v6271 = vunpack.c.0.s8 %v6270
        %v6272 = vlaneseq
        %v6273 = vshrl.u32 %v6272, 7
        %v6274 = vsub.s32 %v6271, %v6273
        %v6275 = vrot.slane %v6268, %v6274
        %v6277 = vmul.f32 %v6221, %v6275
        %v6278 = vmul.f32 %v6222, %v6275
        %6281 = vrot.lane.b32.xlu0 %v6277, 120
        %v6282 = vpop.permute.xlu0 %6281
        %6283 = vrot.lane.b32.xlu0 %v6278, 120
        %v6284 = vpop.permute.xlu0 %6283
        %v6285 = vrot.slane %v6282, 4
        %v6286 = vrot.slane %v6284, 4
        %v6287 = vsel %vm516, %v6285, %v6286
        %v6288 = vsel %vm4793, %v6282, %v6287
        %v6289 = vsel %vm4793, %v6284, %v6286
        %v6292 = vadd.f32 %v6264, %v6288
        %v6293 = vadd.f32 %v6265, %v6289
        %6294 = vset.pattern.permute.xlu0 57
        %6295 = vperm.xlu0 %6294, %v267
        %v6296 = vpop.permute.xlu0 %6295
        %v6298 = vunpack.c.l.s4 839922192
        %v6299 = vunpack.c.0.s8 %v6298
        %v6300 = vlaneseq
        %v6301 = vshrl.u32 %v6300, 7
        %v6302 = vsub.s32 %v6299, %v6301
        %v6303 = vrot.slane %v6296, %v6302
        %v6305 = vmul.f32 %v6221, %v6303
        %v6306 = vmul.f32 %v6222, %v6303
        %6309 = vrot.lane.b32.xlu0 %v6305, 116
        %v6310 = vpop.permute.xlu0 %6309
        %6311 = vrot.lane.b32.xlu0 %v6306, 116
        %v6312 = vpop.permute.xlu0 %6311
        %v6313 = vrot.slane %v6310, 4
        %v6314 = vrot.slane %v6312, 4
        %v6315 = vsel %vm516, %v6313, %v6314
        %v6316 = vsel %vm4822, %v6310, %v6315
        %v6317 = vsel %vm4822, %v6312, %v6314
        %v6320 = vadd.f32 %v6292, %v6316
        %v6321 = vadd.f32 %v6293, %v6317
        %6322 = vset.pattern.permute.xlu0 58
        %6323 = vperm.xlu0 %6322, %v267
        %v6324 = vpop.permute.xlu0 %6323
        %v6326 = vunpack.c.l.s4 839922192
        %v6327 = vunpack.c.0.s8 %v6326
        %v6328 = vlaneseq
        %v6329 = vshrl.u32 %v6328, 7
        %v6330 = vsub.s32 %v6327, %v6329
        %v6331 = vrot.slane %v6324, %v6330
        %v6333 = vmul.f32 %v6221, %v6331
        %v6334 = vmul.f32 %v6222, %v6331
        %6337 = vrot.lane.b32.xlu0 %v6333, 112
        %v6338 = vpop.permute.xlu0 %6337
        %6339 = vrot.lane.b32.xlu0 %v6334, 112
        %v6340 = vpop.permute.xlu0 %6339
        %v6341 = vrot.slane %v6338, 4
        %v6342 = vrot.slane %v6340, 4
        %v6343 = vsel %vm516, %v6341, %v6342
        %v6344 = vsel %vm2186, %v6338, %v6343
        %v6345 = vsel %vm2186, %v6340, %v6342
        %v6348 = vadd.f32 %v6320, %v6344
        %v6349 = vadd.f32 %v6321, %v6345
        %6350 = vset.pattern.permute.xlu0 59
        %6351 = vperm.xlu0 %6350, %v267
        %v6352 = vpop.permute.xlu0 %6351
        %v6354 = vunpack.c.l.s4 839922192
        %v6355 = vunpack.c.0.s8 %v6354
        %v6356 = vlaneseq
        %v6357 = vshrl.u32 %v6356, 7
        %v6358 = vsub.s32 %v6355, %v6357
        %v6359 = vrot.slane %v6352, %v6358
        %v6361 = vmul.f32 %v6221, %v6359
        %v6362 = vmul.f32 %v6222, %v6359
        %6365 = vrot.lane.b32.xlu0 %v6361, 108
        %v6366 = vpop.permute.xlu0 %6365
        %6367 = vrot.lane.b32.xlu0 %v6362, 108
        %v6368 = vpop.permute.xlu0 %6367
        %v6369 = vrot.slane %v6366, 4
        %v6370 = vrot.slane %v6368, 4
        %v6371 = vsel %vm516, %v6369, %v6370
        %v6372 = vsel %vm2518, %v6366, %v6371
        %v6373 = vsel %vm2518, %v6368, %v6370
        %v6376 = vadd.f32 %v6348, %v6372
        %v6377 = vadd.f32 %v6349, %v6373
        %6378 = vset.pattern.permute.xlu0 60
        %6379 = vperm.xlu0 %6378, %v267
        %v6380 = vpop.permute.xlu0 %6379
        %v6382 = vunpack.c.l.s4 839922192
        %v6383 = vunpack.c.0.s8 %v6382
        %v6384 = vlaneseq
        %v6385 = vshrl.u32 %v6384, 7
        %v6386 = vsub.s32 %v6383, %v6385
        %v6387 = vrot.slane %v6380, %v6386
        %v6389 = vmul.f32 %v6221, %v6387
        %v6390 = vmul.f32 %v6222, %v6387
        %6393 = vrot.lane.b32.xlu0 %v6389, 104
        %v6394 = vpop.permute.xlu0 %6393
        %6395 = vrot.lane.b32.xlu0 %v6390, 104
        %v6396 = vpop.permute.xlu0 %6395
        %v6397 = vrot.slane %v6394, 4
        %v6398 = vrot.slane %v6396, 4
        %v6399 = vsel %vm516, %v6397, %v6398
        %v6400 = vsel %vm4907, %v6394, %v6399
        %v6401 = vsel %vm4907, %v6396, %v6398
        %v6404 = vadd.f32 %v6376, %v6400
        %v6405 = vadd.f32 %v6377, %v6401
        %6406 = vset.pattern.permute.xlu0 61
        %6407 = vperm.xlu0 %6406, %v267
        %v6408 = vpop.permute.xlu0 %6407
        %v6410 = vunpack.c.l.s4 839922192
        %v6411 = vunpack.c.0.s8 %v6410
        %v6412 = vlaneseq
        %v6413 = vshrl.u32 %v6412, 7
        %v6414 = vsub.s32 %v6411, %v6413
        %v6415 = vrot.slane %v6408, %v6414
        %v6417 = vmul.f32 %v6221, %v6415
        %v6418 = vmul.f32 %v6222, %v6415
        %6421 = vrot.lane.b32.xlu0 %v6417, 100
        %v6422 = vpop.permute.xlu0 %6421
        %6423 = vrot.lane.b32.xlu0 %v6418, 100
        %v6424 = vpop.permute.xlu0 %6423
        %v6425 = vrot.slane %v6422, 4
        %v6426 = vrot.slane %v6424, 4
        %v6427 = vsel %vm516, %v6425, %v6426
        %v6428 = vsel %vm4936, %v6422, %v6427
        %v6429 = vsel %vm4936, %v6424, %v6426
        %v6432 = vadd.f32 %v6404, %v6428
        %v6433 = vadd.f32 %v6405, %v6429
        %6434 = vset.pattern.permute.xlu0 62
        %6435 = vperm.xlu0 %6434, %v267
        %v6436 = vpop.permute.xlu0 %6435
        %v6438 = vunpack.c.l.s4 839922192
        %v6439 = vunpack.c.0.s8 %v6438
        %v6440 = vlaneseq
        %v6441 = vshrl.u32 %v6440, 7
        %v6442 = vsub.s32 %v6439, %v6441
        %v6443 = vrot.slane %v6436, %v6442
        %v6445 = vmul.f32 %v6221, %v6443
        %v6446 = vmul.f32 %v6222, %v6443
        %6449 = vrot.lane.b32.xlu0 %v6445, 96
        %v6450 = vpop.permute.xlu0 %6449
        %6451 = vrot.lane.b32.xlu0 %v6446, 96
        %v6452 = vpop.permute.xlu0 %6451
        %v6453 = vrot.slane %v6450, 4
        %v6454 = vrot.slane %v6452, 4
        %v6455 = vsel %vm516, %v6453, %v6454
        %v6456 = vsel %vm3937, %v6450, %v6455
        %v6457 = vsel %vm3937, %v6452, %v6454
        %v6460 = vadd.f32 %v6432, %v6456
        %v6461 = vadd.f32 %v6433, %v6457
        %v6462 = vld [vmem:[#allocation3 + $0x28] sm:$0xff]
        %v6463 = vld [vmem:[#allocation3 + $0x30] sm:$0xff]
        %6464 = vset.pattern.permute.xlu0 63
        %6465 = vperm.xlu0 %6464, %v267
        %v6466 = vpop.permute.xlu0 %6465
        %v6468 = vunpack.c.l.s4 839922192
        %v6469 = vunpack.c.0.s8 %v6468
        %v6470 = vlaneseq
        %v6471 = vshrl.u32 %v6470, 7
        %v6472 = vsub.s32 %v6469, %v6471
        %v6473 = vrot.slane %v6466, %v6472
        %v6475 = vmul.f32 %v6462, %v6473
        %v6476 = vmul.f32 %v6463, %v6473
        %6479 = vrot.lane.b32.xlu0 %v6475, 64
        %v6480 = vpop.permute.xlu0 %6479
        %6481 = vrot.lane.b32.xlu0 %v6476, 64
        %v6482 = vpop.permute.xlu0 %6481
        %v6483 = vrot.slane %v6480, 4
        %v6484 = vrot.slane %v6482, 4
        %v6485 = vsel %vm516, %v6483, %v6484
        %v6486 = vsel %vm2767, %v6480, %v6485
        %v6487 = vsel %vm2767, %v6482, %v6484
        %v6490 = vadd.f32 %v6460, %v6486
        %v6491 = vadd.f32 %v6461, %v6487
        %6492 = vset.pattern.permute.xlu0 64
        %6493 = vperm.xlu0 %6492, %v267
        %v6494 = vpop.permute.xlu0 %6493
        %v6496 = vunpack.c.l.s4 839922192
        %v6497 = vunpack.c.0.s8 %v6496
        %v6498 = vlaneseq
        %v6499 = vshrl.u32 %v6498, 7
        %v6500 = vsub.s32 %v6497, %v6499
        %v6501 = vrot.slane %v6494, %v6500
        %v6503 = vmul.f32 %v6462, %v6501
        %v6504 = vmul.f32 %v6463, %v6501
        %6507 = vrot.lane.b32.xlu0 %v6503, 60
        %v6508 = vpop.permute.xlu0 %6507
        %6509 = vrot.lane.b32.xlu0 %v6504, 60
        %v6510 = vpop.permute.xlu0 %6509
        %v6511 = vrot.slane %v6508, 4
        %v6512 = vrot.slane %v6510, 4
        %v6513 = vsel %vm516, %v6511, %v6512
        %v6514 = vsel %vm3099, %v6508, %v6513
        %v6515 = vsel %vm3099, %v6510, %v6512
        %v6518 = vadd.f32 %v6490, %v6514
        %v6519 = vadd.f32 %v6491, %v6515
        %6520 = vset.pattern.permute.xlu0 65
        %6521 = vperm.xlu0 %6520, %v267
        %v6522 = vpop.permute.xlu0 %6521
        %v6524 = vunpack.c.l.s4 839922192
        %v6525 = vunpack.c.0.s8 %v6524
        %v6526 = vlaneseq
        %v6527 = vshrl.u32 %v6526, 7
        %v6528 = vsub.s32 %v6525, %v6527
        %v6529 = vrot.slane %v6522, %v6528
        %v6531 = vmul.f32 %v6462, %v6529
        %v6532 = vmul.f32 %v6463, %v6529
        %6535 = vrot.lane.b32.xlu0 %v6531, 56
        %v6536 = vpop.permute.xlu0 %6535
        %6537 = vrot.lane.b32.xlu0 %v6532, 56
        %v6538 = vpop.permute.xlu0 %6537
        %v6539 = vrot.slane %v6536, 4
        %v6540 = vrot.slane %v6538, 4
        %v6541 = vsel %vm516, %v6539, %v6540
        %v6542 = vsel %vm5051, %v6536, %v6541
        %v6543 = vsel %vm5051, %v6538, %v6540
        %v6546 = vadd.f32 %v6518, %v6542
        %v6547 = vadd.f32 %v6519, %v6543
        %6548 = vset.pattern.permute.xlu0 66
        %6549 = vperm.xlu0 %6548, %v267
        %v6550 = vpop.permute.xlu0 %6549
        %v6552 = vunpack.c.l.s4 839922192
        %v6553 = vunpack.c.0.s8 %v6552
        %v6554 = vlaneseq
        %v6555 = vshrl.u32 %v6554, 7
        %v6556 = vsub.s32 %v6553, %v6555
        %v6557 = vrot.slane %v6550, %v6556
        %v6559 = vmul.f32 %v6462, %v6557
        %v6560 = vmul.f32 %v6463, %v6557
        %6563 = vrot.lane.b32.xlu0 %v6559, 52
        %v6564 = vpop.permute.xlu0 %6563
        %6565 = vrot.lane.b32.xlu0 %v6560, 52
        %v6566 = vpop.permute.xlu0 %6565
        %v6567 = vrot.slane %v6564, 4
        %v6568 = vrot.slane %v6566, 4
        %v6569 = vsel %vm516, %v6567, %v6568
        %v6570 = vsel %vm5080, %v6564, %v6569
        %v6571 = vsel %vm5080, %v6566, %v6568
        %v6574 = vadd.f32 %v6546, %v6570
        %v6575 = vadd.f32 %v6547, %v6571
        %6576 = vset.pattern.permute.xlu0 67
        %6577 = vperm.xlu0 %6576, %v267
        %v6578 = vpop.permute.xlu0 %6577
        %v6580 = vunpack.c.l.s4 839922192
        %v6581 = vunpack.c.0.s8 %v6580
        %v6582 = vlaneseq
        %v6583 = vshrl.u32 %v6582, 7
        %v6584 = vsub.s32 %v6581, %v6583
        %v6585 = vrot.slane %v6578, %v6584
        %v6587 = vmul.f32 %v6462, %v6585
        %v6588 = vmul.f32 %v6463, %v6585
        %6591 = vrot.lane.b32.xlu0 %v6587, 48
        %v6592 = vpop.permute.xlu0 %6591
        %6593 = vrot.lane.b32.xlu0 %v6588, 48
        %v6594 = vpop.permute.xlu0 %6593
        %v6595 = vrot.slane %v6592, 4
        %v6596 = vrot.slane %v6594, 4
        %v6597 = vsel %vm516, %v6595, %v6596
        %v6598 = vsel %vm5109, %v6592, %v6597
        %v6599 = vsel %vm5109, %v6594, %v6596
        %v6602 = vadd.f32 %v6574, %v6598
        %v6603 = vadd.f32 %v6575, %v6599
        %6604 = vset.pattern.permute.xlu0 68
        %6605 = vperm.xlu0 %6604, %v267
        %v6606 = vpop.permute.xlu0 %6605
        %v6608 = vunpack.c.l.s4 839922192
        %v6609 = vunpack.c.0.s8 %v6608
        %v6610 = vlaneseq
        %v6611 = vshrl.u32 %v6610, 7
        %v6612 = vsub.s32 %v6609, %v6611
        %v6613 = vrot.slane %v6606, %v6612
        %v6615 = vmul.f32 %v6462, %v6613
        %v6616 = vmul.f32 %v6463, %v6613
        %6619 = vrot.lane.b32.xlu0 %v6615, 44
        %v6620 = vpop.permute.xlu0 %6619
        %6621 = vrot.lane.b32.xlu0 %v6616, 44
        %v6622 = vpop.permute.xlu0 %6621
        %v6623 = vrot.slane %v6620, 4
        %v6624 = vrot.slane %v6622, 4
        %v6625 = vsel %vm516, %v6623, %v6624
        %v6626 = vsel %vm5138, %v6620, %v6625
        %v6627 = vsel %vm5138, %v6622, %v6624
        %v6630 = vadd.f32 %v6602, %v6626
        %v6631 = vadd.f32 %v6603, %v6627
        %6632 = vset.pattern.permute.xlu0 69
        %6633 = vperm.xlu0 %6632, %v267
        %v6634 = vpop.permute.xlu0 %6633
        %v6636 = vunpack.c.l.s4 839922192
        %v6637 = vunpack.c.0.s8 %v6636
        %v6638 = vlaneseq
        %v6639 = vshrl.u32 %v6638, 7
        %v6640 = vsub.s32 %v6637, %v6639
        %v6641 = vrot.slane %v6634, %v6640
        %v6643 = vmul.f32 %v6462, %v6641
        %v6644 = vmul.f32 %v6463, %v6641
        %6647 = vrot.lane.b32.xlu0 %v6643, 40
        %v6648 = vpop.permute.xlu0 %6647
        %6649 = vrot.lane.b32.xlu0 %v6644, 40
        %v6650 = vpop.permute.xlu0 %6649
        %v6651 = vrot.slane %v6648, 4
        %v6652 = vrot.slane %v6650, 4
        %v6653 = vsel %vm516, %v6651, %v6652
        %v6654 = vsel %vm5167, %v6648, %v6653
        %v6655 = vsel %vm5167, %v6650, %v6652
        %v6658 = vadd.f32 %v6630, %v6654
        %v6659 = vadd.f32 %v6631, %v6655
        %6660 = vset.pattern.permute.xlu0 70
        %6661 = vperm.xlu0 %6660, %v267
        %v6662 = vpop.permute.xlu0 %6661
        %v6664 = vunpack.c.l.s4 839922192
        %v6665 = vunpack.c.0.s8 %v6664
        %v6666 = vlaneseq
        %v6667 = vshrl.u32 %v6666, 7
        %v6668 = vsub.s32 %v6665, %v6667
        %v6669 = vrot.slane %v6662, %v6668
        %v6671 = vmul.f32 %v6462, %v6669
        %v6672 = vmul.f32 %v6463, %v6669
        %6675 = vrot.lane.b32.xlu0 %v6671, 36
        %v6676 = vpop.permute.xlu0 %6675
        %6677 = vrot.lane.b32.xlu0 %v6672, 36
        %v6678 = vpop.permute.xlu0 %6677
        %v6679 = vrot.slane %v6676, 4
        %v6680 = vrot.slane %v6678, 4
        %v6681 = vsel %vm516, %v6679, %v6680
        %v6682 = vsel %vm5196, %v6676, %v6681
        %v6683 = vsel %vm5196, %v6678, %v6680
        %v6686 = vadd.f32 %v6658, %v6682
        %v6687 = vadd.f32 %v6659, %v6683
        %6688 = vset.pattern.permute.xlu0 71
        %6689 = vperm.xlu0 %6688, %v267
        %v6690 = vpop.permute.xlu0 %6689
        %v6692 = vunpack.c.l.s4 839922192
        %v6693 = vunpack.c.0.s8 %v6692
        %v6694 = vlaneseq
        %v6695 = vshrl.u32 %v6694, 7
        %v6696 = vsub.s32 %v6693, %v6695
        %v6697 = vrot.slane %v6690, %v6696
        %v6699 = vmul.f32 %v6462, %v6697
        %v6700 = vmul.f32 %v6463, %v6697
        %6703 = vrot.lane.b32.xlu0 %v6699, 32
        %v6704 = vpop.permute.xlu0 %6703
        %6705 = vrot.lane.b32.xlu0 %v6700, 32
        %v6706 = vpop.permute.xlu0 %6705
        %v6707 = vrot.slane %v6704, 4
        %v6708 = vrot.slane %v6706, 4
        %v6709 = vsel %vm516, %v6707, %v6708
        %v6710 = vsel %vm1604, %v6704, %v6709
        %v6711 = vsel %vm1604, %v6706, %v6708
        %v6714 = vadd.f32 %v6686, %v6710
        %v6715 = vadd.f32 %v6687, %v6711
        %v6716 = vld [vmem:[#allocation3 + $0x30] sm:$0xff]
        %v6717 = vld [vmem:[#allocation3 + $0x38] sm:$0xff]
        %6718 = vset.pattern.permute.xlu0 72
        %6719 = vperm.xlu0 %6718, %v267
        %v6720 = vpop.permute.xlu0 %6719
        %v6722 = vunpack.c.l.s4 839922192
        %v6723 = vunpack.c.0.s8 %v6722
        %v6724 = vlaneseq
        %v6725 = vshrl.u32 %v6724, 7
        %v6726 = vsub.s32 %v6723, %v6725
        %v6727 = vrot.slane %v6720, %v6726
        %v6729 = vmul.f32 %v6716, %v6727
        %v6730 = vmul.f32 %v6717, %v6727
        %v6731 = vadd.f32 %v6714, %v6729
        %v6732 = vadd.f32 %v6715, %v6730
        %6733 = vset.pattern.permute.xlu0 73
        %6734 = vperm.xlu0 %6733, %v267
        %v6735 = vpop.permute.xlu0 %6734
        %v6737 = vunpack.c.l.s4 839922192
        %v6738 = vunpack.c.0.s8 %v6737
        %v6739 = vlaneseq
        %v6740 = vshrl.u32 %v6739, 7
        %v6741 = vsub.s32 %v6738, %v6740
        %v6742 = vrot.slane %v6735, %v6741
        %v6744 = vmul.f32 %v6716, %v6742
        %v6745 = vmul.f32 %v6717, %v6742
        %6748 = vrot.lane.b32.xlu0 %v6744, 124
        %v6749 = vpop.permute.xlu0 %6748
        %6750 = vrot.lane.b32.xlu0 %v6745, 124
        %v6751 = vpop.permute.xlu0 %6750
        %v6752 = vrot.slane %v6749, 4
        %v6753 = vrot.slane %v6751, 4
        %v6754 = vsel %vm516, %v6752, %v6753
        %v6755 = vsel %vm767, %v6749, %v6754
        %v6756 = vsel %vm767, %v6751, %v6753
        %v6759 = vadd.f32 %v6731, %v6755
        %v6760 = vadd.f32 %v6732, %v6756
        %6761 = vset.pattern.permute.xlu0 74
        %6762 = vperm.xlu0 %6761, %v267
        %v6763 = vpop.permute.xlu0 %6762
        %v6765 = vunpack.c.l.s4 839922192
        %v6766 = vunpack.c.0.s8 %v6765
        %v6767 = vlaneseq
        %v6768 = vshrl.u32 %v6767, 7
        %v6769 = vsub.s32 %v6766, %v6768
        %v6770 = vrot.slane %v6763, %v6769
        %v6772 = vmul.f32 %v6716, %v6770
        %v6773 = vmul.f32 %v6717, %v6770
        %6776 = vrot.lane.b32.xlu0 %v6772, 120
        %v6777 = vpop.permute.xlu0 %6776
        %6778 = vrot.lane.b32.xlu0 %v6773, 120
        %v6779 = vpop.permute.xlu0 %6778
        %v6780 = vrot.slane %v6777, 4
        %v6781 = vrot.slane %v6779, 4
        %v6782 = vsel %vm516, %v6780, %v6781
        %v6783 = vsel %vm4793, %v6777, %v6782
        %v6784 = vsel %vm4793, %v6779, %v6781
        %v6787 = vadd.f32 %v6759, %v6783
        %v6788 = vadd.f32 %v6760, %v6784
        %6789 = vset.pattern.permute.xlu0 75
        %6790 = vperm.xlu0 %6789, %v267
        %v6791 = vpop.permute.xlu0 %6790
        %v6793 = vunpack.c.l.s4 839922192
        %v6794 = vunpack.c.0.s8 %v6793
        %v6795 = vlaneseq
        %v6796 = vshrl.u32 %v6795, 7
        %v6797 = vsub.s32 %v6794, %v6796
        %v6798 = vrot.slane %v6791, %v6797
        %v6800 = vmul.f32 %v6716, %v6798
        %v6801 = vmul.f32 %v6717, %v6798
        %6804 = vrot.lane.b32.xlu0 %v6800, 116
        %v6805 = vpop.permute.xlu0 %6804
        %6806 = vrot.lane.b32.xlu0 %v6801, 116
        %v6807 = vpop.permute.xlu0 %6806
        %v6808 = vrot.slane %v6805, 4
        %v6809 = vrot.slane %v6807, 4
        %v6810 = vsel %vm516, %v6808, %v6809
        %v6811 = vsel %vm4822, %v6805, %v6810
        %v6812 = vsel %vm4822, %v6807, %v6809
        %v6815 = vadd.f32 %v6787, %v6811
        %v6816 = vadd.f32 %v6788, %v6812
        %6817 = vset.pattern.permute.xlu0 76
        %6818 = vperm.xlu0 %6817, %v267
        %v6819 = vpop.permute.xlu0 %6818
        %v6821 = vunpack.c.l.s4 839922192
        %v6822 = vunpack.c.0.s8 %v6821
        %v6823 = vlaneseq
        %v6824 = vshrl.u32 %v6823, 7
        %v6825 = vsub.s32 %v6822, %v6824
        %v6826 = vrot.slane %v6819, %v6825
        %v6828 = vmul.f32 %v6716, %v6826
        %v6829 = vmul.f32 %v6717, %v6826
        %6832 = vrot.lane.b32.xlu0 %v6828, 112
        %v6833 = vpop.permute.xlu0 %6832
        %6834 = vrot.lane.b32.xlu0 %v6829, 112
        %v6835 = vpop.permute.xlu0 %6834
        %v6836 = vrot.slane %v6833, 4
        %v6837 = vrot.slane %v6835, 4
        %v6838 = vsel %vm516, %v6836, %v6837
        %v6839 = vsel %vm2186, %v6833, %v6838
        %v6840 = vsel %vm2186, %v6835, %v6837
        %v6843 = vadd.f32 %v6815, %v6839
        %v6844 = vadd.f32 %v6816, %v6840
        %6845 = vset.pattern.permute.xlu0 77
        %6846 = vperm.xlu0 %6845, %v267
        %v6847 = vpop.permute.xlu0 %6846
        %v6849 = vunpack.c.l.s4 839922192
        %v6850 = vunpack.c.0.s8 %v6849
        %v6851 = vlaneseq
        %v6852 = vshrl.u32 %v6851, 7
        %v6853 = vsub.s32 %v6850, %v6852
        %v6854 = vrot.slane %v6847, %v6853
        %v6856 = vmul.f32 %v6716, %v6854
        %v6857 = vmul.f32 %v6717, %v6854
        %6860 = vrot.lane.b32.xlu0 %v6856, 108
        %v6861 = vpop.permute.xlu0 %6860
        %6862 = vrot.lane.b32.xlu0 %v6857, 108
        %v6863 = vpop.permute.xlu0 %6862
        %v6864 = vrot.slane %v6861, 4
        %v6865 = vrot.slane %v6863, 4
        %v6866 = vsel %vm516, %v6864, %v6865
        %v6867 = vsel %vm2518, %v6861, %v6866
        %v6868 = vsel %vm2518, %v6863, %v6865
        %v6871 = vadd.f32 %v6843, %v6867
        %v6872 = vadd.f32 %v6844, %v6868
        %6873 = vset.pattern.permute.xlu0 78
        %6874 = vperm.xlu0 %6873, %v267
        %v6875 = vpop.permute.xlu0 %6874
        %v6877 = vunpack.c.l.s4 839922192
        %v6878 = vunpack.c.0.s8 %v6877
        %v6879 = vlaneseq
        %v6880 = vshrl.u32 %v6879, 7
        %v6881 = vsub.s32 %v6878, %v6880
        %v6882 = vrot.slane %v6875, %v6881
        %v6884 = vmul.f32 %v6716, %v6882
        %v6885 = vmul.f32 %v6717, %v6882
        %6888 = vrot.lane.b32.xlu0 %v6884, 104
        %v6889 = vpop.permute.xlu0 %6888
        %6890 = vrot.lane.b32.xlu0 %v6885, 104
        %v6891 = vpop.permute.xlu0 %6890
        %v6892 = vrot.slane %v6889, 4
        %v6893 = vrot.slane %v6891, 4
        %v6894 = vsel %vm516, %v6892, %v6893
        %v6895 = vsel %vm4907, %v6889, %v6894
        %v6896 = vsel %vm4907, %v6891, %v6893
        %v6899 = vadd.f32 %v6871, %v6895
        %v6900 = vadd.f32 %v6872, %v6896
        %6901 = vset.pattern.permute.xlu0 79
        %6902 = vperm.xlu0 %6901, %v267
        %v6903 = vpop.permute.xlu0 %6902
        %v6905 = vunpack.c.l.s4 839922192
        %v6906 = vunpack.c.0.s8 %v6905
        %v6907 = vlaneseq
        %v6908 = vshrl.u32 %v6907, 7
        %v6909 = vsub.s32 %v6906, %v6908
        %v6910 = vrot.slane %v6903, %v6909
        %v6912 = vmul.f32 %v6716, %v6910
        %v6913 = vmul.f32 %v6717, %v6910
        %6916 = vrot.lane.b32.xlu0 %v6912, 100
        %v6917 = vpop.permute.xlu0 %6916
        %6918 = vrot.lane.b32.xlu0 %v6913, 100
        %v6919 = vpop.permute.xlu0 %6918
        %v6920 = vrot.slane %v6917, 4
        %v6921 = vrot.slane %v6919, 4
        %v6922 = vsel %vm516, %v6920, %v6921
        %v6923 = vsel %vm4936, %v6917, %v6922
        %v6924 = vsel %vm4936, %v6919, %v6921
        %v6927 = vadd.f32 %v6899, %v6923
        %v6928 = vadd.f32 %v6900, %v6924
        %6929 = vset.pattern.permute.xlu0 80
        %6930 = vperm.xlu0 %6929, %v267
        %v6931 = vpop.permute.xlu0 %6930
        %v6933 = vunpack.c.l.s4 839922192
        %v6934 = vunpack.c.0.s8 %v6933
        %v6935 = vlaneseq
        %v6936 = vshrl.u32 %v6935, 7
        %v6937 = vsub.s32 %v6934, %v6936
        %v6938 = vrot.slane %v6931, %v6937
        %v6940 = vmul.f32 %v6716, %v6938
        %v6941 = vmul.f32 %v6717, %v6938
        %6944 = vrot.lane.b32.xlu0 %v6940, 96
        %v6945 = vpop.permute.xlu0 %6944
        %6946 = vrot.lane.b32.xlu0 %v6941, 96
        %v6947 = vpop.permute.xlu0 %6946
        %v6948 = vrot.slane %v6945, 4
        %v6949 = vrot.slane %v6947, 4
        %v6950 = vsel %vm516, %v6948, %v6949
        %v6951 = vsel %vm3937, %v6945, %v6950
        %v6952 = vsel %vm3937, %v6947, %v6949
        %v6955 = vadd.f32 %v6927, %v6951
        %v6956 = vadd.f32 %v6928, %v6952
        %6958 = vset.pattern.permute.xlu0 0
        %6959 = vperm.xlu0 %6958, %v268
        %v6960 = vpop.permute.xlu0 %6959
        %v6962 = vunpack.c.l.s4 839922192
        %v6963 = vunpack.c.0.s8 %v6962
        %v6964 = vlaneseq
        %v6965 = vshrl.u32 %v6964, 7
        %v6966 = vsub.s32 %v6963, %v6965
        %v6967 = vrot.slane %v6960, %v6966
        %v6969 = vadd.f32 %v6955, %v6967
        %v6970 = vadd.f32 %v6956, %v6967
        %6972 = vset.pattern.permute.xlu0 0
        %6973 = vperm.xlu0 %6972, %v269
        %v6974 = vpop.permute.xlu0 %6973
        %v6978 = vlaneseq
        %v6979 = vshrl.u32 %v6978, 7
        %v6980 = vsub.s32 0, %v6979
        %v6981 = vrot.slane %v6969, %v6980
        %v6982 = vlaneseq
        %v6983 = vshrl.u32 %v6982, 7
        %v6984 = vsub.s32 4, %v6983
        %v6985 = vrot.slane %v6969, %v6984
        %v6986 = vlaneseq
        %v6987 = vshrl.u32 %v6986, 7
        %v6988 = vsub.s32 0, %v6987
        %v6989 = vrot.slane %v6970, %v6988
        %v6993 = vlaneseq
        %v6994 = vshrl.u32 %v6993, 7
        %v6995 = vsub.s32 0, %v6994
        %v6996 = vrot.slane %v6981, %v6995
        %v6997 = vlaneseq
        %v6998 = vshrl.u32 %v6997, 7
        %v6999 = vsub.s32 0, %v6998
        %v7000 = vrot.slane %v6985, %v6999
        %v7001 = vlaneseq
        %v7002 = vshrl.u32 %v7001, 7
        %v7003 = vsub.s32 0, %v7002
        %v7004 = vrot.slane %v6989, %v7003
        %v7005 = vmul.f32 %v6974, %v6996
        %v7006 = vmul.f32 %v6974, %v7000
        %v7007 = vmul.f32 %v6974, %v7004
        %7008 = vset.pattern.permute.xlu0 1
        %7009 = vperm.xlu0 %7008, %v269
        %v7010 = vpop.permute.xlu0 %7009
        %v7012 = vlaneseq
        %v7013 = vshrl.u32 %v7012, 7
        %v7014 = vsub.s32 1, %v7013
        %v7015 = vrot.slane %v6969, %v7014
        %v7016 = vlaneseq
        %v7017 = vshrl.u32 %v7016, 7
        %v7018 = vsub.s32 5, %v7017
        %v7019 = vrot.slane %v6969, %v7018
        %v7020 = vlaneseq
        %v7021 = vshrl.u32 %v7020, 7
        %v7022 = vsub.s32 1, %v7021
        %v7023 = vrot.slane %v6970, %v7022
        %v7027 = vlaneseq
        %v7028 = vshrl.u32 %v7027, 7
        %v7029 = vsub.s32 1, %v7028
        %v7030 = vrot.slane %v7015, %v7029
        %v7031 = vlaneseq
        %v7032 = vshrl.u32 %v7031, 7
        %v7033 = vsub.s32 1, %v7032
        %v7034 = vrot.slane %v7019, %v7033
        %v7035 = vlaneseq
        %v7036 = vshrl.u32 %v7035, 7
        %v7037 = vsub.s32 1, %v7036
        %v7038 = vrot.slane %v7023, %v7037
        %v7039 = vmul.f32 %v7010, %v7030
        %v7040 = vmul.f32 %v7010, %v7034
        %v7041 = vmul.f32 %v7010, %v7038
        %v7042 = vadd.f32 %v7005, %v7039
        %v7043 = vadd.f32 %v7006, %v7040
        %v7044 = vadd.f32 %v7007, %v7041
        %7045 = vset.pattern.permute.xlu0 2
        %7046 = vperm.xlu0 %7045, %v269
        %v7047 = vpop.permute.xlu0 %7046
        %v7049 = vlaneseq
        %v7050 = vshrl.u32 %v7049, 7
        %v7051 = vsub.s32 2, %v7050
        %v7052 = vrot.slane %v6969, %v7051
        %v7053 = vlaneseq
        %v7054 = vshrl.u32 %v7053, 7
        %v7055 = vsub.s32 6, %v7054
        %v7056 = vrot.slane %v6969, %v7055
        %v7057 = vlaneseq
        %v7058 = vshrl.u32 %v7057, 7
        %v7059 = vsub.s32 2, %v7058
        %v7060 = vrot.slane %v6970, %v7059
        %v7064 = vlaneseq
        %v7065 = vshrl.u32 %v7064, 7
        %v7066 = vsub.s32 2, %v7065
        %v7067 = vrot.slane %v7052, %v7066
        %v7068 = vlaneseq
        %v7069 = vshrl.u32 %v7068, 7
        %v7070 = vsub.s32 2, %v7069
        %v7071 = vrot.slane %v7056, %v7070
        %v7072 = vlaneseq
        %v7073 = vshrl.u32 %v7072, 7
        %v7074 = vsub.s32 2, %v7073
        %v7075 = vrot.slane %v7060, %v7074
        %v7076 = vmul.f32 %v7047, %v7067
        %v7077 = vmul.f32 %v7047, %v7071
        %v7078 = vmul.f32 %v7047, %v7075
        %v7079 = vadd.f32 %v7042, %v7076
        %v7080 = vadd.f32 %v7043, %v7077
        %v7081 = vadd.f32 %v7044, %v7078
        %7082 = vset.pattern.permute.xlu0 3
        %7083 = vperm.xlu0 %7082, %v269
        %v7084 = vpop.permute.xlu0 %7083
        %v7086 = vlaneseq
        %v7087 = vshrl.u32 %v7086, 7
        %v7088 = vsub.s32 3, %v7087
        %v7089 = vrot.slane %v6969, %v7088
        %v7090 = vlaneseq
        %v7091 = vshrl.u32 %v7090, 7
        %v7092 = vsub.s32 7, %v7091
        %v7093 = vrot.slane %v6969, %v7092
        %v7094 = vlaneseq
        %v7095 = vshrl.u32 %v7094, 7
        %v7096 = vsub.s32 3, %v7095
        %v7097 = vrot.slane %v6970, %v7096
        %v7101 = vlaneseq
        %v7102 = vshrl.u32 %v7101, 7
        %v7103 = vsub.s32 3, %v7102
        %v7104 = vrot.slane %v7089, %v7103
        %v7105 = vlaneseq
        %v7106 = vshrl.u32 %v7105, 7
        %v7107 = vsub.s32 3, %v7106
        %v7108 = vrot.slane %v7093, %v7107
        %v7109 = vlaneseq
        %v7110 = vshrl.u32 %v7109, 7
        %v7111 = vsub.s32 3, %v7110
        %v7112 = vrot.slane %v7097, %v7111
        %v7113 = vmul.f32 %v7084, %v7104
        %v7114 = vmul.f32 %v7084, %v7108
        %v7115 = vmul.f32 %v7084, %v7112
        %v7116 = vadd.f32 %v7079, %v7113
        %v7117 = vadd.f32 %v7080, %v7114
        %v7118 = vadd.f32 %v7081, %v7115
        %7120 = vset.pattern.permute.xlu0 0
        %7121 = vperm.xlu0 %7120, %v270
        %v7122 = vpop.permute.xlu0 %7121
        %v7124 = vadd.f32 %v7116, %v7122
        %v7125 = vadd.f32 %v7117, %v7122
        %v7126 = vadd.f32 %v7118, %v7122
        %v7127 = vld [vmem:[#allocation2 + $0x1c] sm:$0xff]
        %v7128 = vld [vmem:[#allocation2 + $0x24] sm:$0xff]
        %v7132 = vcombine.low %v7124, %v7125
        %7133 = vrot.lane.b32.xlu0 %v7132, 80
        %v7134 = vpop.permute.xlu0 %7133
        %7135 = vrot.lane.b32.xlu0 %v7126, 80
        %v7136 = vpop.permute.xlu0 %7135
        %v7137 = vrot.slane %v7134, 4
        %v7138 = vrot.slane %v7136, 4
        %v7139 = vsel %vm1016, %v7137, %v7134
        %v7140 = vsel %vm516, %v7137, %v7138
        %v7141 = vsel %vm1016, %v7140, %v7136
        %v7144 = vmul.f32 %v7127, %v7139
        %v7145 = vmul.f32 %v7128, %v7141
        %7148 = vrot.lane.b32.xlu0 %v7144, 48
        %v7149 = vpop.permute.xlu0 %7148
        %7150 = vrot.lane.b32.xlu0 %v7145, 48
        %v7151 = vpop.permute.xlu0 %7150
        %v7152 = vrot.slane %v7149, 4
        %v7153 = vrot.slane %v7151, 4
        %v7154 = vsel %vm516, %v7152, %v7153
        %v7155 = vsel %vm5109, %v7149, %v7154
        %v7156 = vsel %vm5109, %v7151, %v7153
        %7159 = vst [vmem:[%s244] sm:$0xff] %v7155
        %7160 = vst [vmem:[%s244 + $0x8] sm:$0xf] %v7156
        %s7161 = sand.u32 %s169, 1
        %s7162 = scalar_lea.sflag [#allocation6], %s7161
        %s7163 = sand.u32 %s169, 1
        %s7164 = smul.addr %s7163, 12
        %s7165 = scalar_lea.vmem [#allocation5], %s7164
        // Predicated region
        $region49: #{tpu_custom_call.1} parent=43 // pred_check
          %p7166 = pneg %p179
        $region50: #{tpu_custom_call.1} parent=43 // pred_check_branch
          %7168 = sbr.rel (%p7166) target = $region52
        $region51: #{tpu_custom_call.1} parent=43 // pred_region
          %s7169 = smul.u32 3, %s26
          %s7171 = ssub.s32 192, 192
          %7172 = vsyncadd %s7162, %s7171
          %s7173 = smul.addr %s25, 6
          %s7174 = sadd.s32 %s7169, %s7173
          %s7175 = smul.addr %s7174, 64
          %s7176 = scalar_lea.hbm %s7, %s7175
          %s7178 = sshll.u32 %s7165, 4
          %s7179 = int_to_ptr.vmem [resolvable:$true] %s7178
          %7181 = dma.vmem_to_hbm [thread:$0]  %s7179, 192, %s7176, %s7162
        $region52: #{tpu_custom_call.1} parent=43 // pred_fallthru
          _
      $region44: #{tpu_custom_call.1} parent=5 // pred_fallthru
        _
      %p7182 = scmp.le.s32.totalorder 2, %s16
      // Predicated region
      $region53: #{tpu_custom_call.1} parent=5 // pred_check
        %p7183 = pneg %p7182
      $region54: #{tpu_custom_call.1} parent=5 // pred_check_branch
        %7185 = sbr.rel (%p7183) target = $region56
      $region55: #{tpu_custom_call.1} parent=5 // pred_region
        %s7186 = ssub.s32 %s16, 2
        // Predicated region
        $region57: #{tpu_custom_call.1} parent=55 // pred_check
          %p7187 = pneg %p185
        $region58: #{tpu_custom_call.1} parent=55 // pred_check_branch
          %7189 = sbr.rel (%p7187) target = $region60
        $region59: #{tpu_custom_call.1} parent=55 // pred_region
          %s7190 = sand.u32 %s170, 1
          %s7191 = scalar_lea.sflag [#allocation6], %s7190
          %s7192 = sand.u32 %s170, 1
          %s7193 = smul.addr %s7192, 12
          %s7194 = scalar_lea.vmem [#allocation5], %s7193
          %7195 = dma.done %s7191, 192
        $region60: #{tpu_custom_call.1} parent=55 // pred_fallthru
          _
      $region56: #{tpu_custom_call.1} parent=5 // pred_fallthru
        _
    $region6: #{tpu_custom_call.1} parent=1 // loop_footer
      %s20 = sadd.s32 1, %s16
    $region7: #{tpu_custom_call.1} parent=1 // loop_footer_branch
      %15 = sbr.rel target = $region3
    $region8: #{tpu_custom_call.1} parent=1 // loop_exit
      _
    %7196 = vsyncpa [#allocation6], 1
    %s7197 = scalar_lea.sflag [#allocation6], 1
    %7198 = vsyncpa %s7197, 1
  %7199 = vsyncmov [#allocation4]
  %s7200 = vpop.sfrf %7199
  %p7201 = scmp.eq.s32.totalorder %s7200, 0
  %p7202 = pneg %p7201
  %7204 = shalt.err (%p7202)

</llo_original>
